<compile_context>
chip_gen: v7x
topology: tpu7x:2x2x1
jax: 0.10.0
libtpu: 0.0.40
codegen_flags: <defaults>
</compile_context>

<pallas_src>
import functools

import jax
import jax.numpy as jnp
from jax.experimental import pallas as pl
from jax.experimental.pallas import tpu as pltpu

TM_CAP = 512  # maximum row tile


# --------------------------------------------------------------------------
# small helpers
# --------------------------------------------------------------------------
def _round_up(x, m):
    return ((x + m - 1) // m) * m


def _choose_tm(m, cap=TM_CAP):
    """Row tile: big tiles for big M, no gross padding for tiny M, and >=2 grid
    steps whenever possible so the parallel axis can shard across 2 TCs (v7x)."""
    if m <= 16:
        return 16
    return min(cap, _round_up((m + 1) // 2, 16))


def _pad_rows(x, tm):
    m = x.shape[0]
    mp = _round_up(m, tm)
    if mp != m:
        x = jnp.pad(x, ((0, mp - m), (0, 0)))
    return x


def _cparams():
    return pltpu.CompilerParams(
        dimension_semantics=("parallel",),
        vmem_limit_bytes=32 * 1024 * 1024,
    )


# --------------------------------------------------------------------------
# Pallas kernels
# --------------------------------------------------------------------------
def _mm_fused_kernel(*refs, act, with_residual, with_stats):
    """out = act((A @ B) * scale + shift [+ residual]); optionally also emits
    per-channel sum / sum-of-squares of the raw A @ B product (BN statistics)."""
    if with_residual:
        a_ref, b_ref, scale_ref, shift_ref, res_ref = refs[:5]
        out_refs = refs[5:]
    else:
        a_ref, b_ref, scale_ref, shift_ref = refs[:4]
        res_ref = None
        out_refs = refs[4:]
    o_ref = out_refs[0]

    # bf16 x bf16 MXU matmul, f32 accumulation.
    acc = jnp.dot(a_ref[...], b_ref[...], preferred_element_type=jnp.float32)

    if with_stats:
        # Padded rows of A are all-zero -> contribute 0 to both sums (exact stats
        # because the BN convs have no bias).
        sum_ref, sq_ref = out_refs[1], out_refs[2]
        sum_ref[...] = jnp.sum(acc, axis=0, keepdims=True)[None]
        sq_ref[...] = jnp.sum(acc * acc, axis=0, keepdims=True)[None]

    y = acc * scale_ref[...] + shift_ref[...]
    if with_residual:
        y = y + res_ref[...]
    if act == "relu":
        y = jnp.maximum(y, 0.0)
    elif act == "tanh":
        y = jnp.tanh(y)
    o_ref[...] = y


def _affine_act_kernel(x_ref, scale_ref, shift_ref, o_ref, *, act):
    y = x_ref[...] * scale_ref[...] + shift_ref[...]
    if act == "relu":
        y = jnp.maximum(y, 0.0)
    elif act == "tanh":
        y = jnp.tanh(y)
    o_ref[...] = y


def _vq_kernel(z_ref, cb_ref, cb2_ref, q_ref, idx_ref):
    z = z_ref[...]                                   # (TM, D) f32
    cb = cb_ref[...]                                 # (K, D) f32
    scores = jax.lax.dot_general(z, cb, (((1,), (1,)), ((), ())),
                                 preferred_element_type=jnp.float32)   # (TM, K)
    # |z|^2 dropped: per-row constant, argmin over codes unchanged.
    d2 = cb2_ref[...] - 2.0 * scores                 # (TM, K)
    kk = d2.shape[1]
    iota = jax.lax.broadcasted_iota(jnp.int32, d2.shape, 1)
    dmin = jnp.min(d2, axis=-1, keepdims=True)
    idx = jnp.min(jnp.where(d2 <= dmin, iota, kk), axis=-1, keepdims=True)  # first min
    onehot = (iota == idx).astype(jnp.float32)       # (TM, K)
    q_ref[...] = jnp.dot(onehot, cb, preferred_element_type=jnp.float32)
    idx_ref[...] = idx.astype(jnp.int32)


# --------------------------------------------------------------------------
# Pallas wrappers
# --------------------------------------------------------------------------
def matmul_fused(a, b, scale, shift, *, act="none", residual=None, with_stats=False):
    """a: (M, K) [bf16], b: (K, N) [bf16] -> f32 (M, N) with fused epilogue."""
    m, k = a.shape
    n = b.shape[1]
    tm = _choose_tm(m)
    a_p = _pad_rows(a, tm)
    mp = a_p.shape[0]
    ntiles = mp // tm

    inputs = [a_p, b,
              scale.reshape(1, n).astype(jnp.float32),
              shift.reshape(1, n).astype(jnp.float32)]
    in_specs = [
        pl.BlockSpec((tm, k), lambda i: (i, 0)),
        pl.BlockSpec((k, n), lambda i: (0, 0)),
        pl.BlockSpec((1, n), lambda i: (0, 0)),
        pl.BlockSpec((1, n), lambda i: (0, 0)),
    ]
    if residual is not None:
        inputs.append(_pad_rows(residual.astype(jnp.float32), tm))
        in_specs.append(pl.BlockSpec((tm, n), lambda i: (i, 0)))

    out_shapes = [jax.ShapeDtypeStruct((mp, n), jnp.float32)]
    out_specs = [pl.BlockSpec((tm, n), lambda i: (i, 0))]
    if with_stats:
        for _ in range(2):  # per-tile partial sum / sum-of-squares (race-free, parallel)
            out_shapes.append(jax.ShapeDtypeStruct((ntiles, 1, n), jnp.float32))
            out_specs.append(pl.BlockSpec((1, 1, n), lambda i: (i, 0, 0)))

    outs = pl.pallas_call(
        functools.partial(_mm_fused_kernel, act=act,
                          with_residual=residual is not None,
                          with_stats=with_stats),
        out_shape=tuple(out_shapes),
        grid=(ntiles,),
        in_specs=in_specs,
        out_specs=tuple(out_specs),
        compiler_params=_cparams(),
    )(*inputs)

    out = outs[0][:m]
    if with_stats:
        ch_sum = jnp.sum(outs[1].reshape(ntiles, n), axis=0)
        ch_sq = jnp.sum(outs[2].reshape(ntiles, n), axis=0)
        return out, (ch_sum, ch_sq)
    return out


def affine_act(x, scale, shift, act="none"):
    """x: (M, C) f32; y = act(x * scale + shift), per-channel scale/shift."""
    m, c = x.shape
    tm = _choose_tm(m)
    x_p = _pad_rows(x, tm)
    mp = x_p.shape[0]
    out = pl.pallas_call(
        functools.partial(_affine_act_kernel, act=act),
        out_shape=jax.ShapeDtypeStruct((mp, c), jnp.float32),
        grid=(mp // tm,),
        in_specs=[
            pl.BlockSpec((tm, c), lambda i: (i, 0)),
            pl.BlockSpec((1, c), lambda i: (0, 0)),
            pl.BlockSpec((1, c), lambda i: (0, 0)),
        ],
        out_specs=pl.BlockSpec((tm, c), lambda i: (i, 0)),
        compiler_params=_cparams(),
    )(x_p, scale.reshape(1, c).astype(jnp.float32),
      shift.reshape(1, c).astype(jnp.float32))
    return out[:m]


def vq_quantize(z_flat, codebook):
    """z_flat: (M, D), codebook: (K, D) -> quantized (M, D) f32, indices (M,)."""
    m, d = z_flat.shape
    kk = codebook.shape[0]
    tm = _choose_tm(m)
    z_p = _pad_rows(z_flat.astype(jnp.float32), tm)
    mp = z_p.shape[0]
    cb = codebook.astype(jnp.float32)
    cb2 = jnp.sum(cb * cb, axis=-1).reshape(1, kk)      # hoisted out of the kernel
    q, idx = pl.pallas_call(
        _vq_kernel,
        out_shape=(jax.ShapeDtypeStruct((mp, d), jnp.float32),
                   jax.ShapeDtypeStruct((mp, 1), jnp.int32)),
        grid=(mp // tm,),
        in_specs=[
            pl.BlockSpec((tm, d), lambda i: (i, 0)),
            pl.BlockSpec((kk, d), lambda i: (0, 0)),
            pl.BlockSpec((1, kk), lambda i: (0, 0)),
        ],
        out_specs=(pl.BlockSpec((tm, d), lambda i: (i, 0)),
                   pl.BlockSpec((tm, 1), lambda i: (i, 0))),
        compiler_params=_cparams(),
    )(z_p, cb, cb2)
    return q[:m], idx[:m, 0]


# --------------------------------------------------------------------------
# JAX glue: im2col / conv / deconv / batchnorm wrappers (NHWC)
# --------------------------------------------------------------------------
def im2col(x, kh, kw, stride, pad):
    x = jnp.pad(x, ((0, 0), (pad, pad), (pad, pad), (0, 0)))
    b, hp, wp, c = x.shape
    ho = (hp - kh) // stride + 1
    wo = (wp - kw) // stride + 1
    cols = []
    for i in range(kh):
        for j in range(kw):
            cols.append(x[:, i:i + ho * stride:stride, j:j + wo * stride:stride, :])
    patches = jnp.stack(cols, axis=-2)                  # (B, Ho, Wo, kh*kw, C)
    return patches.reshape(b * ho * wo, kh * kw * c), (b, ho, wo)


def conv2d(x, w_oihw, bias, stride, pad, *, pre_relu=False, act="none",
           residual=None, with_stats=False):
    o, i, kh, kw = w_oihw.shape
    xs = x.astype(jnp.bfloat16)           # bf16 MXU operands; f32 accumulation in-kernel
    if pre_relu:
        # ReLU folded into the XLA patch-gather fusion -> no standalone Pallas
        # elementwise pass / no extra HBM round trip for the pre-activation.
        xs = jnp.maximum(xs, 0)
    patches, (b, ho, wo) = im2col(xs, kh, kw, stride, pad)
    w_mat = jnp.transpose(w_oihw, (2, 3, 1, 0)).reshape(kh * kw * i, o)
    w_mat = w_mat.astype(jnp.bfloat16)
    scale = jnp.ones((o,), jnp.float32)
    shift = bias if bias is not None else jnp.zeros((o,), jnp.float32)
    res_flat = residual.reshape(-1, o) if residual is not None else None
    outs = matmul_fused(patches, w_mat, scale, shift, act=act,
                        residual=res_flat, with_stats=with_stats)
    if with_stats:
        y, stats = outs
        return y.reshape(b, ho, wo, o), stats
    return outs.reshape(b, ho, wo, o)


def _dilate(x, s):
    if s == 1:
        return x
    b, h, w, c = x.shape
    y = jnp.zeros((b, h * s - (s - 1), w * s - (s - 1), c), x.dtype)
    return y.at[:, ::s, ::s, :].set(x)


def conv_transpose2d(x, w_iohw, bias, stride, pad, **kwargs):
    # ConvTranspose2d == dilate-by-stride, pad by (k-1-pad), conv with flipped kernel.
    _, _, kh, _ = w_iohw.shape
    xd = _dilate(x, stride)
    w_oihw = jnp.transpose(jnp.flip(w_iohw, axis=(2, 3)), (1, 0, 2, 3))   # (O, I, kh, kw)
    return conv2d(xd, w_oihw, bias, stride=1, pad=kh - 1 - pad, **kwargs)


def conv_bn_relu(x, w, gamma, beta_p, *, stride, pad, transpose=False, eps=1e-5):
    """Conv2dNormActivation (train-mode BatchNorm2d, ReLU). BN statistics are
    produced as fused side outputs of the conv matmul kernel."""
    conv = conv_transpose2d if transpose else conv2d
    y, (s1, s2) = conv(x, w, None, stride, pad, with_stats=True)
    b, hh, ww, c = y.shape
    count = b * hh * ww
    mean = s1 / count
    var = s2 / count - mean * mean                       # biased variance (train mode)
    scale = gamma * jax.lax.rsqrt(var + eps)
    shift = beta_p - mean * scale
    yf = affine_act(y.reshape(-1, c), scale, shift, act="relu")
    return yf.reshape(b, hh, ww, c)


def resblock(x, p):
    # TODO(synk): ResBlock definition not provided; classic VQ-VAE block
    #             x + Conv1x1(ReLU(Conv3x3(ReLU(x)))) is assumed.
    r = conv2d(x, p["w1"], p["b1"], stride=1, pad=1, pre_relu=True, act="relu")
    return conv2d(r, p["w2"], p["b2"], stride=1, pad=0, residual=x)


# --------------------------------------------------------------------------
# Parameters and full VQ-VAE forward
# --------------------------------------------------------------------------
def init_params(key, C=128, K=64, num_blocks=2):
    keys = list(jax.random.split(key, 16))
    ki = iter(keys)

    def conv_w(o, i, kh, kw):
        fan_in = i * kh * kw
        return jax.random.normal(next(ki), (o, i, kh, kw), jnp.float32) / jnp.sqrt(fan_in)

    def res_params():
        return dict(w1=conv_w(C, C, 3, 3), b1=jnp.zeros((C,), jnp.float32),
                    w2=conv_w(C, C, 1, 1), b2=jnp.zeros((C,), jnp.float32))

    p = {}
    p["enc_conv1_w"] = conv_w(C, 3, 4, 4)
    p["enc_bn1_g"], p["enc_bn1_b"] = jnp.ones((C,), jnp.float32), jnp.zeros((C,), jnp.float32)
    p["enc_conv2_w"] = conv_w(C, C, 4, 4)
    p["enc_bn2_g"], p["enc_bn2_b"] = jnp.ones((C,), jnp.float32), jnp.zeros((C,), jnp.float32)
    p["enc_res"] = [res_params() for _ in range(num_blocks)]
    # codebook init: uniform(-1/code_size, 1/code_size) as in the reference
    p["codebook"] = jax.random.uniform(next(ki), (K, C), jnp.float32,
                                       minval=-1.0 / K, maxval=1.0 / K)
    p["dec_res"] = [res_params() for _ in range(num_blocks)]
    # ConvTranspose2d weights stored in PyTorch layout (in, out, kh, kw)
    p["dec_tconv1_w"] = jnp.transpose(conv_w(C, C, 4, 4), (1, 0, 2, 3))
    p["dec_bn_g"], p["dec_bn_b"] = jnp.ones((C,), jnp.float32), jnp.zeros((C,), jnp.float32)
    p["dec_tconv2_w"] = jnp.transpose(conv_w(3, C, 4, 4), (1, 0, 2, 3))
    p["dec_tconv2_b"] = jnp.zeros((3,), jnp.float32)
    return p


def vqvae_forward(params, x_nchw, beta=1.0):
    x = jnp.transpose(x_nchw, (0, 2, 3, 1)).astype(jnp.float32)   # NCHW -> NHWC

    # ---- encoder: CNA(3->C) -> CNA(C->C) -> ResBlock x N ----
    h = conv_bn_relu(x, params["enc_conv1_w"], params["enc_bn1_g"], params["enc_bn1_b"],
                     stride=2, pad=1)
    h = conv_bn_relu(h, params["enc_conv2_w"], params["enc_bn2_g"], params["enc_bn2_b"],
                     stride=2, pad=1)
    for rp in params["enc_res"]:
        h = resblock(h, rp)
    z = h                                                         # (B, Hl, Wl, C)

    # ---- vector quantization (Pallas kernel, tiled over M) ----
    b, hl, wl, c = z.shape
    q_flat, _idx = vq_quantize(z.reshape(-1, c), params["codebook"])
    e = q_flat.reshape(b, hl, wl, c)
    e_st = e  # straight-through estimator: forward value equals e

    # ---- decoder: ResBlock x N -> tCNA(C->C) -> tConv(C->3)+bias -> Tanh ----
    d = e_st
    for rp in params["dec_res"]:
        d = resblock(d, rp)
    d = conv_bn_relu(d, params["dec_tconv1_w"], params["dec_bn_g"], params["dec_bn_b"],
                     stride=2, pad=1, transpose=True)
    d = conv_transpose2d(d, params["dec_tconv2_w"], params["dec_tconv2_b"],
                         stride=2, pad=1, act="tanh")   # bias + Tanh fused in epilogue

    x_tilde = jnp.transpose(d, (0, 3, 1, 2))            # back to NCHW
    mse = jnp.mean((z - e) ** 2)
    vq_loss = mse                        # detach is gradient-only; forward value identical
    commitment_loss = beta * mse
    return x_tilde, vq_loss, commitment_loss


if __name__ == "__main__":
    key = jax.random.PRNGKey(0)
    pkey, xkey = jax.random.split(key)
    # Small but structurally faithful config: out_channels = code_dim = 128
    # keeps activations lane-dense; code_size = 64; 2 residual blocks.
    params = init_params(pkey, C=128, K=64, num_blocks=2)
    # input expected in [-1, 1] range, NCHW, 3 channels
    x = jax.random.uniform(xkey, (2, 3, 16, 16), jnp.float32, minval=-1.0, maxval=1.0)

    fwd = jax.jit(vqvae_forward)
    x_tilde, vq_loss, commitment_loss = fwd(params, x)
    jax.block_until_ready((x_tilde, vq_loss, commitment_loss))
    assert x_tilde.shape == (2, 3, 16, 16)
    assert vq_loss.shape == () and commitment_loss.shape == ()
    print("KERNEL_OK")
</pallas_src>

<mosaic_0001>
module attributes {stable_mosaic.version = 11 : i64} {
  func.func @_mm_fused_kernel(%arg0: i32, %arg1: memref<64x48xbf16, #tpu.memory_space<vmem>>, %arg2: memref<48x128xbf16, #tpu.memory_space<vmem>>, %arg3: memref<1x128xf32, #tpu.memory_space<vmem>>, %arg4: memref<1x128xf32, #tpu.memory_space<vmem>>, %arg5: memref<64x128xf32, #tpu.memory_space<vmem>>, %arg6: memref<1x1x128xf32, #tpu.memory_space<vmem>>, %arg7: memref<1x1x128xf32, #tpu.memory_space<vmem>>) attributes {dimension_semantics = [#tpu.dimension_semantics<parallel>], iteration_bounds = array<i64: 2>, scalar_prefetch = 0 : i64, scratch_operands = 0 : i64, tpu.core_type = #tpu.core_type<tc>, window_params = [{transform_indices = @transform_0, window_bounds = array<i64: 64, 48>}, {pipeline_mode = #tpu.pipeline_mode<synchronous>, transform_indices = @transform_1, window_bounds = array<i64: 48, 128>}, {pipeline_mode = #tpu.pipeline_mode<synchronous>, transform_indices = @transform_2, window_bounds = array<i64: 1, 128>}, {pipeline_mode = #tpu.pipeline_mode<synchronous>, transform_indices = @transform_3, window_bounds = array<i64: 1, 128>}, {transform_indices = @transform_4, window_bounds = array<i64: 64, 128>}, {transform_indices = @transform_5, window_bounds = array<i64: 1, 1, 128>}, {transform_indices = @transform_6, window_bounds = array<i64: 1, 1, 128>}]} {
    %c0 = arith.constant 0 : index
    %c0_0 = arith.constant 0 : index
    %0 = vector.load %arg1[%c0, %c0_0] : memref<64x48xbf16, #tpu.memory_space<vmem>>, vector<64x48xbf16>
    %c0_1 = arith.constant 0 : index
    %c0_2 = arith.constant 0 : index
    %1 = vector.load %arg2[%c0_1, %c0_2] : memref<48x128xbf16, #tpu.memory_space<vmem>>, vector<48x128xbf16>
    %cst = arith.constant dense<0.000000e+00> : vector<64x128xf32>
    %2 = tpu.matmul %0, %1, %cst {dimension_numbers = #tpu.dot_dimension_numbers<[1], [0], [0], [1], [0, 0, 1, 1], [], []>} : vector<64x48xbf16>, vector<48x128xbf16>, vector<64x128xf32> -> vector<64x128xf32>
    %cst_3 = arith.constant dense<0.000000e+00> : vector<128xf32>
    %3 = vector.multi_reduction <add>, %2, %cst_3 [0] : vector<64x128xf32> to vector<128xf32>
    %4 = vector.shape_cast %3 : vector<128xf32> to vector<1x128xf32>
    %5 = vector.shape_cast %4 : vector<1x128xf32> to vector<1x1x128xf32>
    %c0_4 = arith.constant 0 : index
    %c0_5 = arith.constant 0 : index
    %c0_6 = arith.constant 0 : index
    %6 = vector.load %arg6[%c0_4, %c0_5, %c0_6] : memref<1x1x128xf32, #tpu.memory_space<vmem>>, vector<1x1x128xf32>
    tpu.vector_store %arg6[%c0_4, %c0_5, %c0_6], %5 {strides = array<i32>} : memref<1x1x128xf32, #tpu.memory_space<vmem>>, vector<1x1x128xf32>,
    %7 = arith.mulf %2, %2 : vector<64x128xf32>
    %cst_7 = arith.constant dense<0.000000e+00> : vector<128xf32>
    %8 = vector.multi_reduction <add>, %7, %cst_7 [0] : vector<64x128xf32> to vector<128xf32>
    %9 = vector.shape_cast %8 : vector<128xf32> to vector<1x128xf32>
    %10 = vector.shape_cast %9 : vector<1x128xf32> to vector<1x1x128xf32>
    %c0_8 = arith.constant 0 : index
    %c0_9 = arith.constant 0 : index
    %c0_10 = arith.constant 0 : index
    %11 = vector.load %arg7[%c0_8, %c0_9, %c0_10] : memref<1x1x128xf32, #tpu.memory_space<vmem>>, vector<1x1x128xf32>
    tpu.vector_store %arg7[%c0_8, %c0_9, %c0_10], %10 {strides = array<i32>} : memref<1x1x128xf32, #tpu.memory_space<vmem>>, vector<1x1x128xf32>,
    %c0_11 = arith.constant 0 : index
    %c0_12 = arith.constant 0 : index
    %12 = vector.load %arg3[%c0_11, %c0_12] : memref<1x128xf32, #tpu.memory_space<vmem>>, vector<1x128xf32>
    %13 = vector.broadcast %12 : vector<1x128xf32> to vector<64x128xf32>
    %14 = arith.mulf %2, %13 : vector<64x128xf32>
    %c0_13 = arith.constant 0 : index
    %c0_14 = arith.constant 0 : index
    %15 = vector.load %arg4[%c0_13, %c0_14] : memref<1x128xf32, #tpu.memory_space<vmem>>, vector<1x128xf32>
    %16 = vector.broadcast %15 : vector<1x128xf32> to vector<64x128xf32>
    %17 = arith.addf %14, %16 : vector<64x128xf32>
    %c0_15 = arith.constant 0 : index
    %c0_16 = arith.constant 0 : index
    %18 = vector.load %arg5[%c0_15, %c0_16] : memref<64x128xf32, #tpu.memory_space<vmem>>, vector<64x128xf32>
    tpu.vector_store %arg5[%c0_15, %c0_16], %17 {strides = array<i32>} : memref<64x128xf32, #tpu.memory_space<vmem>>, vector<64x128xf32>,
    return
  }
  func.func @transform_0(%arg0: i32) -> (i32, i32) {
    %c0_i32 = arith.constant 0 : i32
    %c0_i32_0 = arith.constant 0 : i32
    return %arg0, %c0_i32 : i32, i32
  }
  func.func @transform_1(%arg0: i32) -> (i32, i32) {
    %c0_i32 = arith.constant 0 : i32
    %c0_i32_0 = arith.constant 0 : i32
    %c0_i32_1 = arith.constant 0 : i32
    return %c0_i32, %c0_i32_0 : i32, i32
  }
  func.func @transform_2(%arg0: i32) -> (i32, i32) {
    %c0_i32 = arith.constant 0 : i32
    %c0_i32_0 = arith.constant 0 : i32
    %c0_i32_1 = arith.constant 0 : i32
    return %c0_i32, %c0_i32_0 : i32, i32
  }
  func.func @transform_3(%arg0: i32) -> (i32, i32) {
    %c0_i32 = arith.constant 0 : i32
    %c0_i32_0 = arith.constant 0 : i32
    %c0_i32_1 = arith.constant 0 : i32
    return %c0_i32, %c0_i32_0 : i32, i32
  }
  func.func @transform_4(%arg0: i32) -> (i32, i32) {
    %c0_i32 = arith.constant 0 : i32
    %c0_i32_0 = arith.constant 0 : i32
    return %arg0, %c0_i32 : i32, i32
  }
  func.func @transform_5(%arg0: i32) -> (i32, i32, i32) {
    %c0_i32 = arith.constant 0 : i32
    %c0_i32_0 = arith.constant 0 : i32
    %c0_i32_1 = arith.constant 0 : i32
    return %arg0, %c0_i32, %c0_i32_0 : i32, i32, i32
  }
  func.func @transform_6(%arg0: i32) -> (i32, i32, i32) {
    %c0_i32 = arith.constant 0 : i32
    %c0_i32_0 = arith.constant 0 : i32
    %c0_i32_1 = arith.constant 0 : i32
    return %arg0, %c0_i32, %c0_i32_0 : i32, i32, i32
  }
}

module attributes {stable_mosaic.version = 11 : i64} {
  func.func @_affine_act_kernel(%arg0: i32, %arg1: memref<64x128xf32, #tpu.memory_space<vmem>>, %arg2: memref<1x128xf32, #tpu.memory_space<vmem>>, %arg3: memref<1x128xf32, #tpu.memory_space<vmem>>, %arg4: memref<64x128xf32, #tpu.memory_space<vmem>>) attributes {dimension_semantics = [#tpu.dimension_semantics<parallel>], iteration_bounds = array<i64: 2>, scalar_prefetch = 0 : i64, scratch_operands = 0 : i64, tpu.core_type = #tpu.core_type<tc>, window_params = [{transform_indices = @transform_0, window_bounds = array<i64: 64, 128>}, {pipeline_mode = #tpu.pipeline_mode<synchronous>, transform_indices = @transform_1, window_bounds = array<i64: 1, 128>}, {pipeline_mode = #tpu.pipeline_mode<synchronous>, transform_indices = @transform_2, window_bounds = array<i64: 1, 128>}, {transform_indices = @transform_3, window_bounds = array<i64: 64, 128>}]} {
    %c0 = arith.constant 0 : index
    %c0_0 = arith.constant 0 : index
    %0 = vector.load %arg1[%c0, %c0_0] : memref<64x128xf32, #tpu.memory_space<vmem>>, vector<64x128xf32>
    %c0_1 = arith.constant 0 : index
    %c0_2 = arith.constant 0 : index
    %1 = vector.load %arg2[%c0_1, %c0_2] : memref<1x128xf32, #tpu.memory_space<vmem>>, vector<1x128xf32>
    %2 = vector.broadcast %1 : vector<1x128xf32> to vector<64x128xf32>
    %3 = arith.mulf %0, %2 : vector<64x128xf32>
    %c0_3 = arith.constant 0 : index
    %c0_4 = arith.constant 0 : index
    %4 = vector.load %arg3[%c0_3, %c0_4] : memref<1x128xf32, #tpu.memory_space<vmem>>, vector<1x128xf32>
    %5 = vector.broadcast %4 : vector<1x128xf32> to vector<64x128xf32>
    %6 = arith.addf %3, %5 : vector<64x128xf32>
    %cst = arith.constant 0.000000e+00 : f32
    %7 = vector.broadcast %cst : f32 to vector<64x128xf32>
    %8 = arith.maximumf %6, %7 : vector<64x128xf32>
    %c0_5 = arith.constant 0 : index
    %c0_6 = arith.constant 0 : index
    %9 = vector.load %arg4[%c0_5, %c0_6] : memref<64x128xf32, #tpu.memory_space<vmem>>, vector<64x128xf32>
    tpu.vector_store %arg4[%c0_5, %c0_6], %8 {strides = array<i32>} : memref<64x128xf32, #tpu.memory_space<vmem>>, vector<64x128xf32>,
    return
  }
  func.func @transform_0(%arg0: i32) -> (i32, i32) {
    %c0_i32 = arith.constant 0 : i32
    %c0_i32_0 = arith.constant 0 : i32
    return %arg0, %c0_i32 : i32, i32
  }
  func.func @transform_1(%arg0: i32) -> (i32, i32) {
    %c0_i32 = arith.constant 0 : i32
    %c0_i32_0 = arith.constant 0 : i32
    %c0_i32_1 = arith.constant 0 : i32
    return %c0_i32, %c0_i32_0 : i32, i32
  }
  func.func @transform_2(%arg0: i32) -> (i32, i32) {
    %c0_i32 = arith.constant 0 : i32
    %c0_i32_0 = arith.constant 0 : i32
    %c0_i32_1 = arith.constant 0 : i32
    return %c0_i32, %c0_i32_0 : i32, i32
  }
  func.func @transform_3(%arg0: i32) -> (i32, i32) {
    %c0_i32 = arith.constant 0 : i32
    %c0_i32_0 = arith.constant 0 : i32
    return %arg0, %c0_i32 : i32, i32
  }
}

module attributes {stable_mosaic.version = 11 : i64} {
  func.func @_mm_fused_kernel(%arg0: i32, %arg1: memref<16x2048xbf16, #tpu.memory_space<vmem>>, %arg2: memref<2048x128xbf16, #tpu.memory_space<vmem>>, %arg3: memref<1x128xf32, #tpu.memory_space<vmem>>, %arg4: memref<1x128xf32, #tpu.memory_space<vmem>>, %arg5: memref<16x128xf32, #tpu.memory_space<vmem>>, %arg6: memref<1x1x128xf32, #tpu.memory_space<vmem>>, %arg7: memref<1x1x128xf32, #tpu.memory_space<vmem>>) attributes {dimension_semantics = [#tpu.dimension_semantics<parallel>], iteration_bounds = array<i64: 2>, scalar_prefetch = 0 : i64, scratch_operands = 0 : i64, tpu.core_type = #tpu.core_type<tc>, window_params = [{transform_indices = @transform_0, window_bounds = array<i64: 16, 2048>}, {pipeline_mode = #tpu.pipeline_mode<synchronous>, transform_indices = @transform_1, window_bounds = array<i64: 2048, 128>}, {pipeline_mode = #tpu.pipeline_mode<synchronous>, transform_indices = @transform_2, window_bounds = array<i64: 1, 128>}, {pipeline_mode = #tpu.pipeline_mode<synchronous>, transform_indices = @transform_3, window_bounds = array<i64: 1, 128>}, {transform_indices = @transform_4, window_bounds = array<i64: 16, 128>}, {transform_indices = @transform_5, window_bounds = array<i64: 1, 1, 128>}, {transform_indices = @transform_6, window_bounds = array<i64: 1, 1, 128>}]} {
    %c0 = arith.constant 0 : index
    %c0_0 = arith.constant 0 : index
    %0 = vector.load %arg1[%c0, %c0_0] : memref<16x2048xbf16, #tpu.memory_space<vmem>>, vector<16x2048xbf16>
    %c0_1 = arith.constant 0 : index
    %c0_2 = arith.constant 0 : index
    %1 = vector.load %arg2[%c0_1, %c0_2] : memref<2048x128xbf16, #tpu.memory_space<vmem>>, vector<2048x128xbf16>
    %cst = arith.constant dense<0.000000e+00> : vector<16x128xf32>
    %2 = tpu.matmul %0, %1, %cst {dimension_numbers = #tpu.dot_dimension_numbers<[1], [0], [0], [1], [0, 0, 1, 1], [], []>} : vector<16x2048xbf16>, vector<2048x128xbf16>, vector<16x128xf32> -> vector<16x128xf32>
    %cst_3 = arith.constant dense<0.000000e+00> : vector<128xf32>
    %3 = vector.multi_reduction <add>, %2, %cst_3 [0] : vector<16x128xf32> to vector<128xf32>
    %4 = vector.shape_cast %3 : vector<128xf32> to vector<1x128xf32>
    %5 = vector.shape_cast %4 : vector<1x128xf32> to vector<1x1x128xf32>
    %c0_4 = arith.constant 0 : index
    %c0_5 = arith.constant 0 : index
    %c0_6 = arith.constant 0 : index
    %6 = vector.load %arg6[%c0_4, %c0_5, %c0_6] : memref<1x1x128xf32, #tpu.memory_space<vmem>>, vector<1x1x128xf32>
    tpu.vector_store %arg6[%c0_4, %c0_5, %c0_6], %5 {strides = array<i32>} : memref<1x1x128xf32, #tpu.memory_space<vmem>>, vector<1x1x128xf32>,
    %7 = arith.mulf %2, %2 : vector<16x128xf32>
    %cst_7 = arith.constant dense<0.000000e+00> : vector<128xf32>
    %8 = vector.multi_reduction <add>, %7, %cst_7 [0] : vector<16x128xf32> to vector<128xf32>
    %9 = vector.shape_cast %8 : vector<128xf32> to vector<1x128xf32>
    %10 = vector.shape_cast %9 : vector<1x128xf32> to vector<1x1x128xf32>
    %c0_8 = arith.constant 0 : index
    %c0_9 = arith.constant 0 : index
    %c0_10 = arith.constant 0 : index
    %11 = vector.load %arg7[%c0_8, %c0_9, %c0_10] : memref<1x1x128xf32, #tpu.memory_space<vmem>>, vector<1x1x128xf32>
    tpu.vector_store %arg7[%c0_8, %c0_9, %c0_10], %10 {strides = array<i32>} : memref<1x1x128xf32, #tpu.memory_space<vmem>>, vector<1x1x128xf32>,
    %c0_11 = arith.constant 0 : index
    %c0_12 = arith.constant 0 : index
    %12 = vector.load %arg3[%c0_11, %c0_12] : memref<1x128xf32, #tpu.memory_space<vmem>>, vector<1x128xf32>
    %13 = vector.broadcast %12 : vector<1x128xf32> to vector<16x128xf32>
    %14 = arith.mulf %2, %13 : vector<16x128xf32>
    %c0_13 = arith.constant 0 : index
    %c0_14 = arith.constant 0 : index
    %15 = vector.load %arg4[%c0_13, %c0_14] : memref<1x128xf32, #tpu.memory_space<vmem>>, vector<1x128xf32>
    %16 = vector.broadcast %15 : vector<1x128xf32> to vector<16x128xf32>
    %17 = arith.addf %14, %16 : vector<16x128xf32>
    %c0_15 = arith.constant 0 : index
    %c0_16 = arith.constant 0 : index
    %18 = vector.load %arg5[%c0_15, %c0_16] : memref<16x128xf32, #tpu.memory_space<vmem>>, vector<16x128xf32>
    tpu.vector_store %arg5[%c0_15, %c0_16], %17 {strides = array<i32>} : memref<16x128xf32, #tpu.memory_space<vmem>>, vector<16x128xf32>,
    return
  }
  func.func @transform_0(%arg0: i32) -> (i32, i32) {
    %c0_i32 = arith.constant 0 : i32
    %c0_i32_0 = arith.constant 0 : i32
    return %arg0, %c0_i32 : i32, i32
  }
  func.func @transform_1(%arg0: i32) -> (i32, i32) {
    %c0_i32 = arith.constant 0 : i32
    %c0_i32_0 = arith.constant 0 : i32
    %c0_i32_1 = arith.constant 0 : i32
    return %c0_i32, %c0_i32_0 : i32, i32
  }
  func.func @transform_2(%arg0: i32) -> (i32, i32) {
    %c0_i32 = arith.constant 0 : i32
    %c0_i32_0 = arith.constant 0 : i32
    %c0_i32_1 = arith.constant 0 : i32
    return %c0_i32, %c0_i32_0 : i32, i32
  }
  func.func @transform_3(%arg0: i32) -> (i32, i32) {
    %c0_i32 = arith.constant 0 : i32
    %c0_i32_0 = arith.constant 0 : i32
    %c0_i32_1 = arith.constant 0 : i32
    return %c0_i32, %c0_i32_0 : i32, i32
  }
  func.func @transform_4(%arg0: i32) -> (i32, i32) {
    %c0_i32 = arith.constant 0 : i32
    %c0_i32_0 = arith.constant 0 : i32
    return %arg0, %c0_i32 : i32, i32
  }
  func.func @transform_5(%arg0: i32) -> (i32, i32, i32) {
    %c0_i32 = arith.constant 0 : i32
    %c0_i32_0 = arith.constant 0 : i32
    %c0_i32_1 = arith.constant 0 : i32
    return %arg0, %c0_i32, %c0_i32_0 : i32, i32, i32
  }
  func.func @transform_6(%arg0: i32) -> (i32, i32, i32) {
    %c0_i32 = arith.constant 0 : i32
    %c0_i32_0 = arith.constant 0 : i32
    %c0_i32_1 = arith.constant 0 : i32
    return %arg0, %c0_i32, %c0_i32_0 : i32, i32, i32
  }
}

module attributes {stable_mosaic.version = 11 : i64} {
  func.func @_affine_act_kernel(%arg0: i32, %arg1: memref<16x128xf32, #tpu.memory_space<vmem>>, %arg2: memref<1x128xf32, #tpu.memory_space<vmem>>, %arg3: memref<1x128xf32, #tpu.memory_space<vmem>>, %arg4: memref<16x128xf32, #tpu.memory_space<vmem>>) attributes {dimension_semantics = [#tpu.dimension_semantics<parallel>], iteration_bounds = array<i64: 2>, scalar_prefetch = 0 : i64, scratch_operands = 0 : i64, tpu.core_type = #tpu.core_type<tc>, window_params = [{transform_indices = @transform_0, window_bounds = array<i64: 16, 128>}, {pipeline_mode = #tpu.pipeline_mode<synchronous>, transform_indices = @transform_1, window_bounds = array<i64: 1, 128>}, {pipeline_mode = #tpu.pipeline_mode<synchronous>, transform_indices = @transform_2, window_bounds = array<i64: 1, 128>}, {transform_indices = @transform_3, window_bounds = array<i64: 16, 128>}]} {
    %c0 = arith.constant 0 : index
    %c0_0 = arith.constant 0 : index
    %0 = vector.load %arg1[%c0, %c0_0] : memref<16x128xf32, #tpu.memory_space<vmem>>, vector<16x128xf32>
    %c0_1 = arith.constant 0 : index
    %c0_2 = arith.constant 0 : index
    %1 = vector.load %arg2[%c0_1, %c0_2] : memref<1x128xf32, #tpu.memory_space<vmem>>, vector<1x128xf32>
    %2 = vector.broadcast %1 : vector<1x128xf32> to vector<16x128xf32>
    %3 = arith.mulf %0, %2 : vector<16x128xf32>
    %c0_3 = arith.constant 0 : index
    %c0_4 = arith.constant 0 : index
    %4 = vector.load %arg3[%c0_3, %c0_4] : memref<1x128xf32, #tpu.memory_space<vmem>>, vector<1x128xf32>
    %5 = vector.broadcast %4 : vector<1x128xf32> to vector<16x128xf32>
    %6 = arith.addf %3, %5 : vector<16x128xf32>
    %cst = arith.constant 0.000000e+00 : f32
    %7 = vector.broadcast %cst : f32 to vector<16x128xf32>
    %8 = arith.maximumf %6, %7 : vector<16x128xf32>
    %c0_5 = arith.constant 0 : index
    %c0_6 = arith.constant 0 : index
    %9 = vector.load %arg4[%c0_5, %c0_6] : memref<16x128xf32, #tpu.memory_space<vmem>>, vector<16x128xf32>
    tpu.vector_store %arg4[%c0_5, %c0_6], %8 {strides = array<i32>} : memref<16x128xf32, #tpu.memory_space<vmem>>, vector<16x128xf32>,
    return
  }
  func.func @transform_0(%arg0: i32) -> (i32, i32) {
    %c0_i32 = arith.constant 0 : i32
    %c0_i32_0 = arith.constant 0 : i32
    return %arg0, %c0_i32 : i32, i32
  }
  func.func @transform_1(%arg0: i32) -> (i32, i32) {
    %c0_i32 = arith.constant 0 : i32
    %c0_i32_0 = arith.constant 0 : i32
    %c0_i32_1 = arith.constant 0 : i32
    return %c0_i32, %c0_i32_0 : i32, i32
  }
  func.func @transform_2(%arg0: i32) -> (i32, i32) {
    %c0_i32 = arith.constant 0 : i32
    %c0_i32_0 = arith.constant 0 : i32
    %c0_i32_1 = arith.constant 0 : i32
    return %c0_i32, %c0_i32_0 : i32, i32
  }
  func.func @transform_3(%arg0: i32) -> (i32, i32) {
    %c0_i32 = arith.constant 0 : i32
    %c0_i32_0 = arith.constant 0 : i32
    return %arg0, %c0_i32 : i32, i32
  }
}

module attributes {stable_mosaic.version = 11 : i64} {
  func.func @_mm_fused_kernel(%arg0: i32, %arg1: memref<16x128xbf16, #tpu.memory_space<vmem>>, %arg2: memref<128x128xbf16, #tpu.memory_space<vmem>>, %arg3: memref<1x128xf32, #tpu.memory_space<vmem>>, %arg4: memref<1x128xf32, #tpu.memory_space<vmem>>, %arg5: memref<16x128xf32, #tpu.memory_space<vmem>>, %arg6: memref<16x128xf32, #tpu.memory_space<vmem>>) attributes {dimension_semantics = [#tpu.dimension_semantics<parallel>], iteration_bounds = array<i64: 2>, scalar_prefetch = 0 : i64, scratch_operands = 0 : i64, tpu.core_type = #tpu.core_type<tc>, window_params = [{transform_indices = @transform_0, window_bounds = array<i64: 16, 128>}, {pipeline_mode = #tpu.pipeline_mode<synchronous>, transform_indices = @transform_1, window_bounds = array<i64: 128, 128>}, {pipeline_mode = #tpu.pipeline_mode<synchronous>, transform_indices = @transform_2, window_bounds = array<i64: 1, 128>}, {pipeline_mode = #tpu.pipeline_mode<synchronous>, transform_indices = @transform_3, window_bounds = array<i64: 1, 128>}, {transform_indices = @transform_4, window_bounds = array<i64: 16, 128>}, {transform_indices = @transform_5, window_bounds = array<i64: 16, 128>}]} {
    %c0 = arith.constant 0 : index
    %c0_0 = arith.constant 0 : index
    %0 = vector.load %arg1[%c0, %c0_0] : memref<16x128xbf16, #tpu.memory_space<vmem>>, vector<16x128xbf16>
    %c0_1 = arith.constant 0 : index
    %c0_2 = arith.constant 0 : index
    %1 = vector.load %arg2[%c0_1, %c0_2] : memref<128x128xbf16, #tpu.memory_space<vmem>>, vector<128x128xbf16>
    %cst = arith.constant dense<0.000000e+00> : vector<16x128xf32>
    %2 = tpu.matmul %0, %1, %cst {dimension_numbers = #tpu.dot_dimension_numbers<[1], [0], [0], [1], [0, 0, 1, 1], [], []>} : vector<16x128xbf16>, vector<128x128xbf16>, vector<16x128xf32> -> vector<16x128xf32>
    %c0_3 = arith.constant 0 : index
    %c0_4 = arith.constant 0 : index
    %3 = vector.load %arg3[%c0_3, %c0_4] : memref<1x128xf32, #tpu.memory_space<vmem>>, vector<1x128xf32>
    %4 = vector.broadcast %3 : vector<1x128xf32> to vector<16x128xf32>
    %5 = arith.mulf %2, %4 : vector<16x128xf32>
    %c0_5 = arith.constant 0 : index
    %c0_6 = arith.constant 0 : index
    %6 = vector.load %arg4[%c0_5, %c0_6] : memref<1x128xf32, #tpu.memory_space<vmem>>, vector<1x128xf32>
    %7 = vector.broadcast %6 : vector<1x128xf32> to vector<16x128xf32>
    %8 = arith.addf %5, %7 : vector<16x128xf32>
    %c0_7 = arith.constant 0 : index
    %c0_8 = arith.constant 0 : index
    %9 = vector.load %arg5[%c0_7, %c0_8] : memref<16x128xf32, #tpu.memory_space<vmem>>, vector<16x128xf32>
    %10 = arith.addf %8, %9 : vector<16x128xf32>
    %c0_9 = arith.constant 0 : index
    %c0_10 = arith.constant 0 : index
    %11 = vector.load %arg6[%c0_9, %c0_10] : memref<16x128xf32, #tpu.memory_space<vmem>>, vector<16x128xf32>
    tpu.vector_store %arg6[%c0_9, %c0_10], %10 {strides = array<i32>} : memref<16x128xf32, #tpu.memory_space<vmem>>, vector<16x128xf32>,
    return
  }
  func.func @transform_0(%arg0: i32) -> (i32, i32) {
    %c0_i32 = arith.constant 0 : i32
    %c0_i32_0 = arith.constant 0 : i32
    return %arg0, %c0_i32 : i32, i32
  }
  func.func @transform_1(%arg0: i32) -> (i32, i32) {
    %c0_i32 = arith.constant 0 : i32
    %c0_i32_0 = arith.constant 0 : i32
    %c0_i32_1 = arith.constant 0 : i32
    return %c0_i32, %c0_i32_0 : i32, i32
  }
  func.func @transform_2(%arg0: i32) -> (i32, i32) {
    %c0_i32 = arith.constant 0 : i32
    %c0_i32_0 = arith.constant 0 : i32
    %c0_i32_1 = arith.constant 0 : i32
    return %c0_i32, %c0_i32_0 : i32, i32
  }
  func.func @transform_3(%arg0: i32) -> (i32, i32) {
    %c0_i32 = arith.constant 0 : i32
    %c0_i32_0 = arith.constant 0 : i32
    %c0_i32_1 = arith.constant 0 : i32
    return %c0_i32, %c0_i32_0 : i32, i32
  }
  func.func @transform_4(%arg0: i32) -> (i32, i32) {
    %c0_i32 = arith.constant 0 : i32
    %c0_i32_0 = arith.constant 0 : i32
    return %arg0, %c0_i32 : i32, i32
  }
  func.func @transform_5(%arg0: i32) -> (i32, i32) {
    %c0_i32 = arith.constant 0 : i32
    %c0_i32_0 = arith.constant 0 : i32
    return %arg0, %c0_i32 : i32, i32
  }
}

module attributes {stable_mosaic.version = 11 : i64} {
  func.func @_mm_fused_kernel(%arg0: i32, %arg1: memref<16x1152xbf16, #tpu.memory_space<vmem>>, %arg2: memref<1152x128xbf16, #tpu.memory_space<vmem>>, %arg3: memref<1x128xf32, #tpu.memory_space<vmem>>, %arg4: memref<1x128xf32, #tpu.memory_space<vmem>>, %arg5: memref<16x128xf32, #tpu.memory_space<vmem>>) attributes {dimension_semantics = [#tpu.dimension_semantics<parallel>], iteration_bounds = array<i64: 2>, scalar_prefetch = 0 : i64, scratch_operands = 0 : i64, tpu.core_type = #tpu.core_type<tc>, window_params = [{transform_indices = @transform_0, window_bounds = array<i64: 16, 1152>}, {pipeline_mode = #tpu.pipeline_mode<synchronous>, transform_indices = @transform_1, window_bounds = array<i64: 1152, 128>}, {pipeline_mode = #tpu.pipeline_mode<synchronous>, transform_indices = @transform_2, window_bounds = array<i64: 1, 128>}, {pipeline_mode = #tpu.pipeline_mode<synchronous>, transform_indices = @transform_3, window_bounds = array<i64: 1, 128>}, {transform_indices = @transform_4, window_bounds = array<i64: 16, 128>}]} {
    %c0 = arith.constant 0 : index
    %c0_0 = arith.constant 0 : index
    %0 = vector.load %arg1[%c0, %c0_0] : memref<16x1152xbf16, #tpu.memory_space<vmem>>, vector<16x1152xbf16>
    %c0_1 = arith.constant 0 : index
    %c0_2 = arith.constant 0 : index
    %1 = vector.load %arg2[%c0_1, %c0_2] : memref<1152x128xbf16, #tpu.memory_space<vmem>>, vector<1152x128xbf16>
    %cst = arith.constant dense<0.000000e+00> : vector<16x128xf32>
    %2 = tpu.matmul %0, %1, %cst {dimension_numbers = #tpu.dot_dimension_numbers<[1], [0], [0], [1], [0, 0, 1, 1], [], []>} : vector<16x1152xbf16>, vector<1152x128xbf16>, vector<16x128xf32> -> vector<16x128xf32>
    %c0_3 = arith.constant 0 : index
    %c0_4 = arith.constant 0 : index
    %3 = vector.load %arg3[%c0_3, %c0_4] : memref<1x128xf32, #tpu.memory_space<vmem>>, vector<1x128xf32>
    %4 = vector.broadcast %3 : vector<1x128xf32> to vector<16x128xf32>
    %5 = arith.mulf %2, %4 : vector<16x128xf32>
    %c0_5 = arith.constant 0 : index
    %c0_6 = arith.constant 0 : index
    %6 = vector.load %arg4[%c0_5, %c0_6] : memref<1x128xf32, #tpu.memory_space<vmem>>, vector<1x128xf32>
    %7 = vector.broadcast %6 : vector<1x128xf32> to vector<16x128xf32>
    %8 = arith.addf %5, %7 : vector<16x128xf32>
    %cst_7 = arith.constant 0.000000e+00 : f32
    %9 = vector.broadcast %cst_7 : f32 to vector<16x128xf32>
    %10 = arith.maximumf %8, %9 : vector<16x128xf32>
    %c0_8 = arith.constant 0 : index
    %c0_9 = arith.constant 0 : index
    %11 = vector.load %arg5[%c0_8, %c0_9] : memref<16x128xf32, #tpu.memory_space<vmem>>, vector<16x128xf32>
    tpu.vector_store %arg5[%c0_8, %c0_9], %10 {strides = array<i32>} : memref<16x128xf32, #tpu.memory_space<vmem>>, vector<16x128xf32>,
    return
  }
  func.func @transform_0(%arg0: i32) -> (i32, i32) {
    %c0_i32 = arith.constant 0 : i32
    %c0_i32_0 = arith.constant 0 : i32
    return %arg0, %c0_i32 : i32, i32
  }
  func.func @transform_1(%arg0: i32) -> (i32, i32) {
    %c0_i32 = arith.constant 0 : i32
    %c0_i32_0 = arith.constant 0 : i32
    %c0_i32_1 = arith.constant 0 : i32
    return %c0_i32, %c0_i32_0 : i32, i32
  }
  func.func @transform_2(%arg0: i32) -> (i32, i32) {
    %c0_i32 = arith.constant 0 : i32
    %c0_i32_0 = arith.constant 0 : i32
    %c0_i32_1 = arith.constant 0 : i32
    return %c0_i32, %c0_i32_0 : i32, i32
  }
  func.func @transform_3(%arg0: i32) -> (i32, i32) {
    %c0_i32 = arith.constant 0 : i32
    %c0_i32_0 = arith.constant 0 : i32
    %c0_i32_1 = arith.constant 0 : i32
    return %c0_i32, %c0_i32_0 : i32, i32
  }
  func.func @transform_4(%arg0: i32) -> (i32, i32) {
    %c0_i32 = arith.constant 0 : i32
    %c0_i32_0 = arith.constant 0 : i32
    return %arg0, %c0_i32 : i32, i32
  }
}

module attributes {stable_mosaic.version = 11 : i64} {
  func.func @_vq_kernel(%arg0: i32, %arg1: memref<16x128xf32, #tpu.memory_space<vmem>>, %arg2: memref<64x128xf32, #tpu.memory_space<vmem>>, %arg3: memref<1x64xf32, #tpu.memory_space<vmem>>, %arg4: memref<16x128xf32, #tpu.memory_space<vmem>>, %arg5: memref<16x1xi32, #tpu.memory_space<vmem>>) attributes {dimension_semantics = [#tpu.dimension_semantics<parallel>], iteration_bounds = array<i64: 2>, scalar_prefetch = 0 : i64, scratch_operands = 0 : i64, tpu.core_type = #tpu.core_type<tc>, window_params = [{transform_indices = @transform_0, window_bounds = array<i64: 16, 128>}, {pipeline_mode = #tpu.pipeline_mode<synchronous>, transform_indices = @transform_1, window_bounds = array<i64: 64, 128>}, {pipeline_mode = #tpu.pipeline_mode<synchronous>, transform_indices = @transform_2, window_bounds = array<i64: 1, 64>}, {transform_indices = @transform_3, window_bounds = array<i64: 16, 128>}, {transform_indices = @transform_4, window_bounds = array<i64: 16, 1>}]} {
    %c0 = arith.constant 0 : index
    %c0_0 = arith.constant 0 : index
    %0 = vector.load %arg1[%c0, %c0_0] : memref<16x128xf32, #tpu.memory_space<vmem>>, vector<16x128xf32>
    %c0_1 = arith.constant 0 : index
    %c0_2 = arith.constant 0 : index
    %1 = vector.load %arg2[%c0_1, %c0_2] : memref<64x128xf32, #tpu.memory_space<vmem>>, vector<64x128xf32>
    %cst = arith.constant dense<0.000000e+00> : vector<16x64xf32>
    %2 = tpu.matmul %0, %1, %cst {dimension_numbers = #tpu.dot_dimension_numbers<[1], [1], [0], [0], [0, 0, 1, 0], [], []>} : vector<16x128xf32>, vector<64x128xf32>, vector<16x64xf32> -> vector<16x64xf32>
    %c0_3 = arith.constant 0 : index
    %c0_4 = arith.constant 0 : index
    %3 = vector.load %arg3[%c0_3, %c0_4] : memref<1x64xf32, #tpu.memory_space<vmem>>, vector<1x64xf32>
    %cst_5 = arith.constant 2.000000e+00 : f32
    %4 = vector.broadcast %cst_5 : f32 to vector<16x64xf32>
    %5 = arith.mulf %4, %2 : vector<16x64xf32>
    %6 = vector.broadcast %3 : vector<1x64xf32> to vector<16x64xf32>
    %7 = arith.subf %6, %5 : vector<16x64xf32>
    %8 = tpu.iota {dimensions = array<i32: 1>} : vector<16x64xi32>
    %cst_6 = arith.constant dense<0x7F800000> : vector<16xf32>
    %9 = vector.multi_reduction <minimumf>, %7, %cst_6 [1] : vector<16x64xf32> to vector<16xf32>
    %10 = vector.shape_cast %9 : vector<16xf32> to vector<16x1xf32>
    %11 = vector.broadcast %10 : vector<16x1xf32> to vector<16x64xf32>
    %12 = arith.cmpf ole, %7, %11 : vector<16x64xf32>
    %c64_i32 = arith.constant 64 : i32
    %13 = vector.broadcast %c64_i32 : i32 to vector<16x64xi32>
    %14 = arith.select %12, %8, %13 : vector<16x64xi1>, vector<16x64xi32>
    %cst_7 = arith.constant dense<2147483647> : vector<16xi32>
    %15 = vector.multi_reduction <minsi>, %14, %cst_7 [1] : vector<16x64xi32> to vector<16xi32>
    %16 = vector.shape_cast %15 : vector<16xi32> to vector<16x1xi32>
    %17 = vector.broadcast %16 : vector<16x1xi32> to vector<16x64xi32>
    %18 = arith.cmpi eq, %8, %17 : vector<16x64xi32>
    %19 = arith.extui %18 : vector<16x64xi1> to vector<16x64xi32>
    %20 = arith.sitofp %19 : vector<16x64xi32> to vector<16x64xf32>
    %cst_8 = arith.constant dense<0.000000e+00> : vector<16x128xf32>
    %21 = tpu.matmul %20, %1, %cst_8 {dimension_numbers = #tpu.dot_dimension_numbers<[1], [0], [0], [1], [0, 0, 1, 1], [], []>} : vector<16x64xf32>, vector<64x128xf32>, vector<16x128xf32> -> vector<16x128xf32>
    %c0_9 = arith.constant 0 : index
    %c0_10 = arith.constant 0 : index
    %22 = vector.load %arg4[%c0_9, %c0_10] : memref<16x128xf32, #tpu.memory_space<vmem>>, vector<16x128xf32>
    tpu.vector_store %arg4[%c0_9, %c0_10], %21 {strides = array<i32>} : memref<16x128xf32, #tpu.memory_space<vmem>>, vector<16x128xf32>,
    %c0_11 = arith.constant 0 : index
    %c0_12 = arith.constant 0 : index
    %23 = vector.load %arg5[%c0_11, %c0_12] : memref<16x1xi32, #tpu.memory_space<vmem>>, vector<16x1xi32>
    tpu.vector_store %arg5[%c0_11, %c0_12], %16 {strides = array<i32>} : memref<16x1xi32, #tpu.memory_space<vmem>>, vector<16x1xi32>,
    return
  }
  func.func @transform_0(%arg0: i32) -> (i32, i32) {
    %c0_i32 = arith.constant 0 : i32
    %c0_i32_0 = arith.constant 0 : i32
    return %arg0, %c0_i32 : i32, i32
  }
  func.func @transform_1(%arg0: i32) -> (i32, i32) {
    %c0_i32 = arith.constant 0 : i32
    %c0_i32_0 = arith.constant 0 : i32
    %c0_i32_1 = arith.constant 0 : i32
    return %c0_i32, %c0_i32_0 : i32, i32
  }
  func.func @transform_2(%arg0: i32) -> (i32, i32) {
    %c0_i32 = arith.constant 0 : i32
    %c0_i32_0 = arith.constant 0 : i32
    %c0_i32_1 = arith.constant 0 : i32
    return %c0_i32, %c0_i32_0 : i32, i32
  }
  func.func @transform_3(%arg0: i32) -> (i32, i32) {
    %c0_i32 = arith.constant 0 : i32
    %c0_i32_0 = arith.constant 0 : i32
    return %arg0, %c0_i32 : i32, i32
  }
  func.func @transform_4(%arg0: i32) -> (i32, i32) {
    %c0_i32 = arith.constant 0 : i32
    %c0_i32_0 = arith.constant 0 : i32
    return %arg0, %c0_i32 : i32, i32
  }
}

module attributes {stable_mosaic.version = 11 : i64} {
  func.func @_mm_fused_kernel(%arg0: i32, %arg1: memref<64x2048xbf16, #tpu.memory_space<vmem>>, %arg2: memref<2048x128xbf16, #tpu.memory_space<vmem>>, %arg3: memref<1x128xf32, #tpu.memory_space<vmem>>, %arg4: memref<1x128xf32, #tpu.memory_space<vmem>>, %arg5: memref<64x128xf32, #tpu.memory_space<vmem>>, %arg6: memref<1x1x128xf32, #tpu.memory_space<vmem>>, %arg7: memref<1x1x128xf32, #tpu.memory_space<vmem>>) attributes {dimension_semantics = [#tpu.dimension_semantics<parallel>], iteration_bounds = array<i64: 2>, scalar_prefetch = 0 : i64, scratch_operands = 0 : i64, tpu.core_type = #tpu.core_type<tc>, window_params = [{transform_indices = @transform_0, window_bounds = array<i64: 64, 2048>}, {pipeline_mode = #tpu.pipeline_mode<synchronous>, transform_indices = @transform_1, window_bounds = array<i64: 2048, 128>}, {pipeline_mode = #tpu.pipeline_mode<synchronous>, transform_indices = @transform_2, window_bounds = array<i64: 1, 128>}, {pipeline_mode = #tpu.pipeline_mode<synchronous>, transform_indices = @transform_3, window_bounds = array<i64: 1, 128>}, {transform_indices = @transform_4, window_bounds = array<i64: 64, 128>}, {transform_indices = @transform_5, window_bounds = array<i64: 1, 1, 128>}, {transform_indices = @transform_6, window_bounds = array<i64: 1, 1, 128>}]} {
    %c0 = arith.constant 0 : index
    %c0_0 = arith.constant 0 : index
    %0 = vector.load %arg1[%c0, %c0_0] : memref<64x2048xbf16, #tpu.memory_space<vmem>>, vector<64x2048xbf16>
    %c0_1 = arith.constant 0 : index
    %c0_2 = arith.constant 0 : index
    %1 = vector.load %arg2[%c0_1, %c0_2] : memref<2048x128xbf16, #tpu.memory_space<vmem>>, vector<2048x128xbf16>
    %cst = arith.constant dense<0.000000e+00> : vector<64x128xf32>
    %2 = tpu.matmul %0, %1, %cst {dimension_numbers = #tpu.dot_dimension_numbers<[1], [0], [0], [1], [0, 0, 1, 1], [], []>} : vector<64x2048xbf16>, vector<2048x128xbf16>, vector<64x128xf32> -> vector<64x128xf32>
    %cst_3 = arith.constant dense<0.000000e+00> : vector<128xf32>
    %3 = vector.multi_reduction <add>, %2, %cst_3 [0] : vector<64x128xf32> to vector<128xf32>
    %4 = vector.shape_cast %3 : vector<128xf32> to vector<1x128xf32>
    %5 = vector.shape_cast %4 : vector<1x128xf32> to vector<1x1x128xf32>
    %c0_4 = arith.constant 0 : index
    %c0_5 = arith.constant 0 : index
    %c0_6 = arith.constant 0 : index
    %6 = vector.load %arg6[%c0_4, %c0_5, %c0_6] : memref<1x1x128xf32, #tpu.memory_space<vmem>>, vector<1x1x128xf32>
    tpu.vector_store %arg6[%c0_4, %c0_5, %c0_6], %5 {strides = array<i32>} : memref<1x1x128xf32, #tpu.memory_space<vmem>>, vector<1x1x128xf32>,
    %7 = arith.mulf %2, %2 : vector<64x128xf32>
    %cst_7 = arith.constant dense<0.000000e+00> : vector<128xf32>
    %8 = vector.multi_reduction <add>, %7, %cst_7 [0] : vector<64x128xf32> to vector<128xf32>
    %9 = vector.shape_cast %8 : vector<128xf32> to vector<1x128xf32>
    %10 = vector.shape_cast %9 : vector<1x128xf32> to vector<1x1x128xf32>
    %c0_8 = arith.constant 0 : index
    %c0_9 = arith.constant 0 : index
    %c0_10 = arith.constant 0 : index
    %11 = vector.load %arg7[%c0_8, %c0_9, %c0_10] : memref<1x1x128xf32, #tpu.memory_space<vmem>>, vector<1x1x128xf32>
    tpu.vector_store %arg7[%c0_8, %c0_9, %c0_10], %10 {strides = array<i32>} : memref<1x1x128xf32, #tpu.memory_space<vmem>>, vector<1x1x128xf32>,
    %c0_11 = arith.constant 0 : index
    %c0_12 = arith.constant 0 : index
    %12 = vector.load %arg3[%c0_11, %c0_12] : memref<1x128xf32, #tpu.memory_space<vmem>>, vector<1x128xf32>
    %13 = vector.broadcast %12 : vector<1x128xf32> to vector<64x128xf32>
    %14 = arith.mulf %2, %13 : vector<64x128xf32>
    %c0_13 = arith.constant 0 : index
    %c0_14 = arith.constant 0 : index
    %15 = vector.load %arg4[%c0_13, %c0_14] : memref<1x128xf32, #tpu.memory_space<vmem>>, vector<1x128xf32>
    %16 = vector.broadcast %15 : vector<1x128xf32> to vector<64x128xf32>
    %17 = arith.addf %14, %16 : vector<64x128xf32>
    %c0_15 = arith.constant 0 : index
    %c0_16 = arith.constant 0 : index
    %18 = vector.load %arg5[%c0_15, %c0_16] : memref<64x128xf32, #tpu.memory_space<vmem>>, vector<64x128xf32>
    tpu.vector_store %arg5[%c0_15, %c0_16], %17 {strides = array<i32>} : memref<64x128xf32, #tpu.memory_space<vmem>>, vector<64x128xf32>,
    return
  }
  func.func @transform_0(%arg0: i32) -> (i32, i32) {
    %c0_i32 = arith.constant 0 : i32
    %c0_i32_0 = arith.constant 0 : i32
    return %arg0, %c0_i32 : i32, i32
  }
  func.func @transform_1(%arg0: i32) -> (i32, i32) {
    %c0_i32 = arith.constant 0 : i32
    %c0_i32_0 = arith.constant 0 : i32
    %c0_i32_1 = arith.constant 0 : i32
    return %c0_i32, %c0_i32_0 : i32, i32
  }
  func.func @transform_2(%arg0: i32) -> (i32, i32) {
    %c0_i32 = arith.constant 0 : i32
    %c0_i32_0 = arith.constant 0 : i32
    %c0_i32_1 = arith.constant 0 : i32
    return %c0_i32, %c0_i32_0 : i32, i32
  }
  func.func @transform_3(%arg0: i32) -> (i32, i32) {
    %c0_i32 = arith.constant 0 : i32
    %c0_i32_0 = arith.constant 0 : i32
    %c0_i32_1 = arith.constant 0 : i32
    return %c0_i32, %c0_i32_0 : i32, i32
  }
  func.func @transform_4(%arg0: i32) -> (i32, i32) {
    %c0_i32 = arith.constant 0 : i32
    %c0_i32_0 = arith.constant 0 : i32
    return %arg0, %c0_i32 : i32, i32
  }
  func.func @transform_5(%arg0: i32) -> (i32, i32, i32) {
    %c0_i32 = arith.constant 0 : i32
    %c0_i32_0 = arith.constant 0 : i32
    %c0_i32_1 = arith.constant 0 : i32
    return %arg0, %c0_i32, %c0_i32_0 : i32, i32, i32
  }
  func.func @transform_6(%arg0: i32) -> (i32, i32, i32) {
    %c0_i32 = arith.constant 0 : i32
    %c0_i32_0 = arith.constant 0 : i32
    %c0_i32_1 = arith.constant 0 : i32
    return %arg0, %c0_i32, %c0_i32_0 : i32, i32, i32
  }
}

module attributes {stable_mosaic.version = 11 : i64} {
  func.func @_mm_fused_kernel(%arg0: i32, %arg1: memref<256x2048xbf16, #tpu.memory_space<vmem>>, %arg2: memref<2048x3xbf16, #tpu.memory_space<vmem>>, %arg3: memref<1x3xf32, #tpu.memory_space<vmem>>, %arg4: memref<1x3xf32, #tpu.memory_space<vmem>>, %arg5: memref<256x3xf32, #tpu.memory_space<vmem>>) attributes {dimension_semantics = [#tpu.dimension_semantics<parallel>], iteration_bounds = array<i64: 2>, scalar_prefetch = 0 : i64, scratch_operands = 0 : i64, tpu.core_type = #tpu.core_type<tc>, window_params = [{transform_indices = @transform_0, window_bounds = array<i64: 256, 2048>}, {pipeline_mode = #tpu.pipeline_mode<synchronous>, transform_indices = @transform_1, window_bounds = array<i64: 2048, 3>}, {pipeline_mode = #tpu.pipeline_mode<synchronous>, transform_indices = @transform_2, window_bounds = array<i64: 1, 3>}, {pipeline_mode = #tpu.pipeline_mode<synchronous>, transform_indices = @transform_3, window_bounds = array<i64: 1, 3>}, {transform_indices = @transform_4, window_bounds = array<i64: 256, 3>}]} {
    %c0 = arith.constant 0 : index
    %c0_0 = arith.constant 0 : index
    %0 = vector.load %arg1[%c0, %c0_0] : memref<256x2048xbf16, #tpu.memory_space<vmem>>, vector<256x2048xbf16>
    %c0_1 = arith.constant 0 : index
    %c0_2 = arith.constant 0 : index
    %1 = vector.load %arg2[%c0_1, %c0_2] : memref<2048x3xbf16, #tpu.memory_space<vmem>>, vector<2048x3xbf16>
    %cst = arith.constant dense<0.000000e+00> : vector<256x3xf32>
    %2 = tpu.matmul %0, %1, %cst {dimension_numbers = #tpu.dot_dimension_numbers<[1], [0], [0], [1], [0, 0, 1, 1], [], []>} : vector<256x2048xbf16>, vector<2048x3xbf16>, vector<256x3xf32> -> vector<256x3xf32>
    %c0_3 = arith.constant 0 : index
    %c0_4 = arith.constant 0 : index
    %3 = vector.load %arg3[%c0_3, %c0_4] : memref<1x3xf32, #tpu.memory_space<vmem>>, vector<1x3xf32>
    %4 = vector.broadcast %3 : vector<1x3xf32> to vector<256x3xf32>
    %5 = arith.mulf %2, %4 : vector<256x3xf32>
    %c0_5 = arith.constant 0 : index
    %c0_6 = arith.constant 0 : index
    %6 = vector.load %arg4[%c0_5, %c0_6] : memref<1x3xf32, #tpu.memory_space<vmem>>, vector<1x3xf32>
    %7 = vector.broadcast %6 : vector<1x3xf32> to vector<256x3xf32>
    %8 = arith.addf %5, %7 : vector<256x3xf32>
    %9 = math.tanh %8 : vector<256x3xf32>
    %c0_7 = arith.constant 0 : index
    %c0_8 = arith.constant 0 : index
    %10 = vector.load %arg5[%c0_7, %c0_8] : memref<256x3xf32, #tpu.memory_space<vmem>>, vector<256x3xf32>
    tpu.vector_store %arg5[%c0_7, %c0_8], %9 {strides = array<i32>} : memref<256x3xf32, #tpu.memory_space<vmem>>, vector<256x3xf32>,
    return
  }
  func.func @transform_0(%arg0: i32) -> (i32, i32) {
    %c0_i32 = arith.constant 0 : i32
    %c0_i32_0 = arith.constant 0 : i32
    return %arg0, %c0_i32 : i32, i32
  }
  func.func @transform_1(%arg0: i32) -> (i32, i32) {
    %c0_i32 = arith.constant 0 : i32
    %c0_i32_0 = arith.constant 0 : i32
    %c0_i32_1 = arith.constant 0 : i32
    return %c0_i32, %c0_i32_0 : i32, i32
  }
  func.func @transform_2(%arg0: i32) -> (i32, i32) {
    %c0_i32 = arith.constant 0 : i32
    %c0_i32_0 = arith.constant 0 : i32
    %c0_i32_1 = arith.constant 0 : i32
    return %c0_i32, %c0_i32_0 : i32, i32
  }
  func.func @transform_3(%arg0: i32) -> (i32, i32) {
    %c0_i32 = arith.constant 0 : i32
    %c0_i32_0 = arith.constant 0 : i32
    %c0_i32_1 = arith.constant 0 : i32
    return %c0_i32, %c0_i32_0 : i32, i32
  }
  func.func @transform_4(%arg0: i32) -> (i32, i32) {
    %c0_i32 = arith.constant 0 : i32
    %c0_i32_0 = arith.constant 0 : i32
    return %arg0, %c0_i32 : i32, i32
  }
}

</mosaic_0001>

<llo_original>
// kernel: vqvae_forward.17
$region0: #{vqvae_forward.17}
  #allocation0 [shape = 'u32[]', space=smem, size = 0x4, offset = 0x4, fixed_abs, tag = 'smem constant byte address 0x4 - core index']
  #allocation1 [shape = 'u32[144,128]{1,0:T(1,128)}', space=vmem, size = 0x12000, scoped, tag = 'internal scratch']
  %s0 = inlined_call_operand.vmem [shape: f32[128,128], index: 0, kind: input, shape index: {}]
  %s1 = inlined_call_operand.vmem [shape: f32[1,128], index: 1, kind: input, shape index: {}]
  %s2 = inlined_call_operand.vmem [shape: f32[1,128], index: 2, kind: input, shape index: {}]
  %s3 = inlined_call_operand.vmem [shape: f32[128,128], index: 3, kind: output, shape index: {}]
  %s4 = sld [smem:[#allocation0]]
  $region45: #{vqvae_forward.17} parent=0
    _
  %s6 = ssub.s32 1, %s4
  %s7 = scalar_select 0, %s6, %s4
  loop: start=0, step=1, limit=4
  $region2: #{vqvae_forward.17} parent=0 // loop_pre_header
    _
  $region3: #{vqvae_forward.17} parent=0 // loop_header
    %s9 = sphi 0, %s13
    %p10 = scmp.ge.s32.totalorder %s9, 4
    %s19 = sphi 0, %s21
    %s22 = sphi 0, %s19
    %s23 = sphi 0, %s22
    %s39 = sphi 0, %s23
    %s43 = sphi 0, %s43
    %s45 = sphi 0, %s43
    %s46 = sphi 0, %s45
    %s60 = sphi 0, %s46
    %s64 = sphi 0, %s64
    %s66 = sphi 0, %s64
    %s67 = sphi 0, %s66
    %s81 = sphi 0, %s67
    %s87 = sphi 0, %s89
    %s90 = sphi 0, %s87
    %s91 = sphi 0, %s90
    %s107 = sphi 0, %s91
  $region4: #{vqvae_forward.17} parent=0 // loop_header_branch
    %12 = sbr.rel (%p10) target = $region8
  $region5: #{vqvae_forward.17} parent=0 // loop_body
    %s14 = ssub.s32 %s9, 1
    %s15 = ssub.s32 %s9, 2
    %s16 = sadd.s32 %s9, 1
    %s17 = ssub.s32 %s9, %s16
    %p18 = scmp.eq.s32.totalorder %s17, 0
    %s20 = sadd.s32 %s19, 1
    %s21 = scalar_select %p18, %s19, %s20
    %p24 = pneg %p18
    %p25 = scmp.eq.s32.totalorder %s9, 1
    %p26 = por %p24, %p25
    %p27 = scmp.ne.s32.totalorder %s19, %s22
    %p28 = scmp.eq.s32.totalorder %s9, 0
    %p29 = por %p27, %p28
    %p30 = scmp.ne.s32.totalorder %s19, %s22
    %p31 = scmp.eq.s32.totalorder %s14, 1
    %p32 = por %p30, %p31
    %p33 = scmp.ne.s32.totalorder %s22, %s23
    %p34 = scmp.eq.s32.totalorder %s14, 0
    %p35 = por %p33, %p34
    %p36 = scmp.ne.s32.totalorder %s22, %s23
    %p37 = scmp.eq.s32.totalorder %s15, 1
    %p38 = por %p36, %p37
    %p40 = scmp.ne.s32.totalorder %s23, %s39
    %p41 = scmp.eq.s32.totalorder %s15, 0
    %p42 = por %p40, %p41
    %s44 = sadd.s32 %s43, 1
    %p47 = scmp.eq.s32.totalorder %s9, 1
    %p48 = scmp.ne.s32.totalorder %s43, %s45
    %p49 = scmp.eq.s32.totalorder %s9, 0
    %p50 = por %p48, %p49
    %p51 = scmp.ne.s32.totalorder %s43, %s45
    %p52 = scmp.eq.s32.totalorder %s14, 1
    %p53 = por %p51, %p52
    %p54 = scmp.ne.s32.totalorder %s45, %s46
    %p55 = scmp.eq.s32.totalorder %s14, 0
    %p56 = por %p54, %p55
    %p57 = scmp.ne.s32.totalorder %s45, %s46
    %p58 = scmp.eq.s32.totalorder %s15, 1
    %p59 = por %p57, %p58
    %p61 = scmp.ne.s32.totalorder %s46, %s60
    %p62 = scmp.eq.s32.totalorder %s15, 0
    %p63 = por %p61, %p62
    %s65 = sadd.s32 %s64, 1
    %p68 = scmp.eq.s32.totalorder %s9, 1
    %p69 = scmp.ne.s32.totalorder %s64, %s66
    %p70 = scmp.eq.s32.totalorder %s9, 0
    %p71 = por %p69, %p70
    %p72 = scmp.ne.s32.totalorder %s64, %s66
    %p73 = scmp.eq.s32.totalorder %s14, 1
    %p74 = por %p72, %p73
    %p75 = scmp.ne.s32.totalorder %s66, %s67
    %p76 = scmp.eq.s32.totalorder %s14, 0
    %p77 = por %p75, %p76
    %p78 = scmp.ne.s32.totalorder %s66, %s67
    %p79 = scmp.eq.s32.totalorder %s15, 1
    %p80 = por %p78, %p79
    %p82 = scmp.ne.s32.totalorder %s67, %s81
    %p83 = scmp.eq.s32.totalorder %s15, 0
    %p84 = por %p82, %p83
    %s85 = ssub.s32 %s9, %s16
    %p86 = scmp.eq.s32.totalorder %s85, 0
    %s88 = sadd.s32 %s87, 1
    %s89 = scalar_select %p86, %s87, %s88
    %p92 = pneg %p86
    %p93 = scmp.eq.s32.totalorder %s9, 1
    %p94 = por %p92, %p93
    %p95 = scmp.ne.s32.totalorder %s87, %s90
    %p96 = scmp.eq.s32.totalorder %s9, 0
    %p97 = por %p95, %p96
    %p98 = scmp.ne.s32.totalorder %s87, %s90
    %p99 = scmp.eq.s32.totalorder %s14, 1
    %p100 = por %p98, %p99
    %p101 = scmp.ne.s32.totalorder %s90, %s91
    %p102 = scmp.eq.s32.totalorder %s14, 0
    %p103 = por %p101, %p102
    %p104 = scmp.ne.s32.totalorder %s90, %s91
    %p105 = scmp.eq.s32.totalorder %s15, 1
    %p106 = por %p104, %p105
    %p108 = scmp.ne.s32.totalorder %s91, %s107
    %p109 = scmp.eq.s32.totalorder %s15, 0
    %p110 = por %p108, %p109
    %p111 = scmp.le.s32.totalorder 1, %s9
    %p112 = scmp.lt.s32.totalorder %s9, 3
    %p113 = pnand %p111, %p112
    %p114 = pneg %p113
    // Predicated region
    $region9: #{vqvae_forward.17} parent=5 // pred_check
      _
    $region10: #{vqvae_forward.17} parent=5 // pred_check_branch
      %116 = sbr.rel (%p113) target = $region12
    $region11: #{vqvae_forward.17} parent=5 // pred_region
      %s117 = ssub.s32 %s9, 1
      // Predicated region
      $region13: #{vqvae_forward.17} parent=11 // pred_check
        %p118 = pneg %p56
      $region14: #{vqvae_forward.17} parent=11 // pred_check_branch
        %120 = sbr.rel (%p118) target = $region16
      $region15: #{vqvae_forward.17} parent=11 // pred_region
        _
      $region16: #{vqvae_forward.17} parent=11 // pred_fallthru
        _
      // Predicated region
      $region17: #{vqvae_forward.17} parent=11 // pred_check
        %p121 = pneg %p77
      $region18: #{vqvae_forward.17} parent=11 // pred_check_branch
        %123 = sbr.rel (%p121) target = $region20
      $region19: #{vqvae_forward.17} parent=11 // pred_region
        _
      $region20: #{vqvae_forward.17} parent=11 // pred_fallthru
        _
    $region12: #{vqvae_forward.17} parent=5 // pred_fallthru
      _
    %p124 = scmp.lt.s32.totalorder %s9, 2
    // Predicated region
    $region21: #{vqvae_forward.17} parent=5 // pred_check
      %p125 = pneg %p124
    $region22: #{vqvae_forward.17} parent=5 // pred_check_branch
      %127 = sbr.rel (%p125) target = $region24
    $region23: #{vqvae_forward.17} parent=5 // pred_region
      // Predicated region
      $region25: #{vqvae_forward.17} parent=23 // pred_check
        %p128 = pneg %p29
      $region26: #{vqvae_forward.17} parent=23 // pred_check_branch
        %130 = sbr.rel (%p128) target = $region28
      $region27: #{vqvae_forward.17} parent=23 // pred_region
        %s131 = smul.u32 8, %s9
        %p132 = scmp.lt.s32.totalorder %s131, 15
        %s133 = scalar_select %p132, %s131, 15
        %s134 = smul.addr %s133, 8
        %s135 = scalar_lea.vmem %s0, %s134
        %s136 = smul.u32 8, %s9
      $region28: #{vqvae_forward.17} parent=23 // pred_fallthru
        _
    $region24: #{vqvae_forward.17} parent=5 // pred_fallthru
      _
    %p137 = scmp.le.s32.totalorder 1, %s9
    %p138 = scmp.lt.s32.totalorder %s9, 3
    %p139 = pnand %p137, %p138
    %p140 = pneg %p139
    // Predicated region
    $region29: #{vqvae_forward.17} parent=5 // pred_check
      _
    $region30: #{vqvae_forward.17} parent=5 // pred_check_branch
      %142 = sbr.rel (%p139) target = $region32
    $region31: #{vqvae_forward.17} parent=5 // pred_region
      %s143 = ssub.s32 %s9, 1
      %s144 = smul.u32 8, %s14
      %p145 = scmp.lt.s32.totalorder %s144, 15
      %s146 = scalar_select %p145, %s144, 15
      %s147 = smul.addr %s146, 8
      %s148 = scalar_lea.vmem %s0, %s147
      %p149 = pneg %p35
      %p150 = pneg %p32
      %p151 = pneg %p56
      %p152 = pneg %p53
      %p153 = pneg %p77
      %p154 = pneg %p74
      %p155 = pneg %p103
      %p156 = pneg %p100
      %s157 = smul.u32 8, %s14
      %p158 = scmp.lt.s32.totalorder %s157, 15
      %s159 = scalar_select %p158, %s157, 15
      %s160 = smul.addr %s159, 8
      %s161 = scalar_lea.vmem %s3, %s160
      %s162 = smul.u32 8, %s14
      %p163 = scmp.lt.s32.totalorder %s162, 15
      %s164 = scalar_select %p163, %s162, 15
      %s165 = smul.addr %s164, 8
      %s166 = scalar_lea.vmem %s0, %s165
      %s167 = smul.u32 8, %s14
      %s168 = smul.u32 8, %s14
      %p169 = scmp.lt.s32.totalorder %s168, 15
      %s170 = scalar_select %p169, %s168, 15
      %s171 = smul.addr %s170, 8
      %s172 = scalar_lea.vmem %s3, %s171
      %s173 = smul.u32 8, %s14
      %v174 = vld [vmem:[%s166] sm:$0xff]
      %v175 = vld [vmem:[%s166 + $0x8] sm:$0xff]
      %v176 = vld [vmem:[%s166 + $0x10] sm:$0xff]
      %v177 = vld [vmem:[%s166 + $0x18] sm:$0xff]
      %v178 = vld [vmem:[%s166 + $0x20] sm:$0xff]
      %v179 = vld [vmem:[%s166 + $0x28] sm:$0xff]
      %v180 = vld [vmem:[%s166 + $0x30] sm:$0xff]
      %v181 = vld [vmem:[%s166 + $0x38] sm:$0xff]
      %v182 = vld [vmem:[%s1] sm:$0x1]
      %v184 = vlaneseq
      %v185 = vshrl.u32 %v184, 7
      %v186 = vsub.s32 0, %v185
      %v187 = vrot.slane %v182, %v186
      %v189 = vmul.f32 %v174, %v187
      %v190 = vmul.f32 %v175, %v187
      %v191 = vmul.f32 %v176, %v187
      %v192 = vmul.f32 %v177, %v187
      %v193 = vmul.f32 %v178, %v187
      %v194 = vmul.f32 %v179, %v187
      %v195 = vmul.f32 %v180, %v187
      %v196 = vmul.f32 %v181, %v187
      %v197 = vld [vmem:[%s2] sm:$0x1]
      %v199 = vlaneseq
      %v200 = vshrl.u32 %v199, 7
      %v201 = vsub.s32 0, %v200
      %v202 = vrot.slane %v197, %v201
      %v204 = vadd.f32 %v189, %v202
      %v205 = vadd.f32 %v190, %v202
      %v206 = vadd.f32 %v191, %v202
      %v207 = vadd.f32 %v192, %v202
      %v208 = vadd.f32 %v193, %v202
      %v209 = vadd.f32 %v194, %v202
      %v210 = vadd.f32 %v195, %v202
      %v211 = vadd.f32 %v196, %v202
      %v212 = vmax.f32 %v204, 0.0
      %v213 = vmax.f32 %v205, 0.0
      %v214 = vmax.f32 %v206, 0.0
      %v215 = vmax.f32 %v207, 0.0
      %v216 = vmax.f32 %v208, 0.0
      %v217 = vmax.f32 %v209, 0.0
      %v218 = vmax.f32 %v210, 0.0
      %v219 = vmax.f32 %v211, 0.0
      %220 = vst [vmem:[%s172] sm:$0xff] %v212
      %221 = vst [vmem:[%s172 + $0x8] sm:$0xff] %v213
      %222 = vst [vmem:[%s172 + $0x10] sm:$0xff] %v214
      %223 = vst [vmem:[%s172 + $0x18] sm:$0xff] %v215
      %224 = vst [vmem:[%s172 + $0x20] sm:$0xff] %v216
      %225 = vst [vmem:[%s172 + $0x28] sm:$0xff] %v217
      %226 = vst [vmem:[%s172 + $0x30] sm:$0xff] %v218
      %227 = vst [vmem:[%s172 + $0x38] sm:$0xff] %v219
      %s228 = smul.u32 8, %s14
      %p229 = scmp.lt.s32.totalorder %s228, 15
      %s230 = scalar_select %p229, %s228, 15
      %s231 = smul.addr %s230, 8
      %s232 = scalar_lea.vmem %s3, %s231
      // Predicated region
      $region33: #{vqvae_forward.17} parent=31 // pred_check
        %p233 = pneg %p100
      $region34: #{vqvae_forward.17} parent=31 // pred_check_branch
        %235 = sbr.rel (%p233) target = $region36
      $region35: #{vqvae_forward.17} parent=31 // pred_region
        %s236 = smul.u32 8, %s14
      $region36: #{vqvae_forward.17} parent=31 // pred_fallthru
        _
    $region32: #{vqvae_forward.17} parent=5 // pred_fallthru
      _
    %p237 = scmp.le.s32.totalorder 2, %s9
    // Predicated region
    $region37: #{vqvae_forward.17} parent=5 // pred_check
      %p238 = pneg %p237
    $region38: #{vqvae_forward.17} parent=5 // pred_check_branch
      %240 = sbr.rel (%p238) target = $region40
    $region39: #{vqvae_forward.17} parent=5 // pred_region
      %s241 = ssub.s32 %s9, 2
      // Predicated region
      $region41: #{vqvae_forward.17} parent=39 // pred_check
        %p242 = pneg %p106
      $region42: #{vqvae_forward.17} parent=39 // pred_check_branch
        %244 = sbr.rel (%p242) target = $region44
      $region43: #{vqvae_forward.17} parent=39 // pred_region
        %s245 = smul.u32 8, %s15
        %p246 = scmp.lt.s32.totalorder %s245, 15
        %s247 = scalar_select %p246, %s245, 15
        %s248 = smul.addr %s247, 8
        %s249 = scalar_lea.vmem %s3, %s248
      $region44: #{vqvae_forward.17} parent=39 // pred_fallthru
        _
    $region40: #{vqvae_forward.17} parent=5 // pred_fallthru
      _
  $region6: #{vqvae_forward.17} parent=0 // loop_footer
    %s13 = sadd.s32 1, %s9
  $region7: #{vqvae_forward.17} parent=0 // loop_footer_branch
    %8 = sbr.rel target = $region3
  $region8: #{vqvae_forward.17} parent=0 // loop_exit
    _

// kernel: vqvae_forward.16
$region0: #{vqvae_forward.16}
  #allocation0 [shape = 'u32[]', space=smem, size = 0x4, offset = 0x4, fixed_abs, tag = 'smem constant byte address 0x4 - core index']
  #allocation1 [shape = 'u32[144,128]{1,0:T(1,128)}', space=vmem, size = 0x12000, scoped, tag = 'internal scratch']
  %s0 = inlined_call_operand.vmem [shape: bf16[128,48], index: 0, kind: input, shape index: {}]
  %s1 = inlined_call_operand.vmem [shape: bf16[48,128], index: 1, kind: input, shape index: {}]
  %s2 = inlined_call_operand.vmem [shape: f32[1,128], index: 2, kind: input, shape index: {}]
  %s3 = inlined_call_operand.vmem [shape: f32[1,128], index: 3, kind: input, shape index: {}]
  %s4 = inlined_call_operand.vmem [shape: f32[128,128], index: 4, kind: output, shape index: {0}]
  %s5 = inlined_call_operand.vmem [shape: f32[2,1,128], index: 5, kind: output, shape index: {1}]
  %s6 = inlined_call_operand.vmem [shape: f32[2,1,128], index: 6, kind: output, shape index: {2}]
  %7 = xla_tuple %s4, %s5, %s6
  %s8 = sld [smem:[#allocation0]]
  $region65: #{vqvae_forward.16} parent=0
    _
  %s10 = ssub.s32 1, %s8
  %s11 = scalar_select 0, %s10, %s8
  loop: start=0, step=1, limit=4
  $region2: #{vqvae_forward.16} parent=0 // loop_pre_header
    _
  $region3: #{vqvae_forward.16} parent=0 // loop_header
    %s13 = sphi 0, %s17
    %p14 = scmp.ge.s32.totalorder %s13, 4
    %s23 = sphi 0, %s25
    %s26 = sphi 0, %s23
    %s27 = sphi 0, %s26
    %s43 = sphi 0, %s27
    %s47 = sphi 0, %s47
    %s49 = sphi 0, %s47
    %s50 = sphi 0, %s49
    %s64 = sphi 0, %s50
    %s68 = sphi 0, %s68
    %s70 = sphi 0, %s68
    %s71 = sphi 0, %s70
    %s85 = sphi 0, %s71
    %s89 = sphi 0, %s89
    %s91 = sphi 0, %s89
    %s92 = sphi 0, %s91
    %s106 = sphi 0, %s92
    %s112 = sphi 0, %s114
    %s115 = sphi 0, %s112
    %s116 = sphi 0, %s115
    %s132 = sphi 0, %s116
    %s138 = sphi 0, %s140
    %s141 = sphi 0, %s138
    %s142 = sphi 0, %s141
    %s158 = sphi 0, %s142
    %s164 = sphi 0, %s166
    %s167 = sphi 0, %s164
    %s168 = sphi 0, %s167
    %s184 = sphi 0, %s168
  $region4: #{vqvae_forward.16} parent=0 // loop_header_branch
    %16 = sbr.rel (%p14) target = $region8
  $region5: #{vqvae_forward.16} parent=0 // loop_body
    %s18 = ssub.s32 %s13, 1
    %s19 = ssub.s32 %s13, 2
    %s20 = sadd.s32 %s13, 1
    %s21 = ssub.s32 %s13, %s20
    %p22 = scmp.eq.s32.totalorder %s21, 0
    %s24 = sadd.s32 %s23, 1
    %s25 = scalar_select %p22, %s23, %s24
    %p28 = pneg %p22
    %p29 = scmp.eq.s32.totalorder %s13, 1
    %p30 = por %p28, %p29
    %p31 = scmp.ne.s32.totalorder %s23, %s26
    %p32 = scmp.eq.s32.totalorder %s13, 0
    %p33 = por %p31, %p32
    %p34 = scmp.ne.s32.totalorder %s23, %s26
    %p35 = scmp.eq.s32.totalorder %s18, 1
    %p36 = por %p34, %p35
    %p37 = scmp.ne.s32.totalorder %s26, %s27
    %p38 = scmp.eq.s32.totalorder %s18, 0
    %p39 = por %p37, %p38
    %p40 = scmp.ne.s32.totalorder %s26, %s27
    %p41 = scmp.eq.s32.totalorder %s19, 1
    %p42 = por %p40, %p41
    %p44 = scmp.ne.s32.totalorder %s27, %s43
    %p45 = scmp.eq.s32.totalorder %s19, 0
    %p46 = por %p44, %p45
    %s48 = sadd.s32 %s47, 1
    %p51 = scmp.eq.s32.totalorder %s13, 1
    %p52 = scmp.ne.s32.totalorder %s47, %s49
    %p53 = scmp.eq.s32.totalorder %s13, 0
    %p54 = por %p52, %p53
    %p55 = scmp.ne.s32.totalorder %s47, %s49
    %p56 = scmp.eq.s32.totalorder %s18, 1
    %p57 = por %p55, %p56
    %p58 = scmp.ne.s32.totalorder %s49, %s50
    %p59 = scmp.eq.s32.totalorder %s18, 0
    %p60 = por %p58, %p59
    %p61 = scmp.ne.s32.totalorder %s49, %s50
    %p62 = scmp.eq.s32.totalorder %s19, 1
    %p63 = por %p61, %p62
    %p65 = scmp.ne.s32.totalorder %s50, %s64
    %p66 = scmp.eq.s32.totalorder %s19, 0
    %p67 = por %p65, %p66
    %s69 = sadd.s32 %s68, 1
    %p72 = scmp.eq.s32.totalorder %s13, 1
    %p73 = scmp.ne.s32.totalorder %s68, %s70
    %p74 = scmp.eq.s32.totalorder %s13, 0
    %p75 = por %p73, %p74
    %p76 = scmp.ne.s32.totalorder %s68, %s70
    %p77 = scmp.eq.s32.totalorder %s18, 1
    %p78 = por %p76, %p77
    %p79 = scmp.ne.s32.totalorder %s70, %s71
    %p80 = scmp.eq.s32.totalorder %s18, 0
    %p81 = por %p79, %p80
    %p82 = scmp.ne.s32.totalorder %s70, %s71
    %p83 = scmp.eq.s32.totalorder %s19, 1
    %p84 = por %p82, %p83
    %p86 = scmp.ne.s32.totalorder %s71, %s85
    %p87 = scmp.eq.s32.totalorder %s19, 0
    %p88 = por %p86, %p87
    %s90 = sadd.s32 %s89, 1
    %p93 = scmp.eq.s32.totalorder %s13, 1
    %p94 = scmp.ne.s32.totalorder %s89, %s91
    %p95 = scmp.eq.s32.totalorder %s13, 0
    %p96 = por %p94, %p95
    %p97 = scmp.ne.s32.totalorder %s89, %s91
    %p98 = scmp.eq.s32.totalorder %s18, 1
    %p99 = por %p97, %p98
    %p100 = scmp.ne.s32.totalorder %s91, %s92
    %p101 = scmp.eq.s32.totalorder %s18, 0
    %p102 = por %p100, %p101
    %p103 = scmp.ne.s32.totalorder %s91, %s92
    %p104 = scmp.eq.s32.totalorder %s19, 1
    %p105 = por %p103, %p104
    %p107 = scmp.ne.s32.totalorder %s92, %s106
    %p108 = scmp.eq.s32.totalorder %s19, 0
    %p109 = por %p107, %p108
    %s110 = ssub.s32 %s13, %s20
    %p111 = scmp.eq.s32.totalorder %s110, 0
    %s113 = sadd.s32 %s112, 1
    %s114 = scalar_select %p111, %s112, %s113
    %p117 = pneg %p111
    %p118 = scmp.eq.s32.totalorder %s13, 1
    %p119 = por %p117, %p118
    %p120 = scmp.ne.s32.totalorder %s112, %s115
    %p121 = scmp.eq.s32.totalorder %s13, 0
    %p122 = por %p120, %p121
    %p123 = scmp.ne.s32.totalorder %s112, %s115
    %p124 = scmp.eq.s32.totalorder %s18, 1
    %p125 = por %p123, %p124
    %p126 = scmp.ne.s32.totalorder %s115, %s116
    %p127 = scmp.eq.s32.totalorder %s18, 0
    %p128 = por %p126, %p127
    %p129 = scmp.ne.s32.totalorder %s115, %s116
    %p130 = scmp.eq.s32.totalorder %s19, 1
    %p131 = por %p129, %p130
    %p133 = scmp.ne.s32.totalorder %s116, %s132
    %p134 = scmp.eq.s32.totalorder %s19, 0
    %p135 = por %p133, %p134
    %s136 = ssub.s32 %s13, %s20
    %p137 = scmp.eq.s32.totalorder %s136, 0
    %s139 = sadd.s32 %s138, 1
    %s140 = scalar_select %p137, %s138, %s139
    %p143 = pneg %p137
    %p144 = scmp.eq.s32.totalorder %s13, 1
    %p145 = por %p143, %p144
    %p146 = scmp.ne.s32.totalorder %s138, %s141
    %p147 = scmp.eq.s32.totalorder %s13, 0
    %p148 = por %p146, %p147
    %p149 = scmp.ne.s32.totalorder %s138, %s141
    %p150 = scmp.eq.s32.totalorder %s18, 1
    %p151 = por %p149, %p150
    %p152 = scmp.ne.s32.totalorder %s141, %s142
    %p153 = scmp.eq.s32.totalorder %s18, 0
    %p154 = por %p152, %p153
    %p155 = scmp.ne.s32.totalorder %s141, %s142
    %p156 = scmp.eq.s32.totalorder %s19, 1
    %p157 = por %p155, %p156
    %p159 = scmp.ne.s32.totalorder %s142, %s158
    %p160 = scmp.eq.s32.totalorder %s19, 0
    %p161 = por %p159, %p160
    %s162 = ssub.s32 %s13, %s20
    %p163 = scmp.eq.s32.totalorder %s162, 0
    %s165 = sadd.s32 %s164, 1
    %s166 = scalar_select %p163, %s164, %s165
    %p169 = pneg %p163
    %p170 = scmp.eq.s32.totalorder %s13, 1
    %p171 = por %p169, %p170
    %p172 = scmp.ne.s32.totalorder %s164, %s167
    %p173 = scmp.eq.s32.totalorder %s13, 0
    %p174 = por %p172, %p173
    %p175 = scmp.ne.s32.totalorder %s164, %s167
    %p176 = scmp.eq.s32.totalorder %s18, 1
    %p177 = por %p175, %p176
    %p178 = scmp.ne.s32.totalorder %s167, %s168
    %p179 = scmp.eq.s32.totalorder %s18, 0
    %p180 = por %p178, %p179
    %p181 = scmp.ne.s32.totalorder %s167, %s168
    %p182 = scmp.eq.s32.totalorder %s19, 1
    %p183 = por %p181, %p182
    %p185 = scmp.ne.s32.totalorder %s168, %s184
    %p186 = scmp.eq.s32.totalorder %s19, 0
    %p187 = por %p185, %p186
    %p188 = scmp.le.s32.totalorder 1, %s13
    %p189 = scmp.lt.s32.totalorder %s13, 3
    %p190 = pnand %p188, %p189
    %p191 = pneg %p190
    // Predicated region
    $region9: #{vqvae_forward.16} parent=5 // pred_check
      _
    $region10: #{vqvae_forward.16} parent=5 // pred_check_branch
      %193 = sbr.rel (%p190) target = $region12
    $region11: #{vqvae_forward.16} parent=5 // pred_region
      %s194 = ssub.s32 %s13, 1
      // Predicated region
      $region13: #{vqvae_forward.16} parent=11 // pred_check
        %p195 = pneg %p60
      $region14: #{vqvae_forward.16} parent=11 // pred_check_branch
        %197 = sbr.rel (%p195) target = $region16
      $region15: #{vqvae_forward.16} parent=11 // pred_region
        _
      $region16: #{vqvae_forward.16} parent=11 // pred_fallthru
        _
      // Predicated region
      $region17: #{vqvae_forward.16} parent=11 // pred_check
        %p198 = pneg %p81
      $region18: #{vqvae_forward.16} parent=11 // pred_check_branch
        %200 = sbr.rel (%p198) target = $region20
      $region19: #{vqvae_forward.16} parent=11 // pred_region
        _
      $region20: #{vqvae_forward.16} parent=11 // pred_fallthru
        _
      // Predicated region
      $region21: #{vqvae_forward.16} parent=11 // pred_check
        %p201 = pneg %p102
      $region22: #{vqvae_forward.16} parent=11 // pred_check_branch
        %203 = sbr.rel (%p201) target = $region24
      $region23: #{vqvae_forward.16} parent=11 // pred_region
        _
      $region24: #{vqvae_forward.16} parent=11 // pred_fallthru
        _
    $region12: #{vqvae_forward.16} parent=5 // pred_fallthru
      _
    %p204 = scmp.lt.s32.totalorder %s13, 2
    // Predicated region
    $region25: #{vqvae_forward.16} parent=5 // pred_check
      %p205 = pneg %p204
    $region26: #{vqvae_forward.16} parent=5 // pred_check_branch
      %207 = sbr.rel (%p205) target = $region28
    $region27: #{vqvae_forward.16} parent=5 // pred_region
      // Predicated region
      $region29: #{vqvae_forward.16} parent=27 // pred_check
        %p208 = pneg %p33
      $region30: #{vqvae_forward.16} parent=27 // pred_check_branch
        %210 = sbr.rel (%p208) target = $region32
      $region31: #{vqvae_forward.16} parent=27 // pred_region
        %s211 = smul.u32 8, %s13
        %p212 = scmp.lt.s32.totalorder %s211, 15
        %s213 = scalar_select %p212, %s211, 15
        %s214 = smul.addr %s213, 4
        %s215 = scalar_lea.vmem %s0, %s214
        %s216 = smul.u32 8, %s13
      $region32: #{vqvae_forward.16} parent=27 // pred_fallthru
        _
    $region28: #{vqvae_forward.16} parent=5 // pred_fallthru
      _
    %p217 = scmp.le.s32.totalorder 1, %s13
    %p218 = scmp.lt.s32.totalorder %s13, 3
    %p219 = pnand %p217, %p218
    %p220 = pneg %p219
    // Predicated region
    $region33: #{vqvae_forward.16} parent=5 // pred_check
      _
    $region34: #{vqvae_forward.16} parent=5 // pred_check_branch
      %222 = sbr.rel (%p219) target = $region36
    $region35: #{vqvae_forward.16} parent=5 // pred_region
      %s223 = ssub.s32 %s13, 1
      %s224 = smul.u32 8, %s18
      %p225 = scmp.lt.s32.totalorder %s224, 15
      %s226 = scalar_select %p225, %s224, 15
      %s227 = smul.addr %s226, 4
      %s228 = scalar_lea.vmem %s0, %s227
      %p229 = pneg %p39
      %p230 = pneg %p36
      %p231 = pneg %p60
      %p232 = pneg %p57
      %p233 = pneg %p81
      %p234 = pneg %p78
      %p235 = pneg %p102
      %p236 = pneg %p99
      %p237 = pneg %p128
      %p238 = pneg %p125
      %s239 = smul.u32 8, %s18
      %p240 = scmp.lt.s32.totalorder %s239, 15
      %s241 = scalar_select %p240, %s239, 15
      %s242 = smul.addr %s241, 8
      %s243 = scalar_lea.vmem %s4, %s242
      %p244 = pneg %p154
      %p245 = pneg %p151
      %p246 = scmp.lt.s32.totalorder %s18, 1
      %s247 = scalar_select %p246, %s18, 1
      %s248 = scalar_lea.vmem %s5, %s247
      %p249 = pneg %p180
      %p250 = pneg %p177
      %p251 = scmp.lt.s32.totalorder %s18, 1
      %s252 = scalar_select %p251, %s18, 1
      %s253 = scalar_lea.vmem %s6, %s252
      %s254 = smul.u32 8, %s18
      %p255 = scmp.lt.s32.totalorder %s254, 15
      %s256 = scalar_select %p255, %s254, 15
      %s257 = smul.addr %s256, 4
      %s258 = scalar_lea.vmem %s0, %s257
      %s259 = smul.u32 8, %s18
      %s260 = smul.u32 8, %s18
      %p261 = scmp.lt.s32.totalorder %s260, 15
      %s262 = scalar_select %p261, %s260, 15
      %s263 = smul.addr %s262, 8
      %s264 = scalar_lea.vmem %s4, %s263
      %s265 = smul.u32 8, %s18
      %p266 = scmp.lt.s32.totalorder %s18, 1
      %s267 = scalar_select %p266, %s18, 1
      %s268 = scalar_lea.vmem %s5, %s267
      %p269 = scmp.lt.s32.totalorder %s18, 1
      %s270 = scalar_select %p269, %s18, 1
      %s271 = scalar_lea.vmem %s6, %s270
      %v273 = vld [vmem:[%s258] sm:$0xf]
      %v274 = vld [vmem:[%s258 + $0x4] sm:$0xf]
      %v275 = vld [vmem:[%s258 + $0x8] sm:$0xf]
      %v276 = vld [vmem:[%s258 + $0xc] sm:$0xf]
      %v277 = vld [vmem:[%s258 + $0x10] sm:$0xf]
      %v278 = vld [vmem:[%s258 + $0x14] sm:$0xf]
      %v279 = vld [vmem:[%s258 + $0x18] sm:$0xf]
      %v280 = vld [vmem:[%s258 + $0x1c] sm:$0xf]
      %v281 = vld [vmem:[%s1] sm:$0xf]
      %v282 = vld [vmem:[%s1 + $0x4] sm:$0xf]
      %v283 = vld [vmem:[%s1 + $0x8] sm:$0xf]
      %v284 = vld [vmem:[%s1 + $0xc] sm:$0xf]
      %v285 = vld [vmem:[%s1 + $0x10] sm:$0xf]
      %v286 = vld [vmem:[%s1 + $0x14] sm:$0xf]
      %v295 = vunpack.c.l.b16 %v273
      %v296 = vunpack.c.l.b16 %v274
      %v297 = vunpack.c.l.b16 %v275
      %v298 = vunpack.c.l.b16 %v276
      %v299 = vunpack.c.l.b16 %v277
      %v300 = vunpack.c.l.b16 %v278
      %v301 = vunpack.c.l.b16 %v279
      %v302 = vunpack.c.l.b16 %v280
      %v303 = vpack.c.b16 %v296, %v295
      %v304 = vpack.c.b16 %v298, %v297
      %v305 = vpack.c.b16 %v300, %v299
      %v306 = vpack.c.b16 %v302, %v301
      %v313 = vunpack.c.l.b16 %v281
      %v314 = vunpack.c.l.b16 %v282
      %v315 = vunpack.c.l.b16 %v283
      %v316 = vunpack.c.l.b16 %v284
      %v317 = vunpack.c.l.b16 %v285
      %v318 = vunpack.c.l.b16 %v286
      %v319 = vpack.c.b16 %v314, %v313
      %v320 = vpack.c.b16 %v316, %v315
      %v321 = vpack.c.b16 %v318, %v317
      %vm325 = vcmask 392192
      %v327 = vsel %vm325, %v303, 0
      %v330 = vsel %vm325, %v304, 0
      %v333 = vsel %vm325, %v305, 0
      %v336 = vsel %vm325, %v306, 0
      %338 = vmatprep.subr.bf16.mxu0 0
      %339 = vmatpush1.bf16.msra.mxu0 %v319
      %340 = vmatprep.subr.bf16.mxu0 0
      %341 = vmatpush1.bf16.msra.mxu0 %v320
      %342 = vmatprep.subr.bf16.mxu0 0
      %343 = vmatpush1.bf16.msra.mxu0 %v321
      %344 = vmatprep.subr.bf16.mxu0 0
      %345 = vmatpush1.bf16.msra.mxu0 0
      %346 = vmatprep.subr.bf16.mxu0 0
      %347 = vmatpush1.bf16.msra.mxu0 0
      %348 = vmatprep.subr.bf16.mxu0 0
      %349 = vmatpush1.bf16.msra.mxu0 0
      %350 = vmatprep.subr.bf16.mxu0 0
      %351 = vmatpush1.bf16.msra.mxu0 0
      %352 = vmatprep.subr.bf16.mxu0 0
      %353 = vmatpush1.bf16.msra.mxu0 0
      %354 = vmatprep.subr.bf16.mxu0 0
      %355 = vmatpush1.bf16.msra.mxu0 0
      %356 = vmatprep.subr.bf16.mxu0 0
      %357 = vmatpush1.bf16.msra.mxu0 0
      %358 = vmatprep.subr.bf16.mxu0 0
      %359 = vmatpush1.bf16.msra.mxu0 0
      %360 = vmatprep.subr.bf16.mxu0 0
      %361 = vmatpush1.bf16.msra.mxu0 0
      %362 = vmatprep.subr.bf16.mxu0 0
      %363 = vmatpush1.bf16.msra.mxu0 0
      %364 = vmatprep.subr.bf16.mxu0 0
      %365 = vmatpush1.bf16.msra.mxu0 0
      %366 = vmatprep.subr.bf16.mxu0 0
      %367 = vmatpush1.bf16.msra.mxu0 0
      %368 = vmatprep.subr.bf16.mxu0 0
      %369 = vmatpush1.bf16.msra.mxu0 0
      %370 = vmatprep.mubr.bf16.mxu0 0
      %371 = vmatmul.mubr.bf16.gmra.mrb[0].mxu0 %v327
      %v372 = vpop.f32.mrb[0].mxu0
      %v373 = vadd.f32 0.0, %v372
      %v374 = vpop.f32.mrb[0].mxu0
      %v375 = vpop.f32.mrb[0].mxu0
      %v376 = vadd.f32 0.0, %v375
      %v377 = vpop.f32.mrb[0].mxu0
      %378 = vmatprep.mubr.bf16.mxu0 0
      %379 = vmatmul.mubr.bf16.gmra.mrb[0].mxu0 %v330
      %v380 = vpop.f32.mrb[0].mxu0
      %v381 = vadd.f32 0.0, %v380
      %v382 = vpop.f32.mrb[0].mxu0
      %v383 = vpop.f32.mrb[0].mxu0
      %v384 = vadd.f32 0.0, %v383
      %v385 = vpop.f32.mrb[0].mxu0
      %386 = vmatprep.mubr.bf16.mxu0 0
      %387 = vmatmul.mubr.bf16.gmra.mrb[0].mxu0 %v333
      %v388 = vpop.f32.mrb[0].mxu0
      %v389 = vadd.f32 0.0, %v388
      %v390 = vpop.f32.mrb[0].mxu0
      %v391 = vpop.f32.mrb[0].mxu0
      %v392 = vadd.f32 0.0, %v391
      %v393 = vpop.f32.mrb[0].mxu0
      %394 = vmatprep.mubr.bf16.mxu0 0
      %395 = vmatmul.mubr.bf16.gmra.mrb[0].mxu0 %v336
      %v396 = vpop.f32.mrb[0].mxu0
      %v397 = vadd.f32 0.0, %v396
      %v398 = vpop.f32.mrb[0].mxu0
      %v399 = vpop.f32.mrb[0].mxu0
      %v400 = vadd.f32 0.0, %v399
      %v401 = vpop.f32.mrb[0].mxu0
      %402 = vdwg.mxu0
      %v403 = vadd.f32 %v373, %v376
      %v404 = vadd.f32 %v403, %v381
      %v405 = vadd.f32 %v404, %v384
      %v406 = vadd.f32 %v405, %v389
      %v407 = vadd.f32 %v406, %v392
      %v408 = vadd.f32 %v407, %v397
      %v409 = vadd.f32 %v408, %v400
      %v410 = vrot.slane %v409, 4
      %v411 = vadd.f32 %v409, %v410
      %v412 = vrot.slane %v411, 2
      %v413 = vadd.f32 %v411, %v412
      %v414 = vrot.slane %v413, 1
      %v415 = vadd.f32 %v413, %v414
      %416 = vst [vmem:[%s268] sm:$0x1] %v415
      %v417 = vmul.f32 %v373, %v373
      %v418 = vmul.f32 %v376, %v376
      %v419 = vmul.f32 %v381, %v381
      %v420 = vmul.f32 %v384, %v384
      %v421 = vmul.f32 %v389, %v389
      %v422 = vmul.f32 %v392, %v392
      %v423 = vmul.f32 %v397, %v397
      %v424 = vmul.f32 %v400, %v400
      %v425 = vadd.f32 %v417, %v418
      %v426 = vadd.f32 %v425, %v419
      %v427 = vadd.f32 %v426, %v420
      %v428 = vadd.f32 %v427, %v421
      %v429 = vadd.f32 %v428, %v422
      %v430 = vadd.f32 %v429, %v423
      %v431 = vadd.f32 %v430, %v424
      %v432 = vrot.slane %v431, 4
      %v433 = vadd.f32 %v431, %v432
      %v434 = vrot.slane %v433, 2
      %v435 = vadd.f32 %v433, %v434
      %v436 = vrot.slane %v435, 1
      %v437 = vadd.f32 %v435, %v436
      %438 = vst [vmem:[%s271] sm:$0x1] %v437
      %v439 = vld [vmem:[%s2] sm:$0x1]
      %v441 = vlaneseq
      %v442 = vshrl.u32 %v441, 7
      %v443 = vsub.s32 0, %v442
      %v444 = vrot.slane %v439, %v443
      %v446 = vmul.f32 %v373, %v444
      %v447 = vmul.f32 %v376, %v444
      %v448 = vmul.f32 %v381, %v444
      %v449 = vmul.f32 %v384, %v444
      %v450 = vmul.f32 %v389, %v444
      %v451 = vmul.f32 %v392, %v444
      %v452 = vmul.f32 %v397, %v444
      %v453 = vmul.f32 %v400, %v444
      %v454 = vld [vmem:[%s3] sm:$0x1]
      %v456 = vlaneseq
      %v457 = vshrl.u32 %v456, 7
      %v458 = vsub.s32 0, %v457
      %v459 = vrot.slane %v454, %v458
      %v461 = vadd.f32 %v446, %v459
      %v462 = vadd.f32 %v447, %v459
      %v463 = vadd.f32 %v448, %v459
      %v464 = vadd.f32 %v449, %v459
      %v465 = vadd.f32 %v450, %v459
      %v466 = vadd.f32 %v451, %v459
      %v467 = vadd.f32 %v452, %v459
      %v468 = vadd.f32 %v453, %v459
      %469 = vst [vmem:[%s264] sm:$0xff] %v461
      %470 = vst [vmem:[%s264 + $0x8] sm:$0xff] %v462
      %471 = vst [vmem:[%s264 + $0x10] sm:$0xff] %v463
      %472 = vst [vmem:[%s264 + $0x18] sm:$0xff] %v464
      %473 = vst [vmem:[%s264 + $0x20] sm:$0xff] %v465
      %474 = vst [vmem:[%s264 + $0x28] sm:$0xff] %v466
      %475 = vst [vmem:[%s264 + $0x30] sm:$0xff] %v467
      %476 = vst [vmem:[%s264 + $0x38] sm:$0xff] %v468
      %s477 = smul.u32 8, %s18
      %p478 = scmp.lt.s32.totalorder %s477, 15
      %s479 = scalar_select %p478, %s477, 15
      %s480 = smul.addr %s479, 8
      %s481 = scalar_lea.vmem %s4, %s480
      %p482 = scmp.lt.s32.totalorder %s18, 1
      %s483 = scalar_select %p482, %s18, 1
      %s484 = scalar_lea.vmem %s5, %s483
      %p485 = scmp.lt.s32.totalorder %s18, 1
      %s486 = scalar_select %p485, %s18, 1
      %s487 = scalar_lea.vmem %s6, %s486
      // Predicated region
      $region37: #{vqvae_forward.16} parent=35 // pred_check
        %p488 = pneg %p125
      $region38: #{vqvae_forward.16} parent=35 // pred_check_branch
        %490 = sbr.rel (%p488) target = $region40
      $region39: #{vqvae_forward.16} parent=35 // pred_region
        %s491 = smul.u32 8, %s18
      $region40: #{vqvae_forward.16} parent=35 // pred_fallthru
        _
      // Predicated region
      $region41: #{vqvae_forward.16} parent=35 // pred_check
        %p492 = pneg %p151
      $region42: #{vqvae_forward.16} parent=35 // pred_check_branch
        %494 = sbr.rel (%p492) target = $region44
      $region43: #{vqvae_forward.16} parent=35 // pred_region
        _
      $region44: #{vqvae_forward.16} parent=35 // pred_fallthru
        _
      // Predicated region
      $region45: #{vqvae_forward.16} parent=35 // pred_check
        %p495 = pneg %p177
      $region46: #{vqvae_forward.16} parent=35 // pred_check_branch
        %497 = sbr.rel (%p495) target = $region48
      $region47: #{vqvae_forward.16} parent=35 // pred_region
        _
      $region48: #{vqvae_forward.16} parent=35 // pred_fallthru
        _
    $region36: #{vqvae_forward.16} parent=5 // pred_fallthru
      _
    %p498 = scmp.le.s32.totalorder 2, %s13
    // Predicated region
    $region49: #{vqvae_forward.16} parent=5 // pred_check
      %p499 = pneg %p498
    $region50: #{vqvae_forward.16} parent=5 // pred_check_branch
      %501 = sbr.rel (%p499) target = $region52
    $region51: #{vqvae_forward.16} parent=5 // pred_region
      %s502 = ssub.s32 %s13, 2
      // Predicated region
      $region53: #{vqvae_forward.16} parent=51 // pred_check
        %p503 = pneg %p131
      $region54: #{vqvae_forward.16} parent=51 // pred_check_branch
        %505 = sbr.rel (%p503) target = $region56
      $region55: #{vqvae_forward.16} parent=51 // pred_region
        %s506 = smul.u32 8, %s19
        %p507 = scmp.lt.s32.totalorder %s506, 15
        %s508 = scalar_select %p507, %s506, 15
        %s509 = smul.addr %s508, 8
        %s510 = scalar_lea.vmem %s4, %s509
      $region56: #{vqvae_forward.16} parent=51 // pred_fallthru
        _
      // Predicated region
      $region57: #{vqvae_forward.16} parent=51 // pred_check
        %p511 = pneg %p157
      $region58: #{vqvae_forward.16} parent=51 // pred_check_branch
        %513 = sbr.rel (%p511) target = $region60
      $region59: #{vqvae_forward.16} parent=51 // pred_region
        %p514 = scmp.lt.s32.totalorder %s19, 1
        %s515 = scalar_select %p514, %s19, 1
        %s516 = scalar_lea.vmem %s5, %s515
      $region60: #{vqvae_forward.16} parent=51 // pred_fallthru
        _
      // Predicated region
      $region61: #{vqvae_forward.16} parent=51 // pred_check
        %p517 = pneg %p183
      $region62: #{vqvae_forward.16} parent=51 // pred_check_branch
        %519 = sbr.rel (%p517) target = $region64
      $region63: #{vqvae_forward.16} parent=51 // pred_region
        %p520 = scmp.lt.s32.totalorder %s19, 1
        %s521 = scalar_select %p520, %s19, 1
        %s522 = scalar_lea.vmem %s6, %s521
      $region64: #{vqvae_forward.16} parent=51 // pred_fallthru
        _
    $region52: #{vqvae_forward.16} parent=5 // pred_fallthru
      _
  $region6: #{vqvae_forward.16} parent=0 // loop_footer
    %s17 = sadd.s32 1, %s13
  $region7: #{vqvae_forward.16} parent=0 // loop_footer_branch
    %12 = sbr.rel target = $region3
  $region8: #{vqvae_forward.16} parent=0 // loop_exit
    _

// kernel: vqvae_forward.19
$region0: #{vqvae_forward.19}
  #allocation0 [shape = 'u32[]', space=smem, size = 0x4, offset = 0x4, fixed_abs, tag = 'smem constant byte address 0x4 - core index']
  #allocation1 [shape = 'u32[144,128]{1,0:T(1,128)}', space=vmem, size = 0x12000, scoped, tag = 'internal scratch']
  %s0 = inlined_call_operand.vmem [shape: f32[32,128], index: 0, kind: input, shape index: {}]
  %s1 = inlined_call_operand.vmem [shape: f32[1,128], index: 1, kind: input, shape index: {}]
  %s2 = inlined_call_operand.vmem [shape: f32[1,128], index: 2, kind: input, shape index: {}]
  %s3 = inlined_call_operand.vmem [shape: f32[32,128], index: 3, kind: output, shape index: {}]
  %s4 = sld [smem:[#allocation0]]
  $region45: #{vqvae_forward.19} parent=0
    _
  %s6 = ssub.s32 1, %s4
  %s7 = scalar_select 0, %s6, %s4
  loop: start=0, step=1, limit=4
  $region2: #{vqvae_forward.19} parent=0 // loop_pre_header
    _
  $region3: #{vqvae_forward.19} parent=0 // loop_header
    %s9 = sphi 0, %s13
    %p10 = scmp.ge.s32.totalorder %s9, 4
    %s19 = sphi 0, %s21
    %s22 = sphi 0, %s19
    %s23 = sphi 0, %s22
    %s39 = sphi 0, %s23
    %s43 = sphi 0, %s43
    %s45 = sphi 0, %s43
    %s46 = sphi 0, %s45
    %s60 = sphi 0, %s46
    %s64 = sphi 0, %s64
    %s66 = sphi 0, %s64
    %s67 = sphi 0, %s66
    %s81 = sphi 0, %s67
    %s87 = sphi 0, %s89
    %s90 = sphi 0, %s87
    %s91 = sphi 0, %s90
    %s107 = sphi 0, %s91
  $region4: #{vqvae_forward.19} parent=0 // loop_header_branch
    %12 = sbr.rel (%p10) target = $region8
  $region5: #{vqvae_forward.19} parent=0 // loop_body
    %s14 = ssub.s32 %s9, 1
    %s15 = ssub.s32 %s9, 2
    %s16 = sadd.s32 %s9, 1
    %s17 = ssub.s32 %s9, %s16
    %p18 = scmp.eq.s32.totalorder %s17, 0
    %s20 = sadd.s32 %s19, 1
    %s21 = scalar_select %p18, %s19, %s20
    %p24 = pneg %p18
    %p25 = scmp.eq.s32.totalorder %s9, 1
    %p26 = por %p24, %p25
    %p27 = scmp.ne.s32.totalorder %s19, %s22
    %p28 = scmp.eq.s32.totalorder %s9, 0
    %p29 = por %p27, %p28
    %p30 = scmp.ne.s32.totalorder %s19, %s22
    %p31 = scmp.eq.s32.totalorder %s14, 1
    %p32 = por %p30, %p31
    %p33 = scmp.ne.s32.totalorder %s22, %s23
    %p34 = scmp.eq.s32.totalorder %s14, 0
    %p35 = por %p33, %p34
    %p36 = scmp.ne.s32.totalorder %s22, %s23
    %p37 = scmp.eq.s32.totalorder %s15, 1
    %p38 = por %p36, %p37
    %p40 = scmp.ne.s32.totalorder %s23, %s39
    %p41 = scmp.eq.s32.totalorder %s15, 0
    %p42 = por %p40, %p41
    %s44 = sadd.s32 %s43, 1
    %p47 = scmp.eq.s32.totalorder %s9, 1
    %p48 = scmp.ne.s32.totalorder %s43, %s45
    %p49 = scmp.eq.s32.totalorder %s9, 0
    %p50 = por %p48, %p49
    %p51 = scmp.ne.s32.totalorder %s43, %s45
    %p52 = scmp.eq.s32.totalorder %s14, 1
    %p53 = por %p51, %p52
    %p54 = scmp.ne.s32.totalorder %s45, %s46
    %p55 = scmp.eq.s32.totalorder %s14, 0
    %p56 = por %p54, %p55
    %p57 = scmp.ne.s32.totalorder %s45, %s46
    %p58 = scmp.eq.s32.totalorder %s15, 1
    %p59 = por %p57, %p58
    %p61 = scmp.ne.s32.totalorder %s46, %s60
    %p62 = scmp.eq.s32.totalorder %s15, 0
    %p63 = por %p61, %p62
    %s65 = sadd.s32 %s64, 1
    %p68 = scmp.eq.s32.totalorder %s9, 1
    %p69 = scmp.ne.s32.totalorder %s64, %s66
    %p70 = scmp.eq.s32.totalorder %s9, 0
    %p71 = por %p69, %p70
    %p72 = scmp.ne.s32.totalorder %s64, %s66
    %p73 = scmp.eq.s32.totalorder %s14, 1
    %p74 = por %p72, %p73
    %p75 = scmp.ne.s32.totalorder %s66, %s67
    %p76 = scmp.eq.s32.totalorder %s14, 0
    %p77 = por %p75, %p76
    %p78 = scmp.ne.s32.totalorder %s66, %s67
    %p79 = scmp.eq.s32.totalorder %s15, 1
    %p80 = por %p78, %p79
    %p82 = scmp.ne.s32.totalorder %s67, %s81
    %p83 = scmp.eq.s32.totalorder %s15, 0
    %p84 = por %p82, %p83
    %s85 = ssub.s32 %s9, %s16
    %p86 = scmp.eq.s32.totalorder %s85, 0
    %s88 = sadd.s32 %s87, 1
    %s89 = scalar_select %p86, %s87, %s88
    %p92 = pneg %p86
    %p93 = scmp.eq.s32.totalorder %s9, 1
    %p94 = por %p92, %p93
    %p95 = scmp.ne.s32.totalorder %s87, %s90
    %p96 = scmp.eq.s32.totalorder %s9, 0
    %p97 = por %p95, %p96
    %p98 = scmp.ne.s32.totalorder %s87, %s90
    %p99 = scmp.eq.s32.totalorder %s14, 1
    %p100 = por %p98, %p99
    %p101 = scmp.ne.s32.totalorder %s90, %s91
    %p102 = scmp.eq.s32.totalorder %s14, 0
    %p103 = por %p101, %p102
    %p104 = scmp.ne.s32.totalorder %s90, %s91
    %p105 = scmp.eq.s32.totalorder %s15, 1
    %p106 = por %p104, %p105
    %p108 = scmp.ne.s32.totalorder %s91, %s107
    %p109 = scmp.eq.s32.totalorder %s15, 0
    %p110 = por %p108, %p109
    %p111 = scmp.le.s32.totalorder 1, %s9
    %p112 = scmp.lt.s32.totalorder %s9, 3
    %p113 = pnand %p111, %p112
    %p114 = pneg %p113
    // Predicated region
    $region9: #{vqvae_forward.19} parent=5 // pred_check
      _
    $region10: #{vqvae_forward.19} parent=5 // pred_check_branch
      %116 = sbr.rel (%p113) target = $region12
    $region11: #{vqvae_forward.19} parent=5 // pred_region
      %s117 = ssub.s32 %s9, 1
      // Predicated region
      $region13: #{vqvae_forward.19} parent=11 // pred_check
        %p118 = pneg %p56
      $region14: #{vqvae_forward.19} parent=11 // pred_check_branch
        %120 = sbr.rel (%p118) target = $region16
      $region15: #{vqvae_forward.19} parent=11 // pred_region
        _
      $region16: #{vqvae_forward.19} parent=11 // pred_fallthru
        _
      // Predicated region
      $region17: #{vqvae_forward.19} parent=11 // pred_check
        %p121 = pneg %p77
      $region18: #{vqvae_forward.19} parent=11 // pred_check_branch
        %123 = sbr.rel (%p121) target = $region20
      $region19: #{vqvae_forward.19} parent=11 // pred_region
        _
      $region20: #{vqvae_forward.19} parent=11 // pred_fallthru
        _
    $region12: #{vqvae_forward.19} parent=5 // pred_fallthru
      _
    %p124 = scmp.lt.s32.totalorder %s9, 2
    // Predicated region
    $region21: #{vqvae_forward.19} parent=5 // pred_check
      %p125 = pneg %p124
    $region22: #{vqvae_forward.19} parent=5 // pred_check_branch
      %127 = sbr.rel (%p125) target = $region24
    $region23: #{vqvae_forward.19} parent=5 // pred_region
      // Predicated region
      $region25: #{vqvae_forward.19} parent=23 // pred_check
        %p128 = pneg %p29
      $region26: #{vqvae_forward.19} parent=23 // pred_check_branch
        %130 = sbr.rel (%p128) target = $region28
      $region27: #{vqvae_forward.19} parent=23 // pred_region
        %s131 = smul.u32 2, %s9
        %p132 = scmp.lt.s32.totalorder %s131, 3
        %s133 = scalar_select %p132, %s131, 3
        %s134 = smul.addr %s133, 8
        %s135 = scalar_lea.vmem %s0, %s134
        %s136 = smul.u32 2, %s9
      $region28: #{vqvae_forward.19} parent=23 // pred_fallthru
        _
    $region24: #{vqvae_forward.19} parent=5 // pred_fallthru
      _
    %p137 = scmp.le.s32.totalorder 1, %s9
    %p138 = scmp.lt.s32.totalorder %s9, 3
    %p139 = pnand %p137, %p138
    %p140 = pneg %p139
    // Predicated region
    $region29: #{vqvae_forward.19} parent=5 // pred_check
      _
    $region30: #{vqvae_forward.19} parent=5 // pred_check_branch
      %142 = sbr.rel (%p139) target = $region32
    $region31: #{vqvae_forward.19} parent=5 // pred_region
      %s143 = ssub.s32 %s9, 1
      %s144 = smul.u32 2, %s14
      %p145 = scmp.lt.s32.totalorder %s144, 3
      %s146 = scalar_select %p145, %s144, 3
      %s147 = smul.addr %s146, 8
      %s148 = scalar_lea.vmem %s0, %s147
      %p149 = pneg %p35
      %p150 = pneg %p32
      %p151 = pneg %p56
      %p152 = pneg %p53
      %p153 = pneg %p77
      %p154 = pneg %p74
      %p155 = pneg %p103
      %p156 = pneg %p100
      %s157 = smul.u32 2, %s14
      %p158 = scmp.lt.s32.totalorder %s157, 3
      %s159 = scalar_select %p158, %s157, 3
      %s160 = smul.addr %s159, 8
      %s161 = scalar_lea.vmem %s3, %s160
      %s162 = smul.u32 2, %s14
      %p163 = scmp.lt.s32.totalorder %s162, 3
      %s164 = scalar_select %p163, %s162, 3
      %s165 = smul.addr %s164, 8
      %s166 = scalar_lea.vmem %s0, %s165
      %s167 = smul.u32 2, %s14
      %s168 = smul.u32 2, %s14
      %p169 = scmp.lt.s32.totalorder %s168, 3
      %s170 = scalar_select %p169, %s168, 3
      %s171 = smul.addr %s170, 8
      %s172 = scalar_lea.vmem %s3, %s171
      %s173 = smul.u32 2, %s14
      %v174 = vld [vmem:[%s166] sm:$0xff]
      %v175 = vld [vmem:[%s166 + $0x8] sm:$0xff]
      %v176 = vld [vmem:[%s1] sm:$0x1]
      %v178 = vlaneseq
      %v179 = vshrl.u32 %v178, 7
      %v180 = vsub.s32 0, %v179
      %v181 = vrot.slane %v176, %v180
      %v183 = vmul.f32 %v174, %v181
      %v184 = vmul.f32 %v175, %v181
      %v185 = vld [vmem:[%s2] sm:$0x1]
      %v187 = vlaneseq
      %v188 = vshrl.u32 %v187, 7
      %v189 = vsub.s32 0, %v188
      %v190 = vrot.slane %v185, %v189
      %v192 = vadd.f32 %v183, %v190
      %v193 = vadd.f32 %v184, %v190
      %v194 = vmax.f32 %v192, 0.0
      %v195 = vmax.f32 %v193, 0.0
      %196 = vst [vmem:[%s172] sm:$0xff] %v194
      %197 = vst [vmem:[%s172 + $0x8] sm:$0xff] %v195
      %s198 = smul.u32 2, %s14
      %p199 = scmp.lt.s32.totalorder %s198, 3
      %s200 = scalar_select %p199, %s198, 3
      %s201 = smul.addr %s200, 8
      %s202 = scalar_lea.vmem %s3, %s201
      // Predicated region
      $region33: #{vqvae_forward.19} parent=31 // pred_check
        %p203 = pneg %p100
      $region34: #{vqvae_forward.19} parent=31 // pred_check_branch
        %205 = sbr.rel (%p203) target = $region36
      $region35: #{vqvae_forward.19} parent=31 // pred_region
        %s206 = smul.u32 2, %s14
      $region36: #{vqvae_forward.19} parent=31 // pred_fallthru
        _
    $region32: #{vqvae_forward.19} parent=5 // pred_fallthru
      _
    %p207 = scmp.le.s32.totalorder 2, %s9
    // Predicated region
    $region37: #{vqvae_forward.19} parent=5 // pred_check
      %p208 = pneg %p207
    $region38: #{vqvae_forward.19} parent=5 // pred_check_branch
      %210 = sbr.rel (%p208) target = $region40
    $region39: #{vqvae_forward.19} parent=5 // pred_region
      %s211 = ssub.s32 %s9, 2
      // Predicated region
      $region41: #{vqvae_forward.19} parent=39 // pred_check
        %p212 = pneg %p106
      $region42: #{vqvae_forward.19} parent=39 // pred_check_branch
        %214 = sbr.rel (%p212) target = $region44
      $region43: #{vqvae_forward.19} parent=39 // pred_region
        %s215 = smul.u32 2, %s15
        %p216 = scmp.lt.s32.totalorder %s215, 3
        %s217 = scalar_select %p216, %s215, 3
        %s218 = smul.addr %s217, 8
        %s219 = scalar_lea.vmem %s3, %s218
      $region44: #{vqvae_forward.19} parent=39 // pred_fallthru
        _
    $region40: #{vqvae_forward.19} parent=5 // pred_fallthru
      _
  $region6: #{vqvae_forward.19} parent=0 // loop_footer
    %s13 = sadd.s32 1, %s9
  $region7: #{vqvae_forward.19} parent=0 // loop_footer_branch
    %8 = sbr.rel target = $region3
  $region8: #{vqvae_forward.19} parent=0 // loop_exit
    _

// kernel: vqvae_forward.18
$region0: #{vqvae_forward.18}
  #allocation0 [shape = 'u32[]', space=smem, size = 0x4, offset = 0x4, fixed_abs, tag = 'smem constant byte address 0x4 - core index']
  #allocation1 [shape = 'u32[144,128]{1,0:T(1,128)}', space=vmem, size = 0x12000, scoped, tag = 'internal scratch']
  %s0 = inlined_call_operand.vmem [shape: bf16[32,2048], index: 0, kind: input, shape index: {}]
  %s1 = inlined_call_operand.vmem [shape: bf16[2048,128], index: 1, kind: input, shape index: {}]
  %s2 = inlined_call_operand.vmem [shape: f32[1,128], index: 2, kind: input, shape index: {}]
  %s3 = inlined_call_operand.vmem [shape: f32[1,128], index: 3, kind: input, shape index: {}]
  %s4 = inlined_call_operand.vmem [shape: f32[32,128], index: 4, kind: output, shape index: {0}]
  %s5 = inlined_call_operand.vmem [shape: f32[2,1,128], index: 5, kind: output, shape index: {1}]
  %s6 = inlined_call_operand.vmem [shape: f32[2,1,128], index: 6, kind: output, shape index: {2}]
  %7 = xla_tuple %s4, %s5, %s6
  %s8 = sld [smem:[#allocation0]]
  $region65: #{vqvae_forward.18} parent=0
    _
  %s10 = ssub.s32 1, %s8
  %s11 = scalar_select 0, %s10, %s8
  loop: start=0, step=1, limit=4
  $region2: #{vqvae_forward.18} parent=0 // loop_pre_header
    _
  $region3: #{vqvae_forward.18} parent=0 // loop_header
    %s13 = sphi 0, %s17
    %p14 = scmp.ge.s32.totalorder %s13, 4
    %s23 = sphi 0, %s25
    %s26 = sphi 0, %s23
    %s27 = sphi 0, %s26
    %s43 = sphi 0, %s27
    %s47 = sphi 0, %s47
    %s49 = sphi 0, %s47
    %s50 = sphi 0, %s49
    %s64 = sphi 0, %s50
    %s68 = sphi 0, %s68
    %s70 = sphi 0, %s68
    %s71 = sphi 0, %s70
    %s85 = sphi 0, %s71
    %s89 = sphi 0, %s89
    %s91 = sphi 0, %s89
    %s92 = sphi 0, %s91
    %s106 = sphi 0, %s92
    %s112 = sphi 0, %s114
    %s115 = sphi 0, %s112
    %s116 = sphi 0, %s115
    %s132 = sphi 0, %s116
    %s138 = sphi 0, %s140
    %s141 = sphi 0, %s138
    %s142 = sphi 0, %s141
    %s158 = sphi 0, %s142
    %s164 = sphi 0, %s166
    %s167 = sphi 0, %s164
    %s168 = sphi 0, %s167
    %s184 = sphi 0, %s168
  $region4: #{vqvae_forward.18} parent=0 // loop_header_branch
    %16 = sbr.rel (%p14) target = $region8
  $region5: #{vqvae_forward.18} parent=0 // loop_body
    %s18 = ssub.s32 %s13, 1
    %s19 = ssub.s32 %s13, 2
    %s20 = sadd.s32 %s13, 1
    %s21 = ssub.s32 %s13, %s20
    %p22 = scmp.eq.s32.totalorder %s21, 0
    %s24 = sadd.s32 %s23, 1
    %s25 = scalar_select %p22, %s23, %s24
    %p28 = pneg %p22
    %p29 = scmp.eq.s32.totalorder %s13, 1
    %p30 = por %p28, %p29
    %p31 = scmp.ne.s32.totalorder %s23, %s26
    %p32 = scmp.eq.s32.totalorder %s13, 0
    %p33 = por %p31, %p32
    %p34 = scmp.ne.s32.totalorder %s23, %s26
    %p35 = scmp.eq.s32.totalorder %s18, 1
    %p36 = por %p34, %p35
    %p37 = scmp.ne.s32.totalorder %s26, %s27
    %p38 = scmp.eq.s32.totalorder %s18, 0
    %p39 = por %p37, %p38
    %p40 = scmp.ne.s32.totalorder %s26, %s27
    %p41 = scmp.eq.s32.totalorder %s19, 1
    %p42 = por %p40, %p41
    %p44 = scmp.ne.s32.totalorder %s27, %s43
    %p45 = scmp.eq.s32.totalorder %s19, 0
    %p46 = por %p44, %p45
    %s48 = sadd.s32 %s47, 1
    %p51 = scmp.eq.s32.totalorder %s13, 1
    %p52 = scmp.ne.s32.totalorder %s47, %s49
    %p53 = scmp.eq.s32.totalorder %s13, 0
    %p54 = por %p52, %p53
    %p55 = scmp.ne.s32.totalorder %s47, %s49
    %p56 = scmp.eq.s32.totalorder %s18, 1
    %p57 = por %p55, %p56
    %p58 = scmp.ne.s32.totalorder %s49, %s50
    %p59 = scmp.eq.s32.totalorder %s18, 0
    %p60 = por %p58, %p59
    %p61 = scmp.ne.s32.totalorder %s49, %s50
    %p62 = scmp.eq.s32.totalorder %s19, 1
    %p63 = por %p61, %p62
    %p65 = scmp.ne.s32.totalorder %s50, %s64
    %p66 = scmp.eq.s32.totalorder %s19, 0
    %p67 = por %p65, %p66
    %s69 = sadd.s32 %s68, 1
    %p72 = scmp.eq.s32.totalorder %s13, 1
    %p73 = scmp.ne.s32.totalorder %s68, %s70
    %p74 = scmp.eq.s32.totalorder %s13, 0
    %p75 = por %p73, %p74
    %p76 = scmp.ne.s32.totalorder %s68, %s70
    %p77 = scmp.eq.s32.totalorder %s18, 1
    %p78 = por %p76, %p77
    %p79 = scmp.ne.s32.totalorder %s70, %s71
    %p80 = scmp.eq.s32.totalorder %s18, 0
    %p81 = por %p79, %p80
    %p82 = scmp.ne.s32.totalorder %s70, %s71
    %p83 = scmp.eq.s32.totalorder %s19, 1
    %p84 = por %p82, %p83
    %p86 = scmp.ne.s32.totalorder %s71, %s85
    %p87 = scmp.eq.s32.totalorder %s19, 0
    %p88 = por %p86, %p87
    %s90 = sadd.s32 %s89, 1
    %p93 = scmp.eq.s32.totalorder %s13, 1
    %p94 = scmp.ne.s32.totalorder %s89, %s91
    %p95 = scmp.eq.s32.totalorder %s13, 0
    %p96 = por %p94, %p95
    %p97 = scmp.ne.s32.totalorder %s89, %s91
    %p98 = scmp.eq.s32.totalorder %s18, 1
    %p99 = por %p97, %p98
    %p100 = scmp.ne.s32.totalorder %s91, %s92
    %p101 = scmp.eq.s32.totalorder %s18, 0
    %p102 = por %p100, %p101
    %p103 = scmp.ne.s32.totalorder %s91, %s92
    %p104 = scmp.eq.s32.totalorder %s19, 1
    %p105 = por %p103, %p104
    %p107 = scmp.ne.s32.totalorder %s92, %s106
    %p108 = scmp.eq.s32.totalorder %s19, 0
    %p109 = por %p107, %p108
    %s110 = ssub.s32 %s13, %s20
    %p111 = scmp.eq.s32.totalorder %s110, 0
    %s113 = sadd.s32 %s112, 1
    %s114 = scalar_select %p111, %s112, %s113
    %p117 = pneg %p111
    %p118 = scmp.eq.s32.totalorder %s13, 1
    %p119 = por %p117, %p118
    %p120 = scmp.ne.s32.totalorder %s112, %s115
    %p121 = scmp.eq.s32.totalorder %s13, 0
    %p122 = por %p120, %p121
    %p123 = scmp.ne.s32.totalorder %s112, %s115
    %p124 = scmp.eq.s32.totalorder %s18, 1
    %p125 = por %p123, %p124
    %p126 = scmp.ne.s32.totalorder %s115, %s116
    %p127 = scmp.eq.s32.totalorder %s18, 0
    %p128 = por %p126, %p127
    %p129 = scmp.ne.s32.totalorder %s115, %s116
    %p130 = scmp.eq.s32.totalorder %s19, 1
    %p131 = por %p129, %p130
    %p133 = scmp.ne.s32.totalorder %s116, %s132
    %p134 = scmp.eq.s32.totalorder %s19, 0
    %p135 = por %p133, %p134
    %s136 = ssub.s32 %s13, %s20
    %p137 = scmp.eq.s32.totalorder %s136, 0
    %s139 = sadd.s32 %s138, 1
    %s140 = scalar_select %p137, %s138, %s139
    %p143 = pneg %p137
    %p144 = scmp.eq.s32.totalorder %s13, 1
    %p145 = por %p143, %p144
    %p146 = scmp.ne.s32.totalorder %s138, %s141
    %p147 = scmp.eq.s32.totalorder %s13, 0
    %p148 = por %p146, %p147
    %p149 = scmp.ne.s32.totalorder %s138, %s141
    %p150 = scmp.eq.s32.totalorder %s18, 1
    %p151 = por %p149, %p150
    %p152 = scmp.ne.s32.totalorder %s141, %s142
    %p153 = scmp.eq.s32.totalorder %s18, 0
    %p154 = por %p152, %p153
    %p155 = scmp.ne.s32.totalorder %s141, %s142
    %p156 = scmp.eq.s32.totalorder %s19, 1
    %p157 = por %p155, %p156
    %p159 = scmp.ne.s32.totalorder %s142, %s158
    %p160 = scmp.eq.s32.totalorder %s19, 0
    %p161 = por %p159, %p160
    %s162 = ssub.s32 %s13, %s20
    %p163 = scmp.eq.s32.totalorder %s162, 0
    %s165 = sadd.s32 %s164, 1
    %s166 = scalar_select %p163, %s164, %s165
    %p169 = pneg %p163
    %p170 = scmp.eq.s32.totalorder %s13, 1
    %p171 = por %p169, %p170
    %p172 = scmp.ne.s32.totalorder %s164, %s167
    %p173 = scmp.eq.s32.totalorder %s13, 0
    %p174 = por %p172, %p173
    %p175 = scmp.ne.s32.totalorder %s164, %s167
    %p176 = scmp.eq.s32.totalorder %s18, 1
    %p177 = por %p175, %p176
    %p178 = scmp.ne.s32.totalorder %s167, %s168
    %p179 = scmp.eq.s32.totalorder %s18, 0
    %p180 = por %p178, %p179
    %p181 = scmp.ne.s32.totalorder %s167, %s168
    %p182 = scmp.eq.s32.totalorder %s19, 1
    %p183 = por %p181, %p182
    %p185 = scmp.ne.s32.totalorder %s168, %s184
    %p186 = scmp.eq.s32.totalorder %s19, 0
    %p187 = por %p185, %p186
    %p188 = scmp.le.s32.totalorder 1, %s13
    %p189 = scmp.lt.s32.totalorder %s13, 3
    %p190 = pnand %p188, %p189
    %p191 = pneg %p190
    // Predicated region
    $region9: #{vqvae_forward.18} parent=5 // pred_check
      _
    $region10: #{vqvae_forward.18} parent=5 // pred_check_branch
      %193 = sbr.rel (%p190) target = $region12
    $region11: #{vqvae_forward.18} parent=5 // pred_region
      %s194 = ssub.s32 %s13, 1
      // Predicated region
      $region13: #{vqvae_forward.18} parent=11 // pred_check
        %p195 = pneg %p60
      $region14: #{vqvae_forward.18} parent=11 // pred_check_branch
        %197 = sbr.rel (%p195) target = $region16
      $region15: #{vqvae_forward.18} parent=11 // pred_region
        _
      $region16: #{vqvae_forward.18} parent=11 // pred_fallthru
        _
      // Predicated region
      $region17: #{vqvae_forward.18} parent=11 // pred_check
        %p198 = pneg %p81
      $region18: #{vqvae_forward.18} parent=11 // pred_check_branch
        %200 = sbr.rel (%p198) target = $region20
      $region19: #{vqvae_forward.18} parent=11 // pred_region
        _
      $region20: #{vqvae_forward.18} parent=11 // pred_fallthru
        _
      // Predicated region
      $region21: #{vqvae_forward.18} parent=11 // pred_check
        %p201 = pneg %p102
      $region22: #{vqvae_forward.18} parent=11 // pred_check_branch
        %203 = sbr.rel (%p201) target = $region24
      $region23: #{vqvae_forward.18} parent=11 // pred_region
        _
      $region24: #{vqvae_forward.18} parent=11 // pred_fallthru
        _
    $region12: #{vqvae_forward.18} parent=5 // pred_fallthru
      _
    %p204 = scmp.lt.s32.totalorder %s13, 2
    // Predicated region
    $region25: #{vqvae_forward.18} parent=5 // pred_check
      %p205 = pneg %p204
    $region26: #{vqvae_forward.18} parent=5 // pred_check_branch
      %207 = sbr.rel (%p205) target = $region28
    $region27: #{vqvae_forward.18} parent=5 // pred_region
      // Predicated region
      $region29: #{vqvae_forward.18} parent=27 // pred_check
        %p208 = pneg %p33
      $region30: #{vqvae_forward.18} parent=27 // pred_check_branch
        %210 = sbr.rel (%p208) target = $region32
      $region31: #{vqvae_forward.18} parent=27 // pred_region
        %s211 = smul.u32 2, %s13
        %p212 = scmp.lt.s32.totalorder %s211, 3
        %s213 = scalar_select %p212, %s211, 3
        %s214 = smul.addr %s213, 16
        %s215 = smul.addr %s214, 4
        %s216 = scalar_lea.vmem %s0, %s215
        %s217 = smul.u32 2, %s13
      $region32: #{vqvae_forward.18} parent=27 // pred_fallthru
        _
    $region28: #{vqvae_forward.18} parent=5 // pred_fallthru
      _
    %p218 = scmp.le.s32.totalorder 1, %s13
    %p219 = scmp.lt.s32.totalorder %s13, 3
    %p220 = pnand %p218, %p219
    %p221 = pneg %p220
    // Predicated region
    $region33: #{vqvae_forward.18} parent=5 // pred_check
      _
    $region34: #{vqvae_forward.18} parent=5 // pred_check_branch
      %223 = sbr.rel (%p220) target = $region36
    $region35: #{vqvae_forward.18} parent=5 // pred_region
      %s224 = ssub.s32 %s13, 1
      %s225 = smul.u32 2, %s18
      %p226 = scmp.lt.s32.totalorder %s225, 3
      %s227 = scalar_select %p226, %s225, 3
      %s228 = smul.addr %s227, 16
      %s229 = smul.addr %s228, 4
      %s230 = scalar_lea.vmem %s0, %s229
      %p231 = pneg %p39
      %p232 = pneg %p36
      %p233 = pneg %p60
      %p234 = pneg %p57
      %p235 = pneg %p81
      %p236 = pneg %p78
      %p237 = pneg %p102
      %p238 = pneg %p99
      %p239 = pneg %p128
      %p240 = pneg %p125
      %s241 = smul.u32 2, %s18
      %p242 = scmp.lt.s32.totalorder %s241, 3
      %s243 = scalar_select %p242, %s241, 3
      %s244 = smul.addr %s243, 8
      %s245 = scalar_lea.vmem %s4, %s244
      %p246 = pneg %p154
      %p247 = pneg %p151
      %p248 = scmp.lt.s32.totalorder %s18, 1
      %s249 = scalar_select %p248, %s18, 1
      %s250 = scalar_lea.vmem %s5, %s249
      %p251 = pneg %p180
      %p252 = pneg %p177
      %p253 = scmp.lt.s32.totalorder %s18, 1
      %s254 = scalar_select %p253, %s18, 1
      %s255 = scalar_lea.vmem %s6, %s254
      %s256 = smul.u32 2, %s18
      %p257 = scmp.lt.s32.totalorder %s256, 3
      %s258 = scalar_select %p257, %s256, 3
      %s259 = smul.addr %s258, 16
      %s260 = smul.addr %s259, 4
      %s261 = scalar_lea.vmem %s0, %s260
      %s262 = smul.u32 2, %s18
      %s263 = smul.u32 2, %s18
      %p264 = scmp.lt.s32.totalorder %s263, 3
      %s265 = scalar_select %p264, %s263, 3
      %s266 = smul.addr %s265, 8
      %s267 = scalar_lea.vmem %s4, %s266
      %s268 = smul.u32 2, %s18
      %p269 = scmp.lt.s32.totalorder %s18, 1
      %s270 = scalar_select %p269, %s18, 1
      %s271 = scalar_lea.vmem %s5, %s270
      %p272 = scmp.lt.s32.totalorder %s18, 1
      %s273 = scalar_select %p272, %s18, 1
      %s274 = scalar_lea.vmem %s6, %s273
      %v276 = vld [vmem:[%s261] sm:$0xff]
      %v277 = vld [vmem:[%s261 + $0x8] sm:$0xff]
      %v278 = vld [vmem:[%s261 + $0x10] sm:$0xff]
      %v279 = vld [vmem:[%s261 + $0x18] sm:$0xff]
      %v280 = vld [vmem:[%s261 + $0x20] sm:$0xff]
      %v281 = vld [vmem:[%s261 + $0x28] sm:$0xff]
      %v282 = vld [vmem:[%s261 + $0x30] sm:$0xff]
      %v283 = vld [vmem:[%s261 + $0x38] sm:$0xff]
      %v284 = vld [vmem:[%s261 + $0x40] sm:$0xff]
      %v285 = vld [vmem:[%s261 + $0x48] sm:$0xff]
      %v286 = vld [vmem:[%s261 + $0x50] sm:$0xff]
      %v287 = vld [vmem:[%s261 + $0x58] sm:$0xff]
      %v288 = vld [vmem:[%s261 + $0x60] sm:$0xff]
      %v289 = vld [vmem:[%s261 + $0x68] sm:$0xff]
      %v290 = vld [vmem:[%s261 + $0x70] sm:$0xff]
      %v291 = vld [vmem:[%s261 + $0x78] sm:$0xff]
      %v292 = vld [vmem:[%s1] sm:$0xf]
      %v293 = vld [vmem:[%s1 + $0x4] sm:$0xf]
      %v294 = vld [vmem:[%s1 + $0x8] sm:$0xf]
      %v295 = vld [vmem:[%s1 + $0xc] sm:$0xf]
      %v296 = vld [vmem:[%s1 + $0x10] sm:$0xf]
      %v297 = vld [vmem:[%s1 + $0x14] sm:$0xf]
      %v298 = vld [vmem:[%s1 + $0x18] sm:$0xf]
      %v299 = vld [vmem:[%s1 + $0x1c] sm:$0xf]
      %v300 = vld [vmem:[%s1 + $0x20] sm:$0xf]
      %v301 = vld [vmem:[%s1 + $0x24] sm:$0xf]
      %v302 = vld [vmem:[%s1 + $0x28] sm:$0xf]
      %v303 = vld [vmem:[%s1 + $0x2c] sm:$0xf]
      %v304 = vld [vmem:[%s1 + $0x30] sm:$0xf]
      %v305 = vld [vmem:[%s1 + $0x34] sm:$0xf]
      %v306 = vld [vmem:[%s1 + $0x38] sm:$0xf]
      %v307 = vld [vmem:[%s1 + $0x3c] sm:$0xf]
      %v308 = vld [vmem:[%s1 + $0x40] sm:$0xf]
      %v309 = vld [vmem:[%s1 + $0x44] sm:$0xf]
      %v310 = vld [vmem:[%s1 + $0x48] sm:$0xf]
      %v311 = vld [vmem:[%s1 + $0x4c] sm:$0xf]
      %v312 = vld [vmem:[%s1 + $0x50] sm:$0xf]
      %v313 = vld [vmem:[%s1 + $0x54] sm:$0xf]
      %v314 = vld [vmem:[%s1 + $0x58] sm:$0xf]
      %v315 = vld [vmem:[%s1 + $0x5c] sm:$0xf]
      %v316 = vld [vmem:[%s1 + $0x60] sm:$0xf]
      %v317 = vld [vmem:[%s1 + $0x64] sm:$0xf]
      %v318 = vld [vmem:[%s1 + $0x68] sm:$0xf]
      %v319 = vld [vmem:[%s1 + $0x6c] sm:$0xf]
      %v320 = vld [vmem:[%s1 + $0x70] sm:$0xf]
      %v321 = vld [vmem:[%s1 + $0x74] sm:$0xf]
      %v322 = vld [vmem:[%s1 + $0x78] sm:$0xf]
      %v323 = vld [vmem:[%s1 + $0x7c] sm:$0xf]
      %v324 = vld [vmem:[%s1 + $0x80] sm:$0xf]
      %v325 = vld [vmem:[%s1 + $0x84] sm:$0xf]
      %v326 = vld [vmem:[%s1 + $0x88] sm:$0xf]
      %v327 = vld [vmem:[%s1 + $0x8c] sm:$0xf]
      %v328 = vld [vmem:[%s1 + $0x90] sm:$0xf]
      %v329 = vld [vmem:[%s1 + $0x94] sm:$0xf]
      %v330 = vld [vmem:[%s1 + $0x98] sm:$0xf]
      %v331 = vld [vmem:[%s1 + $0x9c] sm:$0xf]
      %v332 = vld [vmem:[%s1 + $0xa0] sm:$0xf]
      %v333 = vld [vmem:[%s1 + $0xa4] sm:$0xf]
      %v334 = vld [vmem:[%s1 + $0xa8] sm:$0xf]
      %v335 = vld [vmem:[%s1 + $0xac] sm:$0xf]
      %v336 = vld [vmem:[%s1 + $0xb0] sm:$0xf]
      %v337 = vld [vmem:[%s1 + $0xb4] sm:$0xf]
      %v338 = vld [vmem:[%s1 + $0xb8] sm:$0xf]
      %v339 = vld [vmem:[%s1 + $0xbc] sm:$0xf]
      %v340 = vld [vmem:[%s1 + $0xc0] sm:$0xf]
      %v341 = vld [vmem:[%s1 + $0xc4] sm:$0xf]
      %v342 = vld [vmem:[%s1 + $0xc8] sm:$0xf]
      %v343 = vld [vmem:[%s1 + $0xcc] sm:$0xf]
      %v344 = vld [vmem:[%s1 + $0xd0] sm:$0xf]
      %v345 = vld [vmem:[%s1 + $0xd4] sm:$0xf]
      %v346 = vld [vmem:[%s1 + $0xd8] sm:$0xf]
      %v347 = vld [vmem:[%s1 + $0xdc] sm:$0xf]
      %v348 = vld [vmem:[%s1 + $0xe0] sm:$0xf]
      %v349 = vld [vmem:[%s1 + $0xe4] sm:$0xf]
      %v350 = vld [vmem:[%s1 + $0xe8] sm:$0xf]
      %v351 = vld [vmem:[%s1 + $0xec] sm:$0xf]
      %v352 = vld [vmem:[%s1 + $0xf0] sm:$0xf]
      %v353 = vld [vmem:[%s1 + $0xf4] sm:$0xf]
      %v354 = vld [vmem:[%s1 + $0xf8] sm:$0xf]
      %v355 = vld [vmem:[%s1 + $0xfc] sm:$0xf]
      %v356 = vld [vmem:[%s1 + $0x100] sm:$0xf]
      %v357 = vld [vmem:[%s1 + $0x104] sm:$0xf]
      %v358 = vld [vmem:[%s1 + $0x108] sm:$0xf]
      %v359 = vld [vmem:[%s1 + $0x10c] sm:$0xf]
      %v360 = vld [vmem:[%s1 + $0x110] sm:$0xf]
      %v361 = vld [vmem:[%s1 + $0x114] sm:$0xf]
      %v362 = vld [vmem:[%s1 + $0x118] sm:$0xf]
      %v363 = vld [vmem:[%s1 + $0x11c] sm:$0xf]
      %v364 = vld [vmem:[%s1 + $0x120] sm:$0xf]
      %v365 = vld [vmem:[%s1 + $0x124] sm:$0xf]
      %v366 = vld [vmem:[%s1 + $0x128] sm:$0xf]
      %v367 = vld [vmem:[%s1 + $0x12c] sm:$0xf]
      %v368 = vld [vmem:[%s1 + $0x130] sm:$0xf]
      %v369 = vld [vmem:[%s1 + $0x134] sm:$0xf]
      %v370 = vld [vmem:[%s1 + $0x138] sm:$0xf]
      %v371 = vld [vmem:[%s1 + $0x13c] sm:$0xf]
      %v372 = vld [vmem:[%s1 + $0x140] sm:$0xf]
      %v373 = vld [vmem:[%s1 + $0x144] sm:$0xf]
      %v374 = vld [vmem:[%s1 + $0x148] sm:$0xf]
      %v375 = vld [vmem:[%s1 + $0x14c] sm:$0xf]
      %v376 = vld [vmem:[%s1 + $0x150] sm:$0xf]
      %v377 = vld [vmem:[%s1 + $0x154] sm:$0xf]
      %v378 = vld [vmem:[%s1 + $0x158] sm:$0xf]
      %v379 = vld [vmem:[%s1 + $0x15c] sm:$0xf]
      %v380 = vld [vmem:[%s1 + $0x160] sm:$0xf]
      %v381 = vld [vmem:[%s1 + $0x164] sm:$0xf]
      %v382 = vld [vmem:[%s1 + $0x168] sm:$0xf]
      %v383 = vld [vmem:[%s1 + $0x16c] sm:$0xf]
      %v384 = vld [vmem:[%s1 + $0x170] sm:$0xf]
      %v385 = vld [vmem:[%s1 + $0x174] sm:$0xf]
      %v386 = vld [vmem:[%s1 + $0x178] sm:$0xf]
      %v387 = vld [vmem:[%s1 + $0x17c] sm:$0xf]
      %v388 = vld [vmem:[%s1 + $0x180] sm:$0xf]
      %v389 = vld [vmem:[%s1 + $0x184] sm:$0xf]
      %v390 = vld [vmem:[%s1 + $0x188] sm:$0xf]
      %v391 = vld [vmem:[%s1 + $0x18c] sm:$0xf]
      %v392 = vld [vmem:[%s1 + $0x190] sm:$0xf]
      %v393 = vld [vmem:[%s1 + $0x194] sm:$0xf]
      %v394 = vld [vmem:[%s1 + $0x198] sm:$0xf]
      %v395 = vld [vmem:[%s1 + $0x19c] sm:$0xf]
      %v396 = vld [vmem:[%s1 + $0x1a0] sm:$0xf]
      %v397 = vld [vmem:[%s1 + $0x1a4] sm:$0xf]
      %v398 = vld [vmem:[%s1 + $0x1a8] sm:$0xf]
      %v399 = vld [vmem:[%s1 + $0x1ac] sm:$0xf]
      %v400 = vld [vmem:[%s1 + $0x1b0] sm:$0xf]
      %v401 = vld [vmem:[%s1 + $0x1b4] sm:$0xf]
      %v402 = vld [vmem:[%s1 + $0x1b8] sm:$0xf]
      %v403 = vld [vmem:[%s1 + $0x1bc] sm:$0xf]
      %v404 = vld [vmem:[%s1 + $0x1c0] sm:$0xf]
      %v405 = vld [vmem:[%s1 + $0x1c4] sm:$0xf]
      %v406 = vld [vmem:[%s1 + $0x1c8] sm:$0xf]
      %v407 = vld [vmem:[%s1 + $0x1cc] sm:$0xf]
      %v408 = vld [vmem:[%s1 + $0x1d0] sm:$0xf]
      %v409 = vld [vmem:[%s1 + $0x1d4] sm:$0xf]
      %v410 = vld [vmem:[%s1 + $0x1d8] sm:$0xf]
      %v411 = vld [vmem:[%s1 + $0x1dc] sm:$0xf]
      %v412 = vld [vmem:[%s1 + $0x1e0] sm:$0xf]
      %v413 = vld [vmem:[%s1 + $0x1e4] sm:$0xf]
      %v414 = vld [vmem:[%s1 + $0x1e8] sm:$0xf]
      %v415 = vld [vmem:[%s1 + $0x1ec] sm:$0xf]
      %v416 = vld [vmem:[%s1 + $0x1f0] sm:$0xf]
      %v417 = vld [vmem:[%s1 + $0x1f4] sm:$0xf]
      %v418 = vld [vmem:[%s1 + $0x1f8] sm:$0xf]
      %v419 = vld [vmem:[%s1 + $0x1fc] sm:$0xf]
      %v420 = vld [vmem:[%s1 + $0x200] sm:$0xf]
      %v421 = vld [vmem:[%s1 + $0x204] sm:$0xf]
      %v422 = vld [vmem:[%s1 + $0x208] sm:$0xf]
      %v423 = vld [vmem:[%s1 + $0x20c] sm:$0xf]
      %v424 = vld [vmem:[%s1 + $0x210] sm:$0xf]
      %v425 = vld [vmem:[%s1 + $0x214] sm:$0xf]
      %v426 = vld [vmem:[%s1 + $0x218] sm:$0xf]
      %v427 = vld [vmem:[%s1 + $0x21c] sm:$0xf]
      %v428 = vld [vmem:[%s1 + $0x220] sm:$0xf]
      %v429 = vld [vmem:[%s1 + $0x224] sm:$0xf]
      %v430 = vld [vmem:[%s1 + $0x228] sm:$0xf]
      %v431 = vld [vmem:[%s1 + $0x22c] sm:$0xf]
      %v432 = vld [vmem:[%s1 + $0x230] sm:$0xf]
      %v433 = vld [vmem:[%s1 + $0x234] sm:$0xf]
      %v434 = vld [vmem:[%s1 + $0x238] sm:$0xf]
      %v435 = vld [vmem:[%s1 + $0x23c] sm:$0xf]
      %v436 = vld [vmem:[%s1 + $0x240] sm:$0xf]
      %v437 = vld [vmem:[%s1 + $0x244] sm:$0xf]
      %v438 = vld [vmem:[%s1 + $0x248] sm:$0xf]
      %v439 = vld [vmem:[%s1 + $0x24c] sm:$0xf]
      %v440 = vld [vmem:[%s1 + $0x250] sm:$0xf]
      %v441 = vld [vmem:[%s1 + $0x254] sm:$0xf]
      %v442 = vld [vmem:[%s1 + $0x258] sm:$0xf]
      %v443 = vld [vmem:[%s1 + $0x25c] sm:$0xf]
      %v444 = vld [vmem:[%s1 + $0x260] sm:$0xf]
      %v445 = vld [vmem:[%s1 + $0x264] sm:$0xf]
      %v446 = vld [vmem:[%s1 + $0x268] sm:$0xf]
      %v447 = vld [vmem:[%s1 + $0x26c] sm:$0xf]
      %v448 = vld [vmem:[%s1 + $0x270] sm:$0xf]
      %v449 = vld [vmem:[%s1 + $0x274] sm:$0xf]
      %v450 = vld [vmem:[%s1 + $0x278] sm:$0xf]
      %v451 = vld [vmem:[%s1 + $0x27c] sm:$0xf]
      %v452 = vld [vmem:[%s1 + $0x280] sm:$0xf]
      %v453 = vld [vmem:[%s1 + $0x284] sm:$0xf]
      %v454 = vld [vmem:[%s1 + $0x288] sm:$0xf]
      %v455 = vld [vmem:[%s1 + $0x28c] sm:$0xf]
      %v456 = vld [vmem:[%s1 + $0x290] sm:$0xf]
      %v457 = vld [vmem:[%s1 + $0x294] sm:$0xf]
      %v458 = vld [vmem:[%s1 + $0x298] sm:$0xf]
      %v459 = vld [vmem:[%s1 + $0x29c] sm:$0xf]
      %v460 = vld [vmem:[%s1 + $0x2a0] sm:$0xf]
      %v461 = vld [vmem:[%s1 + $0x2a4] sm:$0xf]
      %v462 = vld [vmem:[%s1 + $0x2a8] sm:$0xf]
      %v463 = vld [vmem:[%s1 + $0x2ac] sm:$0xf]
      %v464 = vld [vmem:[%s1 + $0x2b0] sm:$0xf]
      %v465 = vld [vmem:[%s1 + $0x2b4] sm:$0xf]
      %v466 = vld [vmem:[%s1 + $0x2b8] sm:$0xf]
      %v467 = vld [vmem:[%s1 + $0x2bc] sm:$0xf]
      %v468 = vld [vmem:[%s1 + $0x2c0] sm:$0xf]
      %v469 = vld [vmem:[%s1 + $0x2c4] sm:$0xf]
      %v470 = vld [vmem:[%s1 + $0x2c8] sm:$0xf]
      %v471 = vld [vmem:[%s1 + $0x2cc] sm:$0xf]
      %v472 = vld [vmem:[%s1 + $0x2d0] sm:$0xf]
      %v473 = vld [vmem:[%s1 + $0x2d4] sm:$0xf]
      %v474 = vld [vmem:[%s1 + $0x2d8] sm:$0xf]
      %v475 = vld [vmem:[%s1 + $0x2dc] sm:$0xf]
      %v476 = vld [vmem:[%s1 + $0x2e0] sm:$0xf]
      %v477 = vld [vmem:[%s1 + $0x2e4] sm:$0xf]
      %v478 = vld [vmem:[%s1 + $0x2e8] sm:$0xf]
      %v479 = vld [vmem:[%s1 + $0x2ec] sm:$0xf]
      %v480 = vld [vmem:[%s1 + $0x2f0] sm:$0xf]
      %v481 = vld [vmem:[%s1 + $0x2f4] sm:$0xf]
      %v482 = vld [vmem:[%s1 + $0x2f8] sm:$0xf]
      %v483 = vld [vmem:[%s1 + $0x2fc] sm:$0xf]
      %v484 = vld [vmem:[%s1 + $0x300] sm:$0xf]
      %v485 = vld [vmem:[%s1 + $0x304] sm:$0xf]
      %v486 = vld [vmem:[%s1 + $0x308] sm:$0xf]
      %v487 = vld [vmem:[%s1 + $0x30c] sm:$0xf]
      %v488 = vld [vmem:[%s1 + $0x310] sm:$0xf]
      %v489 = vld [vmem:[%s1 + $0x314] sm:$0xf]
      %v490 = vld [vmem:[%s1 + $0x318] sm:$0xf]
      %v491 = vld [vmem:[%s1 + $0x31c] sm:$0xf]
      %v492 = vld [vmem:[%s1 + $0x320] sm:$0xf]
      %v493 = vld [vmem:[%s1 + $0x324] sm:$0xf]
      %v494 = vld [vmem:[%s1 + $0x328] sm:$0xf]
      %v495 = vld [vmem:[%s1 + $0x32c] sm:$0xf]
      %v496 = vld [vmem:[%s1 + $0x330] sm:$0xf]
      %v497 = vld [vmem:[%s1 + $0x334] sm:$0xf]
      %v498 = vld [vmem:[%s1 + $0x338] sm:$0xf]
      %v499 = vld [vmem:[%s1 + $0x33c] sm:$0xf]
      %v500 = vld [vmem:[%s1 + $0x340] sm:$0xf]
      %v501 = vld [vmem:[%s1 + $0x344] sm:$0xf]
      %v502 = vld [vmem:[%s1 + $0x348] sm:$0xf]
      %v503 = vld [vmem:[%s1 + $0x34c] sm:$0xf]
      %v504 = vld [vmem:[%s1 + $0x350] sm:$0xf]
      %v505 = vld [vmem:[%s1 + $0x354] sm:$0xf]
      %v506 = vld [vmem:[%s1 + $0x358] sm:$0xf]
      %v507 = vld [vmem:[%s1 + $0x35c] sm:$0xf]
      %v508 = vld [vmem:[%s1 + $0x360] sm:$0xf]
      %v509 = vld [vmem:[%s1 + $0x364] sm:$0xf]
      %v510 = vld [vmem:[%s1 + $0x368] sm:$0xf]
      %v511 = vld [vmem:[%s1 + $0x36c] sm:$0xf]
      %v512 = vld [vmem:[%s1 + $0x370] sm:$0xf]
      %v513 = vld [vmem:[%s1 + $0x374] sm:$0xf]
      %v514 = vld [vmem:[%s1 + $0x378] sm:$0xf]
      %v515 = vld [vmem:[%s1 + $0x37c] sm:$0xf]
      %v516 = vld [vmem:[%s1 + $0x380] sm:$0xf]
      %v517 = vld [vmem:[%s1 + $0x384] sm:$0xf]
      %v518 = vld [vmem:[%s1 + $0x388] sm:$0xf]
      %v519 = vld [vmem:[%s1 + $0x38c] sm:$0xf]
      %v520 = vld [vmem:[%s1 + $0x390] sm:$0xf]
      %v521 = vld [vmem:[%s1 + $0x394] sm:$0xf]
      %v522 = vld [vmem:[%s1 + $0x398] sm:$0xf]
      %v523 = vld [vmem:[%s1 + $0x39c] sm:$0xf]
      %v524 = vld [vmem:[%s1 + $0x3a0] sm:$0xf]
      %v525 = vld [vmem:[%s1 + $0x3a4] sm:$0xf]
      %v526 = vld [vmem:[%s1 + $0x3a8] sm:$0xf]
      %v527 = vld [vmem:[%s1 + $0x3ac] sm:$0xf]
      %v528 = vld [vmem:[%s1 + $0x3b0] sm:$0xf]
      %v529 = vld [vmem:[%s1 + $0x3b4] sm:$0xf]
      %v530 = vld [vmem:[%s1 + $0x3b8] sm:$0xf]
      %v531 = vld [vmem:[%s1 + $0x3bc] sm:$0xf]
      %v532 = vld [vmem:[%s1 + $0x3c0] sm:$0xf]
      %v533 = vld [vmem:[%s1 + $0x3c4] sm:$0xf]
      %v534 = vld [vmem:[%s1 + $0x3c8] sm:$0xf]
      %v535 = vld [vmem:[%s1 + $0x3cc] sm:$0xf]
      %v536 = vld [vmem:[%s1 + $0x3d0] sm:$0xf]
      %v537 = vld [vmem:[%s1 + $0x3d4] sm:$0xf]
      %v538 = vld [vmem:[%s1 + $0x3d8] sm:$0xf]
      %v539 = vld [vmem:[%s1 + $0x3dc] sm:$0xf]
      %v540 = vld [vmem:[%s1 + $0x3e0] sm:$0xf]
      %v541 = vld [vmem:[%s1 + $0x3e4] sm:$0xf]
      %v542 = vld [vmem:[%s1 + $0x3e8] sm:$0xf]
      %v543 = vld [vmem:[%s1 + $0x3ec] sm:$0xf]
      %v544 = vld [vmem:[%s1 + $0x3f0] sm:$0xf]
      %v545 = vld [vmem:[%s1 + $0x3f4] sm:$0xf]
      %v546 = vld [vmem:[%s1 + $0x3f8] sm:$0xf]
      %v547 = vld [vmem:[%s1 + $0x3fc] sm:$0xf]
      %v564 = vunpack.c.l.b16 %v276
      %v565 = vunpack.c.h.b16 %v276
      %v566 = vunpack.c.l.b16 %v277
      %v567 = vunpack.c.h.b16 %v277
      %v568 = vunpack.c.l.b16 %v278
      %v569 = vunpack.c.h.b16 %v278
      %v570 = vunpack.c.l.b16 %v279
      %v571 = vunpack.c.h.b16 %v279
      %v572 = vunpack.c.l.b16 %v280
      %v573 = vunpack.c.h.b16 %v280
      %v574 = vunpack.c.l.b16 %v281
      %v575 = vunpack.c.h.b16 %v281
      %v576 = vunpack.c.l.b16 %v282
      %v577 = vunpack.c.h.b16 %v282
      %v578 = vunpack.c.l.b16 %v283
      %v579 = vunpack.c.h.b16 %v283
      %v580 = vunpack.c.l.b16 %v284
      %v581 = vunpack.c.h.b16 %v284
      %v582 = vunpack.c.l.b16 %v285
      %v583 = vunpack.c.h.b16 %v285
      %v584 = vunpack.c.l.b16 %v286
      %v585 = vunpack.c.h.b16 %v286
      %v586 = vunpack.c.l.b16 %v287
      %v587 = vunpack.c.h.b16 %v287
      %v588 = vunpack.c.l.b16 %v288
      %v589 = vunpack.c.h.b16 %v288
      %v590 = vunpack.c.l.b16 %v289
      %v591 = vunpack.c.h.b16 %v289
      %v592 = vunpack.c.l.b16 %v290
      %v593 = vunpack.c.h.b16 %v290
      %v594 = vunpack.c.l.b16 %v291
      %v595 = vunpack.c.h.b16 %v291
      %v596 = vpack.c.b16 %v580, %v564
      %v597 = vpack.c.b16 %v581, %v565
      %v598 = vpack.c.b16 %v582, %v566
      %v599 = vpack.c.b16 %v583, %v567
      %v600 = vpack.c.b16 %v584, %v568
      %v601 = vpack.c.b16 %v585, %v569
      %v602 = vpack.c.b16 %v586, %v570
      %v603 = vpack.c.b16 %v587, %v571
      %v604 = vpack.c.b16 %v588, %v572
      %v605 = vpack.c.b16 %v589, %v573
      %v606 = vpack.c.b16 %v590, %v574
      %v607 = vpack.c.b16 %v591, %v575
      %v608 = vpack.c.b16 %v592, %v576
      %v609 = vpack.c.b16 %v593, %v577
      %v610 = vpack.c.b16 %v594, %v578
      %v611 = vpack.c.b16 %v595, %v579
      %v884 = vunpack.c.l.b16 %v292
      %v885 = vunpack.c.l.b16 %v293
      %v886 = vunpack.c.l.b16 %v294
      %v887 = vunpack.c.l.b16 %v295
      %v888 = vunpack.c.l.b16 %v296
      %v889 = vunpack.c.l.b16 %v297
      %v890 = vunpack.c.l.b16 %v298
      %v891 = vunpack.c.l.b16 %v299
      %v892 = vunpack.c.l.b16 %v300
      %v893 = vunpack.c.l.b16 %v301
      %v894 = vunpack.c.l.b16 %v302
      %v895 = vunpack.c.l.b16 %v303
      %v896 = vunpack.c.l.b16 %v304
      %v897 = vunpack.c.l.b16 %v305
      %v898 = vunpack.c.l.b16 %v306
      %v899 = vunpack.c.l.b16 %v307
      %v900 = vunpack.c.l.b16 %v308
      %v901 = vunpack.c.l.b16 %v309
      %v902 = vunpack.c.l.b16 %v310
      %v903 = vunpack.c.l.b16 %v311
      %v904 = vunpack.c.l.b16 %v312
      %v905 = vunpack.c.l.b16 %v313
      %v906 = vunpack.c.l.b16 %v314
      %v907 = vunpack.c.l.b16 %v315
      %v908 = vunpack.c.l.b16 %v316
      %v909 = vunpack.c.l.b16 %v317
      %v910 = vunpack.c.l.b16 %v318
      %v911 = vunpack.c.l.b16 %v319
      %v912 = vunpack.c.l.b16 %v320
      %v913 = vunpack.c.l.b16 %v321
      %v914 = vunpack.c.l.b16 %v322
      %v915 = vunpack.c.l.b16 %v323
      %v916 = vunpack.c.l.b16 %v324
      %v917 = vunpack.c.l.b16 %v325
      %v918 = vunpack.c.l.b16 %v326
      %v919 = vunpack.c.l.b16 %v327
      %v920 = vunpack.c.l.b16 %v328
      %v921 = vunpack.c.l.b16 %v329
      %v922 = vunpack.c.l.b16 %v330
      %v923 = vunpack.c.l.b16 %v331
      %v924 = vunpack.c.l.b16 %v332
      %v925 = vunpack.c.l.b16 %v333
      %v926 = vunpack.c.l.b16 %v334
      %v927 = vunpack.c.l.b16 %v335
      %v928 = vunpack.c.l.b16 %v336
      %v929 = vunpack.c.l.b16 %v337
      %v930 = vunpack.c.l.b16 %v338
      %v931 = vunpack.c.l.b16 %v339
      %v932 = vunpack.c.l.b16 %v340
      %v933 = vunpack.c.l.b16 %v341
      %v934 = vunpack.c.l.b16 %v342
      %v935 = vunpack.c.l.b16 %v343
      %v936 = vunpack.c.l.b16 %v344
      %v937 = vunpack.c.l.b16 %v345
      %v938 = vunpack.c.l.b16 %v346
      %v939 = vunpack.c.l.b16 %v347
      %v940 = vunpack.c.l.b16 %v348
      %v941 = vunpack.c.l.b16 %v349
      %v942 = vunpack.c.l.b16 %v350
      %v943 = vunpack.c.l.b16 %v351
      %v944 = vunpack.c.l.b16 %v352
      %v945 = vunpack.c.l.b16 %v353
      %v946 = vunpack.c.l.b16 %v354
      %v947 = vunpack.c.l.b16 %v355
      %v948 = vunpack.c.l.b16 %v356
      %v949 = vunpack.c.l.b16 %v357
      %v950 = vunpack.c.l.b16 %v358
      %v951 = vunpack.c.l.b16 %v359
      %v952 = vunpack.c.l.b16 %v360
      %v953 = vunpack.c.l.b16 %v361
      %v954 = vunpack.c.l.b16 %v362
      %v955 = vunpack.c.l.b16 %v363
      %v956 = vunpack.c.l.b16 %v364
      %v957 = vunpack.c.l.b16 %v365
      %v958 = vunpack.c.l.b16 %v366
      %v959 = vunpack.c.l.b16 %v367
      %v960 = vunpack.c.l.b16 %v368
      %v961 = vunpack.c.l.b16 %v369
      %v962 = vunpack.c.l.b16 %v370
      %v963 = vunpack.c.l.b16 %v371
      %v964 = vunpack.c.l.b16 %v372
      %v965 = vunpack.c.l.b16 %v373
      %v966 = vunpack.c.l.b16 %v374
      %v967 = vunpack.c.l.b16 %v375
      %v968 = vunpack.c.l.b16 %v376
      %v969 = vunpack.c.l.b16 %v377
      %v970 = vunpack.c.l.b16 %v378
      %v971 = vunpack.c.l.b16 %v379
      %v972 = vunpack.c.l.b16 %v380
      %v973 = vunpack.c.l.b16 %v381
      %v974 = vunpack.c.l.b16 %v382
      %v975 = vunpack.c.l.b16 %v383
      %v976 = vunpack.c.l.b16 %v384
      %v977 = vunpack.c.l.b16 %v385
      %v978 = vunpack.c.l.b16 %v386
      %v979 = vunpack.c.l.b16 %v387
      %v980 = vunpack.c.l.b16 %v388
      %v981 = vunpack.c.l.b16 %v389
      %v982 = vunpack.c.l.b16 %v390
      %v983 = vunpack.c.l.b16 %v391
      %v984 = vunpack.c.l.b16 %v392
      %v985 = vunpack.c.l.b16 %v393
      %v986 = vunpack.c.l.b16 %v394
      %v987 = vunpack.c.l.b16 %v395
      %v988 = vunpack.c.l.b16 %v396
      %v989 = vunpack.c.l.b16 %v397
      %v990 = vunpack.c.l.b16 %v398
      %v991 = vunpack.c.l.b16 %v399
      %v992 = vunpack.c.l.b16 %v400
      %v993 = vunpack.c.l.b16 %v401
      %v994 = vunpack.c.l.b16 %v402
      %v995 = vunpack.c.l.b16 %v403
      %v996 = vunpack.c.l.b16 %v404
      %v997 = vunpack.c.l.b16 %v405
      %v998 = vunpack.c.l.b16 %v406
      %v999 = vunpack.c.l.b16 %v407
      %v1000 = vunpack.c.l.b16 %v408
      %v1001 = vunpack.c.l.b16 %v409
      %v1002 = vunpack.c.l.b16 %v410
      %v1003 = vunpack.c.l.b16 %v411
      %v1004 = vunpack.c.l.b16 %v412
      %v1005 = vunpack.c.l.b16 %v413
      %v1006 = vunpack.c.l.b16 %v414
      %v1007 = vunpack.c.l.b16 %v415
      %v1008 = vunpack.c.l.b16 %v416
      %v1009 = vunpack.c.l.b16 %v417
      %v1010 = vunpack.c.l.b16 %v418
      %v1011 = vunpack.c.l.b16 %v419
      %v1012 = vunpack.c.l.b16 %v420
      %v1013 = vunpack.c.l.b16 %v421
      %v1014 = vunpack.c.l.b16 %v422
      %v1015 = vunpack.c.l.b16 %v423
      %v1016 = vunpack.c.l.b16 %v424
      %v1017 = vunpack.c.l.b16 %v425
      %v1018 = vunpack.c.l.b16 %v426
      %v1019 = vunpack.c.l.b16 %v427
      %v1020 = vunpack.c.l.b16 %v428
      %v1021 = vunpack.c.l.b16 %v429
      %v1022 = vunpack.c.l.b16 %v430
      %v1023 = vunpack.c.l.b16 %v431
      %v1024 = vunpack.c.l.b16 %v432
      %v1025 = vunpack.c.l.b16 %v433
      %v1026 = vunpack.c.l.b16 %v434
      %v1027 = vunpack.c.l.b16 %v435
      %v1028 = vunpack.c.l.b16 %v436
      %v1029 = vunpack.c.l.b16 %v437
      %v1030 = vunpack.c.l.b16 %v438
      %v1031 = vunpack.c.l.b16 %v439
      %v1032 = vunpack.c.l.b16 %v440
      %v1033 = vunpack.c.l.b16 %v441
      %v1034 = vunpack.c.l.b16 %v442
      %v1035 = vunpack.c.l.b16 %v443
      %v1036 = vunpack.c.l.b16 %v444
      %v1037 = vunpack.c.l.b16 %v445
      %v1038 = vunpack.c.l.b16 %v446
      %v1039 = vunpack.c.l.b16 %v447
      %v1040 = vunpack.c.l.b16 %v448
      %v1041 = vunpack.c.l.b16 %v449
      %v1042 = vunpack.c.l.b16 %v450
      %v1043 = vunpack.c.l.b16 %v451
      %v1044 = vunpack.c.l.b16 %v452
      %v1045 = vunpack.c.l.b16 %v453
      %v1046 = vunpack.c.l.b16 %v454
      %v1047 = vunpack.c.l.b16 %v455
      %v1048 = vunpack.c.l.b16 %v456
      %v1049 = vunpack.c.l.b16 %v457
      %v1050 = vunpack.c.l.b16 %v458
      %v1051 = vunpack.c.l.b16 %v459
      %v1052 = vunpack.c.l.b16 %v460
      %v1053 = vunpack.c.l.b16 %v461
      %v1054 = vunpack.c.l.b16 %v462
      %v1055 = vunpack.c.l.b16 %v463
      %v1056 = vunpack.c.l.b16 %v464
      %v1057 = vunpack.c.l.b16 %v465
      %v1058 = vunpack.c.l.b16 %v466
      %v1059 = vunpack.c.l.b16 %v467
      %v1060 = vunpack.c.l.b16 %v468
      %v1061 = vunpack.c.l.b16 %v469
      %v1062 = vunpack.c.l.b16 %v470
      %v1063 = vunpack.c.l.b16 %v471
      %v1064 = vunpack.c.l.b16 %v472
      %v1065 = vunpack.c.l.b16 %v473
      %v1066 = vunpack.c.l.b16 %v474
      %v1067 = vunpack.c.l.b16 %v475
      %v1068 = vunpack.c.l.b16 %v476
      %v1069 = vunpack.c.l.b16 %v477
      %v1070 = vunpack.c.l.b16 %v478
      %v1071 = vunpack.c.l.b16 %v479
      %v1072 = vunpack.c.l.b16 %v480
      %v1073 = vunpack.c.l.b16 %v481
      %v1074 = vunpack.c.l.b16 %v482
      %v1075 = vunpack.c.l.b16 %v483
      %v1076 = vunpack.c.l.b16 %v484
      %v1077 = vunpack.c.l.b16 %v485
      %v1078 = vunpack.c.l.b16 %v486
      %v1079 = vunpack.c.l.b16 %v487
      %v1080 = vunpack.c.l.b16 %v488
      %v1081 = vunpack.c.l.b16 %v489
      %v1082 = vunpack.c.l.b16 %v490
      %v1083 = vunpack.c.l.b16 %v491
      %v1084 = vunpack.c.l.b16 %v492
      %v1085 = vunpack.c.l.b16 %v493
      %v1086 = vunpack.c.l.b16 %v494
      %v1087 = vunpack.c.l.b16 %v495
      %v1088 = vunpack.c.l.b16 %v496
      %v1089 = vunpack.c.l.b16 %v497
      %v1090 = vunpack.c.l.b16 %v498
      %v1091 = vunpack.c.l.b16 %v499
      %v1092 = vunpack.c.l.b16 %v500
      %v1093 = vunpack.c.l.b16 %v501
      %v1094 = vunpack.c.l.b16 %v502
      %v1095 = vunpack.c.l.b16 %v503
      %v1096 = vunpack.c.l.b16 %v504
      %v1097 = vunpack.c.l.b16 %v505
      %v1098 = vunpack.c.l.b16 %v506
      %v1099 = vunpack.c.l.b16 %v507
      %v1100 = vunpack.c.l.b16 %v508
      %v1101 = vunpack.c.l.b16 %v509
      %v1102 = vunpack.c.l.b16 %v510
      %v1103 = vunpack.c.l.b16 %v511
      %v1104 = vunpack.c.l.b16 %v512
      %v1105 = vunpack.c.l.b16 %v513
      %v1106 = vunpack.c.l.b16 %v514
      %v1107 = vunpack.c.l.b16 %v515
      %v1108 = vunpack.c.l.b16 %v516
      %v1109 = vunpack.c.l.b16 %v517
      %v1110 = vunpack.c.l.b16 %v518
      %v1111 = vunpack.c.l.b16 %v519
      %v1112 = vunpack.c.l.b16 %v520
      %v1113 = vunpack.c.l.b16 %v521
      %v1114 = vunpack.c.l.b16 %v522
      %v1115 = vunpack.c.l.b16 %v523
      %v1116 = vunpack.c.l.b16 %v524
      %v1117 = vunpack.c.l.b16 %v525
      %v1118 = vunpack.c.l.b16 %v526
      %v1119 = vunpack.c.l.b16 %v527
      %v1120 = vunpack.c.l.b16 %v528
      %v1121 = vunpack.c.l.b16 %v529
      %v1122 = vunpack.c.l.b16 %v530
      %v1123 = vunpack.c.l.b16 %v531
      %v1124 = vunpack.c.l.b16 %v532
      %v1125 = vunpack.c.l.b16 %v533
      %v1126 = vunpack.c.l.b16 %v534
      %v1127 = vunpack.c.l.b16 %v535
      %v1128 = vunpack.c.l.b16 %v536
      %v1129 = vunpack.c.l.b16 %v537
      %v1130 = vunpack.c.l.b16 %v538
      %v1131 = vunpack.c.l.b16 %v539
      %v1132 = vunpack.c.l.b16 %v540
      %v1133 = vunpack.c.l.b16 %v541
      %v1134 = vunpack.c.l.b16 %v542
      %v1135 = vunpack.c.l.b16 %v543
      %v1136 = vunpack.c.l.b16 %v544
      %v1137 = vunpack.c.l.b16 %v545
      %v1138 = vunpack.c.l.b16 %v546
      %v1139 = vunpack.c.l.b16 %v547
      %v1140 = vpack.c.b16 %v885, %v884
      %v1141 = vpack.c.b16 %v887, %v886
      %v1142 = vpack.c.b16 %v889, %v888
      %v1143 = vpack.c.b16 %v891, %v890
      %v1144 = vpack.c.b16 %v893, %v892
      %v1145 = vpack.c.b16 %v895, %v894
      %v1146 = vpack.c.b16 %v897, %v896
      %v1147 = vpack.c.b16 %v899, %v898
      %v1148 = vpack.c.b16 %v901, %v900
      %v1149 = vpack.c.b16 %v903, %v902
      %v1150 = vpack.c.b16 %v905, %v904
      %v1151 = vpack.c.b16 %v907, %v906
      %v1152 = vpack.c.b16 %v909, %v908
      %v1153 = vpack.c.b16 %v911, %v910
      %v1154 = vpack.c.b16 %v913, %v912
      %v1155 = vpack.c.b16 %v915, %v914
      %v1156 = vpack.c.b16 %v917, %v916
      %v1157 = vpack.c.b16 %v919, %v918
      %v1158 = vpack.c.b16 %v921, %v920
      %v1159 = vpack.c.b16 %v923, %v922
      %v1160 = vpack.c.b16 %v925, %v924
      %v1161 = vpack.c.b16 %v927, %v926
      %v1162 = vpack.c.b16 %v929, %v928
      %v1163 = vpack.c.b16 %v931, %v930
      %v1164 = vpack.c.b16 %v933, %v932
      %v1165 = vpack.c.b16 %v935, %v934
      %v1166 = vpack.c.b16 %v937, %v936
      %v1167 = vpack.c.b16 %v939, %v938
      %v1168 = vpack.c.b16 %v941, %v940
      %v1169 = vpack.c.b16 %v943, %v942
      %v1170 = vpack.c.b16 %v945, %v944
      %v1171 = vpack.c.b16 %v947, %v946
      %v1172 = vpack.c.b16 %v949, %v948
      %v1173 = vpack.c.b16 %v951, %v950
      %v1174 = vpack.c.b16 %v953, %v952
      %v1175 = vpack.c.b16 %v955, %v954
      %v1176 = vpack.c.b16 %v957, %v956
      %v1177 = vpack.c.b16 %v959, %v958
      %v1178 = vpack.c.b16 %v961, %v960
      %v1179 = vpack.c.b16 %v963, %v962
      %v1180 = vpack.c.b16 %v965, %v964
      %v1181 = vpack.c.b16 %v967, %v966
      %v1182 = vpack.c.b16 %v969, %v968
      %v1183 = vpack.c.b16 %v971, %v970
      %v1184 = vpack.c.b16 %v973, %v972
      %v1185 = vpack.c.b16 %v975, %v974
      %v1186 = vpack.c.b16 %v977, %v976
      %v1187 = vpack.c.b16 %v979, %v978
      %v1188 = vpack.c.b16 %v981, %v980
      %v1189 = vpack.c.b16 %v983, %v982
      %v1190 = vpack.c.b16 %v985, %v984
      %v1191 = vpack.c.b16 %v987, %v986
      %v1192 = vpack.c.b16 %v989, %v988
      %v1193 = vpack.c.b16 %v991, %v990
      %v1194 = vpack.c.b16 %v993, %v992
      %v1195 = vpack.c.b16 %v995, %v994
      %v1196 = vpack.c.b16 %v997, %v996
      %v1197 = vpack.c.b16 %v999, %v998
      %v1198 = vpack.c.b16 %v1001, %v1000
      %v1199 = vpack.c.b16 %v1003, %v1002
      %v1200 = vpack.c.b16 %v1005, %v1004
      %v1201 = vpack.c.b16 %v1007, %v1006
      %v1202 = vpack.c.b16 %v1009, %v1008
      %v1203 = vpack.c.b16 %v1011, %v1010
      %v1204 = vpack.c.b16 %v1013, %v1012
      %v1205 = vpack.c.b16 %v1015, %v1014
      %v1206 = vpack.c.b16 %v1017, %v1016
      %v1207 = vpack.c.b16 %v1019, %v1018
      %v1208 = vpack.c.b16 %v1021, %v1020
      %v1209 = vpack.c.b16 %v1023, %v1022
      %v1210 = vpack.c.b16 %v1025, %v1024
      %v1211 = vpack.c.b16 %v1027, %v1026
      %v1212 = vpack.c.b16 %v1029, %v1028
      %v1213 = vpack.c.b16 %v1031, %v1030
      %v1214 = vpack.c.b16 %v1033, %v1032
      %v1215 = vpack.c.b16 %v1035, %v1034
      %v1216 = vpack.c.b16 %v1037, %v1036
      %v1217 = vpack.c.b16 %v1039, %v1038
      %v1218 = vpack.c.b16 %v1041, %v1040
      %v1219 = vpack.c.b16 %v1043, %v1042
      %v1220 = vpack.c.b16 %v1045, %v1044
      %v1221 = vpack.c.b16 %v1047, %v1046
      %v1222 = vpack.c.b16 %v1049, %v1048
      %v1223 = vpack.c.b16 %v1051, %v1050
      %v1224 = vpack.c.b16 %v1053, %v1052
      %v1225 = vpack.c.b16 %v1055, %v1054
      %v1226 = vpack.c.b16 %v1057, %v1056
      %v1227 = vpack.c.b16 %v1059, %v1058
      %v1228 = vpack.c.b16 %v1061, %v1060
      %v1229 = vpack.c.b16 %v1063, %v1062
      %v1230 = vpack.c.b16 %v1065, %v1064
      %v1231 = vpack.c.b16 %v1067, %v1066
      %v1232 = vpack.c.b16 %v1069, %v1068
      %v1233 = vpack.c.b16 %v1071, %v1070
      %v1234 = vpack.c.b16 %v1073, %v1072
      %v1235 = vpack.c.b16 %v1075, %v1074
      %v1236 = vpack.c.b16 %v1077, %v1076
      %v1237 = vpack.c.b16 %v1079, %v1078
      %v1238 = vpack.c.b16 %v1081, %v1080
      %v1239 = vpack.c.b16 %v1083, %v1082
      %v1240 = vpack.c.b16 %v1085, %v1084
      %v1241 = vpack.c.b16 %v1087, %v1086
      %v1242 = vpack.c.b16 %v1089, %v1088
      %v1243 = vpack.c.b16 %v1091, %v1090
      %v1244 = vpack.c.b16 %v1093, %v1092
      %v1245 = vpack.c.b16 %v1095, %v1094
      %v1246 = vpack.c.b16 %v1097, %v1096
      %v1247 = vpack.c.b16 %v1099, %v1098
      %v1248 = vpack.c.b16 %v1101, %v1100
      %v1249 = vpack.c.b16 %v1103, %v1102
      %v1250 = vpack.c.b16 %v1105, %v1104
      %v1251 = vpack.c.b16 %v1107, %v1106
      %v1252 = vpack.c.b16 %v1109, %v1108
      %v1253 = vpack.c.b16 %v1111, %v1110
      %v1254 = vpack.c.b16 %v1113, %v1112
      %v1255 = vpack.c.b16 %v1115, %v1114
      %v1256 = vpack.c.b16 %v1117, %v1116
      %v1257 = vpack.c.b16 %v1119, %v1118
      %v1258 = vpack.c.b16 %v1121, %v1120
      %v1259 = vpack.c.b16 %v1123, %v1122
      %v1260 = vpack.c.b16 %v1125, %v1124
      %v1261 = vpack.c.b16 %v1127, %v1126
      %v1262 = vpack.c.b16 %v1129, %v1128
      %v1263 = vpack.c.b16 %v1131, %v1130
      %v1264 = vpack.c.b16 %v1133, %v1132
      %v1265 = vpack.c.b16 %v1135, %v1134
      %v1266 = vpack.c.b16 %v1137, %v1136
      %v1267 = vpack.c.b16 %v1139, %v1138
      %1396 = vmatprep.subr.bf16.mxu0 0
      %1397 = vmatpush1.bf16.msra.mxu0 %v1140
      %1398 = vmatprep.subr.bf16.mxu0 0
      %1399 = vmatpush1.bf16.msra.mxu0 %v1141
      %1400 = vmatprep.subr.bf16.mxu0 0
      %1401 = vmatpush1.bf16.msra.mxu0 %v1142
      %1402 = vmatprep.subr.bf16.mxu0 0
      %1403 = vmatpush1.bf16.msra.mxu0 %v1143
      %1404 = vmatprep.subr.bf16.mxu0 0
      %1405 = vmatpush1.bf16.msra.mxu0 %v1144
      %1406 = vmatprep.subr.bf16.mxu0 0
      %1407 = vmatpush1.bf16.msra.mxu0 %v1145
      %1408 = vmatprep.subr.bf16.mxu0 0
      %1409 = vmatpush1.bf16.msra.mxu0 %v1146
      %1410 = vmatprep.subr.bf16.mxu0 0
      %1411 = vmatpush1.bf16.msra.mxu0 %v1147
      %1412 = vmatprep.subr.bf16.mxu0 0
      %1413 = vmatpush1.bf16.msra.mxu0 %v1148
      %1414 = vmatprep.subr.bf16.mxu0 0
      %1415 = vmatpush1.bf16.msra.mxu0 %v1149
      %1416 = vmatprep.subr.bf16.mxu0 0
      %1417 = vmatpush1.bf16.msra.mxu0 %v1150
      %1418 = vmatprep.subr.bf16.mxu0 0
      %1419 = vmatpush1.bf16.msra.mxu0 %v1151
      %1420 = vmatprep.subr.bf16.mxu0 0
      %1421 = vmatpush1.bf16.msra.mxu0 %v1152
      %1422 = vmatprep.subr.bf16.mxu0 0
      %1423 = vmatpush1.bf16.msra.mxu0 %v1153
      %1424 = vmatprep.subr.bf16.mxu0 0
      %1425 = vmatpush1.bf16.msra.mxu0 %v1154
      %1426 = vmatprep.subr.bf16.mxu0 0
      %1427 = vmatpush1.bf16.msra.mxu0 %v1155
      %1428 = vmatprep.mubr.bf16.mxu0 %v597
      %1429 = vmatmul.mubr.bf16.gmra.mrb[0].mxu0 %v596
      %v1430 = vpop.f32.mrb[0].mxu0
      %v1431 = vadd.f32 0.0, %v1430
      %v1432 = vpop.f32.mrb[0].mxu0
      %v1433 = vpop.f32.mrb[0].mxu0
      %v1434 = vadd.f32 0.0, %v1433
      %v1435 = vpop.f32.mrb[0].mxu0
      %1436 = vdwg.mxu0
      %1437 = vmatprep.subr.bf16.mxu0 0
      %1438 = vmatpush1.bf16.msra.mxu0 %v1156
      %1439 = vmatprep.subr.bf16.mxu0 0
      %1440 = vmatpush1.bf16.msra.mxu0 %v1157
      %1441 = vmatprep.subr.bf16.mxu0 0
      %1442 = vmatpush1.bf16.msra.mxu0 %v1158
      %1443 = vmatprep.subr.bf16.mxu0 0
      %1444 = vmatpush1.bf16.msra.mxu0 %v1159
      %1445 = vmatprep.subr.bf16.mxu0 0
      %1446 = vmatpush1.bf16.msra.mxu0 %v1160
      %1447 = vmatprep.subr.bf16.mxu0 0
      %1448 = vmatpush1.bf16.msra.mxu0 %v1161
      %1449 = vmatprep.subr.bf16.mxu0 0
      %1450 = vmatpush1.bf16.msra.mxu0 %v1162
      %1451 = vmatprep.subr.bf16.mxu0 0
      %1452 = vmatpush1.bf16.msra.mxu0 %v1163
      %1453 = vmatprep.subr.bf16.mxu0 0
      %1454 = vmatpush1.bf16.msra.mxu0 %v1164
      %1455 = vmatprep.subr.bf16.mxu0 0
      %1456 = vmatpush1.bf16.msra.mxu0 %v1165
      %1457 = vmatprep.subr.bf16.mxu0 0
      %1458 = vmatpush1.bf16.msra.mxu0 %v1166
      %1459 = vmatprep.subr.bf16.mxu0 0
      %1460 = vmatpush1.bf16.msra.mxu0 %v1167
      %1461 = vmatprep.subr.bf16.mxu0 0
      %1462 = vmatpush1.bf16.msra.mxu0 %v1168
      %1463 = vmatprep.subr.bf16.mxu0 0
      %1464 = vmatpush1.bf16.msra.mxu0 %v1169
      %1465 = vmatprep.subr.bf16.mxu0 0
      %1466 = vmatpush1.bf16.msra.mxu0 %v1170
      %1467 = vmatprep.subr.bf16.mxu0 0
      %1468 = vmatpush1.bf16.msra.mxu0 %v1171
      %1469 = vmatprep.mubr.bf16.mxu0 %v599
      %1470 = vmatmul.mubr.bf16.gmra.mrb[0].mxu0 %v598
      %v1471 = vpop.f32.mrb[0].mxu0
      %v1472 = vadd.f32 %v1431, %v1471
      %v1473 = vpop.f32.mrb[0].mxu0
      %v1474 = vpop.f32.mrb[0].mxu0
      %v1475 = vadd.f32 %v1434, %v1474
      %v1476 = vpop.f32.mrb[0].mxu0
      %1477 = vdwg.mxu0
      %1478 = vmatprep.subr.bf16.mxu0 0
      %1479 = vmatpush1.bf16.msra.mxu0 %v1172
      %1480 = vmatprep.subr.bf16.mxu0 0
      %1481 = vmatpush1.bf16.msra.mxu0 %v1173
      %1482 = vmatprep.subr.bf16.mxu0 0
      %1483 = vmatpush1.bf16.msra.mxu0 %v1174
      %1484 = vmatprep.subr.bf16.mxu0 0
      %1485 = vmatpush1.bf16.msra.mxu0 %v1175
      %1486 = vmatprep.subr.bf16.mxu0 0
      %1487 = vmatpush1.bf16.msra.mxu0 %v1176
      %1488 = vmatprep.subr.bf16.mxu0 0
      %1489 = vmatpush1.bf16.msra.mxu0 %v1177
      %1490 = vmatprep.subr.bf16.mxu0 0
      %1491 = vmatpush1.bf16.msra.mxu0 %v1178
      %1492 = vmatprep.subr.bf16.mxu0 0
      %1493 = vmatpush1.bf16.msra.mxu0 %v1179
      %1494 = vmatprep.subr.bf16.mxu0 0
      %1495 = vmatpush1.bf16.msra.mxu0 %v1180
      %1496 = vmatprep.subr.bf16.mxu0 0
      %1497 = vmatpush1.bf16.msra.mxu0 %v1181
      %1498 = vmatprep.subr.bf16.mxu0 0
      %1499 = vmatpush1.bf16.msra.mxu0 %v1182
      %1500 = vmatprep.subr.bf16.mxu0 0
      %1501 = vmatpush1.bf16.msra.mxu0 %v1183
      %1502 = vmatprep.subr.bf16.mxu0 0
      %1503 = vmatpush1.bf16.msra.mxu0 %v1184
      %1504 = vmatprep.subr.bf16.mxu0 0
      %1505 = vmatpush1.bf16.msra.mxu0 %v1185
      %1506 = vmatprep.subr.bf16.mxu0 0
      %1507 = vmatpush1.bf16.msra.mxu0 %v1186
      %1508 = vmatprep.subr.bf16.mxu0 0
      %1509 = vmatpush1.bf16.msra.mxu0 %v1187
      %1510 = vmatprep.mubr.bf16.mxu0 %v601
      %1511 = vmatmul.mubr.bf16.gmra.mrb[0].mxu0 %v600
      %v1512 = vpop.f32.mrb[0].mxu0
      %v1513 = vadd.f32 %v1472, %v1512
      %v1514 = vpop.f32.mrb[0].mxu0
      %v1515 = vpop.f32.mrb[0].mxu0
      %v1516 = vadd.f32 %v1475, %v1515
      %v1517 = vpop.f32.mrb[0].mxu0
      %1518 = vdwg.mxu0
      %1519 = vmatprep.subr.bf16.mxu0 0
      %1520 = vmatpush1.bf16.msra.mxu0 %v1188
      %1521 = vmatprep.subr.bf16.mxu0 0
      %1522 = vmatpush1.bf16.msra.mxu0 %v1189
      %1523 = vmatprep.subr.bf16.mxu0 0
      %1524 = vmatpush1.bf16.msra.mxu0 %v1190
      %1525 = vmatprep.subr.bf16.mxu0 0
      %1526 = vmatpush1.bf16.msra.mxu0 %v1191
      %1527 = vmatprep.subr.bf16.mxu0 0
      %1528 = vmatpush1.bf16.msra.mxu0 %v1192
      %1529 = vmatprep.subr.bf16.mxu0 0
      %1530 = vmatpush1.bf16.msra.mxu0 %v1193
      %1531 = vmatprep.subr.bf16.mxu0 0
      %1532 = vmatpush1.bf16.msra.mxu0 %v1194
      %1533 = vmatprep.subr.bf16.mxu0 0
      %1534 = vmatpush1.bf16.msra.mxu0 %v1195
      %1535 = vmatprep.subr.bf16.mxu0 0
      %1536 = vmatpush1.bf16.msra.mxu0 %v1196
      %1537 = vmatprep.subr.bf16.mxu0 0
      %1538 = vmatpush1.bf16.msra.mxu0 %v1197
      %1539 = vmatprep.subr.bf16.mxu0 0
      %1540 = vmatpush1.bf16.msra.mxu0 %v1198
      %1541 = vmatprep.subr.bf16.mxu0 0
      %1542 = vmatpush1.bf16.msra.mxu0 %v1199
      %1543 = vmatprep.subr.bf16.mxu0 0
      %1544 = vmatpush1.bf16.msra.mxu0 %v1200
      %1545 = vmatprep.subr.bf16.mxu0 0
      %1546 = vmatpush1.bf16.msra.mxu0 %v1201
      %1547 = vmatprep.subr.bf16.mxu0 0
      %1548 = vmatpush1.bf16.msra.mxu0 %v1202
      %1549 = vmatprep.subr.bf16.mxu0 0
      %1550 = vmatpush1.bf16.msra.mxu0 %v1203
      %1551 = vmatprep.mubr.bf16.mxu0 %v603
      %1552 = vmatmul.mubr.bf16.gmra.mrb[0].mxu0 %v602
      %v1553 = vpop.f32.mrb[0].mxu0
      %v1554 = vadd.f32 %v1513, %v1553
      %v1555 = vpop.f32.mrb[0].mxu0
      %v1556 = vpop.f32.mrb[0].mxu0
      %v1557 = vadd.f32 %v1516, %v1556
      %v1558 = vpop.f32.mrb[0].mxu0
      %1559 = vdwg.mxu0
      %1560 = vmatprep.subr.bf16.mxu0 0
      %1561 = vmatpush1.bf16.msra.mxu0 %v1204
      %1562 = vmatprep.subr.bf16.mxu0 0
      %1563 = vmatpush1.bf16.msra.mxu0 %v1205
      %1564 = vmatprep.subr.bf16.mxu0 0
      %1565 = vmatpush1.bf16.msra.mxu0 %v1206
      %1566 = vmatprep.subr.bf16.mxu0 0
      %1567 = vmatpush1.bf16.msra.mxu0 %v1207
      %1568 = vmatprep.subr.bf16.mxu0 0
      %1569 = vmatpush1.bf16.msra.mxu0 %v1208
      %1570 = vmatprep.subr.bf16.mxu0 0
      %1571 = vmatpush1.bf16.msra.mxu0 %v1209
      %1572 = vmatprep.subr.bf16.mxu0 0
      %1573 = vmatpush1.bf16.msra.mxu0 %v1210
      %1574 = vmatprep.subr.bf16.mxu0 0
      %1575 = vmatpush1.bf16.msra.mxu0 %v1211
      %1576 = vmatprep.subr.bf16.mxu0 0
      %1577 = vmatpush1.bf16.msra.mxu0 %v1212
      %1578 = vmatprep.subr.bf16.mxu0 0
      %1579 = vmatpush1.bf16.msra.mxu0 %v1213
      %1580 = vmatprep.subr.bf16.mxu0 0
      %1581 = vmatpush1.bf16.msra.mxu0 %v1214
      %1582 = vmatprep.subr.bf16.mxu0 0
      %1583 = vmatpush1.bf16.msra.mxu0 %v1215
      %1584 = vmatprep.subr.bf16.mxu0 0
      %1585 = vmatpush1.bf16.msra.mxu0 %v1216
      %1586 = vmatprep.subr.bf16.mxu0 0
      %1587 = vmatpush1.bf16.msra.mxu0 %v1217
      %1588 = vmatprep.subr.bf16.mxu0 0
      %1589 = vmatpush1.bf16.msra.mxu0 %v1218
      %1590 = vmatprep.subr.bf16.mxu0 0
      %1591 = vmatpush1.bf16.msra.mxu0 %v1219
      %1592 = vmatprep.mubr.bf16.mxu0 %v605
      %1593 = vmatmul.mubr.bf16.gmra.mrb[0].mxu0 %v604
      %v1594 = vpop.f32.mrb[0].mxu0
      %v1595 = vadd.f32 %v1554, %v1594
      %v1596 = vpop.f32.mrb[0].mxu0
      %v1597 = vpop.f32.mrb[0].mxu0
      %v1598 = vadd.f32 %v1557, %v1597
      %v1599 = vpop.f32.mrb[0].mxu0
      %1600 = vdwg.mxu0
      %1601 = vmatprep.subr.bf16.mxu0 0
      %1602 = vmatpush1.bf16.msra.mxu0 %v1220
      %1603 = vmatprep.subr.bf16.mxu0 0
      %1604 = vmatpush1.bf16.msra.mxu0 %v1221
      %1605 = vmatprep.subr.bf16.mxu0 0
      %1606 = vmatpush1.bf16.msra.mxu0 %v1222
      %1607 = vmatprep.subr.bf16.mxu0 0
      %1608 = vmatpush1.bf16.msra.mxu0 %v1223
      %1609 = vmatprep.subr.bf16.mxu0 0
      %1610 = vmatpush1.bf16.msra.mxu0 %v1224
      %1611 = vmatprep.subr.bf16.mxu0 0
      %1612 = vmatpush1.bf16.msra.mxu0 %v1225
      %1613 = vmatprep.subr.bf16.mxu0 0
      %1614 = vmatpush1.bf16.msra.mxu0 %v1226
      %1615 = vmatprep.subr.bf16.mxu0 0
      %1616 = vmatpush1.bf16.msra.mxu0 %v1227
      %1617 = vmatprep.subr.bf16.mxu0 0
      %1618 = vmatpush1.bf16.msra.mxu0 %v1228
      %1619 = vmatprep.subr.bf16.mxu0 0
      %1620 = vmatpush1.bf16.msra.mxu0 %v1229
      %1621 = vmatprep.subr.bf16.mxu0 0
      %1622 = vmatpush1.bf16.msra.mxu0 %v1230
      %1623 = vmatprep.subr.bf16.mxu0 0
      %1624 = vmatpush1.bf16.msra.mxu0 %v1231
      %1625 = vmatprep.subr.bf16.mxu0 0
      %1626 = vmatpush1.bf16.msra.mxu0 %v1232
      %1627 = vmatprep.subr.bf16.mxu0 0
      %1628 = vmatpush1.bf16.msra.mxu0 %v1233
      %1629 = vmatprep.subr.bf16.mxu0 0
      %1630 = vmatpush1.bf16.msra.mxu0 %v1234
      %1631 = vmatprep.subr.bf16.mxu0 0
      %1632 = vmatpush1.bf16.msra.mxu0 %v1235
      %1633 = vmatprep.mubr.bf16.mxu0 %v607
      %1634 = vmatmul.mubr.bf16.gmra.mrb[0].mxu0 %v606
      %v1635 = vpop.f32.mrb[0].mxu0
      %v1636 = vadd.f32 %v1595, %v1635
      %v1637 = vpop.f32.mrb[0].mxu0
      %v1638 = vpop.f32.mrb[0].mxu0
      %v1639 = vadd.f32 %v1598, %v1638
      %v1640 = vpop.f32.mrb[0].mxu0
      %1641 = vdwg.mxu0
      %1642 = vmatprep.subr.bf16.mxu0 0
      %1643 = vmatpush1.bf16.msra.mxu0 %v1236
      %1644 = vmatprep.subr.bf16.mxu0 0
      %1645 = vmatpush1.bf16.msra.mxu0 %v1237
      %1646 = vmatprep.subr.bf16.mxu0 0
      %1647 = vmatpush1.bf16.msra.mxu0 %v1238
      %1648 = vmatprep.subr.bf16.mxu0 0
      %1649 = vmatpush1.bf16.msra.mxu0 %v1239
      %1650 = vmatprep.subr.bf16.mxu0 0
      %1651 = vmatpush1.bf16.msra.mxu0 %v1240
      %1652 = vmatprep.subr.bf16.mxu0 0
      %1653 = vmatpush1.bf16.msra.mxu0 %v1241
      %1654 = vmatprep.subr.bf16.mxu0 0
      %1655 = vmatpush1.bf16.msra.mxu0 %v1242
      %1656 = vmatprep.subr.bf16.mxu0 0
      %1657 = vmatpush1.bf16.msra.mxu0 %v1243
      %1658 = vmatprep.subr.bf16.mxu0 0
      %1659 = vmatpush1.bf16.msra.mxu0 %v1244
      %1660 = vmatprep.subr.bf16.mxu0 0
      %1661 = vmatpush1.bf16.msra.mxu0 %v1245
      %1662 = vmatprep.subr.bf16.mxu0 0
      %1663 = vmatpush1.bf16.msra.mxu0 %v1246
      %1664 = vmatprep.subr.bf16.mxu0 0
      %1665 = vmatpush1.bf16.msra.mxu0 %v1247
      %1666 = vmatprep.subr.bf16.mxu0 0
      %1667 = vmatpush1.bf16.msra.mxu0 %v1248
      %1668 = vmatprep.subr.bf16.mxu0 0
      %1669 = vmatpush1.bf16.msra.mxu0 %v1249
      %1670 = vmatprep.subr.bf16.mxu0 0
      %1671 = vmatpush1.bf16.msra.mxu0 %v1250
      %1672 = vmatprep.subr.bf16.mxu0 0
      %1673 = vmatpush1.bf16.msra.mxu0 %v1251
      %1674 = vmatprep.mubr.bf16.mxu0 %v609
      %1675 = vmatmul.mubr.bf16.gmra.mrb[0].mxu0 %v608
      %v1676 = vpop.f32.mrb[0].mxu0
      %v1677 = vadd.f32 %v1636, %v1676
      %v1678 = vpop.f32.mrb[0].mxu0
      %v1679 = vpop.f32.mrb[0].mxu0
      %v1680 = vadd.f32 %v1639, %v1679
      %v1681 = vpop.f32.mrb[0].mxu0
      %1682 = vdwg.mxu0
      %1683 = vmatprep.subr.bf16.mxu0 0
      %1684 = vmatpush1.bf16.msra.mxu0 %v1252
      %1685 = vmatprep.subr.bf16.mxu0 0
      %1686 = vmatpush1.bf16.msra.mxu0 %v1253
      %1687 = vmatprep.subr.bf16.mxu0 0
      %1688 = vmatpush1.bf16.msra.mxu0 %v1254
      %1689 = vmatprep.subr.bf16.mxu0 0
      %1690 = vmatpush1.bf16.msra.mxu0 %v1255
      %1691 = vmatprep.subr.bf16.mxu0 0
      %1692 = vmatpush1.bf16.msra.mxu0 %v1256
      %1693 = vmatprep.subr.bf16.mxu0 0
      %1694 = vmatpush1.bf16.msra.mxu0 %v1257
      %1695 = vmatprep.subr.bf16.mxu0 0
      %1696 = vmatpush1.bf16.msra.mxu0 %v1258
      %1697 = vmatprep.subr.bf16.mxu0 0
      %1698 = vmatpush1.bf16.msra.mxu0 %v1259
      %1699 = vmatprep.subr.bf16.mxu0 0
      %1700 = vmatpush1.bf16.msra.mxu0 %v1260
      %1701 = vmatprep.subr.bf16.mxu0 0
      %1702 = vmatpush1.bf16.msra.mxu0 %v1261
      %1703 = vmatprep.subr.bf16.mxu0 0
      %1704 = vmatpush1.bf16.msra.mxu0 %v1262
      %1705 = vmatprep.subr.bf16.mxu0 0
      %1706 = vmatpush1.bf16.msra.mxu0 %v1263
      %1707 = vmatprep.subr.bf16.mxu0 0
      %1708 = vmatpush1.bf16.msra.mxu0 %v1264
      %1709 = vmatprep.subr.bf16.mxu0 0
      %1710 = vmatpush1.bf16.msra.mxu0 %v1265
      %1711 = vmatprep.subr.bf16.mxu0 0
      %1712 = vmatpush1.bf16.msra.mxu0 %v1266
      %1713 = vmatprep.subr.bf16.mxu0 0
      %1714 = vmatpush1.bf16.msra.mxu0 %v1267
      %1715 = vmatprep.mubr.bf16.mxu0 %v611
      %1716 = vmatmul.mubr.bf16.gmra.mrb[0].mxu0 %v610
      %v1717 = vpop.f32.mrb[0].mxu0
      %v1718 = vadd.f32 %v1677, %v1717
      %v1719 = vpop.f32.mrb[0].mxu0
      %v1720 = vpop.f32.mrb[0].mxu0
      %v1721 = vadd.f32 %v1680, %v1720
      %v1722 = vpop.f32.mrb[0].mxu0
      %1723 = vdwg.mxu0
      %v1724 = vadd.f32 %v1718, %v1721
      %v1725 = vrot.slane %v1724, 4
      %v1726 = vadd.f32 %v1724, %v1725
      %v1727 = vrot.slane %v1726, 2
      %v1728 = vadd.f32 %v1726, %v1727
      %v1729 = vrot.slane %v1728, 1
      %v1730 = vadd.f32 %v1728, %v1729
      %1731 = vst [vmem:[%s271] sm:$0x1] %v1730
      %v1732 = vmul.f32 %v1718, %v1718
      %v1733 = vmul.f32 %v1721, %v1721
      %v1734 = vadd.f32 %v1732, %v1733
      %v1735 = vrot.slane %v1734, 4
      %v1736 = vadd.f32 %v1734, %v1735
      %v1737 = vrot.slane %v1736, 2
      %v1738 = vadd.f32 %v1736, %v1737
      %v1739 = vrot.slane %v1738, 1
      %v1740 = vadd.f32 %v1738, %v1739
      %1741 = vst [vmem:[%s274] sm:$0x1] %v1740
      %v1742 = vld [vmem:[%s2] sm:$0x1]
      %v1744 = vlaneseq
      %v1745 = vshrl.u32 %v1744, 7
      %v1746 = vsub.s32 0, %v1745
      %v1747 = vrot.slane %v1742, %v1746
      %v1749 = vmul.f32 %v1718, %v1747
      %v1750 = vmul.f32 %v1721, %v1747
      %v1751 = vld [vmem:[%s3] sm:$0x1]
      %v1753 = vlaneseq
      %v1754 = vshrl.u32 %v1753, 7
      %v1755 = vsub.s32 0, %v1754
      %v1756 = vrot.slane %v1751, %v1755
      %v1758 = vadd.f32 %v1749, %v1756
      %v1759 = vadd.f32 %v1750, %v1756
      %1760 = vst [vmem:[%s267] sm:$0xff] %v1758
      %1761 = vst [vmem:[%s267 + $0x8] sm:$0xff] %v1759
      %s1762 = smul.u32 2, %s18
      %p1763 = scmp.lt.s32.totalorder %s1762, 3
      %s1764 = scalar_select %p1763, %s1762, 3
      %s1765 = smul.addr %s1764, 8
      %s1766 = scalar_lea.vmem %s4, %s1765
      %p1767 = scmp.lt.s32.totalorder %s18, 1
      %s1768 = scalar_select %p1767, %s18, 1
      %s1769 = scalar_lea.vmem %s5, %s1768
      %p1770 = scmp.lt.s32.totalorder %s18, 1
      %s1771 = scalar_select %p1770, %s18, 1
      %s1772 = scalar_lea.vmem %s6, %s1771
      // Predicated region
      $region37: #{vqvae_forward.18} parent=35 // pred_check
        %p1773 = pneg %p125
      $region38: #{vqvae_forward.18} parent=35 // pred_check_branch
        %1775 = sbr.rel (%p1773) target = $region40
      $region39: #{vqvae_forward.18} parent=35 // pred_region
        %s1776 = smul.u32 2, %s18
      $region40: #{vqvae_forward.18} parent=35 // pred_fallthru
        _
      // Predicated region
      $region41: #{vqvae_forward.18} parent=35 // pred_check
        %p1777 = pneg %p151
      $region42: #{vqvae_forward.18} parent=35 // pred_check_branch
        %1779 = sbr.rel (%p1777) target = $region44
      $region43: #{vqvae_forward.18} parent=35 // pred_region
        _
      $region44: #{vqvae_forward.18} parent=35 // pred_fallthru
        _
      // Predicated region
      $region45: #{vqvae_forward.18} parent=35 // pred_check
        %p1780 = pneg %p177
      $region46: #{vqvae_forward.18} parent=35 // pred_check_branch
        %1782 = sbr.rel (%p1780) target = $region48
      $region47: #{vqvae_forward.18} parent=35 // pred_region
        _
      $region48: #{vqvae_forward.18} parent=35 // pred_fallthru
        _
    $region36: #{vqvae_forward.18} parent=5 // pred_fallthru
      _
    %p1783 = scmp.le.s32.totalorder 2, %s13
    // Predicated region
    $region49: #{vqvae_forward.18} parent=5 // pred_check
      %p1784 = pneg %p1783
    $region50: #{vqvae_forward.18} parent=5 // pred_check_branch
      %1786 = sbr.rel (%p1784) target = $region52
    $region51: #{vqvae_forward.18} parent=5 // pred_region
      %s1787 = ssub.s32 %s13, 2
      // Predicated region
      $region53: #{vqvae_forward.18} parent=51 // pred_check
        %p1788 = pneg %p131
      $region54: #{vqvae_forward.18} parent=51 // pred_check_branch
        %1790 = sbr.rel (%p1788) target = $region56
      $region55: #{vqvae_forward.18} parent=51 // pred_region
        %s1791 = smul.u32 2, %s19
        %p1792 = scmp.lt.s32.totalorder %s1791, 3
        %s1793 = scalar_select %p1792, %s1791, 3
        %s1794 = smul.addr %s1793, 8
        %s1795 = scalar_lea.vmem %s4, %s1794
      $region56: #{vqvae_forward.18} parent=51 // pred_fallthru
        _
      // Predicated region
      $region57: #{vqvae_forward.18} parent=51 // pred_check
        %p1796 = pneg %p157
      $region58: #{vqvae_forward.18} parent=51 // pred_check_branch
        %1798 = sbr.rel (%p1796) target = $region60
      $region59: #{vqvae_forward.18} parent=51 // pred_region
        %p1799 = scmp.lt.s32.totalorder %s19, 1
        %s1800 = scalar_select %p1799, %s19, 1
        %s1801 = scalar_lea.vmem %s5, %s1800
      $region60: #{vqvae_forward.18} parent=51 // pred_fallthru
        _
      // Predicated region
      $region61: #{vqvae_forward.18} parent=51 // pred_check
        %p1802 = pneg %p183
      $region62: #{vqvae_forward.18} parent=51 // pred_check_branch
        %1804 = sbr.rel (%p1802) target = $region64
      $region63: #{vqvae_forward.18} parent=51 // pred_region
        %p1805 = scmp.lt.s32.totalorder %s19, 1
        %s1806 = scalar_select %p1805, %s19, 1
        %s1807 = scalar_lea.vmem %s6, %s1806
      $region64: #{vqvae_forward.18} parent=51 // pred_fallthru
        _
    $region52: #{vqvae_forward.18} parent=5 // pred_fallthru
      _
  $region6: #{vqvae_forward.18} parent=0 // loop_footer
    %s17 = sadd.s32 1, %s13
  $region7: #{vqvae_forward.18} parent=0 // loop_footer_branch
    %12 = sbr.rel target = $region3
  $region8: #{vqvae_forward.18} parent=0 // loop_exit
    _

// kernel: vqvae_forward.21
$region0: #{vqvae_forward.21}
  #allocation0 [shape = 'u32[]', space=smem, size = 0x4, offset = 0x4, fixed_abs, tag = 'smem constant byte address 0x4 - core index']
  #allocation1 [shape = 'u32[144,128]{1,0:T(1,128)}', space=vmem, size = 0x12000, scoped, tag = 'internal scratch']
  %s0 = inlined_call_operand.vmem [shape: bf16[32,128], index: 0, kind: input, shape index: {}]
  %s1 = inlined_call_operand.vmem [shape: bf16[128,128], index: 1, kind: input, shape index: {}]
  %s2 = inlined_call_operand.vmem [shape: f32[1,128], index: 2, kind: input, shape index: {}]
  %s3 = inlined_call_operand.vmem [shape: f32[1,128], index: 3, kind: input, shape index: {}]
  %s4 = inlined_call_operand.vmem [shape: f32[32,128], index: 4, kind: input, shape index: {}]
  %s5 = inlined_call_operand.vmem [shape: f32[32,128], index: 5, kind: output, shape index: {}]
  %s6 = sld [smem:[#allocation0]]
  $region53: #{vqvae_forward.21} parent=0
    _
  %s8 = ssub.s32 1, %s6
  %s9 = scalar_select 0, %s8, %s6
  loop: start=0, step=1, limit=4
  $region2: #{vqvae_forward.21} parent=0 // loop_pre_header
    _
  $region3: #{vqvae_forward.21} parent=0 // loop_header
    %s11 = sphi 0, %s15
    %p12 = scmp.ge.s32.totalorder %s11, 4
    %s21 = sphi 0, %s23
    %s24 = sphi 0, %s21
    %s25 = sphi 0, %s24
    %s41 = sphi 0, %s25
    %s45 = sphi 0, %s45
    %s47 = sphi 0, %s45
    %s48 = sphi 0, %s47
    %s62 = sphi 0, %s48
    %s66 = sphi 0, %s66
    %s68 = sphi 0, %s66
    %s69 = sphi 0, %s68
    %s83 = sphi 0, %s69
    %s87 = sphi 0, %s87
    %s89 = sphi 0, %s87
    %s90 = sphi 0, %s89
    %s104 = sphi 0, %s90
    %s110 = sphi 0, %s112
    %s113 = sphi 0, %s110
    %s114 = sphi 0, %s113
    %s130 = sphi 0, %s114
    %s136 = sphi 0, %s138
    %s139 = sphi 0, %s136
    %s140 = sphi 0, %s139
    %s156 = sphi 0, %s140
  $region4: #{vqvae_forward.21} parent=0 // loop_header_branch
    %14 = sbr.rel (%p12) target = $region8
  $region5: #{vqvae_forward.21} parent=0 // loop_body
    %s16 = ssub.s32 %s11, 1
    %s17 = ssub.s32 %s11, 2
    %s18 = sadd.s32 %s11, 1
    %s19 = ssub.s32 %s11, %s18
    %p20 = scmp.eq.s32.totalorder %s19, 0
    %s22 = sadd.s32 %s21, 1
    %s23 = scalar_select %p20, %s21, %s22
    %p26 = pneg %p20
    %p27 = scmp.eq.s32.totalorder %s11, 1
    %p28 = por %p26, %p27
    %p29 = scmp.ne.s32.totalorder %s21, %s24
    %p30 = scmp.eq.s32.totalorder %s11, 0
    %p31 = por %p29, %p30
    %p32 = scmp.ne.s32.totalorder %s21, %s24
    %p33 = scmp.eq.s32.totalorder %s16, 1
    %p34 = por %p32, %p33
    %p35 = scmp.ne.s32.totalorder %s24, %s25
    %p36 = scmp.eq.s32.totalorder %s16, 0
    %p37 = por %p35, %p36
    %p38 = scmp.ne.s32.totalorder %s24, %s25
    %p39 = scmp.eq.s32.totalorder %s17, 1
    %p40 = por %p38, %p39
    %p42 = scmp.ne.s32.totalorder %s25, %s41
    %p43 = scmp.eq.s32.totalorder %s17, 0
    %p44 = por %p42, %p43
    %s46 = sadd.s32 %s45, 1
    %p49 = scmp.eq.s32.totalorder %s11, 1
    %p50 = scmp.ne.s32.totalorder %s45, %s47
    %p51 = scmp.eq.s32.totalorder %s11, 0
    %p52 = por %p50, %p51
    %p53 = scmp.ne.s32.totalorder %s45, %s47
    %p54 = scmp.eq.s32.totalorder %s16, 1
    %p55 = por %p53, %p54
    %p56 = scmp.ne.s32.totalorder %s47, %s48
    %p57 = scmp.eq.s32.totalorder %s16, 0
    %p58 = por %p56, %p57
    %p59 = scmp.ne.s32.totalorder %s47, %s48
    %p60 = scmp.eq.s32.totalorder %s17, 1
    %p61 = por %p59, %p60
    %p63 = scmp.ne.s32.totalorder %s48, %s62
    %p64 = scmp.eq.s32.totalorder %s17, 0
    %p65 = por %p63, %p64
    %s67 = sadd.s32 %s66, 1
    %p70 = scmp.eq.s32.totalorder %s11, 1
    %p71 = scmp.ne.s32.totalorder %s66, %s68
    %p72 = scmp.eq.s32.totalorder %s11, 0
    %p73 = por %p71, %p72
    %p74 = scmp.ne.s32.totalorder %s66, %s68
    %p75 = scmp.eq.s32.totalorder %s16, 1
    %p76 = por %p74, %p75
    %p77 = scmp.ne.s32.totalorder %s68, %s69
    %p78 = scmp.eq.s32.totalorder %s16, 0
    %p79 = por %p77, %p78
    %p80 = scmp.ne.s32.totalorder %s68, %s69
    %p81 = scmp.eq.s32.totalorder %s17, 1
    %p82 = por %p80, %p81
    %p84 = scmp.ne.s32.totalorder %s69, %s83
    %p85 = scmp.eq.s32.totalorder %s17, 0
    %p86 = por %p84, %p85
    %s88 = sadd.s32 %s87, 1
    %p91 = scmp.eq.s32.totalorder %s11, 1
    %p92 = scmp.ne.s32.totalorder %s87, %s89
    %p93 = scmp.eq.s32.totalorder %s11, 0
    %p94 = por %p92, %p93
    %p95 = scmp.ne.s32.totalorder %s87, %s89
    %p96 = scmp.eq.s32.totalorder %s16, 1
    %p97 = por %p95, %p96
    %p98 = scmp.ne.s32.totalorder %s89, %s90
    %p99 = scmp.eq.s32.totalorder %s16, 0
    %p100 = por %p98, %p99
    %p101 = scmp.ne.s32.totalorder %s89, %s90
    %p102 = scmp.eq.s32.totalorder %s17, 1
    %p103 = por %p101, %p102
    %p105 = scmp.ne.s32.totalorder %s90, %s104
    %p106 = scmp.eq.s32.totalorder %s17, 0
    %p107 = por %p105, %p106
    %s108 = ssub.s32 %s11, %s18
    %p109 = scmp.eq.s32.totalorder %s108, 0
    %s111 = sadd.s32 %s110, 1
    %s112 = scalar_select %p109, %s110, %s111
    %p115 = pneg %p109
    %p116 = scmp.eq.s32.totalorder %s11, 1
    %p117 = por %p115, %p116
    %p118 = scmp.ne.s32.totalorder %s110, %s113
    %p119 = scmp.eq.s32.totalorder %s11, 0
    %p120 = por %p118, %p119
    %p121 = scmp.ne.s32.totalorder %s110, %s113
    %p122 = scmp.eq.s32.totalorder %s16, 1
    %p123 = por %p121, %p122
    %p124 = scmp.ne.s32.totalorder %s113, %s114
    %p125 = scmp.eq.s32.totalorder %s16, 0
    %p126 = por %p124, %p125
    %p127 = scmp.ne.s32.totalorder %s113, %s114
    %p128 = scmp.eq.s32.totalorder %s17, 1
    %p129 = por %p127, %p128
    %p131 = scmp.ne.s32.totalorder %s114, %s130
    %p132 = scmp.eq.s32.totalorder %s17, 0
    %p133 = por %p131, %p132
    %s134 = ssub.s32 %s11, %s18
    %p135 = scmp.eq.s32.totalorder %s134, 0
    %s137 = sadd.s32 %s136, 1
    %s138 = scalar_select %p135, %s136, %s137
    %p141 = pneg %p135
    %p142 = scmp.eq.s32.totalorder %s11, 1
    %p143 = por %p141, %p142
    %p144 = scmp.ne.s32.totalorder %s136, %s139
    %p145 = scmp.eq.s32.totalorder %s11, 0
    %p146 = por %p144, %p145
    %p147 = scmp.ne.s32.totalorder %s136, %s139
    %p148 = scmp.eq.s32.totalorder %s16, 1
    %p149 = por %p147, %p148
    %p150 = scmp.ne.s32.totalorder %s139, %s140
    %p151 = scmp.eq.s32.totalorder %s16, 0
    %p152 = por %p150, %p151
    %p153 = scmp.ne.s32.totalorder %s139, %s140
    %p154 = scmp.eq.s32.totalorder %s17, 1
    %p155 = por %p153, %p154
    %p157 = scmp.ne.s32.totalorder %s140, %s156
    %p158 = scmp.eq.s32.totalorder %s17, 0
    %p159 = por %p157, %p158
    %p160 = scmp.le.s32.totalorder 1, %s11
    %p161 = scmp.lt.s32.totalorder %s11, 3
    %p162 = pnand %p160, %p161
    %p163 = pneg %p162
    // Predicated region
    $region9: #{vqvae_forward.21} parent=5 // pred_check
      _
    $region10: #{vqvae_forward.21} parent=5 // pred_check_branch
      %165 = sbr.rel (%p162) target = $region12
    $region11: #{vqvae_forward.21} parent=5 // pred_region
      %s166 = ssub.s32 %s11, 1
      // Predicated region
      $region13: #{vqvae_forward.21} parent=11 // pred_check
        %p167 = pneg %p58
      $region14: #{vqvae_forward.21} parent=11 // pred_check_branch
        %169 = sbr.rel (%p167) target = $region16
      $region15: #{vqvae_forward.21} parent=11 // pred_region
        _
      $region16: #{vqvae_forward.21} parent=11 // pred_fallthru
        _
      // Predicated region
      $region17: #{vqvae_forward.21} parent=11 // pred_check
        %p170 = pneg %p79
      $region18: #{vqvae_forward.21} parent=11 // pred_check_branch
        %172 = sbr.rel (%p170) target = $region20
      $region19: #{vqvae_forward.21} parent=11 // pred_region
        _
      $region20: #{vqvae_forward.21} parent=11 // pred_fallthru
        _
      // Predicated region
      $region21: #{vqvae_forward.21} parent=11 // pred_check
        %p173 = pneg %p100
      $region22: #{vqvae_forward.21} parent=11 // pred_check_branch
        %175 = sbr.rel (%p173) target = $region24
      $region23: #{vqvae_forward.21} parent=11 // pred_region
        _
      $region24: #{vqvae_forward.21} parent=11 // pred_fallthru
        _
    $region12: #{vqvae_forward.21} parent=5 // pred_fallthru
      _
    %p176 = scmp.lt.s32.totalorder %s11, 2
    // Predicated region
    $region25: #{vqvae_forward.21} parent=5 // pred_check
      %p177 = pneg %p176
    $region26: #{vqvae_forward.21} parent=5 // pred_check_branch
      %179 = sbr.rel (%p177) target = $region28
    $region27: #{vqvae_forward.21} parent=5 // pred_region
      // Predicated region
      $region29: #{vqvae_forward.21} parent=27 // pred_check
        %p180 = pneg %p31
      $region30: #{vqvae_forward.21} parent=27 // pred_check_branch
        %182 = sbr.rel (%p180) target = $region32
      $region31: #{vqvae_forward.21} parent=27 // pred_region
        %s183 = smul.u32 2, %s11
        %p184 = scmp.lt.s32.totalorder %s183, 3
        %s185 = scalar_select %p184, %s183, 3
        %s186 = smul.addr %s185, 4
        %s187 = scalar_lea.vmem %s0, %s186
        %s188 = smul.u32 2, %s11
      $region32: #{vqvae_forward.21} parent=27 // pred_fallthru
        _
      // Predicated region
      $region33: #{vqvae_forward.21} parent=27 // pred_check
        %p189 = pneg %p120
      $region34: #{vqvae_forward.21} parent=27 // pred_check_branch
        %191 = sbr.rel (%p189) target = $region36
      $region35: #{vqvae_forward.21} parent=27 // pred_region
        %s192 = smul.u32 2, %s11
        %p193 = scmp.lt.s32.totalorder %s192, 3
        %s194 = scalar_select %p193, %s192, 3
        %s195 = smul.addr %s194, 8
        %s196 = scalar_lea.vmem %s4, %s195
        %s197 = smul.u32 2, %s11
      $region36: #{vqvae_forward.21} parent=27 // pred_fallthru
        _
    $region28: #{vqvae_forward.21} parent=5 // pred_fallthru
      _
    %p198 = scmp.le.s32.totalorder 1, %s11
    %p199 = scmp.lt.s32.totalorder %s11, 3
    %p200 = pnand %p198, %p199
    %p201 = pneg %p200
    // Predicated region
    $region37: #{vqvae_forward.21} parent=5 // pred_check
      _
    $region38: #{vqvae_forward.21} parent=5 // pred_check_branch
      %203 = sbr.rel (%p200) target = $region40
    $region39: #{vqvae_forward.21} parent=5 // pred_region
      %s204 = ssub.s32 %s11, 1
      %s205 = smul.u32 2, %s16
      %p206 = scmp.lt.s32.totalorder %s205, 3
      %s207 = scalar_select %p206, %s205, 3
      %s208 = smul.addr %s207, 4
      %s209 = scalar_lea.vmem %s0, %s208
      %p210 = pneg %p37
      %p211 = pneg %p34
      %p212 = pneg %p58
      %p213 = pneg %p55
      %p214 = pneg %p79
      %p215 = pneg %p76
      %p216 = pneg %p100
      %p217 = pneg %p97
      %s218 = smul.u32 2, %s16
      %p219 = scmp.lt.s32.totalorder %s218, 3
      %s220 = scalar_select %p219, %s218, 3
      %s221 = smul.addr %s220, 8
      %s222 = scalar_lea.vmem %s4, %s221
      %p223 = pneg %p126
      %p224 = pneg %p123
      %p225 = pneg %p152
      %p226 = pneg %p149
      %s227 = smul.u32 2, %s16
      %p228 = scmp.lt.s32.totalorder %s227, 3
      %s229 = scalar_select %p228, %s227, 3
      %s230 = smul.addr %s229, 8
      %s231 = scalar_lea.vmem %s5, %s230
      %s232 = smul.u32 2, %s16
      %p233 = scmp.lt.s32.totalorder %s232, 3
      %s234 = scalar_select %p233, %s232, 3
      %s235 = smul.addr %s234, 4
      %s236 = scalar_lea.vmem %s0, %s235
      %s237 = smul.u32 2, %s16
      %s238 = smul.u32 2, %s16
      %p239 = scmp.lt.s32.totalorder %s238, 3
      %s240 = scalar_select %p239, %s238, 3
      %s241 = smul.addr %s240, 8
      %s242 = scalar_lea.vmem %s4, %s241
      %s243 = smul.u32 2, %s16
      %s244 = smul.u32 2, %s16
      %p245 = scmp.lt.s32.totalorder %s244, 3
      %s246 = scalar_select %p245, %s244, 3
      %s247 = smul.addr %s246, 8
      %s248 = scalar_lea.vmem %s5, %s247
      %s249 = smul.u32 2, %s16
      %v251 = vld [vmem:[%s236] sm:$0xf]
      %v252 = vld [vmem:[%s236 + $0x4] sm:$0xf]
      %v253 = vld [vmem:[%s1] sm:$0xf]
      %v254 = vld [vmem:[%s1 + $0x4] sm:$0xf]
      %v255 = vld [vmem:[%s1 + $0x8] sm:$0xf]
      %v256 = vld [vmem:[%s1 + $0xc] sm:$0xf]
      %v257 = vld [vmem:[%s1 + $0x10] sm:$0xf]
      %v258 = vld [vmem:[%s1 + $0x14] sm:$0xf]
      %v259 = vld [vmem:[%s1 + $0x18] sm:$0xf]
      %v260 = vld [vmem:[%s1 + $0x1c] sm:$0xf]
      %v261 = vld [vmem:[%s1 + $0x20] sm:$0xf]
      %v262 = vld [vmem:[%s1 + $0x24] sm:$0xf]
      %v263 = vld [vmem:[%s1 + $0x28] sm:$0xf]
      %v264 = vld [vmem:[%s1 + $0x2c] sm:$0xf]
      %v265 = vld [vmem:[%s1 + $0x30] sm:$0xf]
      %v266 = vld [vmem:[%s1 + $0x34] sm:$0xf]
      %v267 = vld [vmem:[%s1 + $0x38] sm:$0xf]
      %v268 = vld [vmem:[%s1 + $0x3c] sm:$0xf]
      %v271 = vunpack.c.l.b16 %v251
      %v272 = vunpack.c.l.b16 %v252
      %v273 = vpack.c.b16 %v272, %v271
      %v291 = vunpack.c.l.b16 %v253
      %v292 = vunpack.c.l.b16 %v254
      %v293 = vunpack.c.l.b16 %v255
      %v294 = vunpack.c.l.b16 %v256
      %v295 = vunpack.c.l.b16 %v257
      %v296 = vunpack.c.l.b16 %v258
      %v297 = vunpack.c.l.b16 %v259
      %v298 = vunpack.c.l.b16 %v260
      %v299 = vunpack.c.l.b16 %v261
      %v300 = vunpack.c.l.b16 %v262
      %v301 = vunpack.c.l.b16 %v263
      %v302 = vunpack.c.l.b16 %v264
      %v303 = vunpack.c.l.b16 %v265
      %v304 = vunpack.c.l.b16 %v266
      %v305 = vunpack.c.l.b16 %v267
      %v306 = vunpack.c.l.b16 %v268
      %v307 = vpack.c.b16 %v292, %v291
      %v308 = vpack.c.b16 %v294, %v293
      %v309 = vpack.c.b16 %v296, %v295
      %v310 = vpack.c.b16 %v298, %v297
      %v311 = vpack.c.b16 %v300, %v299
      %v312 = vpack.c.b16 %v302, %v301
      %v313 = vpack.c.b16 %v304, %v303
      %v314 = vpack.c.b16 %v306, %v305
      %323 = vmatprep.subr.bf16.mxu0 0
      %324 = vmatpush1.bf16.msra.mxu0 %v307
      %325 = vmatprep.subr.bf16.mxu0 0
      %326 = vmatpush1.bf16.msra.mxu0 %v308
      %327 = vmatprep.subr.bf16.mxu0 0
      %328 = vmatpush1.bf16.msra.mxu0 %v309
      %329 = vmatprep.subr.bf16.mxu0 0
      %330 = vmatpush1.bf16.msra.mxu0 %v310
      %331 = vmatprep.subr.bf16.mxu0 0
      %332 = vmatpush1.bf16.msra.mxu0 %v311
      %333 = vmatprep.subr.bf16.mxu0 0
      %334 = vmatpush1.bf16.msra.mxu0 %v312
      %335 = vmatprep.subr.bf16.mxu0 0
      %336 = vmatpush1.bf16.msra.mxu0 %v313
      %337 = vmatprep.subr.bf16.mxu0 0
      %338 = vmatpush1.bf16.msra.mxu0 %v314
      %339 = vmatprep.subr.bf16.mxu0 0
      %340 = vmatpush1.bf16.msra.mxu0 0
      %341 = vmatprep.subr.bf16.mxu0 0
      %342 = vmatpush1.bf16.msra.mxu0 0
      %343 = vmatprep.subr.bf16.mxu0 0
      %344 = vmatpush1.bf16.msra.mxu0 0
      %345 = vmatprep.subr.bf16.mxu0 0
      %346 = vmatpush1.bf16.msra.mxu0 0
      %347 = vmatprep.subr.bf16.mxu0 0
      %348 = vmatpush1.bf16.msra.mxu0 0
      %349 = vmatprep.subr.bf16.mxu0 0
      %350 = vmatpush1.bf16.msra.mxu0 0
      %351 = vmatprep.subr.bf16.mxu0 0
      %352 = vmatpush1.bf16.msra.mxu0 0
      %353 = vmatprep.subr.bf16.mxu0 0
      %354 = vmatpush1.bf16.msra.mxu0 0
      %355 = vmatprep.mubr.bf16.mxu0 0
      %356 = vmatmul.mubr.bf16.gmra.mrb[0].mxu0 %v273
      %v357 = vpop.f32.mrb[0].mxu0
      %v358 = vadd.f32 0.0, %v357
      %v359 = vpop.f32.mrb[0].mxu0
      %v360 = vpop.f32.mrb[0].mxu0
      %v361 = vadd.f32 0.0, %v360
      %v362 = vpop.f32.mrb[0].mxu0
      %363 = vdwg.mxu0
      %v364 = vld [vmem:[%s2] sm:$0x1]
      %v366 = vlaneseq
      %v367 = vshrl.u32 %v366, 7
      %v368 = vsub.s32 0, %v367
      %v369 = vrot.slane %v364, %v368
      %v371 = vmul.f32 %v358, %v369
      %v372 = vmul.f32 %v361, %v369
      %v373 = vld [vmem:[%s3] sm:$0x1]
      %v375 = vlaneseq
      %v376 = vshrl.u32 %v375, 7
      %v377 = vsub.s32 0, %v376
      %v378 = vrot.slane %v373, %v377
      %v380 = vadd.f32 %v371, %v378
      %v381 = vadd.f32 %v372, %v378
      %v382 = vld [vmem:[%s242] sm:$0xff]
      %v383 = vld [vmem:[%s242 + $0x8] sm:$0xff]
      %v384 = vadd.f32 %v380, %v382
      %v385 = vadd.f32 %v381, %v383
      %386 = vst [vmem:[%s248] sm:$0xff] %v384
      %387 = vst [vmem:[%s248 + $0x8] sm:$0xff] %v385
      %s388 = smul.u32 2, %s16
      %p389 = scmp.lt.s32.totalorder %s388, 3
      %s390 = scalar_select %p389, %s388, 3
      %s391 = smul.addr %s390, 8
      %s392 = scalar_lea.vmem %s5, %s391
      // Predicated region
      $region41: #{vqvae_forward.21} parent=39 // pred_check
        %p393 = pneg %p149
      $region42: #{vqvae_forward.21} parent=39 // pred_check_branch
        %395 = sbr.rel (%p393) target = $region44
      $region43: #{vqvae_forward.21} parent=39 // pred_region
        %s396 = smul.u32 2, %s16
      $region44: #{vqvae_forward.21} parent=39 // pred_fallthru
        _
    $region40: #{vqvae_forward.21} parent=5 // pred_fallthru
      _
    %p397 = scmp.le.s32.totalorder 2, %s11
    // Predicated region
    $region45: #{vqvae_forward.21} parent=5 // pred_check
      %p398 = pneg %p397
    $region46: #{vqvae_forward.21} parent=5 // pred_check_branch
      %400 = sbr.rel (%p398) target = $region48
    $region47: #{vqvae_forward.21} parent=5 // pred_region
      %s401 = ssub.s32 %s11, 2
      // Predicated region
      $region49: #{vqvae_forward.21} parent=47 // pred_check
        %p402 = pneg %p155
      $region50: #{vqvae_forward.21} parent=47 // pred_check_branch
        %404 = sbr.rel (%p402) target = $region52
      $region51: #{vqvae_forward.21} parent=47 // pred_region
        %s405 = smul.u32 2, %s17
        %p406 = scmp.lt.s32.totalorder %s405, 3
        %s407 = scalar_select %p406, %s405, 3
        %s408 = smul.addr %s407, 8
        %s409 = scalar_lea.vmem %s5, %s408
      $region52: #{vqvae_forward.21} parent=47 // pred_fallthru
        _
    $region48: #{vqvae_forward.21} parent=5 // pred_fallthru
      _
  $region6: #{vqvae_forward.21} parent=0 // loop_footer
    %s15 = sadd.s32 1, %s11
  $region7: #{vqvae_forward.21} parent=0 // loop_footer_branch
    %10 = sbr.rel target = $region3
  $region8: #{vqvae_forward.21} parent=0 // loop_exit
    _

// kernel: vqvae_forward.24
$region0: #{vqvae_forward.24}
  #allocation0 [shape = 'u32[]', space=smem, size = 0x4, offset = 0x4, fixed_abs, tag = 'smem constant byte address 0x4 - core index']
  #allocation1 [shape = 'u32[144,128]{1,0:T(1,128)}', space=vmem, size = 0x12000, scoped, tag = 'internal scratch']
  %s0 = inlined_call_operand.vmem [shape: f32[32,128], index: 0, kind: input, shape index: {}]
  %s1 = inlined_call_operand.vmem [shape: f32[64,128], index: 1, kind: input, shape index: {}]
  %s2 = inlined_call_operand.vmem [shape: f32[1,64], index: 2, kind: input, shape index: {}]
  %s3 = inlined_call_operand.vmem [shape: f32[32,128], index: 3, kind: output, shape index: {0}]
  %s4 = inlined_call_operand.hbm [shape: s32[32,1], index: 4, kind: output, shape index: {1}]
  %5 = xla_tuple %s3, %s4
  %s6 = sld [smem:[#allocation0]]
  $region53: #{vqvae_forward.24} parent=0
    _
  %s8 = ssub.s32 1, %s6
  %s9 = scalar_select 0, %s8, %s6
  $region1: #{vqvae_forward.24} parent=0
    #allocation2 [shape = 'u8[16384]{0}', space=vmem, size = 0x4000, scoped, tag = 'output window, operand 1']
    #allocation3 [shape = 's32[2]{0}', space=sflag, size = 0x8, scoped, tag = 'scoped memory for vqvae_forward.24']
    %10 = vsyncpa [#allocation3], 0
    %s11 = scalar_lea.sflag [#allocation3], 1
    %12 = vsyncpa %s11, 0
    loop: start=0, step=1, limit=4
    $region2: #{vqvae_forward.24} parent=1 // loop_pre_header
      _
    $region3: #{vqvae_forward.24} parent=1 // loop_header
      %s14 = sphi 0, %s18
      %p15 = scmp.ge.s32.totalorder %s14, 4
      %s24 = sphi 0, %s26
      %s27 = sphi 0, %s24
      %s28 = sphi 0, %s27
      %s44 = sphi 0, %s28
      %s48 = sphi 0, %s48
      %s50 = sphi 0, %s48
      %s51 = sphi 0, %s50
      %s65 = sphi 0, %s51
      %s69 = sphi 0, %s69
      %s71 = sphi 0, %s69
      %s72 = sphi 0, %s71
      %s86 = sphi 0, %s72
      %s92 = sphi 0, %s94
      %s95 = sphi 0, %s92
      %s96 = sphi 0, %s95
      %s112 = sphi 0, %s96
      %s118 = sphi 0, %s120
      %s121 = sphi 0, %s118
      %s122 = sphi 0, %s121
      %s138 = sphi 0, %s122
    $region4: #{vqvae_forward.24} parent=1 // loop_header_branch
      %17 = sbr.rel (%p15) target = $region8
    $region5: #{vqvae_forward.24} parent=1 // loop_body
      %s19 = ssub.s32 %s14, 1
      %s20 = ssub.s32 %s14, 2
      %s21 = sadd.s32 %s14, 1
      %s22 = ssub.s32 %s14, %s21
      %p23 = scmp.eq.s32.totalorder %s22, 0
      %s25 = sadd.s32 %s24, 1
      %s26 = scalar_select %p23, %s24, %s25
      %p29 = pneg %p23
      %p30 = scmp.eq.s32.totalorder %s14, 1
      %p31 = por %p29, %p30
      %p32 = scmp.ne.s32.totalorder %s24, %s27
      %p33 = scmp.eq.s32.totalorder %s14, 0
      %p34 = por %p32, %p33
      %p35 = scmp.ne.s32.totalorder %s24, %s27
      %p36 = scmp.eq.s32.totalorder %s19, 1
      %p37 = por %p35, %p36
      %p38 = scmp.ne.s32.totalorder %s27, %s28
      %p39 = scmp.eq.s32.totalorder %s19, 0
      %p40 = por %p38, %p39
      %p41 = scmp.ne.s32.totalorder %s27, %s28
      %p42 = scmp.eq.s32.totalorder %s20, 1
      %p43 = por %p41, %p42
      %p45 = scmp.ne.s32.totalorder %s28, %s44
      %p46 = scmp.eq.s32.totalorder %s20, 0
      %p47 = por %p45, %p46
      %s49 = sadd.s32 %s48, 1
      %p52 = scmp.eq.s32.totalorder %s14, 1
      %p53 = scmp.ne.s32.totalorder %s48, %s50
      %p54 = scmp.eq.s32.totalorder %s14, 0
      %p55 = por %p53, %p54
      %p56 = scmp.ne.s32.totalorder %s48, %s50
      %p57 = scmp.eq.s32.totalorder %s19, 1
      %p58 = por %p56, %p57
      %p59 = scmp.ne.s32.totalorder %s50, %s51
      %p60 = scmp.eq.s32.totalorder %s19, 0
      %p61 = por %p59, %p60
      %p62 = scmp.ne.s32.totalorder %s50, %s51
      %p63 = scmp.eq.s32.totalorder %s20, 1
      %p64 = por %p62, %p63
      %p66 = scmp.ne.s32.totalorder %s51, %s65
      %p67 = scmp.eq.s32.totalorder %s20, 0
      %p68 = por %p66, %p67
      %s70 = sadd.s32 %s69, 1
      %p73 = scmp.eq.s32.totalorder %s14, 1
      %p74 = scmp.ne.s32.totalorder %s69, %s71
      %p75 = scmp.eq.s32.totalorder %s14, 0
      %p76 = por %p74, %p75
      %p77 = scmp.ne.s32.totalorder %s69, %s71
      %p78 = scmp.eq.s32.totalorder %s19, 1
      %p79 = por %p77, %p78
      %p80 = scmp.ne.s32.totalorder %s71, %s72
      %p81 = scmp.eq.s32.totalorder %s19, 0
      %p82 = por %p80, %p81
      %p83 = scmp.ne.s32.totalorder %s71, %s72
      %p84 = scmp.eq.s32.totalorder %s20, 1
      %p85 = por %p83, %p84
      %p87 = scmp.ne.s32.totalorder %s72, %s86
      %p88 = scmp.eq.s32.totalorder %s20, 0
      %p89 = por %p87, %p88
      %s90 = ssub.s32 %s14, %s21
      %p91 = scmp.eq.s32.totalorder %s90, 0
      %s93 = sadd.s32 %s92, 1
      %s94 = scalar_select %p91, %s92, %s93
      %p97 = pneg %p91
      %p98 = scmp.eq.s32.totalorder %s14, 1
      %p99 = por %p97, %p98
      %p100 = scmp.ne.s32.totalorder %s92, %s95
      %p101 = scmp.eq.s32.totalorder %s14, 0
      %p102 = por %p100, %p101
      %p103 = scmp.ne.s32.totalorder %s92, %s95
      %p104 = scmp.eq.s32.totalorder %s19, 1
      %p105 = por %p103, %p104
      %p106 = scmp.ne.s32.totalorder %s95, %s96
      %p107 = scmp.eq.s32.totalorder %s19, 0
      %p108 = por %p106, %p107
      %p109 = scmp.ne.s32.totalorder %s95, %s96
      %p110 = scmp.eq.s32.totalorder %s20, 1
      %p111 = por %p109, %p110
      %p113 = scmp.ne.s32.totalorder %s96, %s112
      %p114 = scmp.eq.s32.totalorder %s20, 0
      %p115 = por %p113, %p114
      %s116 = ssub.s32 %s14, %s21
      %p117 = scmp.eq.s32.totalorder %s116, 0
      %s119 = sadd.s32 %s118, 1
      %s120 = scalar_select %p117, %s118, %s119
      %p123 = pneg %p117
      %p124 = scmp.eq.s32.totalorder %s14, 1
      %p125 = por %p123, %p124
      %p126 = scmp.ne.s32.totalorder %s118, %s121
      %p127 = scmp.eq.s32.totalorder %s14, 0
      %p128 = por %p126, %p127
      %p129 = scmp.ne.s32.totalorder %s118, %s121
      %p130 = scmp.eq.s32.totalorder %s19, 1
      %p131 = por %p129, %p130
      %p132 = scmp.ne.s32.totalorder %s121, %s122
      %p133 = scmp.eq.s32.totalorder %s19, 0
      %p134 = por %p132, %p133
      %p135 = scmp.ne.s32.totalorder %s121, %s122
      %p136 = scmp.eq.s32.totalorder %s20, 1
      %p137 = por %p135, %p136
      %p139 = scmp.ne.s32.totalorder %s122, %s138
      %p140 = scmp.eq.s32.totalorder %s20, 0
      %p141 = por %p139, %p140
      %p142 = scmp.le.s32.totalorder 1, %s14
      %p143 = scmp.lt.s32.totalorder %s14, 3
      %p144 = pnand %p142, %p143
      %p145 = pneg %p144
      // Predicated region
      $region9: #{vqvae_forward.24} parent=5 // pred_check
        _
      $region10: #{vqvae_forward.24} parent=5 // pred_check_branch
        %147 = sbr.rel (%p144) target = $region12
      $region11: #{vqvae_forward.24} parent=5 // pred_region
        %s148 = ssub.s32 %s14, 1
        // Predicated region
        $region13: #{vqvae_forward.24} parent=11 // pred_check
          %p149 = pneg %p61
        $region14: #{vqvae_forward.24} parent=11 // pred_check_branch
          %151 = sbr.rel (%p149) target = $region16
        $region15: #{vqvae_forward.24} parent=11 // pred_region
          _
        $region16: #{vqvae_forward.24} parent=11 // pred_fallthru
          _
        // Predicated region
        $region17: #{vqvae_forward.24} parent=11 // pred_check
          %p152 = pneg %p82
        $region18: #{vqvae_forward.24} parent=11 // pred_check_branch
          %154 = sbr.rel (%p152) target = $region20
        $region19: #{vqvae_forward.24} parent=11 // pred_region
          _
        $region20: #{vqvae_forward.24} parent=11 // pred_fallthru
          _
      $region12: #{vqvae_forward.24} parent=5 // pred_fallthru
        _
      %p155 = scmp.lt.s32.totalorder %s14, 2
      // Predicated region
      $region21: #{vqvae_forward.24} parent=5 // pred_check
        %p156 = pneg %p155
      $region22: #{vqvae_forward.24} parent=5 // pred_check_branch
        %158 = sbr.rel (%p156) target = $region24
      $region23: #{vqvae_forward.24} parent=5 // pred_region
        // Predicated region
        $region25: #{vqvae_forward.24} parent=23 // pred_check
          %p159 = pneg %p34
        $region26: #{vqvae_forward.24} parent=23 // pred_check_branch
          %161 = sbr.rel (%p159) target = $region28
        $region27: #{vqvae_forward.24} parent=23 // pred_region
          %s162 = smul.u32 2, %s14
          %p163 = scmp.lt.s32.totalorder %s162, 3
          %s164 = scalar_select %p163, %s162, 3
          %s165 = smul.addr %s164, 8
          %s166 = scalar_lea.vmem %s0, %s165
          %s167 = smul.u32 2, %s14
        $region28: #{vqvae_forward.24} parent=23 // pred_fallthru
          _
      $region24: #{vqvae_forward.24} parent=5 // pred_fallthru
        _
      %p168 = scmp.le.s32.totalorder 1, %s14
      %p169 = scmp.lt.s32.totalorder %s14, 3
      %p170 = pnand %p168, %p169
      %p171 = pneg %p170
      // Predicated region
      $region29: #{vqvae_forward.24} parent=5 // pred_check
        _
      $region30: #{vqvae_forward.24} parent=5 // pred_check_branch
        %173 = sbr.rel (%p170) target = $region32
      $region31: #{vqvae_forward.24} parent=5 // pred_region
        %s174 = ssub.s32 %s14, 1
        %s175 = smul.u32 2, %s19
        %p176 = scmp.lt.s32.totalorder %s175, 3
        %s177 = scalar_select %p176, %s175, 3
        %s178 = smul.addr %s177, 8
        %s179 = scalar_lea.vmem %s0, %s178
        %p180 = pneg %p40
        %p181 = pneg %p37
        %p182 = pneg %p61
        %p183 = pneg %p58
        %p184 = pneg %p82
        %p185 = pneg %p79
        %p186 = pneg %p108
        %p187 = pneg %p105
        %s188 = smul.u32 2, %s19
        %p189 = scmp.lt.s32.totalorder %s188, 3
        %s190 = scalar_select %p189, %s188, 3
        %s191 = smul.addr %s190, 8
        %s192 = scalar_lea.vmem %s3, %s191
        %p193 = pneg %p134
        %p194 = pneg %p131
        %s195 = sand.u32 %s121, 1
        %s196 = scalar_lea.sflag [#allocation3], %s195
        %s197 = sand.u32 %s121, 1
        %s198 = smul.addr %s197, 16
        %s199 = scalar_lea.vmem [#allocation2], %s198
        %s200 = smul.u32 2, %s19
        %p201 = scmp.lt.s32.totalorder %s200, 3
        %s202 = scalar_select %p201, %s200, 3
        %s203 = smul.addr %s202, 8
        %s204 = scalar_lea.vmem %s0, %s203
        %s205 = smul.u32 2, %s19
        %s206 = smul.u32 2, %s19
        %p207 = scmp.lt.s32.totalorder %s206, 3
        %s208 = scalar_select %p207, %s206, 3
        %s209 = smul.addr %s208, 8
        %s210 = scalar_lea.vmem %s3, %s209
        %s211 = smul.u32 2, %s19
        %s212 = smul.u32 2, %s19
        %v213 = vld [vmem:[%s204] sm:$0xff]
        %v214 = vld [vmem:[%s204 + $0x8] sm:$0xff]
        %v215 = vld [vmem:[%s1] sm:$0xff]
        %v216 = vld [vmem:[%s1 + $0x8] sm:$0xff]
        %v217 = vld [vmem:[%s1 + $0x10] sm:$0xff]
        %v218 = vld [vmem:[%s1 + $0x18] sm:$0xff]
        %v219 = vld [vmem:[%s1 + $0x20] sm:$0xff]
        %v220 = vld [vmem:[%s1 + $0x28] sm:$0xff]
        %v221 = vld [vmem:[%s1 + $0x30] sm:$0xff]
        %v222 = vld [vmem:[%s1 + $0x38] sm:$0xff]
        %223 = vmatprep.subr.mxu0 0.0
        %224 = vmatpush1.xpose.msra.mxu0 %v215
        %225 = vmatprep.subr.mxu0 0.0
        %226 = vmatpush1.xpose.msra.mxu0 %v216
        %227 = vmatprep.subr.mxu0 0.0
        %228 = vmatpush1.xpose.msra.mxu0 %v217
        %229 = vmatprep.subr.mxu0 0.0
        %230 = vmatpush1.xpose.msra.mxu0 %v218
        %231 = vmatprep.subr.mxu0 0.0
        %232 = vmatpush1.xpose.msra.mxu0 %v219
        %233 = vmatprep.subr.mxu0 0.0
        %234 = vmatpush1.xpose.msra.mxu0 %v220
        %235 = vmatprep.subr.mxu0 0.0
        %236 = vmatpush1.xpose.msra.mxu0 %v221
        %237 = vmatprep.subr.mxu0 0.0
        %238 = vmatpush1.xpose.msra.mxu0 %v222
        %239 = vmatprep.subr.mxu0 0.0
        %240 = vmatpush1.xpose.msra.mxu0 0.0
        %241 = vmatprep.subr.mxu0 0.0
        %242 = vmatpush1.xpose.msra.mxu0 0.0
        %243 = vmatprep.subr.mxu0 0.0
        %244 = vmatpush1.xpose.msra.mxu0 0.0
        %245 = vmatprep.subr.mxu0 0.0
        %246 = vmatpush1.xpose.msra.mxu0 0.0
        %247 = vmatprep.subr.mxu0 0.0
        %248 = vmatpush1.xpose.msra.mxu0 0.0
        %249 = vmatprep.subr.mxu0 0.0
        %250 = vmatpush1.xpose.msra.mxu0 0.0
        %251 = vmatprep.subr.mxu0 0.0
        %252 = vmatpush1.xpose.msra.mxu0 0.0
        %253 = vmatprep.subr.mxu0 0.0
        %254 = vmatpush1.xpose.msra.mxu0 0.0
        %255 = vmatprep.subr.mxu0 0.0
        %256 = vmatpush1.xpose.msra.mxu0 0.0
        %257 = vmatprep.subr.mxu0 0.0
        %258 = vmatpush1.xpose.msra.mxu0 0.0
        %259 = vmatprep.subr.mxu0 0.0
        %260 = vmatpush1.xpose.msra.mxu0 0.0
        %261 = vmatprep.subr.mxu0 0.0
        %262 = vmatpush1.xpose.msra.mxu0 0.0
        %263 = vmatprep.subr.mxu0 0.0
        %264 = vmatpush1.xpose.msra.mxu0 0.0
        %265 = vmatprep.subr.mxu0 0.0
        %266 = vmatpush1.xpose.msra.mxu0 0.0
        %267 = vmatprep.subr.mxu0 0.0
        %268 = vmatpush1.xpose.msra.mxu0 0.0
        %269 = vmatprep.subr.mxu0 0.0
        %270 = vmatpush1.xpose.msra.mxu0 0.0
        %271 = vmatprep.subr.mxu0 0.0
        %272 = vmatpush1.xpose.msra.mxu0 0.0
        %273 = vmatprep.subr.mxu0 0.0
        %274 = vmatpush1.xpose.msra.mxu0 0.0
        %275 = vmatprep.subr.mxu0 0.0
        %276 = vmatpush1.xpose.msra.mxu0 0.0
        %277 = vmatprep.subr.mxu0 0.0
        %278 = vmatpush1.xpose.msra.mxu0 0.0
        %279 = vmatprep.subr.mxu0 0.0
        %280 = vmatpush1.xpose.msra.mxu0 0.0
        %281 = vmatprep.subr.mxu0 0.0
        %282 = vmatpush1.xpose.msra.mxu0 0.0
        %283 = vmatprep.subr.mxu0 0.0
        %284 = vmatpush1.xpose.msra.mxu0 0.0
        %285 = vmatprep.subr.mxu0 0.0
        %286 = vmatpush1.xpose.msra.mxu0 0.0
        %287 = vmatprep.mubr.f32.mxu0 0.0
        %288 = vmatmul.mubr.f32.gmra.mrb[0].mxu0 %v213
        %v289 = vpop.f32.mrb[0].mxu0
        %v290 = vadd.f32 0.0, %v289
        %v291 = vpop.f32.mrb[0].mxu0
        %292 = vmatprep.mubr.f32.mxu0 0.0
        %293 = vmatmul.mubr.f32.gmra.mrb[0].mxu0 %v214
        %v294 = vpop.f32.mrb[0].mxu0
        %v295 = vadd.f32 0.0, %v294
        %v296 = vpop.f32.mrb[0].mxu0
        %297 = vdwg.mxu0
        %v298 = vld [vmem:[%s2] sm:$0x1]
        %v299 = vmul.f32 %v290, 2.0
        %v300 = vmul.f32 %v295, 2.0
        %v302 = vlaneseq
        %v303 = vshrl.u32 %v302, 7
        %v304 = vsub.s32 0, %v303
        %v305 = vrot.slane %v298, %v304
        %v307 = vsub.f32 %v305, %v299
        %v308 = vsub.f32 %v305, %v300
        %v309 = vlaneseq
        %v310 = vand.u32 %v309, 127
        %vm311 = vcmask 523264
        %v312 = vsel %vm311, %v307, inf
        %313 = vmin.xlane.f32.xlu0 %v312
        %v314 = vpop.xlane.xlu0 %313
        %v315 = vsel %vm311, %v308, inf
        %316 = vmin.xlane.f32.xlu0 %v315
        %v317 = vpop.xlane.xlu0 %316
        %vm318 = vcmp.le.f32.partialorder %v307, %v314
        %vm319 = vcmp.le.f32.partialorder %v308, %v317
        %v320 = vsel %vm318, %v310, 64
        %v321 = vsel %vm319, %v310, 64
        %v322 = vsel %vm311, %v320, 2147483647
        %v323 = vand.u32 %v322, 65535
        %v324 = vshra.s32 %v322, 16
        %v325 = vcvt.s32.f32 %v323
        %v326 = vcvt.s32.f32 %v324
        %327 = vmin.xlane.f32.xlu0 %v326
        %v328 = vpop.xlane.xlu0 %327
        %vm329 = vcmp.eq.f32.partialorder %v326, %v328
        %v330 = vsel %vm329, %v325, inf
        %331 = vmin.xlane.f32.xlu0 %v330
        %v332 = vpop.xlane.xlu0 %331
        %v333 = vcvt.f32.s32 %v332
        %v334 = vcvt.f32.s32 %v328
        %v335 = vshll.u32 %v334, 16
        %v336 = vadd.s32 %v335, %v333
        %v337 = vsel %vm311, %v321, 2147483647
        %v338 = vand.u32 %v337, 65535
        %v339 = vshra.s32 %v337, 16
        %v340 = vcvt.s32.f32 %v338
        %v341 = vcvt.s32.f32 %v339
        %342 = vmin.xlane.f32.xlu0 %v341
        %v343 = vpop.xlane.xlu0 %342
        %vm344 = vcmp.eq.f32.partialorder %v341, %v343
        %v345 = vsel %vm344, %v340, inf
        %346 = vmin.xlane.f32.xlu0 %v345
        %v347 = vpop.xlane.xlu0 %346
        %v348 = vcvt.f32.s32 %v347
        %v349 = vcvt.f32.s32 %v343
        %v350 = vshll.u32 %v349, 16
        %v351 = vadd.s32 %v350, %v348
        %vm352 = vcmp.eq.s32.totalorder %v310, %v336
        %vm353 = vcmp.eq.s32.totalorder %v310, %v351
        %v354 = vsel %vm352, 1, 0
        %v355 = vsel %vm353, 1, 0
        %v356 = vcvt.s32.f32 %v354
        %v357 = vcvt.s32.f32 %v355
        %v359 = vsel %vm311, %v356, 0
        %v362 = vsel %vm311, %v357, 0
        %364 = vmatprep.subr.mxu0 0.0
        %365 = vmatpush1.msra.mxu0 %v215
        %366 = vmatprep.subr.mxu0 0.0
        %367 = vmatpush1.msra.mxu0 %v216
        %368 = vmatprep.subr.mxu0 0.0
        %369 = vmatpush1.msra.mxu0 %v217
        %370 = vmatprep.subr.mxu0 0.0
        %371 = vmatpush1.msra.mxu0 %v218
        %372 = vmatprep.subr.mxu0 0.0
        %373 = vmatpush1.msra.mxu0 %v219
        %374 = vmatprep.subr.mxu0 0.0
        %375 = vmatpush1.msra.mxu0 %v220
        %376 = vmatprep.subr.mxu0 0.0
        %377 = vmatpush1.msra.mxu0 %v221
        %378 = vmatprep.subr.mxu0 0.0
        %379 = vmatpush1.msra.mxu0 %v222
        %380 = vmatprep.subr.mxu0 0.0
        %381 = vmatpush1.msra.mxu0 0.0
        %382 = vmatprep.subr.mxu0 0.0
        %383 = vmatpush1.msra.mxu0 0.0
        %384 = vmatprep.subr.mxu0 0.0
        %385 = vmatpush1.msra.mxu0 0.0
        %386 = vmatprep.subr.mxu0 0.0
        %387 = vmatpush1.msra.mxu0 0.0
        %388 = vmatprep.subr.mxu0 0.0
        %389 = vmatpush1.msra.mxu0 0.0
        %390 = vmatprep.subr.mxu0 0.0
        %391 = vmatpush1.msra.mxu0 0.0
        %392 = vmatprep.subr.mxu0 0.0
        %393 = vmatpush1.msra.mxu0 0.0
        %394 = vmatprep.subr.mxu0 0.0
        %395 = vmatpush1.msra.mxu0 0.0
        %396 = vmatprep.subr.mxu0 0.0
        %397 = vmatpush1.msra.mxu0 0.0
        %398 = vmatprep.subr.mxu0 0.0
        %399 = vmatpush1.msra.mxu0 0.0
        %400 = vmatprep.subr.mxu0 0.0
        %401 = vmatpush1.msra.mxu0 0.0
        %402 = vmatprep.subr.mxu0 0.0
        %403 = vmatpush1.msra.mxu0 0.0
        %404 = vmatprep.subr.mxu0 0.0
        %405 = vmatpush1.msra.mxu0 0.0
        %406 = vmatprep.subr.mxu0 0.0
        %407 = vmatpush1.msra.mxu0 0.0
        %408 = vmatprep.subr.mxu0 0.0
        %409 = vmatpush1.msra.mxu0 0.0
        %410 = vmatprep.subr.mxu0 0.0
        %411 = vmatpush1.msra.mxu0 0.0
        %412 = vmatprep.subr.mxu0 0.0
        %413 = vmatpush1.msra.mxu0 0.0
        %414 = vmatprep.subr.mxu0 0.0
        %415 = vmatpush1.msra.mxu0 0.0
        %416 = vmatprep.subr.mxu0 0.0
        %417 = vmatpush1.msra.mxu0 0.0
        %418 = vmatprep.subr.mxu0 0.0
        %419 = vmatpush1.msra.mxu0 0.0
        %420 = vmatprep.subr.mxu0 0.0
        %421 = vmatpush1.msra.mxu0 0.0
        %422 = vmatprep.subr.mxu0 0.0
        %423 = vmatpush1.msra.mxu0 0.0
        %424 = vmatprep.subr.mxu0 0.0
        %425 = vmatpush1.msra.mxu0 0.0
        %426 = vmatprep.subr.mxu0 0.0
        %427 = vmatpush1.msra.mxu0 0.0
        %428 = vmatprep.mubr.f32.mxu0 0.0
        %429 = vmatmul.mubr.f32.gmra.mrb[0].mxu0 %v359
        %v430 = vpop.f32.mrb[0].mxu0
        %v431 = vadd.f32 0.0, %v430
        %v432 = vpop.f32.mrb[0].mxu0
        %433 = vmatprep.mubr.f32.mxu0 0.0
        %434 = vmatmul.mubr.f32.gmra.mrb[0].mxu0 %v362
        %v435 = vpop.f32.mrb[0].mxu0
        %v436 = vadd.f32 0.0, %v435
        %v437 = vpop.f32.mrb[0].mxu0
        %438 = vdwg.mxu0
        %439 = vst [vmem:[%s210] sm:$0xff] %v431
        %440 = vst [vmem:[%s210 + $0x8] sm:$0xff] %v436
        %vm441 = vcmask 7168
        %442 = vst.msk [vmem:[%s199] sm:$0xff] %vm441, %v336
        %443 = vst.msk [vmem:[%s199 + $0x8] sm:$0xff] %vm441, %v351
        %s444 = smul.u32 2, %s19
        %p445 = scmp.lt.s32.totalorder %s444, 3
        %s446 = scalar_select %p445, %s444, 3
        %s447 = smul.addr %s446, 8
        %s448 = scalar_lea.vmem %s3, %s447
        %s449 = sand.u32 %s121, 1
        %s450 = scalar_lea.sflag [#allocation3], %s449
        %s451 = sand.u32 %s121, 1
        %s452 = smul.addr %s451, 16
        %s453 = scalar_lea.vmem [#allocation2], %s452
        // Predicated region
        $region33: #{vqvae_forward.24} parent=31 // pred_check
          %p454 = pneg %p105
        $region34: #{vqvae_forward.24} parent=31 // pred_check_branch
          %456 = sbr.rel (%p454) target = $region36
        $region35: #{vqvae_forward.24} parent=31 // pred_region
          %s457 = smul.u32 2, %s19
        $region36: #{vqvae_forward.24} parent=31 // pred_fallthru
          _
        // Predicated region
        $region37: #{vqvae_forward.24} parent=31 // pred_check
          %p458 = pneg %p131
        $region38: #{vqvae_forward.24} parent=31 // pred_check_branch
          %460 = sbr.rel (%p458) target = $region40
        $region39: #{vqvae_forward.24} parent=31 // pred_region
          %s461 = smul.u32 2, %s19
          %s463 = ssub.s32 256, 256
          %464 = vsyncadd %s450, %s463
          %s465 = smul.addr %s461, 128
          %s466 = scalar_lea.hbm %s4, %s465
          %s467 = sshll.u32 %s453, 4
          %s468 = int_to_ptr.vmem [resolvable:$true] %s467
          %473 = dma.vmem_to_hbm [thread:$0]  %s468, 256, %s466, %s450, 128, 128, 8
        $region40: #{vqvae_forward.24} parent=31 // pred_fallthru
          _
      $region32: #{vqvae_forward.24} parent=5 // pred_fallthru
        _
      %p474 = scmp.le.s32.totalorder 2, %s14
      // Predicated region
      $region41: #{vqvae_forward.24} parent=5 // pred_check
        %p475 = pneg %p474
      $region42: #{vqvae_forward.24} parent=5 // pred_check_branch
        %477 = sbr.rel (%p475) target = $region44
      $region43: #{vqvae_forward.24} parent=5 // pred_region
        %s478 = ssub.s32 %s14, 2
        // Predicated region
        $region45: #{vqvae_forward.24} parent=43 // pred_check
          %p479 = pneg %p111
        $region46: #{vqvae_forward.24} parent=43 // pred_check_branch
          %481 = sbr.rel (%p479) target = $region48
        $region47: #{vqvae_forward.24} parent=43 // pred_region
          %s482 = smul.u32 2, %s20
          %p483 = scmp.lt.s32.totalorder %s482, 3
          %s484 = scalar_select %p483, %s482, 3
          %s485 = smul.addr %s484, 8
          %s486 = scalar_lea.vmem %s3, %s485
        $region48: #{vqvae_forward.24} parent=43 // pred_fallthru
          _
        // Predicated region
        $region49: #{vqvae_forward.24} parent=43 // pred_check
          %p487 = pneg %p137
        $region50: #{vqvae_forward.24} parent=43 // pred_check_branch
          %489 = sbr.rel (%p487) target = $region52
        $region51: #{vqvae_forward.24} parent=43 // pred_region
          %s490 = sand.u32 %s122, 1
          %s491 = scalar_lea.sflag [#allocation3], %s490
          %s492 = sand.u32 %s122, 1
          %s493 = smul.addr %s492, 16
          %s494 = scalar_lea.vmem [#allocation2], %s493
          %495 = dma.done %s491, 256
        $region52: #{vqvae_forward.24} parent=43 // pred_fallthru
          _
      $region44: #{vqvae_forward.24} parent=5 // pred_fallthru
        _
    $region6: #{vqvae_forward.24} parent=1 // loop_footer
      %s18 = sadd.s32 1, %s14
    $region7: #{vqvae_forward.24} parent=1 // loop_footer_branch
      %13 = sbr.rel target = $region3
    $region8: #{vqvae_forward.24} parent=1 // loop_exit
      _
    %496 = vsyncpa [#allocation3], 1
    %s497 = scalar_lea.sflag [#allocation3], 1
    %498 = vsyncpa %s497, 1

// kernel: vqvae_forward.20
$region0: #{vqvae_forward.20}
  #allocation0 [shape = 'u32[]', space=smem, size = 0x4, offset = 0x4, fixed_abs, tag = 'smem constant byte address 0x4 - core index']
  #allocation1 [shape = 'u32[144,128]{1,0:T(1,128)}', space=vmem, size = 0x12000, scoped, tag = 'internal scratch']
  %s0 = inlined_call_operand.vmem [shape: bf16[32,1152], index: 0, kind: input, shape index: {}]
  %s1 = inlined_call_operand.vmem [shape: bf16[1152,128], index: 1, kind: input, shape index: {}]
  %s2 = inlined_call_operand.vmem [shape: f32[1,128], index: 2, kind: input, shape index: {}]
  %s3 = inlined_call_operand.vmem [shape: f32[1,128], index: 3, kind: input, shape index: {}]
  %s4 = inlined_call_operand.vmem [shape: f32[32,128], index: 4, kind: output, shape index: {}]
  %s5 = sld [smem:[#allocation0]]
  $region49: #{vqvae_forward.20} parent=0
    _
  %s7 = ssub.s32 1, %s5
  %s8 = scalar_select 0, %s7, %s5
  loop: start=0, step=1, limit=4
  $region2: #{vqvae_forward.20} parent=0 // loop_pre_header
    _
  $region3: #{vqvae_forward.20} parent=0 // loop_header
    %s10 = sphi 0, %s14
    %p11 = scmp.ge.s32.totalorder %s10, 4
    %s20 = sphi 0, %s22
    %s23 = sphi 0, %s20
    %s24 = sphi 0, %s23
    %s40 = sphi 0, %s24
    %s44 = sphi 0, %s44
    %s46 = sphi 0, %s44
    %s47 = sphi 0, %s46
    %s61 = sphi 0, %s47
    %s65 = sphi 0, %s65
    %s67 = sphi 0, %s65
    %s68 = sphi 0, %s67
    %s82 = sphi 0, %s68
    %s86 = sphi 0, %s86
    %s88 = sphi 0, %s86
    %s89 = sphi 0, %s88
    %s103 = sphi 0, %s89
    %s109 = sphi 0, %s111
    %s112 = sphi 0, %s109
    %s113 = sphi 0, %s112
    %s129 = sphi 0, %s113
  $region4: #{vqvae_forward.20} parent=0 // loop_header_branch
    %13 = sbr.rel (%p11) target = $region8
  $region5: #{vqvae_forward.20} parent=0 // loop_body
    %s15 = ssub.s32 %s10, 1
    %s16 = ssub.s32 %s10, 2
    %s17 = sadd.s32 %s10, 1
    %s18 = ssub.s32 %s10, %s17
    %p19 = scmp.eq.s32.totalorder %s18, 0
    %s21 = sadd.s32 %s20, 1
    %s22 = scalar_select %p19, %s20, %s21
    %p25 = pneg %p19
    %p26 = scmp.eq.s32.totalorder %s10, 1
    %p27 = por %p25, %p26
    %p28 = scmp.ne.s32.totalorder %s20, %s23
    %p29 = scmp.eq.s32.totalorder %s10, 0
    %p30 = por %p28, %p29
    %p31 = scmp.ne.s32.totalorder %s20, %s23
    %p32 = scmp.eq.s32.totalorder %s15, 1
    %p33 = por %p31, %p32
    %p34 = scmp.ne.s32.totalorder %s23, %s24
    %p35 = scmp.eq.s32.totalorder %s15, 0
    %p36 = por %p34, %p35
    %p37 = scmp.ne.s32.totalorder %s23, %s24
    %p38 = scmp.eq.s32.totalorder %s16, 1
    %p39 = por %p37, %p38
    %p41 = scmp.ne.s32.totalorder %s24, %s40
    %p42 = scmp.eq.s32.totalorder %s16, 0
    %p43 = por %p41, %p42
    %s45 = sadd.s32 %s44, 1
    %p48 = scmp.eq.s32.totalorder %s10, 1
    %p49 = scmp.ne.s32.totalorder %s44, %s46
    %p50 = scmp.eq.s32.totalorder %s10, 0
    %p51 = por %p49, %p50
    %p52 = scmp.ne.s32.totalorder %s44, %s46
    %p53 = scmp.eq.s32.totalorder %s15, 1
    %p54 = por %p52, %p53
    %p55 = scmp.ne.s32.totalorder %s46, %s47
    %p56 = scmp.eq.s32.totalorder %s15, 0
    %p57 = por %p55, %p56
    %p58 = scmp.ne.s32.totalorder %s46, %s47
    %p59 = scmp.eq.s32.totalorder %s16, 1
    %p60 = por %p58, %p59
    %p62 = scmp.ne.s32.totalorder %s47, %s61
    %p63 = scmp.eq.s32.totalorder %s16, 0
    %p64 = por %p62, %p63
    %s66 = sadd.s32 %s65, 1
    %p69 = scmp.eq.s32.totalorder %s10, 1
    %p70 = scmp.ne.s32.totalorder %s65, %s67
    %p71 = scmp.eq.s32.totalorder %s10, 0
    %p72 = por %p70, %p71
    %p73 = scmp.ne.s32.totalorder %s65, %s67
    %p74 = scmp.eq.s32.totalorder %s15, 1
    %p75 = por %p73, %p74
    %p76 = scmp.ne.s32.totalorder %s67, %s68
    %p77 = scmp.eq.s32.totalorder %s15, 0
    %p78 = por %p76, %p77
    %p79 = scmp.ne.s32.totalorder %s67, %s68
    %p80 = scmp.eq.s32.totalorder %s16, 1
    %p81 = por %p79, %p80
    %p83 = scmp.ne.s32.totalorder %s68, %s82
    %p84 = scmp.eq.s32.totalorder %s16, 0
    %p85 = por %p83, %p84
    %s87 = sadd.s32 %s86, 1
    %p90 = scmp.eq.s32.totalorder %s10, 1
    %p91 = scmp.ne.s32.totalorder %s86, %s88
    %p92 = scmp.eq.s32.totalorder %s10, 0
    %p93 = por %p91, %p92
    %p94 = scmp.ne.s32.totalorder %s86, %s88
    %p95 = scmp.eq.s32.totalorder %s15, 1
    %p96 = por %p94, %p95
    %p97 = scmp.ne.s32.totalorder %s88, %s89
    %p98 = scmp.eq.s32.totalorder %s15, 0
    %p99 = por %p97, %p98
    %p100 = scmp.ne.s32.totalorder %s88, %s89
    %p101 = scmp.eq.s32.totalorder %s16, 1
    %p102 = por %p100, %p101
    %p104 = scmp.ne.s32.totalorder %s89, %s103
    %p105 = scmp.eq.s32.totalorder %s16, 0
    %p106 = por %p104, %p105
    %s107 = ssub.s32 %s10, %s17
    %p108 = scmp.eq.s32.totalorder %s107, 0
    %s110 = sadd.s32 %s109, 1
    %s111 = scalar_select %p108, %s109, %s110
    %p114 = pneg %p108
    %p115 = scmp.eq.s32.totalorder %s10, 1
    %p116 = por %p114, %p115
    %p117 = scmp.ne.s32.totalorder %s109, %s112
    %p118 = scmp.eq.s32.totalorder %s10, 0
    %p119 = por %p117, %p118
    %p120 = scmp.ne.s32.totalorder %s109, %s112
    %p121 = scmp.eq.s32.totalorder %s15, 1
    %p122 = por %p120, %p121
    %p123 = scmp.ne.s32.totalorder %s112, %s113
    %p124 = scmp.eq.s32.totalorder %s15, 0
    %p125 = por %p123, %p124
    %p126 = scmp.ne.s32.totalorder %s112, %s113
    %p127 = scmp.eq.s32.totalorder %s16, 1
    %p128 = por %p126, %p127
    %p130 = scmp.ne.s32.totalorder %s113, %s129
    %p131 = scmp.eq.s32.totalorder %s16, 0
    %p132 = por %p130, %p131
    %p133 = scmp.le.s32.totalorder 1, %s10
    %p134 = scmp.lt.s32.totalorder %s10, 3
    %p135 = pnand %p133, %p134
    %p136 = pneg %p135
    // Predicated region
    $region9: #{vqvae_forward.20} parent=5 // pred_check
      _
    $region10: #{vqvae_forward.20} parent=5 // pred_check_branch
      %138 = sbr.rel (%p135) target = $region12
    $region11: #{vqvae_forward.20} parent=5 // pred_region
      %s139 = ssub.s32 %s10, 1
      // Predicated region
      $region13: #{vqvae_forward.20} parent=11 // pred_check
        %p140 = pneg %p57
      $region14: #{vqvae_forward.20} parent=11 // pred_check_branch
        %142 = sbr.rel (%p140) target = $region16
      $region15: #{vqvae_forward.20} parent=11 // pred_region
        _
      $region16: #{vqvae_forward.20} parent=11 // pred_fallthru
        _
      // Predicated region
      $region17: #{vqvae_forward.20} parent=11 // pred_check
        %p143 = pneg %p78
      $region18: #{vqvae_forward.20} parent=11 // pred_check_branch
        %145 = sbr.rel (%p143) target = $region20
      $region19: #{vqvae_forward.20} parent=11 // pred_region
        _
      $region20: #{vqvae_forward.20} parent=11 // pred_fallthru
        _
      // Predicated region
      $region21: #{vqvae_forward.20} parent=11 // pred_check
        %p146 = pneg %p99
      $region22: #{vqvae_forward.20} parent=11 // pred_check_branch
        %148 = sbr.rel (%p146) target = $region24
      $region23: #{vqvae_forward.20} parent=11 // pred_region
        _
      $region24: #{vqvae_forward.20} parent=11 // pred_fallthru
        _
    $region12: #{vqvae_forward.20} parent=5 // pred_fallthru
      _
    %p149 = scmp.lt.s32.totalorder %s10, 2
    // Predicated region
    $region25: #{vqvae_forward.20} parent=5 // pred_check
      %p150 = pneg %p149
    $region26: #{vqvae_forward.20} parent=5 // pred_check_branch
      %152 = sbr.rel (%p150) target = $region28
    $region27: #{vqvae_forward.20} parent=5 // pred_region
      // Predicated region
      $region29: #{vqvae_forward.20} parent=27 // pred_check
        %p153 = pneg %p30
      $region30: #{vqvae_forward.20} parent=27 // pred_check_branch
        %155 = sbr.rel (%p153) target = $region32
      $region31: #{vqvae_forward.20} parent=27 // pred_region
        %s156 = smul.u32 2, %s10
        %p157 = scmp.lt.s32.totalorder %s156, 3
        %s158 = scalar_select %p157, %s156, 3
        %s159 = smul.addr %s158, 9
        %s160 = smul.addr %s159, 4
        %s161 = scalar_lea.vmem %s0, %s160
        %s162 = smul.u32 2, %s10
      $region32: #{vqvae_forward.20} parent=27 // pred_fallthru
        _
    $region28: #{vqvae_forward.20} parent=5 // pred_fallthru
      _
    %p163 = scmp.le.s32.totalorder 1, %s10
    %p164 = scmp.lt.s32.totalorder %s10, 3
    %p165 = pnand %p163, %p164
    %p166 = pneg %p165
    // Predicated region
    $region33: #{vqvae_forward.20} parent=5 // pred_check
      _
    $region34: #{vqvae_forward.20} parent=5 // pred_check_branch
      %168 = sbr.rel (%p165) target = $region36
    $region35: #{vqvae_forward.20} parent=5 // pred_region
      %s169 = ssub.s32 %s10, 1
      %s170 = smul.u32 2, %s15
      %p171 = scmp.lt.s32.totalorder %s170, 3
      %s172 = scalar_select %p171, %s170, 3
      %s173 = smul.addr %s172, 9
      %s174 = smul.addr %s173, 4
      %s175 = scalar_lea.vmem %s0, %s174
      %p176 = pneg %p36
      %p177 = pneg %p33
      %p178 = pneg %p57
      %p179 = pneg %p54
      %p180 = pneg %p78
      %p181 = pneg %p75
      %p182 = pneg %p99
      %p183 = pneg %p96
      %p184 = pneg %p125
      %p185 = pneg %p122
      %s186 = smul.u32 2, %s15
      %p187 = scmp.lt.s32.totalorder %s186, 3
      %s188 = scalar_select %p187, %s186, 3
      %s189 = smul.addr %s188, 8
      %s190 = scalar_lea.vmem %s4, %s189
      %s191 = smul.u32 2, %s15
      %p192 = scmp.lt.s32.totalorder %s191, 3
      %s193 = scalar_select %p192, %s191, 3
      %s194 = smul.addr %s193, 9
      %s195 = smul.addr %s194, 4
      %s196 = scalar_lea.vmem %s0, %s195
      %s197 = smul.u32 2, %s15
      %s198 = smul.u32 2, %s15
      %p199 = scmp.lt.s32.totalorder %s198, 3
      %s200 = scalar_select %p199, %s198, 3
      %s201 = smul.addr %s200, 8
      %s202 = scalar_lea.vmem %s4, %s201
      %s203 = smul.u32 2, %s15
      %v205 = vld [vmem:[%s196] sm:$0xff]
      %v206 = vld [vmem:[%s196 + $0x8] sm:$0xff]
      %v207 = vld [vmem:[%s196 + $0x10] sm:$0xff]
      %v208 = vld [vmem:[%s196 + $0x18] sm:$0xff]
      %v209 = vld [vmem:[%s196 + $0x20] sm:$0xf]
      %v210 = vld [vmem:[%s196 + $0x24] sm:$0xff]
      %v211 = vld [vmem:[%s196 + $0x2c] sm:$0xff]
      %v212 = vld [vmem:[%s196 + $0x34] sm:$0xff]
      %v213 = vld [vmem:[%s196 + $0x3c] sm:$0xff]
      %v214 = vld [vmem:[%s196 + $0x44] sm:$0xf]
      %v215 = vld [vmem:[%s1] sm:$0xf]
      %v216 = vld [vmem:[%s1 + $0x4] sm:$0xf]
      %v217 = vld [vmem:[%s1 + $0x8] sm:$0xf]
      %v218 = vld [vmem:[%s1 + $0xc] sm:$0xf]
      %v219 = vld [vmem:[%s1 + $0x10] sm:$0xf]
      %v220 = vld [vmem:[%s1 + $0x14] sm:$0xf]
      %v221 = vld [vmem:[%s1 + $0x18] sm:$0xf]
      %v222 = vld [vmem:[%s1 + $0x1c] sm:$0xf]
      %v223 = vld [vmem:[%s1 + $0x20] sm:$0xf]
      %v224 = vld [vmem:[%s1 + $0x24] sm:$0xf]
      %v225 = vld [vmem:[%s1 + $0x28] sm:$0xf]
      %v226 = vld [vmem:[%s1 + $0x2c] sm:$0xf]
      %v227 = vld [vmem:[%s1 + $0x30] sm:$0xf]
      %v228 = vld [vmem:[%s1 + $0x34] sm:$0xf]
      %v229 = vld [vmem:[%s1 + $0x38] sm:$0xf]
      %v230 = vld [vmem:[%s1 + $0x3c] sm:$0xf]
      %v231 = vld [vmem:[%s1 + $0x40] sm:$0xf]
      %v232 = vld [vmem:[%s1 + $0x44] sm:$0xf]
      %v233 = vld [vmem:[%s1 + $0x48] sm:$0xf]
      %v234 = vld [vmem:[%s1 + $0x4c] sm:$0xf]
      %v235 = vld [vmem:[%s1 + $0x50] sm:$0xf]
      %v236 = vld [vmem:[%s1 + $0x54] sm:$0xf]
      %v237 = vld [vmem:[%s1 + $0x58] sm:$0xf]
      %v238 = vld [vmem:[%s1 + $0x5c] sm:$0xf]
      %v239 = vld [vmem:[%s1 + $0x60] sm:$0xf]
      %v240 = vld [vmem:[%s1 + $0x64] sm:$0xf]
      %v241 = vld [vmem:[%s1 + $0x68] sm:$0xf]
      %v242 = vld [vmem:[%s1 + $0x6c] sm:$0xf]
      %v243 = vld [vmem:[%s1 + $0x70] sm:$0xf]
      %v244 = vld [vmem:[%s1 + $0x74] sm:$0xf]
      %v245 = vld [vmem:[%s1 + $0x78] sm:$0xf]
      %v246 = vld [vmem:[%s1 + $0x7c] sm:$0xf]
      %v247 = vld [vmem:[%s1 + $0x80] sm:$0xf]
      %v248 = vld [vmem:[%s1 + $0x84] sm:$0xf]
      %v249 = vld [vmem:[%s1 + $0x88] sm:$0xf]
      %v250 = vld [vmem:[%s1 + $0x8c] sm:$0xf]
      %v251 = vld [vmem:[%s1 + $0x90] sm:$0xf]
      %v252 = vld [vmem:[%s1 + $0x94] sm:$0xf]
      %v253 = vld [vmem:[%s1 + $0x98] sm:$0xf]
      %v254 = vld [vmem:[%s1 + $0x9c] sm:$0xf]
      %v255 = vld [vmem:[%s1 + $0xa0] sm:$0xf]
      %v256 = vld [vmem:[%s1 + $0xa4] sm:$0xf]
      %v257 = vld [vmem:[%s1 + $0xa8] sm:$0xf]
      %v258 = vld [vmem:[%s1 + $0xac] sm:$0xf]
      %v259 = vld [vmem:[%s1 + $0xb0] sm:$0xf]
      %v260 = vld [vmem:[%s1 + $0xb4] sm:$0xf]
      %v261 = vld [vmem:[%s1 + $0xb8] sm:$0xf]
      %v262 = vld [vmem:[%s1 + $0xbc] sm:$0xf]
      %v263 = vld [vmem:[%s1 + $0xc0] sm:$0xf]
      %v264 = vld [vmem:[%s1 + $0xc4] sm:$0xf]
      %v265 = vld [vmem:[%s1 + $0xc8] sm:$0xf]
      %v266 = vld [vmem:[%s1 + $0xcc] sm:$0xf]
      %v267 = vld [vmem:[%s1 + $0xd0] sm:$0xf]
      %v268 = vld [vmem:[%s1 + $0xd4] sm:$0xf]
      %v269 = vld [vmem:[%s1 + $0xd8] sm:$0xf]
      %v270 = vld [vmem:[%s1 + $0xdc] sm:$0xf]
      %v271 = vld [vmem:[%s1 + $0xe0] sm:$0xf]
      %v272 = vld [vmem:[%s1 + $0xe4] sm:$0xf]
      %v273 = vld [vmem:[%s1 + $0xe8] sm:$0xf]
      %v274 = vld [vmem:[%s1 + $0xec] sm:$0xf]
      %v275 = vld [vmem:[%s1 + $0xf0] sm:$0xf]
      %v276 = vld [vmem:[%s1 + $0xf4] sm:$0xf]
      %v277 = vld [vmem:[%s1 + $0xf8] sm:$0xf]
      %v278 = vld [vmem:[%s1 + $0xfc] sm:$0xf]
      %v279 = vld [vmem:[%s1 + $0x100] sm:$0xf]
      %v280 = vld [vmem:[%s1 + $0x104] sm:$0xf]
      %v281 = vld [vmem:[%s1 + $0x108] sm:$0xf]
      %v282 = vld [vmem:[%s1 + $0x10c] sm:$0xf]
      %v283 = vld [vmem:[%s1 + $0x110] sm:$0xf]
      %v284 = vld [vmem:[%s1 + $0x114] sm:$0xf]
      %v285 = vld [vmem:[%s1 + $0x118] sm:$0xf]
      %v286 = vld [vmem:[%s1 + $0x11c] sm:$0xf]
      %v287 = vld [vmem:[%s1 + $0x120] sm:$0xf]
      %v288 = vld [vmem:[%s1 + $0x124] sm:$0xf]
      %v289 = vld [vmem:[%s1 + $0x128] sm:$0xf]
      %v290 = vld [vmem:[%s1 + $0x12c] sm:$0xf]
      %v291 = vld [vmem:[%s1 + $0x130] sm:$0xf]
      %v292 = vld [vmem:[%s1 + $0x134] sm:$0xf]
      %v293 = vld [vmem:[%s1 + $0x138] sm:$0xf]
      %v294 = vld [vmem:[%s1 + $0x13c] sm:$0xf]
      %v295 = vld [vmem:[%s1 + $0x140] sm:$0xf]
      %v296 = vld [vmem:[%s1 + $0x144] sm:$0xf]
      %v297 = vld [vmem:[%s1 + $0x148] sm:$0xf]
      %v298 = vld [vmem:[%s1 + $0x14c] sm:$0xf]
      %v299 = vld [vmem:[%s1 + $0x150] sm:$0xf]
      %v300 = vld [vmem:[%s1 + $0x154] sm:$0xf]
      %v301 = vld [vmem:[%s1 + $0x158] sm:$0xf]
      %v302 = vld [vmem:[%s1 + $0x15c] sm:$0xf]
      %v303 = vld [vmem:[%s1 + $0x160] sm:$0xf]
      %v304 = vld [vmem:[%s1 + $0x164] sm:$0xf]
      %v305 = vld [vmem:[%s1 + $0x168] sm:$0xf]
      %v306 = vld [vmem:[%s1 + $0x16c] sm:$0xf]
      %v307 = vld [vmem:[%s1 + $0x170] sm:$0xf]
      %v308 = vld [vmem:[%s1 + $0x174] sm:$0xf]
      %v309 = vld [vmem:[%s1 + $0x178] sm:$0xf]
      %v310 = vld [vmem:[%s1 + $0x17c] sm:$0xf]
      %v311 = vld [vmem:[%s1 + $0x180] sm:$0xf]
      %v312 = vld [vmem:[%s1 + $0x184] sm:$0xf]
      %v313 = vld [vmem:[%s1 + $0x188] sm:$0xf]
      %v314 = vld [vmem:[%s1 + $0x18c] sm:$0xf]
      %v315 = vld [vmem:[%s1 + $0x190] sm:$0xf]
      %v316 = vld [vmem:[%s1 + $0x194] sm:$0xf]
      %v317 = vld [vmem:[%s1 + $0x198] sm:$0xf]
      %v318 = vld [vmem:[%s1 + $0x19c] sm:$0xf]
      %v319 = vld [vmem:[%s1 + $0x1a0] sm:$0xf]
      %v320 = vld [vmem:[%s1 + $0x1a4] sm:$0xf]
      %v321 = vld [vmem:[%s1 + $0x1a8] sm:$0xf]
      %v322 = vld [vmem:[%s1 + $0x1ac] sm:$0xf]
      %v323 = vld [vmem:[%s1 + $0x1b0] sm:$0xf]
      %v324 = vld [vmem:[%s1 + $0x1b4] sm:$0xf]
      %v325 = vld [vmem:[%s1 + $0x1b8] sm:$0xf]
      %v326 = vld [vmem:[%s1 + $0x1bc] sm:$0xf]
      %v327 = vld [vmem:[%s1 + $0x1c0] sm:$0xf]
      %v328 = vld [vmem:[%s1 + $0x1c4] sm:$0xf]
      %v329 = vld [vmem:[%s1 + $0x1c8] sm:$0xf]
      %v330 = vld [vmem:[%s1 + $0x1cc] sm:$0xf]
      %v331 = vld [vmem:[%s1 + $0x1d0] sm:$0xf]
      %v332 = vld [vmem:[%s1 + $0x1d4] sm:$0xf]
      %v333 = vld [vmem:[%s1 + $0x1d8] sm:$0xf]
      %v334 = vld [vmem:[%s1 + $0x1dc] sm:$0xf]
      %v335 = vld [vmem:[%s1 + $0x1e0] sm:$0xf]
      %v336 = vld [vmem:[%s1 + $0x1e4] sm:$0xf]
      %v337 = vld [vmem:[%s1 + $0x1e8] sm:$0xf]
      %v338 = vld [vmem:[%s1 + $0x1ec] sm:$0xf]
      %v339 = vld [vmem:[%s1 + $0x1f0] sm:$0xf]
      %v340 = vld [vmem:[%s1 + $0x1f4] sm:$0xf]
      %v341 = vld [vmem:[%s1 + $0x1f8] sm:$0xf]
      %v342 = vld [vmem:[%s1 + $0x1fc] sm:$0xf]
      %v343 = vld [vmem:[%s1 + $0x200] sm:$0xf]
      %v344 = vld [vmem:[%s1 + $0x204] sm:$0xf]
      %v345 = vld [vmem:[%s1 + $0x208] sm:$0xf]
      %v346 = vld [vmem:[%s1 + $0x20c] sm:$0xf]
      %v347 = vld [vmem:[%s1 + $0x210] sm:$0xf]
      %v348 = vld [vmem:[%s1 + $0x214] sm:$0xf]
      %v349 = vld [vmem:[%s1 + $0x218] sm:$0xf]
      %v350 = vld [vmem:[%s1 + $0x21c] sm:$0xf]
      %v351 = vld [vmem:[%s1 + $0x220] sm:$0xf]
      %v352 = vld [vmem:[%s1 + $0x224] sm:$0xf]
      %v353 = vld [vmem:[%s1 + $0x228] sm:$0xf]
      %v354 = vld [vmem:[%s1 + $0x22c] sm:$0xf]
      %v355 = vld [vmem:[%s1 + $0x230] sm:$0xf]
      %v356 = vld [vmem:[%s1 + $0x234] sm:$0xf]
      %v357 = vld [vmem:[%s1 + $0x238] sm:$0xf]
      %v358 = vld [vmem:[%s1 + $0x23c] sm:$0xf]
      %v369 = vunpack.c.l.b16 %v205
      %v370 = vunpack.c.h.b16 %v205
      %v371 = vunpack.c.l.b16 %v206
      %v372 = vunpack.c.h.b16 %v206
      %v373 = vunpack.c.l.b16 %v207
      %v374 = vunpack.c.h.b16 %v207
      %v375 = vunpack.c.l.b16 %v208
      %v376 = vunpack.c.h.b16 %v208
      %v377 = vunpack.c.l.b16 %v209
      %v378 = vunpack.c.l.b16 %v210
      %v379 = vunpack.c.h.b16 %v210
      %v380 = vunpack.c.l.b16 %v211
      %v381 = vunpack.c.h.b16 %v211
      %v382 = vunpack.c.l.b16 %v212
      %v383 = vunpack.c.h.b16 %v212
      %v384 = vunpack.c.l.b16 %v213
      %v385 = vunpack.c.h.b16 %v213
      %v386 = vunpack.c.l.b16 %v214
      %v387 = vpack.c.b16 %v378, %v369
      %v388 = vpack.c.b16 %v379, %v370
      %v389 = vpack.c.b16 %v380, %v371
      %v390 = vpack.c.b16 %v381, %v372
      %v391 = vpack.c.b16 %v382, %v373
      %v392 = vpack.c.b16 %v383, %v374
      %v393 = vpack.c.b16 %v384, %v375
      %v394 = vpack.c.b16 %v385, %v376
      %v395 = vpack.c.b16 %v386, %v377
      %v549 = vunpack.c.l.b16 %v215
      %v550 = vunpack.c.l.b16 %v216
      %v551 = vunpack.c.l.b16 %v217
      %v552 = vunpack.c.l.b16 %v218
      %v553 = vunpack.c.l.b16 %v219
      %v554 = vunpack.c.l.b16 %v220
      %v555 = vunpack.c.l.b16 %v221
      %v556 = vunpack.c.l.b16 %v222
      %v557 = vunpack.c.l.b16 %v223
      %v558 = vunpack.c.l.b16 %v224
      %v559 = vunpack.c.l.b16 %v225
      %v560 = vunpack.c.l.b16 %v226
      %v561 = vunpack.c.l.b16 %v227
      %v562 = vunpack.c.l.b16 %v228
      %v563 = vunpack.c.l.b16 %v229
      %v564 = vunpack.c.l.b16 %v230
      %v565 = vunpack.c.l.b16 %v231
      %v566 = vunpack.c.l.b16 %v232
      %v567 = vunpack.c.l.b16 %v233
      %v568 = vunpack.c.l.b16 %v234
      %v569 = vunpack.c.l.b16 %v235
      %v570 = vunpack.c.l.b16 %v236
      %v571 = vunpack.c.l.b16 %v237
      %v572 = vunpack.c.l.b16 %v238
      %v573 = vunpack.c.l.b16 %v239
      %v574 = vunpack.c.l.b16 %v240
      %v575 = vunpack.c.l.b16 %v241
      %v576 = vunpack.c.l.b16 %v242
      %v577 = vunpack.c.l.b16 %v243
      %v578 = vunpack.c.l.b16 %v244
      %v579 = vunpack.c.l.b16 %v245
      %v580 = vunpack.c.l.b16 %v246
      %v581 = vunpack.c.l.b16 %v247
      %v582 = vunpack.c.l.b16 %v248
      %v583 = vunpack.c.l.b16 %v249
      %v584 = vunpack.c.l.b16 %v250
      %v585 = vunpack.c.l.b16 %v251
      %v586 = vunpack.c.l.b16 %v252
      %v587 = vunpack.c.l.b16 %v253
      %v588 = vunpack.c.l.b16 %v254
      %v589 = vunpack.c.l.b16 %v255
      %v590 = vunpack.c.l.b16 %v256
      %v591 = vunpack.c.l.b16 %v257
      %v592 = vunpack.c.l.b16 %v258
      %v593 = vunpack.c.l.b16 %v259
      %v594 = vunpack.c.l.b16 %v260
      %v595 = vunpack.c.l.b16 %v261
      %v596 = vunpack.c.l.b16 %v262
      %v597 = vunpack.c.l.b16 %v263
      %v598 = vunpack.c.l.b16 %v264
      %v599 = vunpack.c.l.b16 %v265
      %v600 = vunpack.c.l.b16 %v266
      %v601 = vunpack.c.l.b16 %v267
      %v602 = vunpack.c.l.b16 %v268
      %v603 = vunpack.c.l.b16 %v269
      %v604 = vunpack.c.l.b16 %v270
      %v605 = vunpack.c.l.b16 %v271
      %v606 = vunpack.c.l.b16 %v272
      %v607 = vunpack.c.l.b16 %v273
      %v608 = vunpack.c.l.b16 %v274
      %v609 = vunpack.c.l.b16 %v275
      %v610 = vunpack.c.l.b16 %v276
      %v611 = vunpack.c.l.b16 %v277
      %v612 = vunpack.c.l.b16 %v278
      %v613 = vunpack.c.l.b16 %v279
      %v614 = vunpack.c.l.b16 %v280
      %v615 = vunpack.c.l.b16 %v281
      %v616 = vunpack.c.l.b16 %v282
      %v617 = vunpack.c.l.b16 %v283
      %v618 = vunpack.c.l.b16 %v284
      %v619 = vunpack.c.l.b16 %v285
      %v620 = vunpack.c.l.b16 %v286
      %v621 = vunpack.c.l.b16 %v287
      %v622 = vunpack.c.l.b16 %v288
      %v623 = vunpack.c.l.b16 %v289
      %v624 = vunpack.c.l.b16 %v290
      %v625 = vunpack.c.l.b16 %v291
      %v626 = vunpack.c.l.b16 %v292
      %v627 = vunpack.c.l.b16 %v293
      %v628 = vunpack.c.l.b16 %v294
      %v629 = vunpack.c.l.b16 %v295
      %v630 = vunpack.c.l.b16 %v296
      %v631 = vunpack.c.l.b16 %v297
      %v632 = vunpack.c.l.b16 %v298
      %v633 = vunpack.c.l.b16 %v299
      %v634 = vunpack.c.l.b16 %v300
      %v635 = vunpack.c.l.b16 %v301
      %v636 = vunpack.c.l.b16 %v302
      %v637 = vunpack.c.l.b16 %v303
      %v638 = vunpack.c.l.b16 %v304
      %v639 = vunpack.c.l.b16 %v305
      %v640 = vunpack.c.l.b16 %v306
      %v641 = vunpack.c.l.b16 %v307
      %v642 = vunpack.c.l.b16 %v308
      %v643 = vunpack.c.l.b16 %v309
      %v644 = vunpack.c.l.b16 %v310
      %v645 = vunpack.c.l.b16 %v311
      %v646 = vunpack.c.l.b16 %v312
      %v647 = vunpack.c.l.b16 %v313
      %v648 = vunpack.c.l.b16 %v314
      %v649 = vunpack.c.l.b16 %v315
      %v650 = vunpack.c.l.b16 %v316
      %v651 = vunpack.c.l.b16 %v317
      %v652 = vunpack.c.l.b16 %v318
      %v653 = vunpack.c.l.b16 %v319
      %v654 = vunpack.c.l.b16 %v320
      %v655 = vunpack.c.l.b16 %v321
      %v656 = vunpack.c.l.b16 %v322
      %v657 = vunpack.c.l.b16 %v323
      %v658 = vunpack.c.l.b16 %v324
      %v659 = vunpack.c.l.b16 %v325
      %v660 = vunpack.c.l.b16 %v326
      %v661 = vunpack.c.l.b16 %v327
      %v662 = vunpack.c.l.b16 %v328
      %v663 = vunpack.c.l.b16 %v329
      %v664 = vunpack.c.l.b16 %v330
      %v665 = vunpack.c.l.b16 %v331
      %v666 = vunpack.c.l.b16 %v332
      %v667 = vunpack.c.l.b16 %v333
      %v668 = vunpack.c.l.b16 %v334
      %v669 = vunpack.c.l.b16 %v335
      %v670 = vunpack.c.l.b16 %v336
      %v671 = vunpack.c.l.b16 %v337
      %v672 = vunpack.c.l.b16 %v338
      %v673 = vunpack.c.l.b16 %v339
      %v674 = vunpack.c.l.b16 %v340
      %v675 = vunpack.c.l.b16 %v341
      %v676 = vunpack.c.l.b16 %v342
      %v677 = vunpack.c.l.b16 %v343
      %v678 = vunpack.c.l.b16 %v344
      %v679 = vunpack.c.l.b16 %v345
      %v680 = vunpack.c.l.b16 %v346
      %v681 = vunpack.c.l.b16 %v347
      %v682 = vunpack.c.l.b16 %v348
      %v683 = vunpack.c.l.b16 %v349
      %v684 = vunpack.c.l.b16 %v350
      %v685 = vunpack.c.l.b16 %v351
      %v686 = vunpack.c.l.b16 %v352
      %v687 = vunpack.c.l.b16 %v353
      %v688 = vunpack.c.l.b16 %v354
      %v689 = vunpack.c.l.b16 %v355
      %v690 = vunpack.c.l.b16 %v356
      %v691 = vunpack.c.l.b16 %v357
      %v692 = vunpack.c.l.b16 %v358
      %v693 = vpack.c.b16 %v550, %v549
      %v694 = vpack.c.b16 %v552, %v551
      %v695 = vpack.c.b16 %v554, %v553
      %v696 = vpack.c.b16 %v556, %v555
      %v697 = vpack.c.b16 %v558, %v557
      %v698 = vpack.c.b16 %v560, %v559
      %v699 = vpack.c.b16 %v562, %v561
      %v700 = vpack.c.b16 %v564, %v563
      %v701 = vpack.c.b16 %v566, %v565
      %v702 = vpack.c.b16 %v568, %v567
      %v703 = vpack.c.b16 %v570, %v569
      %v704 = vpack.c.b16 %v572, %v571
      %v705 = vpack.c.b16 %v574, %v573
      %v706 = vpack.c.b16 %v576, %v575
      %v707 = vpack.c.b16 %v578, %v577
      %v708 = vpack.c.b16 %v580, %v579
      %v709 = vpack.c.b16 %v582, %v581
      %v710 = vpack.c.b16 %v584, %v583
      %v711 = vpack.c.b16 %v586, %v585
      %v712 = vpack.c.b16 %v588, %v587
      %v713 = vpack.c.b16 %v590, %v589
      %v714 = vpack.c.b16 %v592, %v591
      %v715 = vpack.c.b16 %v594, %v593
      %v716 = vpack.c.b16 %v596, %v595
      %v717 = vpack.c.b16 %v598, %v597
      %v718 = vpack.c.b16 %v600, %v599
      %v719 = vpack.c.b16 %v602, %v601
      %v720 = vpack.c.b16 %v604, %v603
      %v721 = vpack.c.b16 %v606, %v605
      %v722 = vpack.c.b16 %v608, %v607
      %v723 = vpack.c.b16 %v610, %v609
      %v724 = vpack.c.b16 %v612, %v611
      %v725 = vpack.c.b16 %v614, %v613
      %v726 = vpack.c.b16 %v616, %v615
      %v727 = vpack.c.b16 %v618, %v617
      %v728 = vpack.c.b16 %v620, %v619
      %v729 = vpack.c.b16 %v622, %v621
      %v730 = vpack.c.b16 %v624, %v623
      %v731 = vpack.c.b16 %v626, %v625
      %v732 = vpack.c.b16 %v628, %v627
      %v733 = vpack.c.b16 %v630, %v629
      %v734 = vpack.c.b16 %v632, %v631
      %v735 = vpack.c.b16 %v634, %v633
      %v736 = vpack.c.b16 %v636, %v635
      %v737 = vpack.c.b16 %v638, %v637
      %v738 = vpack.c.b16 %v640, %v639
      %v739 = vpack.c.b16 %v642, %v641
      %v740 = vpack.c.b16 %v644, %v643
      %v741 = vpack.c.b16 %v646, %v645
      %v742 = vpack.c.b16 %v648, %v647
      %v743 = vpack.c.b16 %v650, %v649
      %v744 = vpack.c.b16 %v652, %v651
      %v745 = vpack.c.b16 %v654, %v653
      %v746 = vpack.c.b16 %v656, %v655
      %v747 = vpack.c.b16 %v658, %v657
      %v748 = vpack.c.b16 %v660, %v659
      %v749 = vpack.c.b16 %v662, %v661
      %v750 = vpack.c.b16 %v664, %v663
      %v751 = vpack.c.b16 %v666, %v665
      %v752 = vpack.c.b16 %v668, %v667
      %v753 = vpack.c.b16 %v670, %v669
      %v754 = vpack.c.b16 %v672, %v671
      %v755 = vpack.c.b16 %v674, %v673
      %v756 = vpack.c.b16 %v676, %v675
      %v757 = vpack.c.b16 %v678, %v677
      %v758 = vpack.c.b16 %v680, %v679
      %v759 = vpack.c.b16 %v682, %v681
      %v760 = vpack.c.b16 %v684, %v683
      %v761 = vpack.c.b16 %v686, %v685
      %v762 = vpack.c.b16 %v688, %v687
      %v763 = vpack.c.b16 %v690, %v689
      %v764 = vpack.c.b16 %v692, %v691
      %837 = vmatprep.subr.bf16.mxu0 0
      %838 = vmatpush1.bf16.msra.mxu0 %v693
      %839 = vmatprep.subr.bf16.mxu0 0
      %840 = vmatpush1.bf16.msra.mxu0 %v694
      %841 = vmatprep.subr.bf16.mxu0 0
      %842 = vmatpush1.bf16.msra.mxu0 %v695
      %843 = vmatprep.subr.bf16.mxu0 0
      %844 = vmatpush1.bf16.msra.mxu0 %v696
      %845 = vmatprep.subr.bf16.mxu0 0
      %846 = vmatpush1.bf16.msra.mxu0 %v697
      %847 = vmatprep.subr.bf16.mxu0 0
      %848 = vmatpush1.bf16.msra.mxu0 %v698
      %849 = vmatprep.subr.bf16.mxu0 0
      %850 = vmatpush1.bf16.msra.mxu0 %v699
      %851 = vmatprep.subr.bf16.mxu0 0
      %852 = vmatpush1.bf16.msra.mxu0 %v700
      %853 = vmatprep.subr.bf16.mxu0 0
      %854 = vmatpush1.bf16.msra.mxu0 %v701
      %855 = vmatprep.subr.bf16.mxu0 0
      %856 = vmatpush1.bf16.msra.mxu0 %v702
      %857 = vmatprep.subr.bf16.mxu0 0
      %858 = vmatpush1.bf16.msra.mxu0 %v703
      %859 = vmatprep.subr.bf16.mxu0 0
      %860 = vmatpush1.bf16.msra.mxu0 %v704
      %861 = vmatprep.subr.bf16.mxu0 0
      %862 = vmatpush1.bf16.msra.mxu0 %v705
      %863 = vmatprep.subr.bf16.mxu0 0
      %864 = vmatpush1.bf16.msra.mxu0 %v706
      %865 = vmatprep.subr.bf16.mxu0 0
      %866 = vmatpush1.bf16.msra.mxu0 %v707
      %867 = vmatprep.subr.bf16.mxu0 0
      %868 = vmatpush1.bf16.msra.mxu0 %v708
      %869 = vmatprep.mubr.bf16.mxu0 %v388
      %870 = vmatmul.mubr.bf16.gmra.mrb[0].mxu0 %v387
      %v871 = vpop.f32.mrb[0].mxu0
      %v872 = vadd.f32 0.0, %v871
      %v873 = vpop.f32.mrb[0].mxu0
      %v874 = vpop.f32.mrb[0].mxu0
      %v875 = vadd.f32 0.0, %v874
      %v876 = vpop.f32.mrb[0].mxu0
      %877 = vdwg.mxu0
      %878 = vmatprep.subr.bf16.mxu0 0
      %879 = vmatpush1.bf16.msra.mxu0 %v709
      %880 = vmatprep.subr.bf16.mxu0 0
      %881 = vmatpush1.bf16.msra.mxu0 %v710
      %882 = vmatprep.subr.bf16.mxu0 0
      %883 = vmatpush1.bf16.msra.mxu0 %v711
      %884 = vmatprep.subr.bf16.mxu0 0
      %885 = vmatpush1.bf16.msra.mxu0 %v712
      %886 = vmatprep.subr.bf16.mxu0 0
      %887 = vmatpush1.bf16.msra.mxu0 %v713
      %888 = vmatprep.subr.bf16.mxu0 0
      %889 = vmatpush1.bf16.msra.mxu0 %v714
      %890 = vmatprep.subr.bf16.mxu0 0
      %891 = vmatpush1.bf16.msra.mxu0 %v715
      %892 = vmatprep.subr.bf16.mxu0 0
      %893 = vmatpush1.bf16.msra.mxu0 %v716
      %894 = vmatprep.subr.bf16.mxu0 0
      %895 = vmatpush1.bf16.msra.mxu0 %v717
      %896 = vmatprep.subr.bf16.mxu0 0
      %897 = vmatpush1.bf16.msra.mxu0 %v718
      %898 = vmatprep.subr.bf16.mxu0 0
      %899 = vmatpush1.bf16.msra.mxu0 %v719
      %900 = vmatprep.subr.bf16.mxu0 0
      %901 = vmatpush1.bf16.msra.mxu0 %v720
      %902 = vmatprep.subr.bf16.mxu0 0
      %903 = vmatpush1.bf16.msra.mxu0 %v721
      %904 = vmatprep.subr.bf16.mxu0 0
      %905 = vmatpush1.bf16.msra.mxu0 %v722
      %906 = vmatprep.subr.bf16.mxu0 0
      %907 = vmatpush1.bf16.msra.mxu0 %v723
      %908 = vmatprep.subr.bf16.mxu0 0
      %909 = vmatpush1.bf16.msra.mxu0 %v724
      %910 = vmatprep.mubr.bf16.mxu0 %v390
      %911 = vmatmul.mubr.bf16.gmra.mrb[0].mxu0 %v389
      %v912 = vpop.f32.mrb[0].mxu0
      %v913 = vadd.f32 %v872, %v912
      %v914 = vpop.f32.mrb[0].mxu0
      %v915 = vpop.f32.mrb[0].mxu0
      %v916 = vadd.f32 %v875, %v915
      %v917 = vpop.f32.mrb[0].mxu0
      %918 = vdwg.mxu0
      %919 = vmatprep.subr.bf16.mxu0 0
      %920 = vmatpush1.bf16.msra.mxu0 %v725
      %921 = vmatprep.subr.bf16.mxu0 0
      %922 = vmatpush1.bf16.msra.mxu0 %v726
      %923 = vmatprep.subr.bf16.mxu0 0
      %924 = vmatpush1.bf16.msra.mxu0 %v727
      %925 = vmatprep.subr.bf16.mxu0 0
      %926 = vmatpush1.bf16.msra.mxu0 %v728
      %927 = vmatprep.subr.bf16.mxu0 0
      %928 = vmatpush1.bf16.msra.mxu0 %v729
      %929 = vmatprep.subr.bf16.mxu0 0
      %930 = vmatpush1.bf16.msra.mxu0 %v730
      %931 = vmatprep.subr.bf16.mxu0 0
      %932 = vmatpush1.bf16.msra.mxu0 %v731
      %933 = vmatprep.subr.bf16.mxu0 0
      %934 = vmatpush1.bf16.msra.mxu0 %v732
      %935 = vmatprep.subr.bf16.mxu0 0
      %936 = vmatpush1.bf16.msra.mxu0 %v733
      %937 = vmatprep.subr.bf16.mxu0 0
      %938 = vmatpush1.bf16.msra.mxu0 %v734
      %939 = vmatprep.subr.bf16.mxu0 0
      %940 = vmatpush1.bf16.msra.mxu0 %v735
      %941 = vmatprep.subr.bf16.mxu0 0
      %942 = vmatpush1.bf16.msra.mxu0 %v736
      %943 = vmatprep.subr.bf16.mxu0 0
      %944 = vmatpush1.bf16.msra.mxu0 %v737
      %945 = vmatprep.subr.bf16.mxu0 0
      %946 = vmatpush1.bf16.msra.mxu0 %v738
      %947 = vmatprep.subr.bf16.mxu0 0
      %948 = vmatpush1.bf16.msra.mxu0 %v739
      %949 = vmatprep.subr.bf16.mxu0 0
      %950 = vmatpush1.bf16.msra.mxu0 %v740
      %951 = vmatprep.mubr.bf16.mxu0 %v392
      %952 = vmatmul.mubr.bf16.gmra.mrb[0].mxu0 %v391
      %v953 = vpop.f32.mrb[0].mxu0
      %v954 = vadd.f32 %v913, %v953
      %v955 = vpop.f32.mrb[0].mxu0
      %v956 = vpop.f32.mrb[0].mxu0
      %v957 = vadd.f32 %v916, %v956
      %v958 = vpop.f32.mrb[0].mxu0
      %959 = vdwg.mxu0
      %960 = vmatprep.subr.bf16.mxu0 0
      %961 = vmatpush1.bf16.msra.mxu0 %v741
      %962 = vmatprep.subr.bf16.mxu0 0
      %963 = vmatpush1.bf16.msra.mxu0 %v742
      %964 = vmatprep.subr.bf16.mxu0 0
      %965 = vmatpush1.bf16.msra.mxu0 %v743
      %966 = vmatprep.subr.bf16.mxu0 0
      %967 = vmatpush1.bf16.msra.mxu0 %v744
      %968 = vmatprep.subr.bf16.mxu0 0
      %969 = vmatpush1.bf16.msra.mxu0 %v745
      %970 = vmatprep.subr.bf16.mxu0 0
      %971 = vmatpush1.bf16.msra.mxu0 %v746
      %972 = vmatprep.subr.bf16.mxu0 0
      %973 = vmatpush1.bf16.msra.mxu0 %v747
      %974 = vmatprep.subr.bf16.mxu0 0
      %975 = vmatpush1.bf16.msra.mxu0 %v748
      %976 = vmatprep.subr.bf16.mxu0 0
      %977 = vmatpush1.bf16.msra.mxu0 %v749
      %978 = vmatprep.subr.bf16.mxu0 0
      %979 = vmatpush1.bf16.msra.mxu0 %v750
      %980 = vmatprep.subr.bf16.mxu0 0
      %981 = vmatpush1.bf16.msra.mxu0 %v751
      %982 = vmatprep.subr.bf16.mxu0 0
      %983 = vmatpush1.bf16.msra.mxu0 %v752
      %984 = vmatprep.subr.bf16.mxu0 0
      %985 = vmatpush1.bf16.msra.mxu0 %v753
      %986 = vmatprep.subr.bf16.mxu0 0
      %987 = vmatpush1.bf16.msra.mxu0 %v754
      %988 = vmatprep.subr.bf16.mxu0 0
      %989 = vmatpush1.bf16.msra.mxu0 %v755
      %990 = vmatprep.subr.bf16.mxu0 0
      %991 = vmatpush1.bf16.msra.mxu0 %v756
      %992 = vmatprep.mubr.bf16.mxu0 %v394
      %993 = vmatmul.mubr.bf16.gmra.mrb[0].mxu0 %v393
      %v994 = vpop.f32.mrb[0].mxu0
      %v995 = vadd.f32 %v954, %v994
      %v996 = vpop.f32.mrb[0].mxu0
      %v997 = vpop.f32.mrb[0].mxu0
      %v998 = vadd.f32 %v957, %v997
      %v999 = vpop.f32.mrb[0].mxu0
      %1000 = vdwg.mxu0
      %1001 = vmatprep.subr.bf16.mxu0 0
      %1002 = vmatpush1.bf16.msra.mxu0 %v757
      %1003 = vmatprep.subr.bf16.mxu0 0
      %1004 = vmatpush1.bf16.msra.mxu0 %v758
      %1005 = vmatprep.subr.bf16.mxu0 0
      %1006 = vmatpush1.bf16.msra.mxu0 %v759
      %1007 = vmatprep.subr.bf16.mxu0 0
      %1008 = vmatpush1.bf16.msra.mxu0 %v760
      %1009 = vmatprep.subr.bf16.mxu0 0
      %1010 = vmatpush1.bf16.msra.mxu0 %v761
      %1011 = vmatprep.subr.bf16.mxu0 0
      %1012 = vmatpush1.bf16.msra.mxu0 %v762
      %1013 = vmatprep.subr.bf16.mxu0 0
      %1014 = vmatpush1.bf16.msra.mxu0 %v763
      %1015 = vmatprep.subr.bf16.mxu0 0
      %1016 = vmatpush1.bf16.msra.mxu0 %v764
      %1017 = vmatprep.subr.bf16.mxu0 0
      %1018 = vmatpush1.bf16.msra.mxu0 0
      %1019 = vmatprep.subr.bf16.mxu0 0
      %1020 = vmatpush1.bf16.msra.mxu0 0
      %1021 = vmatprep.subr.bf16.mxu0 0
      %1022 = vmatpush1.bf16.msra.mxu0 0
      %1023 = vmatprep.subr.bf16.mxu0 0
      %1024 = vmatpush1.bf16.msra.mxu0 0
      %1025 = vmatprep.subr.bf16.mxu0 0
      %1026 = vmatpush1.bf16.msra.mxu0 0
      %1027 = vmatprep.subr.bf16.mxu0 0
      %1028 = vmatpush1.bf16.msra.mxu0 0
      %1029 = vmatprep.subr.bf16.mxu0 0
      %1030 = vmatpush1.bf16.msra.mxu0 0
      %1031 = vmatprep.subr.bf16.mxu0 0
      %1032 = vmatpush1.bf16.msra.mxu0 0
      %1033 = vmatprep.mubr.bf16.mxu0 0
      %1034 = vmatmul.mubr.bf16.gmra.mrb[0].mxu0 %v395
      %v1035 = vpop.f32.mrb[0].mxu0
      %v1036 = vadd.f32 %v995, %v1035
      %v1037 = vpop.f32.mrb[0].mxu0
      %v1038 = vpop.f32.mrb[0].mxu0
      %v1039 = vadd.f32 %v998, %v1038
      %v1040 = vpop.f32.mrb[0].mxu0
      %1041 = vdwg.mxu0
      %v1042 = vld [vmem:[%s2] sm:$0x1]
      %v1044 = vlaneseq
      %v1045 = vshrl.u32 %v1044, 7
      %v1046 = vsub.s32 0, %v1045
      %v1047 = vrot.slane %v1042, %v1046
      %v1049 = vmul.f32 %v1036, %v1047
      %v1050 = vmul.f32 %v1039, %v1047
      %v1051 = vld [vmem:[%s3] sm:$0x1]
      %v1053 = vlaneseq
      %v1054 = vshrl.u32 %v1053, 7
      %v1055 = vsub.s32 0, %v1054
      %v1056 = vrot.slane %v1051, %v1055
      %v1058 = vadd.f32 %v1049, %v1056
      %v1059 = vadd.f32 %v1050, %v1056
      %v1060 = vmax.f32 %v1058, 0.0
      %v1061 = vmax.f32 %v1059, 0.0
      %1062 = vst [vmem:[%s202] sm:$0xff] %v1060
      %1063 = vst [vmem:[%s202 + $0x8] sm:$0xff] %v1061
      %s1064 = smul.u32 2, %s15
      %p1065 = scmp.lt.s32.totalorder %s1064, 3
      %s1066 = scalar_select %p1065, %s1064, 3
      %s1067 = smul.addr %s1066, 8
      %s1068 = scalar_lea.vmem %s4, %s1067
      // Predicated region
      $region37: #{vqvae_forward.20} parent=35 // pred_check
        %p1069 = pneg %p122
      $region38: #{vqvae_forward.20} parent=35 // pred_check_branch
        %1071 = sbr.rel (%p1069) target = $region40
      $region39: #{vqvae_forward.20} parent=35 // pred_region
        %s1072 = smul.u32 2, %s15
      $region40: #{vqvae_forward.20} parent=35 // pred_fallthru
        _
    $region36: #{vqvae_forward.20} parent=5 // pred_fallthru
      _
    %p1073 = scmp.le.s32.totalorder 2, %s10
    // Predicated region
    $region41: #{vqvae_forward.20} parent=5 // pred_check
      %p1074 = pneg %p1073
    $region42: #{vqvae_forward.20} parent=5 // pred_check_branch
      %1076 = sbr.rel (%p1074) target = $region44
    $region43: #{vqvae_forward.20} parent=5 // pred_region
      %s1077 = ssub.s32 %s10, 2
      // Predicated region
      $region45: #{vqvae_forward.20} parent=43 // pred_check
        %p1078 = pneg %p128
      $region46: #{vqvae_forward.20} parent=43 // pred_check_branch
        %1080 = sbr.rel (%p1078) target = $region48
      $region47: #{vqvae_forward.20} parent=43 // pred_region
        %s1081 = smul.u32 2, %s16
        %p1082 = scmp.lt.s32.totalorder %s1081, 3
        %s1083 = scalar_select %p1082, %s1081, 3
        %s1084 = smul.addr %s1083, 8
        %s1085 = scalar_lea.vmem %s4, %s1084
      $region48: #{vqvae_forward.20} parent=43 // pred_fallthru
        _
    $region44: #{vqvae_forward.20} parent=5 // pred_fallthru
      _
  $region6: #{vqvae_forward.20} parent=0 // loop_footer
    %s14 = sadd.s32 1, %s10
  $region7: #{vqvae_forward.20} parent=0 // loop_footer_branch
    %9 = sbr.rel target = $region3
  $region8: #{vqvae_forward.20} parent=0 // loop_exit
    _

// kernel: vqvae_forward.29
$region0: #{vqvae_forward.29}
  #allocation0 [shape = 'u32[]', space=smem, size = 0x4, offset = 0x4, fixed_abs, tag = 'smem constant byte address 0x4 - core index']
  #allocation1 [shape = 'u32[144,128]{1,0:T(1,128)}', space=vmem, size = 0x12000, scoped, tag = 'internal scratch']
  %s0 = inlined_call_operand.vmem [shape: bf16[128,2048], index: 0, kind: input, shape index: {}]
  %s1 = inlined_call_operand.vmem [shape: bf16[2048,128], index: 1, kind: input, shape index: {}]
  %s2 = inlined_call_operand.vmem [shape: f32[1,128], index: 2, kind: input, shape index: {}]
  %s3 = inlined_call_operand.vmem [shape: f32[1,128], index: 3, kind: input, shape index: {}]
  %s4 = inlined_call_operand.vmem [shape: f32[128,128], index: 4, kind: output, shape index: {0}]
  %s5 = inlined_call_operand.vmem [shape: f32[2,1,128], index: 5, kind: output, shape index: {1}]
  %s6 = inlined_call_operand.vmem [shape: f32[2,1,128], index: 6, kind: output, shape index: {2}]
  %7 = xla_tuple %s4, %s5, %s6
  %s8 = sld [smem:[#allocation0]]
  $region65: #{vqvae_forward.29} parent=0
    _
  %s10 = ssub.s32 1, %s8
  %s11 = scalar_select 0, %s10, %s8
  loop: start=0, step=1, limit=4
  $region2: #{vqvae_forward.29} parent=0 // loop_pre_header
    _
  $region3: #{vqvae_forward.29} parent=0 // loop_header
    %s13 = sphi 0, %s17
    %p14 = scmp.ge.s32.totalorder %s13, 4
    %s23 = sphi 0, %s25
    %s26 = sphi 0, %s23
    %s27 = sphi 0, %s26
    %s43 = sphi 0, %s27
    %s47 = sphi 0, %s47
    %s49 = sphi 0, %s47
    %s50 = sphi 0, %s49
    %s64 = sphi 0, %s50
    %s68 = sphi 0, %s68
    %s70 = sphi 0, %s68
    %s71 = sphi 0, %s70
    %s85 = sphi 0, %s71
    %s89 = sphi 0, %s89
    %s91 = sphi 0, %s89
    %s92 = sphi 0, %s91
    %s106 = sphi 0, %s92
    %s112 = sphi 0, %s114
    %s115 = sphi 0, %s112
    %s116 = sphi 0, %s115
    %s132 = sphi 0, %s116
    %s138 = sphi 0, %s140
    %s141 = sphi 0, %s138
    %s142 = sphi 0, %s141
    %s158 = sphi 0, %s142
    %s164 = sphi 0, %s166
    %s167 = sphi 0, %s164
    %s168 = sphi 0, %s167
    %s184 = sphi 0, %s168
  $region4: #{vqvae_forward.29} parent=0 // loop_header_branch
    %16 = sbr.rel (%p14) target = $region8
  $region5: #{vqvae_forward.29} parent=0 // loop_body
    %s18 = ssub.s32 %s13, 1
    %s19 = ssub.s32 %s13, 2
    %s20 = sadd.s32 %s13, 1
    %s21 = ssub.s32 %s13, %s20
    %p22 = scmp.eq.s32.totalorder %s21, 0
    %s24 = sadd.s32 %s23, 1
    %s25 = scalar_select %p22, %s23, %s24
    %p28 = pneg %p22
    %p29 = scmp.eq.s32.totalorder %s13, 1
    %p30 = por %p28, %p29
    %p31 = scmp.ne.s32.totalorder %s23, %s26
    %p32 = scmp.eq.s32.totalorder %s13, 0
    %p33 = por %p31, %p32
    %p34 = scmp.ne.s32.totalorder %s23, %s26
    %p35 = scmp.eq.s32.totalorder %s18, 1
    %p36 = por %p34, %p35
    %p37 = scmp.ne.s32.totalorder %s26, %s27
    %p38 = scmp.eq.s32.totalorder %s18, 0
    %p39 = por %p37, %p38
    %p40 = scmp.ne.s32.totalorder %s26, %s27
    %p41 = scmp.eq.s32.totalorder %s19, 1
    %p42 = por %p40, %p41
    %p44 = scmp.ne.s32.totalorder %s27, %s43
    %p45 = scmp.eq.s32.totalorder %s19, 0
    %p46 = por %p44, %p45
    %s48 = sadd.s32 %s47, 1
    %p51 = scmp.eq.s32.totalorder %s13, 1
    %p52 = scmp.ne.s32.totalorder %s47, %s49
    %p53 = scmp.eq.s32.totalorder %s13, 0
    %p54 = por %p52, %p53
    %p55 = scmp.ne.s32.totalorder %s47, %s49
    %p56 = scmp.eq.s32.totalorder %s18, 1
    %p57 = por %p55, %p56
    %p58 = scmp.ne.s32.totalorder %s49, %s50
    %p59 = scmp.eq.s32.totalorder %s18, 0
    %p60 = por %p58, %p59
    %p61 = scmp.ne.s32.totalorder %s49, %s50
    %p62 = scmp.eq.s32.totalorder %s19, 1
    %p63 = por %p61, %p62
    %p65 = scmp.ne.s32.totalorder %s50, %s64
    %p66 = scmp.eq.s32.totalorder %s19, 0
    %p67 = por %p65, %p66
    %s69 = sadd.s32 %s68, 1
    %p72 = scmp.eq.s32.totalorder %s13, 1
    %p73 = scmp.ne.s32.totalorder %s68, %s70
    %p74 = scmp.eq.s32.totalorder %s13, 0
    %p75 = por %p73, %p74
    %p76 = scmp.ne.s32.totalorder %s68, %s70
    %p77 = scmp.eq.s32.totalorder %s18, 1
    %p78 = por %p76, %p77
    %p79 = scmp.ne.s32.totalorder %s70, %s71
    %p80 = scmp.eq.s32.totalorder %s18, 0
    %p81 = por %p79, %p80
    %p82 = scmp.ne.s32.totalorder %s70, %s71
    %p83 = scmp.eq.s32.totalorder %s19, 1
    %p84 = por %p82, %p83
    %p86 = scmp.ne.s32.totalorder %s71, %s85
    %p87 = scmp.eq.s32.totalorder %s19, 0
    %p88 = por %p86, %p87
    %s90 = sadd.s32 %s89, 1
    %p93 = scmp.eq.s32.totalorder %s13, 1
    %p94 = scmp.ne.s32.totalorder %s89, %s91
    %p95 = scmp.eq.s32.totalorder %s13, 0
    %p96 = por %p94, %p95
    %p97 = scmp.ne.s32.totalorder %s89, %s91
    %p98 = scmp.eq.s32.totalorder %s18, 1
    %p99 = por %p97, %p98
    %p100 = scmp.ne.s32.totalorder %s91, %s92
    %p101 = scmp.eq.s32.totalorder %s18, 0
    %p102 = por %p100, %p101
    %p103 = scmp.ne.s32.totalorder %s91, %s92
    %p104 = scmp.eq.s32.totalorder %s19, 1
    %p105 = por %p103, %p104
    %p107 = scmp.ne.s32.totalorder %s92, %s106
    %p108 = scmp.eq.s32.totalorder %s19, 0
    %p109 = por %p107, %p108
    %s110 = ssub.s32 %s13, %s20
    %p111 = scmp.eq.s32.totalorder %s110, 0
    %s113 = sadd.s32 %s112, 1
    %s114 = scalar_select %p111, %s112, %s113
    %p117 = pneg %p111
    %p118 = scmp.eq.s32.totalorder %s13, 1
    %p119 = por %p117, %p118
    %p120 = scmp.ne.s32.totalorder %s112, %s115
    %p121 = scmp.eq.s32.totalorder %s13, 0
    %p122 = por %p120, %p121
    %p123 = scmp.ne.s32.totalorder %s112, %s115
    %p124 = scmp.eq.s32.totalorder %s18, 1
    %p125 = por %p123, %p124
    %p126 = scmp.ne.s32.totalorder %s115, %s116
    %p127 = scmp.eq.s32.totalorder %s18, 0
    %p128 = por %p126, %p127
    %p129 = scmp.ne.s32.totalorder %s115, %s116
    %p130 = scmp.eq.s32.totalorder %s19, 1
    %p131 = por %p129, %p130
    %p133 = scmp.ne.s32.totalorder %s116, %s132
    %p134 = scmp.eq.s32.totalorder %s19, 0
    %p135 = por %p133, %p134
    %s136 = ssub.s32 %s13, %s20
    %p137 = scmp.eq.s32.totalorder %s136, 0
    %s139 = sadd.s32 %s138, 1
    %s140 = scalar_select %p137, %s138, %s139
    %p143 = pneg %p137
    %p144 = scmp.eq.s32.totalorder %s13, 1
    %p145 = por %p143, %p144
    %p146 = scmp.ne.s32.totalorder %s138, %s141
    %p147 = scmp.eq.s32.totalorder %s13, 0
    %p148 = por %p146, %p147
    %p149 = scmp.ne.s32.totalorder %s138, %s141
    %p150 = scmp.eq.s32.totalorder %s18, 1
    %p151 = por %p149, %p150
    %p152 = scmp.ne.s32.totalorder %s141, %s142
    %p153 = scmp.eq.s32.totalorder %s18, 0
    %p154 = por %p152, %p153
    %p155 = scmp.ne.s32.totalorder %s141, %s142
    %p156 = scmp.eq.s32.totalorder %s19, 1
    %p157 = por %p155, %p156
    %p159 = scmp.ne.s32.totalorder %s142, %s158
    %p160 = scmp.eq.s32.totalorder %s19, 0
    %p161 = por %p159, %p160
    %s162 = ssub.s32 %s13, %s20
    %p163 = scmp.eq.s32.totalorder %s162, 0
    %s165 = sadd.s32 %s164, 1
    %s166 = scalar_select %p163, %s164, %s165
    %p169 = pneg %p163
    %p170 = scmp.eq.s32.totalorder %s13, 1
    %p171 = por %p169, %p170
    %p172 = scmp.ne.s32.totalorder %s164, %s167
    %p173 = scmp.eq.s32.totalorder %s13, 0
    %p174 = por %p172, %p173
    %p175 = scmp.ne.s32.totalorder %s164, %s167
    %p176 = scmp.eq.s32.totalorder %s18, 1
    %p177 = por %p175, %p176
    %p178 = scmp.ne.s32.totalorder %s167, %s168
    %p179 = scmp.eq.s32.totalorder %s18, 0
    %p180 = por %p178, %p179
    %p181 = scmp.ne.s32.totalorder %s167, %s168
    %p182 = scmp.eq.s32.totalorder %s19, 1
    %p183 = por %p181, %p182
    %p185 = scmp.ne.s32.totalorder %s168, %s184
    %p186 = scmp.eq.s32.totalorder %s19, 0
    %p187 = por %p185, %p186
    %p188 = scmp.le.s32.totalorder 1, %s13
    %p189 = scmp.lt.s32.totalorder %s13, 3
    %p190 = pnand %p188, %p189
    %p191 = pneg %p190
    // Predicated region
    $region9: #{vqvae_forward.29} parent=5 // pred_check
      _
    $region10: #{vqvae_forward.29} parent=5 // pred_check_branch
      %193 = sbr.rel (%p190) target = $region12
    $region11: #{vqvae_forward.29} parent=5 // pred_region
      %s194 = ssub.s32 %s13, 1
      // Predicated region
      $region13: #{vqvae_forward.29} parent=11 // pred_check
        %p195 = pneg %p60
      $region14: #{vqvae_forward.29} parent=11 // pred_check_branch
        %197 = sbr.rel (%p195) target = $region16
      $region15: #{vqvae_forward.29} parent=11 // pred_region
        _
      $region16: #{vqvae_forward.29} parent=11 // pred_fallthru
        _
      // Predicated region
      $region17: #{vqvae_forward.29} parent=11 // pred_check
        %p198 = pneg %p81
      $region18: #{vqvae_forward.29} parent=11 // pred_check_branch
        %200 = sbr.rel (%p198) target = $region20
      $region19: #{vqvae_forward.29} parent=11 // pred_region
        _
      $region20: #{vqvae_forward.29} parent=11 // pred_fallthru
        _
      // Predicated region
      $region21: #{vqvae_forward.29} parent=11 // pred_check
        %p201 = pneg %p102
      $region22: #{vqvae_forward.29} parent=11 // pred_check_branch
        %203 = sbr.rel (%p201) target = $region24
      $region23: #{vqvae_forward.29} parent=11 // pred_region
        _
      $region24: #{vqvae_forward.29} parent=11 // pred_fallthru
        _
    $region12: #{vqvae_forward.29} parent=5 // pred_fallthru
      _
    %p204 = scmp.lt.s32.totalorder %s13, 2
    // Predicated region
    $region25: #{vqvae_forward.29} parent=5 // pred_check
      %p205 = pneg %p204
    $region26: #{vqvae_forward.29} parent=5 // pred_check_branch
      %207 = sbr.rel (%p205) target = $region28
    $region27: #{vqvae_forward.29} parent=5 // pred_region
      // Predicated region
      $region29: #{vqvae_forward.29} parent=27 // pred_check
        %p208 = pneg %p33
      $region30: #{vqvae_forward.29} parent=27 // pred_check_branch
        %210 = sbr.rel (%p208) target = $region32
      $region31: #{vqvae_forward.29} parent=27 // pred_region
        %s211 = smul.u32 8, %s13
        %p212 = scmp.lt.s32.totalorder %s211, 15
        %s213 = scalar_select %p212, %s211, 15
        %s214 = smul.addr %s213, 16
        %s215 = smul.addr %s214, 4
        %s216 = scalar_lea.vmem %s0, %s215
        %s217 = smul.u32 8, %s13
      $region32: #{vqvae_forward.29} parent=27 // pred_fallthru
        _
    $region28: #{vqvae_forward.29} parent=5 // pred_fallthru
      _
    %p218 = scmp.le.s32.totalorder 1, %s13
    %p219 = scmp.lt.s32.totalorder %s13, 3
    %p220 = pnand %p218, %p219
    %p221 = pneg %p220
    // Predicated region
    $region33: #{vqvae_forward.29} parent=5 // pred_check
      _
    $region34: #{vqvae_forward.29} parent=5 // pred_check_branch
      %223 = sbr.rel (%p220) target = $region36
    $region35: #{vqvae_forward.29} parent=5 // pred_region
      %s224 = ssub.s32 %s13, 1
      %s225 = smul.u32 8, %s18
      %p226 = scmp.lt.s32.totalorder %s225, 15
      %s227 = scalar_select %p226, %s225, 15
      %s228 = smul.addr %s227, 16
      %s229 = smul.addr %s228, 4
      %s230 = scalar_lea.vmem %s0, %s229
      %p231 = pneg %p39
      %p232 = pneg %p36
      %p233 = pneg %p60
      %p234 = pneg %p57
      %p235 = pneg %p81
      %p236 = pneg %p78
      %p237 = pneg %p102
      %p238 = pneg %p99
      %p239 = pneg %p128
      %p240 = pneg %p125
      %s241 = smul.u32 8, %s18
      %p242 = scmp.lt.s32.totalorder %s241, 15
      %s243 = scalar_select %p242, %s241, 15
      %s244 = smul.addr %s243, 8
      %s245 = scalar_lea.vmem %s4, %s244
      %p246 = pneg %p154
      %p247 = pneg %p151
      %p248 = scmp.lt.s32.totalorder %s18, 1
      %s249 = scalar_select %p248, %s18, 1
      %s250 = scalar_lea.vmem %s5, %s249
      %p251 = pneg %p180
      %p252 = pneg %p177
      %p253 = scmp.lt.s32.totalorder %s18, 1
      %s254 = scalar_select %p253, %s18, 1
      %s255 = scalar_lea.vmem %s6, %s254
      %s256 = smul.u32 8, %s18
      %p257 = scmp.lt.s32.totalorder %s256, 15
      %s258 = scalar_select %p257, %s256, 15
      %s259 = smul.addr %s258, 16
      %s260 = smul.addr %s259, 4
      %s261 = scalar_lea.vmem %s0, %s260
      %s262 = smul.u32 8, %s18
      %s263 = smul.u32 8, %s18
      %p264 = scmp.lt.s32.totalorder %s263, 15
      %s265 = scalar_select %p264, %s263, 15
      %s266 = smul.addr %s265, 8
      %s267 = scalar_lea.vmem %s4, %s266
      %s268 = smul.u32 8, %s18
      %p269 = scmp.lt.s32.totalorder %s18, 1
      %s270 = scalar_select %p269, %s18, 1
      %s271 = scalar_lea.vmem %s5, %s270
      %p272 = scmp.lt.s32.totalorder %s18, 1
      %s273 = scalar_select %p272, %s18, 1
      %s274 = scalar_lea.vmem %s6, %s273
      %v276 = vld [vmem:[%s261] sm:$0xff]
      %v277 = vld [vmem:[%s261 + $0x8] sm:$0xff]
      %v278 = vld [vmem:[%s261 + $0x10] sm:$0xff]
      %v279 = vld [vmem:[%s261 + $0x18] sm:$0xff]
      %v280 = vld [vmem:[%s261 + $0x20] sm:$0xff]
      %v281 = vld [vmem:[%s261 + $0x28] sm:$0xff]
      %v282 = vld [vmem:[%s261 + $0x30] sm:$0xff]
      %v283 = vld [vmem:[%s261 + $0x38] sm:$0xff]
      %v284 = vld [vmem:[%s261 + $0x40] sm:$0xff]
      %v285 = vld [vmem:[%s261 + $0x48] sm:$0xff]
      %v286 = vld [vmem:[%s261 + $0x50] sm:$0xff]
      %v287 = vld [vmem:[%s261 + $0x58] sm:$0xff]
      %v288 = vld [vmem:[%s261 + $0x60] sm:$0xff]
      %v289 = vld [vmem:[%s261 + $0x68] sm:$0xff]
      %v290 = vld [vmem:[%s261 + $0x70] sm:$0xff]
      %v291 = vld [vmem:[%s261 + $0x78] sm:$0xff]
      %v292 = vld [vmem:[%s261 + $0x80] sm:$0xff]
      %v293 = vld [vmem:[%s261 + $0x88] sm:$0xff]
      %v294 = vld [vmem:[%s261 + $0x90] sm:$0xff]
      %v295 = vld [vmem:[%s261 + $0x98] sm:$0xff]
      %v296 = vld [vmem:[%s261 + $0xa0] sm:$0xff]
      %v297 = vld [vmem:[%s261 + $0xa8] sm:$0xff]
      %v298 = vld [vmem:[%s261 + $0xb0] sm:$0xff]
      %v299 = vld [vmem:[%s261 + $0xb8] sm:$0xff]
      %v300 = vld [vmem:[%s261 + $0xc0] sm:$0xff]
      %v301 = vld [vmem:[%s261 + $0xc8] sm:$0xff]
      %v302 = vld [vmem:[%s261 + $0xd0] sm:$0xff]
      %v303 = vld [vmem:[%s261 + $0xd8] sm:$0xff]
      %v304 = vld [vmem:[%s261 + $0xe0] sm:$0xff]
      %v305 = vld [vmem:[%s261 + $0xe8] sm:$0xff]
      %v306 = vld [vmem:[%s261 + $0xf0] sm:$0xff]
      %v307 = vld [vmem:[%s261 + $0xf8] sm:$0xff]
      %v308 = vld [vmem:[%s261 + $0x100] sm:$0xff]
      %v309 = vld [vmem:[%s261 + $0x108] sm:$0xff]
      %v310 = vld [vmem:[%s261 + $0x110] sm:$0xff]
      %v311 = vld [vmem:[%s261 + $0x118] sm:$0xff]
      %v312 = vld [vmem:[%s261 + $0x120] sm:$0xff]
      %v313 = vld [vmem:[%s261 + $0x128] sm:$0xff]
      %v314 = vld [vmem:[%s261 + $0x130] sm:$0xff]
      %v315 = vld [vmem:[%s261 + $0x138] sm:$0xff]
      %v316 = vld [vmem:[%s261 + $0x140] sm:$0xff]
      %v317 = vld [vmem:[%s261 + $0x148] sm:$0xff]
      %v318 = vld [vmem:[%s261 + $0x150] sm:$0xff]
      %v319 = vld [vmem:[%s261 + $0x158] sm:$0xff]
      %v320 = vld [vmem:[%s261 + $0x160] sm:$0xff]
      %v321 = vld [vmem:[%s261 + $0x168] sm:$0xff]
      %v322 = vld [vmem:[%s261 + $0x170] sm:$0xff]
      %v323 = vld [vmem:[%s261 + $0x178] sm:$0xff]
      %v324 = vld [vmem:[%s261 + $0x180] sm:$0xff]
      %v325 = vld [vmem:[%s261 + $0x188] sm:$0xff]
      %v326 = vld [vmem:[%s261 + $0x190] sm:$0xff]
      %v327 = vld [vmem:[%s261 + $0x198] sm:$0xff]
      %v328 = vld [vmem:[%s261 + $0x1a0] sm:$0xff]
      %v329 = vld [vmem:[%s261 + $0x1a8] sm:$0xff]
      %v330 = vld [vmem:[%s261 + $0x1b0] sm:$0xff]
      %v331 = vld [vmem:[%s261 + $0x1b8] sm:$0xff]
      %v332 = vld [vmem:[%s261 + $0x1c0] sm:$0xff]
      %v333 = vld [vmem:[%s261 + $0x1c8] sm:$0xff]
      %v334 = vld [vmem:[%s261 + $0x1d0] sm:$0xff]
      %v335 = vld [vmem:[%s261 + $0x1d8] sm:$0xff]
      %v336 = vld [vmem:[%s261 + $0x1e0] sm:$0xff]
      %v337 = vld [vmem:[%s261 + $0x1e8] sm:$0xff]
      %v338 = vld [vmem:[%s261 + $0x1f0] sm:$0xff]
      %v339 = vld [vmem:[%s261 + $0x1f8] sm:$0xff]
      %v340 = vld [vmem:[%s1] sm:$0xf]
      %v341 = vld [vmem:[%s1 + $0x4] sm:$0xf]
      %v342 = vld [vmem:[%s1 + $0x8] sm:$0xf]
      %v343 = vld [vmem:[%s1 + $0xc] sm:$0xf]
      %v344 = vld [vmem:[%s1 + $0x10] sm:$0xf]
      %v345 = vld [vmem:[%s1 + $0x14] sm:$0xf]
      %v346 = vld [vmem:[%s1 + $0x18] sm:$0xf]
      %v347 = vld [vmem:[%s1 + $0x1c] sm:$0xf]
      %v348 = vld [vmem:[%s1 + $0x20] sm:$0xf]
      %v349 = vld [vmem:[%s1 + $0x24] sm:$0xf]
      %v350 = vld [vmem:[%s1 + $0x28] sm:$0xf]
      %v351 = vld [vmem:[%s1 + $0x2c] sm:$0xf]
      %v352 = vld [vmem:[%s1 + $0x30] sm:$0xf]
      %v353 = vld [vmem:[%s1 + $0x34] sm:$0xf]
      %v354 = vld [vmem:[%s1 + $0x38] sm:$0xf]
      %v355 = vld [vmem:[%s1 + $0x3c] sm:$0xf]
      %v356 = vld [vmem:[%s1 + $0x40] sm:$0xf]
      %v357 = vld [vmem:[%s1 + $0x44] sm:$0xf]
      %v358 = vld [vmem:[%s1 + $0x48] sm:$0xf]
      %v359 = vld [vmem:[%s1 + $0x4c] sm:$0xf]
      %v360 = vld [vmem:[%s1 + $0x50] sm:$0xf]
      %v361 = vld [vmem:[%s1 + $0x54] sm:$0xf]
      %v362 = vld [vmem:[%s1 + $0x58] sm:$0xf]
      %v363 = vld [vmem:[%s1 + $0x5c] sm:$0xf]
      %v364 = vld [vmem:[%s1 + $0x60] sm:$0xf]
      %v365 = vld [vmem:[%s1 + $0x64] sm:$0xf]
      %v366 = vld [vmem:[%s1 + $0x68] sm:$0xf]
      %v367 = vld [vmem:[%s1 + $0x6c] sm:$0xf]
      %v368 = vld [vmem:[%s1 + $0x70] sm:$0xf]
      %v369 = vld [vmem:[%s1 + $0x74] sm:$0xf]
      %v370 = vld [vmem:[%s1 + $0x78] sm:$0xf]
      %v371 = vld [vmem:[%s1 + $0x7c] sm:$0xf]
      %v372 = vld [vmem:[%s1 + $0x80] sm:$0xf]
      %v373 = vld [vmem:[%s1 + $0x84] sm:$0xf]
      %v374 = vld [vmem:[%s1 + $0x88] sm:$0xf]
      %v375 = vld [vmem:[%s1 + $0x8c] sm:$0xf]
      %v376 = vld [vmem:[%s1 + $0x90] sm:$0xf]
      %v377 = vld [vmem:[%s1 + $0x94] sm:$0xf]
      %v378 = vld [vmem:[%s1 + $0x98] sm:$0xf]
      %v379 = vld [vmem:[%s1 + $0x9c] sm:$0xf]
      %v380 = vld [vmem:[%s1 + $0xa0] sm:$0xf]
      %v381 = vld [vmem:[%s1 + $0xa4] sm:$0xf]
      %v382 = vld [vmem:[%s1 + $0xa8] sm:$0xf]
      %v383 = vld [vmem:[%s1 + $0xac] sm:$0xf]
      %v384 = vld [vmem:[%s1 + $0xb0] sm:$0xf]
      %v385 = vld [vmem:[%s1 + $0xb4] sm:$0xf]
      %v386 = vld [vmem:[%s1 + $0xb8] sm:$0xf]
      %v387 = vld [vmem:[%s1 + $0xbc] sm:$0xf]
      %v388 = vld [vmem:[%s1 + $0xc0] sm:$0xf]
      %v389 = vld [vmem:[%s1 + $0xc4] sm:$0xf]
      %v390 = vld [vmem:[%s1 + $0xc8] sm:$0xf]
      %v391 = vld [vmem:[%s1 + $0xcc] sm:$0xf]
      %v392 = vld [vmem:[%s1 + $0xd0] sm:$0xf]
      %v393 = vld [vmem:[%s1 + $0xd4] sm:$0xf]
      %v394 = vld [vmem:[%s1 + $0xd8] sm:$0xf]
      %v395 = vld [vmem:[%s1 + $0xdc] sm:$0xf]
      %v396 = vld [vmem:[%s1 + $0xe0] sm:$0xf]
      %v397 = vld [vmem:[%s1 + $0xe4] sm:$0xf]
      %v398 = vld [vmem:[%s1 + $0xe8] sm:$0xf]
      %v399 = vld [vmem:[%s1 + $0xec] sm:$0xf]
      %v400 = vld [vmem:[%s1 + $0xf0] sm:$0xf]
      %v401 = vld [vmem:[%s1 + $0xf4] sm:$0xf]
      %v402 = vld [vmem:[%s1 + $0xf8] sm:$0xf]
      %v403 = vld [vmem:[%s1 + $0xfc] sm:$0xf]
      %v404 = vld [vmem:[%s1 + $0x100] sm:$0xf]
      %v405 = vld [vmem:[%s1 + $0x104] sm:$0xf]
      %v406 = vld [vmem:[%s1 + $0x108] sm:$0xf]
      %v407 = vld [vmem:[%s1 + $0x10c] sm:$0xf]
      %v408 = vld [vmem:[%s1 + $0x110] sm:$0xf]
      %v409 = vld [vmem:[%s1 + $0x114] sm:$0xf]
      %v410 = vld [vmem:[%s1 + $0x118] sm:$0xf]
      %v411 = vld [vmem:[%s1 + $0x11c] sm:$0xf]
      %v412 = vld [vmem:[%s1 + $0x120] sm:$0xf]
      %v413 = vld [vmem:[%s1 + $0x124] sm:$0xf]
      %v414 = vld [vmem:[%s1 + $0x128] sm:$0xf]
      %v415 = vld [vmem:[%s1 + $0x12c] sm:$0xf]
      %v416 = vld [vmem:[%s1 + $0x130] sm:$0xf]
      %v417 = vld [vmem:[%s1 + $0x134] sm:$0xf]
      %v418 = vld [vmem:[%s1 + $0x138] sm:$0xf]
      %v419 = vld [vmem:[%s1 + $0x13c] sm:$0xf]
      %v420 = vld [vmem:[%s1 + $0x140] sm:$0xf]
      %v421 = vld [vmem:[%s1 + $0x144] sm:$0xf]
      %v422 = vld [vmem:[%s1 + $0x148] sm:$0xf]
      %v423 = vld [vmem:[%s1 + $0x14c] sm:$0xf]
      %v424 = vld [vmem:[%s1 + $0x150] sm:$0xf]
      %v425 = vld [vmem:[%s1 + $0x154] sm:$0xf]
      %v426 = vld [vmem:[%s1 + $0x158] sm:$0xf]
      %v427 = vld [vmem:[%s1 + $0x15c] sm:$0xf]
      %v428 = vld [vmem:[%s1 + $0x160] sm:$0xf]
      %v429 = vld [vmem:[%s1 + $0x164] sm:$0xf]
      %v430 = vld [vmem:[%s1 + $0x168] sm:$0xf]
      %v431 = vld [vmem:[%s1 + $0x16c] sm:$0xf]
      %v432 = vld [vmem:[%s1 + $0x170] sm:$0xf]
      %v433 = vld [vmem:[%s1 + $0x174] sm:$0xf]
      %v434 = vld [vmem:[%s1 + $0x178] sm:$0xf]
      %v435 = vld [vmem:[%s1 + $0x17c] sm:$0xf]
      %v436 = vld [vmem:[%s1 + $0x180] sm:$0xf]
      %v437 = vld [vmem:[%s1 + $0x184] sm:$0xf]
      %v438 = vld [vmem:[%s1 + $0x188] sm:$0xf]
      %v439 = vld [vmem:[%s1 + $0x18c] sm:$0xf]
      %v440 = vld [vmem:[%s1 + $0x190] sm:$0xf]
      %v441 = vld [vmem:[%s1 + $0x194] sm:$0xf]
      %v442 = vld [vmem:[%s1 + $0x198] sm:$0xf]
      %v443 = vld [vmem:[%s1 + $0x19c] sm:$0xf]
      %v444 = vld [vmem:[%s1 + $0x1a0] sm:$0xf]
      %v445 = vld [vmem:[%s1 + $0x1a4] sm:$0xf]
      %v446 = vld [vmem:[%s1 + $0x1a8] sm:$0xf]
      %v447 = vld [vmem:[%s1 + $0x1ac] sm:$0xf]
      %v448 = vld [vmem:[%s1 + $0x1b0] sm:$0xf]
      %v449 = vld [vmem:[%s1 + $0x1b4] sm:$0xf]
      %v450 = vld [vmem:[%s1 + $0x1b8] sm:$0xf]
      %v451 = vld [vmem:[%s1 + $0x1bc] sm:$0xf]
      %v452 = vld [vmem:[%s1 + $0x1c0] sm:$0xf]
      %v453 = vld [vmem:[%s1 + $0x1c4] sm:$0xf]
      %v454 = vld [vmem:[%s1 + $0x1c8] sm:$0xf]
      %v455 = vld [vmem:[%s1 + $0x1cc] sm:$0xf]
      %v456 = vld [vmem:[%s1 + $0x1d0] sm:$0xf]
      %v457 = vld [vmem:[%s1 + $0x1d4] sm:$0xf]
      %v458 = vld [vmem:[%s1 + $0x1d8] sm:$0xf]
      %v459 = vld [vmem:[%s1 + $0x1dc] sm:$0xf]
      %v460 = vld [vmem:[%s1 + $0x1e0] sm:$0xf]
      %v461 = vld [vmem:[%s1 + $0x1e4] sm:$0xf]
      %v462 = vld [vmem:[%s1 + $0x1e8] sm:$0xf]
      %v463 = vld [vmem:[%s1 + $0x1ec] sm:$0xf]
      %v464 = vld [vmem:[%s1 + $0x1f0] sm:$0xf]
      %v465 = vld [vmem:[%s1 + $0x1f4] sm:$0xf]
      %v466 = vld [vmem:[%s1 + $0x1f8] sm:$0xf]
      %v467 = vld [vmem:[%s1 + $0x1fc] sm:$0xf]
      %v468 = vld [vmem:[%s1 + $0x200] sm:$0xf]
      %v469 = vld [vmem:[%s1 + $0x204] sm:$0xf]
      %v470 = vld [vmem:[%s1 + $0x208] sm:$0xf]
      %v471 = vld [vmem:[%s1 + $0x20c] sm:$0xf]
      %v472 = vld [vmem:[%s1 + $0x210] sm:$0xf]
      %v473 = vld [vmem:[%s1 + $0x214] sm:$0xf]
      %v474 = vld [vmem:[%s1 + $0x218] sm:$0xf]
      %v475 = vld [vmem:[%s1 + $0x21c] sm:$0xf]
      %v476 = vld [vmem:[%s1 + $0x220] sm:$0xf]
      %v477 = vld [vmem:[%s1 + $0x224] sm:$0xf]
      %v478 = vld [vmem:[%s1 + $0x228] sm:$0xf]
      %v479 = vld [vmem:[%s1 + $0x22c] sm:$0xf]
      %v480 = vld [vmem:[%s1 + $0x230] sm:$0xf]
      %v481 = vld [vmem:[%s1 + $0x234] sm:$0xf]
      %v482 = vld [vmem:[%s1 + $0x238] sm:$0xf]
      %v483 = vld [vmem:[%s1 + $0x23c] sm:$0xf]
      %v484 = vld [vmem:[%s1 + $0x240] sm:$0xf]
      %v485 = vld [vmem:[%s1 + $0x244] sm:$0xf]
      %v486 = vld [vmem:[%s1 + $0x248] sm:$0xf]
      %v487 = vld [vmem:[%s1 + $0x24c] sm:$0xf]
      %v488 = vld [vmem:[%s1 + $0x250] sm:$0xf]
      %v489 = vld [vmem:[%s1 + $0x254] sm:$0xf]
      %v490 = vld [vmem:[%s1 + $0x258] sm:$0xf]
      %v491 = vld [vmem:[%s1 + $0x25c] sm:$0xf]
      %v492 = vld [vmem:[%s1 + $0x260] sm:$0xf]
      %v493 = vld [vmem:[%s1 + $0x264] sm:$0xf]
      %v494 = vld [vmem:[%s1 + $0x268] sm:$0xf]
      %v495 = vld [vmem:[%s1 + $0x26c] sm:$0xf]
      %v496 = vld [vmem:[%s1 + $0x270] sm:$0xf]
      %v497 = vld [vmem:[%s1 + $0x274] sm:$0xf]
      %v498 = vld [vmem:[%s1 + $0x278] sm:$0xf]
      %v499 = vld [vmem:[%s1 + $0x27c] sm:$0xf]
      %v500 = vld [vmem:[%s1 + $0x280] sm:$0xf]
      %v501 = vld [vmem:[%s1 + $0x284] sm:$0xf]
      %v502 = vld [vmem:[%s1 + $0x288] sm:$0xf]
      %v503 = vld [vmem:[%s1 + $0x28c] sm:$0xf]
      %v504 = vld [vmem:[%s1 + $0x290] sm:$0xf]
      %v505 = vld [vmem:[%s1 + $0x294] sm:$0xf]
      %v506 = vld [vmem:[%s1 + $0x298] sm:$0xf]
      %v507 = vld [vmem:[%s1 + $0x29c] sm:$0xf]
      %v508 = vld [vmem:[%s1 + $0x2a0] sm:$0xf]
      %v509 = vld [vmem:[%s1 + $0x2a4] sm:$0xf]
      %v510 = vld [vmem:[%s1 + $0x2a8] sm:$0xf]
      %v511 = vld [vmem:[%s1 + $0x2ac] sm:$0xf]
      %v512 = vld [vmem:[%s1 + $0x2b0] sm:$0xf]
      %v513 = vld [vmem:[%s1 + $0x2b4] sm:$0xf]
      %v514 = vld [vmem:[%s1 + $0x2b8] sm:$0xf]
      %v515 = vld [vmem:[%s1 + $0x2bc] sm:$0xf]
      %v516 = vld [vmem:[%s1 + $0x2c0] sm:$0xf]
      %v517 = vld [vmem:[%s1 + $0x2c4] sm:$0xf]
      %v518 = vld [vmem:[%s1 + $0x2c8] sm:$0xf]
      %v519 = vld [vmem:[%s1 + $0x2cc] sm:$0xf]
      %v520 = vld [vmem:[%s1 + $0x2d0] sm:$0xf]
      %v521 = vld [vmem:[%s1 + $0x2d4] sm:$0xf]
      %v522 = vld [vmem:[%s1 + $0x2d8] sm:$0xf]
      %v523 = vld [vmem:[%s1 + $0x2dc] sm:$0xf]
      %v524 = vld [vmem:[%s1 + $0x2e0] sm:$0xf]
      %v525 = vld [vmem:[%s1 + $0x2e4] sm:$0xf]
      %v526 = vld [vmem:[%s1 + $0x2e8] sm:$0xf]
      %v527 = vld [vmem:[%s1 + $0x2ec] sm:$0xf]
      %v528 = vld [vmem:[%s1 + $0x2f0] sm:$0xf]
      %v529 = vld [vmem:[%s1 + $0x2f4] sm:$0xf]
      %v530 = vld [vmem:[%s1 + $0x2f8] sm:$0xf]
      %v531 = vld [vmem:[%s1 + $0x2fc] sm:$0xf]
      %v532 = vld [vmem:[%s1 + $0x300] sm:$0xf]
      %v533 = vld [vmem:[%s1 + $0x304] sm:$0xf]
      %v534 = vld [vmem:[%s1 + $0x308] sm:$0xf]
      %v535 = vld [vmem:[%s1 + $0x30c] sm:$0xf]
      %v536 = vld [vmem:[%s1 + $0x310] sm:$0xf]
      %v537 = vld [vmem:[%s1 + $0x314] sm:$0xf]
      %v538 = vld [vmem:[%s1 + $0x318] sm:$0xf]
      %v539 = vld [vmem:[%s1 + $0x31c] sm:$0xf]
      %v540 = vld [vmem:[%s1 + $0x320] sm:$0xf]
      %v541 = vld [vmem:[%s1 + $0x324] sm:$0xf]
      %v542 = vld [vmem:[%s1 + $0x328] sm:$0xf]
      %v543 = vld [vmem:[%s1 + $0x32c] sm:$0xf]
      %v544 = vld [vmem:[%s1 + $0x330] sm:$0xf]
      %v545 = vld [vmem:[%s1 + $0x334] sm:$0xf]
      %v546 = vld [vmem:[%s1 + $0x338] sm:$0xf]
      %v547 = vld [vmem:[%s1 + $0x33c] sm:$0xf]
      %v548 = vld [vmem:[%s1 + $0x340] sm:$0xf]
      %v549 = vld [vmem:[%s1 + $0x344] sm:$0xf]
      %v550 = vld [vmem:[%s1 + $0x348] sm:$0xf]
      %v551 = vld [vmem:[%s1 + $0x34c] sm:$0xf]
      %v552 = vld [vmem:[%s1 + $0x350] sm:$0xf]
      %v553 = vld [vmem:[%s1 + $0x354] sm:$0xf]
      %v554 = vld [vmem:[%s1 + $0x358] sm:$0xf]
      %v555 = vld [vmem:[%s1 + $0x35c] sm:$0xf]
      %v556 = vld [vmem:[%s1 + $0x360] sm:$0xf]
      %v557 = vld [vmem:[%s1 + $0x364] sm:$0xf]
      %v558 = vld [vmem:[%s1 + $0x368] sm:$0xf]
      %v559 = vld [vmem:[%s1 + $0x36c] sm:$0xf]
      %v560 = vld [vmem:[%s1 + $0x370] sm:$0xf]
      %v561 = vld [vmem:[%s1 + $0x374] sm:$0xf]
      %v562 = vld [vmem:[%s1 + $0x378] sm:$0xf]
      %v563 = vld [vmem:[%s1 + $0x37c] sm:$0xf]
      %v564 = vld [vmem:[%s1 + $0x380] sm:$0xf]
      %v565 = vld [vmem:[%s1 + $0x384] sm:$0xf]
      %v566 = vld [vmem:[%s1 + $0x388] sm:$0xf]
      %v567 = vld [vmem:[%s1 + $0x38c] sm:$0xf]
      %v568 = vld [vmem:[%s1 + $0x390] sm:$0xf]
      %v569 = vld [vmem:[%s1 + $0x394] sm:$0xf]
      %v570 = vld [vmem:[%s1 + $0x398] sm:$0xf]
      %v571 = vld [vmem:[%s1 + $0x39c] sm:$0xf]
      %v572 = vld [vmem:[%s1 + $0x3a0] sm:$0xf]
      %v573 = vld [vmem:[%s1 + $0x3a4] sm:$0xf]
      %v574 = vld [vmem:[%s1 + $0x3a8] sm:$0xf]
      %v575 = vld [vmem:[%s1 + $0x3ac] sm:$0xf]
      %v576 = vld [vmem:[%s1 + $0x3b0] sm:$0xf]
      %v577 = vld [vmem:[%s1 + $0x3b4] sm:$0xf]
      %v578 = vld [vmem:[%s1 + $0x3b8] sm:$0xf]
      %v579 = vld [vmem:[%s1 + $0x3bc] sm:$0xf]
      %v580 = vld [vmem:[%s1 + $0x3c0] sm:$0xf]
      %v581 = vld [vmem:[%s1 + $0x3c4] sm:$0xf]
      %v582 = vld [vmem:[%s1 + $0x3c8] sm:$0xf]
      %v583 = vld [vmem:[%s1 + $0x3cc] sm:$0xf]
      %v584 = vld [vmem:[%s1 + $0x3d0] sm:$0xf]
      %v585 = vld [vmem:[%s1 + $0x3d4] sm:$0xf]
      %v586 = vld [vmem:[%s1 + $0x3d8] sm:$0xf]
      %v587 = vld [vmem:[%s1 + $0x3dc] sm:$0xf]
      %v588 = vld [vmem:[%s1 + $0x3e0] sm:$0xf]
      %v589 = vld [vmem:[%s1 + $0x3e4] sm:$0xf]
      %v590 = vld [vmem:[%s1 + $0x3e8] sm:$0xf]
      %v591 = vld [vmem:[%s1 + $0x3ec] sm:$0xf]
      %v592 = vld [vmem:[%s1 + $0x3f0] sm:$0xf]
      %v593 = vld [vmem:[%s1 + $0x3f4] sm:$0xf]
      %v594 = vld [vmem:[%s1 + $0x3f8] sm:$0xf]
      %v595 = vld [vmem:[%s1 + $0x3fc] sm:$0xf]
      %v660 = vunpack.c.l.b16 %v276
      %v661 = vunpack.c.h.b16 %v276
      %v662 = vunpack.c.l.b16 %v277
      %v663 = vunpack.c.h.b16 %v277
      %v664 = vunpack.c.l.b16 %v278
      %v665 = vunpack.c.h.b16 %v278
      %v666 = vunpack.c.l.b16 %v279
      %v667 = vunpack.c.h.b16 %v279
      %v668 = vunpack.c.l.b16 %v280
      %v669 = vunpack.c.h.b16 %v280
      %v670 = vunpack.c.l.b16 %v281
      %v671 = vunpack.c.h.b16 %v281
      %v672 = vunpack.c.l.b16 %v282
      %v673 = vunpack.c.h.b16 %v282
      %v674 = vunpack.c.l.b16 %v283
      %v675 = vunpack.c.h.b16 %v283
      %v676 = vunpack.c.l.b16 %v284
      %v677 = vunpack.c.h.b16 %v284
      %v678 = vunpack.c.l.b16 %v285
      %v679 = vunpack.c.h.b16 %v285
      %v680 = vunpack.c.l.b16 %v286
      %v681 = vunpack.c.h.b16 %v286
      %v682 = vunpack.c.l.b16 %v287
      %v683 = vunpack.c.h.b16 %v287
      %v684 = vunpack.c.l.b16 %v288
      %v685 = vunpack.c.h.b16 %v288
      %v686 = vunpack.c.l.b16 %v289
      %v687 = vunpack.c.h.b16 %v289
      %v688 = vunpack.c.l.b16 %v290
      %v689 = vunpack.c.h.b16 %v290
      %v690 = vunpack.c.l.b16 %v291
      %v691 = vunpack.c.h.b16 %v291
      %v692 = vunpack.c.l.b16 %v292
      %v693 = vunpack.c.h.b16 %v292
      %v694 = vunpack.c.l.b16 %v293
      %v695 = vunpack.c.h.b16 %v293
      %v696 = vunpack.c.l.b16 %v294
      %v697 = vunpack.c.h.b16 %v294
      %v698 = vunpack.c.l.b16 %v295
      %v699 = vunpack.c.h.b16 %v295
      %v700 = vunpack.c.l.b16 %v296
      %v701 = vunpack.c.h.b16 %v296
      %v702 = vunpack.c.l.b16 %v297
      %v703 = vunpack.c.h.b16 %v297
      %v704 = vunpack.c.l.b16 %v298
      %v705 = vunpack.c.h.b16 %v298
      %v706 = vunpack.c.l.b16 %v299
      %v707 = vunpack.c.h.b16 %v299
      %v708 = vunpack.c.l.b16 %v300
      %v709 = vunpack.c.h.b16 %v300
      %v710 = vunpack.c.l.b16 %v301
      %v711 = vunpack.c.h.b16 %v301
      %v712 = vunpack.c.l.b16 %v302
      %v713 = vunpack.c.h.b16 %v302
      %v714 = vunpack.c.l.b16 %v303
      %v715 = vunpack.c.h.b16 %v303
      %v716 = vunpack.c.l.b16 %v304
      %v717 = vunpack.c.h.b16 %v304
      %v718 = vunpack.c.l.b16 %v305
      %v719 = vunpack.c.h.b16 %v305
      %v720 = vunpack.c.l.b16 %v306
      %v721 = vunpack.c.h.b16 %v306
      %v722 = vunpack.c.l.b16 %v307
      %v723 = vunpack.c.h.b16 %v307
      %v724 = vunpack.c.l.b16 %v308
      %v725 = vunpack.c.h.b16 %v308
      %v726 = vunpack.c.l.b16 %v309
      %v727 = vunpack.c.h.b16 %v309
      %v728 = vunpack.c.l.b16 %v310
      %v729 = vunpack.c.h.b16 %v310
      %v730 = vunpack.c.l.b16 %v311
      %v731 = vunpack.c.h.b16 %v311
      %v732 = vunpack.c.l.b16 %v312
      %v733 = vunpack.c.h.b16 %v312
      %v734 = vunpack.c.l.b16 %v313
      %v735 = vunpack.c.h.b16 %v313
      %v736 = vunpack.c.l.b16 %v314
      %v737 = vunpack.c.h.b16 %v314
      %v738 = vunpack.c.l.b16 %v315
      %v739 = vunpack.c.h.b16 %v315
      %v740 = vunpack.c.l.b16 %v316
      %v741 = vunpack.c.h.b16 %v316
      %v742 = vunpack.c.l.b16 %v317
      %v743 = vunpack.c.h.b16 %v317
      %v744 = vunpack.c.l.b16 %v318
      %v745 = vunpack.c.h.b16 %v318
      %v746 = vunpack.c.l.b16 %v319
      %v747 = vunpack.c.h.b16 %v319
      %v748 = vunpack.c.l.b16 %v320
      %v749 = vunpack.c.h.b16 %v320
      %v750 = vunpack.c.l.b16 %v321
      %v751 = vunpack.c.h.b16 %v321
      %v752 = vunpack.c.l.b16 %v322
      %v753 = vunpack.c.h.b16 %v322
      %v754 = vunpack.c.l.b16 %v323
      %v755 = vunpack.c.h.b16 %v323
      %v756 = vunpack.c.l.b16 %v324
      %v757 = vunpack.c.h.b16 %v324
      %v758 = vunpack.c.l.b16 %v325
      %v759 = vunpack.c.h.b16 %v325
      %v760 = vunpack.c.l.b16 %v326
      %v761 = vunpack.c.h.b16 %v326
      %v762 = vunpack.c.l.b16 %v327
      %v763 = vunpack.c.h.b16 %v327
      %v764 = vunpack.c.l.b16 %v328
      %v765 = vunpack.c.h.b16 %v328
      %v766 = vunpack.c.l.b16 %v329
      %v767 = vunpack.c.h.b16 %v329
      %v768 = vunpack.c.l.b16 %v330
      %v769 = vunpack.c.h.b16 %v330
      %v770 = vunpack.c.l.b16 %v331
      %v771 = vunpack.c.h.b16 %v331
      %v772 = vunpack.c.l.b16 %v332
      %v773 = vunpack.c.h.b16 %v332
      %v774 = vunpack.c.l.b16 %v333
      %v775 = vunpack.c.h.b16 %v333
      %v776 = vunpack.c.l.b16 %v334
      %v777 = vunpack.c.h.b16 %v334
      %v778 = vunpack.c.l.b16 %v335
      %v779 = vunpack.c.h.b16 %v335
      %v780 = vunpack.c.l.b16 %v336
      %v781 = vunpack.c.h.b16 %v336
      %v782 = vunpack.c.l.b16 %v337
      %v783 = vunpack.c.h.b16 %v337
      %v784 = vunpack.c.l.b16 %v338
      %v785 = vunpack.c.h.b16 %v338
      %v786 = vunpack.c.l.b16 %v339
      %v787 = vunpack.c.h.b16 %v339
      %v788 = vpack.c.b16 %v676, %v660
      %v789 = vpack.c.b16 %v677, %v661
      %v790 = vpack.c.b16 %v678, %v662
      %v791 = vpack.c.b16 %v679, %v663
      %v792 = vpack.c.b16 %v680, %v664
      %v793 = vpack.c.b16 %v681, %v665
      %v794 = vpack.c.b16 %v682, %v666
      %v795 = vpack.c.b16 %v683, %v667
      %v796 = vpack.c.b16 %v684, %v668
      %v797 = vpack.c.b16 %v685, %v669
      %v798 = vpack.c.b16 %v686, %v670
      %v799 = vpack.c.b16 %v687, %v671
      %v800 = vpack.c.b16 %v688, %v672
      %v801 = vpack.c.b16 %v689, %v673
      %v802 = vpack.c.b16 %v690, %v674
      %v803 = vpack.c.b16 %v691, %v675
      %v804 = vpack.c.b16 %v708, %v692
      %v805 = vpack.c.b16 %v709, %v693
      %v806 = vpack.c.b16 %v710, %v694
      %v807 = vpack.c.b16 %v711, %v695
      %v808 = vpack.c.b16 %v712, %v696
      %v809 = vpack.c.b16 %v713, %v697
      %v810 = vpack.c.b16 %v714, %v698
      %v811 = vpack.c.b16 %v715, %v699
      %v812 = vpack.c.b16 %v716, %v700
      %v813 = vpack.c.b16 %v717, %v701
      %v814 = vpack.c.b16 %v718, %v702
      %v815 = vpack.c.b16 %v719, %v703
      %v816 = vpack.c.b16 %v720, %v704
      %v817 = vpack.c.b16 %v721, %v705
      %v818 = vpack.c.b16 %v722, %v706
      %v819 = vpack.c.b16 %v723, %v707
      %v820 = vpack.c.b16 %v740, %v724
      %v821 = vpack.c.b16 %v741, %v725
      %v822 = vpack.c.b16 %v742, %v726
      %v823 = vpack.c.b16 %v743, %v727
      %v824 = vpack.c.b16 %v744, %v728
      %v825 = vpack.c.b16 %v745, %v729
      %v826 = vpack.c.b16 %v746, %v730
      %v827 = vpack.c.b16 %v747, %v731
      %v828 = vpack.c.b16 %v748, %v732
      %v829 = vpack.c.b16 %v749, %v733
      %v830 = vpack.c.b16 %v750, %v734
      %v831 = vpack.c.b16 %v751, %v735
      %v832 = vpack.c.b16 %v752, %v736
      %v833 = vpack.c.b16 %v753, %v737
      %v834 = vpack.c.b16 %v754, %v738
      %v835 = vpack.c.b16 %v755, %v739
      %v836 = vpack.c.b16 %v772, %v756
      %v837 = vpack.c.b16 %v773, %v757
      %v838 = vpack.c.b16 %v774, %v758
      %v839 = vpack.c.b16 %v775, %v759
      %v840 = vpack.c.b16 %v776, %v760
      %v841 = vpack.c.b16 %v777, %v761
      %v842 = vpack.c.b16 %v778, %v762
      %v843 = vpack.c.b16 %v779, %v763
      %v844 = vpack.c.b16 %v780, %v764
      %v845 = vpack.c.b16 %v781, %v765
      %v846 = vpack.c.b16 %v782, %v766
      %v847 = vpack.c.b16 %v783, %v767
      %v848 = vpack.c.b16 %v784, %v768
      %v849 = vpack.c.b16 %v785, %v769
      %v850 = vpack.c.b16 %v786, %v770
      %v851 = vpack.c.b16 %v787, %v771
      %v1172 = vunpack.c.l.b16 %v340
      %v1173 = vunpack.c.l.b16 %v341
      %v1174 = vunpack.c.l.b16 %v342
      %v1175 = vunpack.c.l.b16 %v343
      %v1176 = vunpack.c.l.b16 %v344
      %v1177 = vunpack.c.l.b16 %v345
      %v1178 = vunpack.c.l.b16 %v346
      %v1179 = vunpack.c.l.b16 %v347
      %v1180 = vunpack.c.l.b16 %v348
      %v1181 = vunpack.c.l.b16 %v349
      %v1182 = vunpack.c.l.b16 %v350
      %v1183 = vunpack.c.l.b16 %v351
      %v1184 = vunpack.c.l.b16 %v352
      %v1185 = vunpack.c.l.b16 %v353
      %v1186 = vunpack.c.l.b16 %v354
      %v1187 = vunpack.c.l.b16 %v355
      %v1188 = vunpack.c.l.b16 %v356
      %v1189 = vunpack.c.l.b16 %v357
      %v1190 = vunpack.c.l.b16 %v358
      %v1191 = vunpack.c.l.b16 %v359
      %v1192 = vunpack.c.l.b16 %v360
      %v1193 = vunpack.c.l.b16 %v361
      %v1194 = vunpack.c.l.b16 %v362
      %v1195 = vunpack.c.l.b16 %v363
      %v1196 = vunpack.c.l.b16 %v364
      %v1197 = vunpack.c.l.b16 %v365
      %v1198 = vunpack.c.l.b16 %v366
      %v1199 = vunpack.c.l.b16 %v367
      %v1200 = vunpack.c.l.b16 %v368
      %v1201 = vunpack.c.l.b16 %v369
      %v1202 = vunpack.c.l.b16 %v370
      %v1203 = vunpack.c.l.b16 %v371
      %v1204 = vunpack.c.l.b16 %v372
      %v1205 = vunpack.c.l.b16 %v373
      %v1206 = vunpack.c.l.b16 %v374
      %v1207 = vunpack.c.l.b16 %v375
      %v1208 = vunpack.c.l.b16 %v376
      %v1209 = vunpack.c.l.b16 %v377
      %v1210 = vunpack.c.l.b16 %v378
      %v1211 = vunpack.c.l.b16 %v379
      %v1212 = vunpack.c.l.b16 %v380
      %v1213 = vunpack.c.l.b16 %v381
      %v1214 = vunpack.c.l.b16 %v382
      %v1215 = vunpack.c.l.b16 %v383
      %v1216 = vunpack.c.l.b16 %v384
      %v1217 = vunpack.c.l.b16 %v385
      %v1218 = vunpack.c.l.b16 %v386
      %v1219 = vunpack.c.l.b16 %v387
      %v1220 = vunpack.c.l.b16 %v388
      %v1221 = vunpack.c.l.b16 %v389
      %v1222 = vunpack.c.l.b16 %v390
      %v1223 = vunpack.c.l.b16 %v391
      %v1224 = vunpack.c.l.b16 %v392
      %v1225 = vunpack.c.l.b16 %v393
      %v1226 = vunpack.c.l.b16 %v394
      %v1227 = vunpack.c.l.b16 %v395
      %v1228 = vunpack.c.l.b16 %v396
      %v1229 = vunpack.c.l.b16 %v397
      %v1230 = vunpack.c.l.b16 %v398
      %v1231 = vunpack.c.l.b16 %v399
      %v1232 = vunpack.c.l.b16 %v400
      %v1233 = vunpack.c.l.b16 %v401
      %v1234 = vunpack.c.l.b16 %v402
      %v1235 = vunpack.c.l.b16 %v403
      %v1236 = vunpack.c.l.b16 %v404
      %v1237 = vunpack.c.l.b16 %v405
      %v1238 = vunpack.c.l.b16 %v406
      %v1239 = vunpack.c.l.b16 %v407
      %v1240 = vunpack.c.l.b16 %v408
      %v1241 = vunpack.c.l.b16 %v409
      %v1242 = vunpack.c.l.b16 %v410
      %v1243 = vunpack.c.l.b16 %v411
      %v1244 = vunpack.c.l.b16 %v412
      %v1245 = vunpack.c.l.b16 %v413
      %v1246 = vunpack.c.l.b16 %v414
      %v1247 = vunpack.c.l.b16 %v415
      %v1248 = vunpack.c.l.b16 %v416
      %v1249 = vunpack.c.l.b16 %v417
      %v1250 = vunpack.c.l.b16 %v418
      %v1251 = vunpack.c.l.b16 %v419
      %v1252 = vunpack.c.l.b16 %v420
      %v1253 = vunpack.c.l.b16 %v421
      %v1254 = vunpack.c.l.b16 %v422
      %v1255 = vunpack.c.l.b16 %v423
      %v1256 = vunpack.c.l.b16 %v424
      %v1257 = vunpack.c.l.b16 %v425
      %v1258 = vunpack.c.l.b16 %v426
      %v1259 = vunpack.c.l.b16 %v427
      %v1260 = vunpack.c.l.b16 %v428
      %v1261 = vunpack.c.l.b16 %v429
      %v1262 = vunpack.c.l.b16 %v430
      %v1263 = vunpack.c.l.b16 %v431
      %v1264 = vunpack.c.l.b16 %v432
      %v1265 = vunpack.c.l.b16 %v433
      %v1266 = vunpack.c.l.b16 %v434
      %v1267 = vunpack.c.l.b16 %v435
      %v1268 = vunpack.c.l.b16 %v436
      %v1269 = vunpack.c.l.b16 %v437
      %v1270 = vunpack.c.l.b16 %v438
      %v1271 = vunpack.c.l.b16 %v439
      %v1272 = vunpack.c.l.b16 %v440
      %v1273 = vunpack.c.l.b16 %v441
      %v1274 = vunpack.c.l.b16 %v442
      %v1275 = vunpack.c.l.b16 %v443
      %v1276 = vunpack.c.l.b16 %v444
      %v1277 = vunpack.c.l.b16 %v445
      %v1278 = vunpack.c.l.b16 %v446
      %v1279 = vunpack.c.l.b16 %v447
      %v1280 = vunpack.c.l.b16 %v448
      %v1281 = vunpack.c.l.b16 %v449
      %v1282 = vunpack.c.l.b16 %v450
      %v1283 = vunpack.c.l.b16 %v451
      %v1284 = vunpack.c.l.b16 %v452
      %v1285 = vunpack.c.l.b16 %v453
      %v1286 = vunpack.c.l.b16 %v454
      %v1287 = vunpack.c.l.b16 %v455
      %v1288 = vunpack.c.l.b16 %v456
      %v1289 = vunpack.c.l.b16 %v457
      %v1290 = vunpack.c.l.b16 %v458
      %v1291 = vunpack.c.l.b16 %v459
      %v1292 = vunpack.c.l.b16 %v460
      %v1293 = vunpack.c.l.b16 %v461
      %v1294 = vunpack.c.l.b16 %v462
      %v1295 = vunpack.c.l.b16 %v463
      %v1296 = vunpack.c.l.b16 %v464
      %v1297 = vunpack.c.l.b16 %v465
      %v1298 = vunpack.c.l.b16 %v466
      %v1299 = vunpack.c.l.b16 %v467
      %v1300 = vunpack.c.l.b16 %v468
      %v1301 = vunpack.c.l.b16 %v469
      %v1302 = vunpack.c.l.b16 %v470
      %v1303 = vunpack.c.l.b16 %v471
      %v1304 = vunpack.c.l.b16 %v472
      %v1305 = vunpack.c.l.b16 %v473
      %v1306 = vunpack.c.l.b16 %v474
      %v1307 = vunpack.c.l.b16 %v475
      %v1308 = vunpack.c.l.b16 %v476
      %v1309 = vunpack.c.l.b16 %v477
      %v1310 = vunpack.c.l.b16 %v478
      %v1311 = vunpack.c.l.b16 %v479
      %v1312 = vunpack.c.l.b16 %v480
      %v1313 = vunpack.c.l.b16 %v481
      %v1314 = vunpack.c.l.b16 %v482
      %v1315 = vunpack.c.l.b16 %v483
      %v1316 = vunpack.c.l.b16 %v484
      %v1317 = vunpack.c.l.b16 %v485
      %v1318 = vunpack.c.l.b16 %v486
      %v1319 = vunpack.c.l.b16 %v487
      %v1320 = vunpack.c.l.b16 %v488
      %v1321 = vunpack.c.l.b16 %v489
      %v1322 = vunpack.c.l.b16 %v490
      %v1323 = vunpack.c.l.b16 %v491
      %v1324 = vunpack.c.l.b16 %v492
      %v1325 = vunpack.c.l.b16 %v493
      %v1326 = vunpack.c.l.b16 %v494
      %v1327 = vunpack.c.l.b16 %v495
      %v1328 = vunpack.c.l.b16 %v496
      %v1329 = vunpack.c.l.b16 %v497
      %v1330 = vunpack.c.l.b16 %v498
      %v1331 = vunpack.c.l.b16 %v499
      %v1332 = vunpack.c.l.b16 %v500
      %v1333 = vunpack.c.l.b16 %v501
      %v1334 = vunpack.c.l.b16 %v502
      %v1335 = vunpack.c.l.b16 %v503
      %v1336 = vunpack.c.l.b16 %v504
      %v1337 = vunpack.c.l.b16 %v505
      %v1338 = vunpack.c.l.b16 %v506
      %v1339 = vunpack.c.l.b16 %v507
      %v1340 = vunpack.c.l.b16 %v508
      %v1341 = vunpack.c.l.b16 %v509
      %v1342 = vunpack.c.l.b16 %v510
      %v1343 = vunpack.c.l.b16 %v511
      %v1344 = vunpack.c.l.b16 %v512
      %v1345 = vunpack.c.l.b16 %v513
      %v1346 = vunpack.c.l.b16 %v514
      %v1347 = vunpack.c.l.b16 %v515
      %v1348 = vunpack.c.l.b16 %v516
      %v1349 = vunpack.c.l.b16 %v517
      %v1350 = vunpack.c.l.b16 %v518
      %v1351 = vunpack.c.l.b16 %v519
      %v1352 = vunpack.c.l.b16 %v520
      %v1353 = vunpack.c.l.b16 %v521
      %v1354 = vunpack.c.l.b16 %v522
      %v1355 = vunpack.c.l.b16 %v523
      %v1356 = vunpack.c.l.b16 %v524
      %v1357 = vunpack.c.l.b16 %v525
      %v1358 = vunpack.c.l.b16 %v526
      %v1359 = vunpack.c.l.b16 %v527
      %v1360 = vunpack.c.l.b16 %v528
      %v1361 = vunpack.c.l.b16 %v529
      %v1362 = vunpack.c.l.b16 %v530
      %v1363 = vunpack.c.l.b16 %v531
      %v1364 = vunpack.c.l.b16 %v532
      %v1365 = vunpack.c.l.b16 %v533
      %v1366 = vunpack.c.l.b16 %v534
      %v1367 = vunpack.c.l.b16 %v535
      %v1368 = vunpack.c.l.b16 %v536
      %v1369 = vunpack.c.l.b16 %v537
      %v1370 = vunpack.c.l.b16 %v538
      %v1371 = vunpack.c.l.b16 %v539
      %v1372 = vunpack.c.l.b16 %v540
      %v1373 = vunpack.c.l.b16 %v541
      %v1374 = vunpack.c.l.b16 %v542
      %v1375 = vunpack.c.l.b16 %v543
      %v1376 = vunpack.c.l.b16 %v544
      %v1377 = vunpack.c.l.b16 %v545
      %v1378 = vunpack.c.l.b16 %v546
      %v1379 = vunpack.c.l.b16 %v547
      %v1380 = vunpack.c.l.b16 %v548
      %v1381 = vunpack.c.l.b16 %v549
      %v1382 = vunpack.c.l.b16 %v550
      %v1383 = vunpack.c.l.b16 %v551
      %v1384 = vunpack.c.l.b16 %v552
      %v1385 = vunpack.c.l.b16 %v553
      %v1386 = vunpack.c.l.b16 %v554
      %v1387 = vunpack.c.l.b16 %v555
      %v1388 = vunpack.c.l.b16 %v556
      %v1389 = vunpack.c.l.b16 %v557
      %v1390 = vunpack.c.l.b16 %v558
      %v1391 = vunpack.c.l.b16 %v559
      %v1392 = vunpack.c.l.b16 %v560
      %v1393 = vunpack.c.l.b16 %v561
      %v1394 = vunpack.c.l.b16 %v562
      %v1395 = vunpack.c.l.b16 %v563
      %v1396 = vunpack.c.l.b16 %v564
      %v1397 = vunpack.c.l.b16 %v565
      %v1398 = vunpack.c.l.b16 %v566
      %v1399 = vunpack.c.l.b16 %v567
      %v1400 = vunpack.c.l.b16 %v568
      %v1401 = vunpack.c.l.b16 %v569
      %v1402 = vunpack.c.l.b16 %v570
      %v1403 = vunpack.c.l.b16 %v571
      %v1404 = vunpack.c.l.b16 %v572
      %v1405 = vunpack.c.l.b16 %v573
      %v1406 = vunpack.c.l.b16 %v574
      %v1407 = vunpack.c.l.b16 %v575
      %v1408 = vunpack.c.l.b16 %v576
      %v1409 = vunpack.c.l.b16 %v577
      %v1410 = vunpack.c.l.b16 %v578
      %v1411 = vunpack.c.l.b16 %v579
      %v1412 = vunpack.c.l.b16 %v580
      %v1413 = vunpack.c.l.b16 %v581
      %v1414 = vunpack.c.l.b16 %v582
      %v1415 = vunpack.c.l.b16 %v583
      %v1416 = vunpack.c.l.b16 %v584
      %v1417 = vunpack.c.l.b16 %v585
      %v1418 = vunpack.c.l.b16 %v586
      %v1419 = vunpack.c.l.b16 %v587
      %v1420 = vunpack.c.l.b16 %v588
      %v1421 = vunpack.c.l.b16 %v589
      %v1422 = vunpack.c.l.b16 %v590
      %v1423 = vunpack.c.l.b16 %v591
      %v1424 = vunpack.c.l.b16 %v592
      %v1425 = vunpack.c.l.b16 %v593
      %v1426 = vunpack.c.l.b16 %v594
      %v1427 = vunpack.c.l.b16 %v595
      %v1428 = vpack.c.b16 %v1173, %v1172
      %v1429 = vpack.c.b16 %v1175, %v1174
      %v1430 = vpack.c.b16 %v1177, %v1176
      %v1431 = vpack.c.b16 %v1179, %v1178
      %v1432 = vpack.c.b16 %v1181, %v1180
      %v1433 = vpack.c.b16 %v1183, %v1182
      %v1434 = vpack.c.b16 %v1185, %v1184
      %v1435 = vpack.c.b16 %v1187, %v1186
      %v1436 = vpack.c.b16 %v1189, %v1188
      %v1437 = vpack.c.b16 %v1191, %v1190
      %v1438 = vpack.c.b16 %v1193, %v1192
      %v1439 = vpack.c.b16 %v1195, %v1194
      %v1440 = vpack.c.b16 %v1197, %v1196
      %v1441 = vpack.c.b16 %v1199, %v1198
      %v1442 = vpack.c.b16 %v1201, %v1200
      %v1443 = vpack.c.b16 %v1203, %v1202
      %v1444 = vpack.c.b16 %v1205, %v1204
      %v1445 = vpack.c.b16 %v1207, %v1206
      %v1446 = vpack.c.b16 %v1209, %v1208
      %v1447 = vpack.c.b16 %v1211, %v1210
      %v1448 = vpack.c.b16 %v1213, %v1212
      %v1449 = vpack.c.b16 %v1215, %v1214
      %v1450 = vpack.c.b16 %v1217, %v1216
      %v1451 = vpack.c.b16 %v1219, %v1218
      %v1452 = vpack.c.b16 %v1221, %v1220
      %v1453 = vpack.c.b16 %v1223, %v1222
      %v1454 = vpack.c.b16 %v1225, %v1224
      %v1455 = vpack.c.b16 %v1227, %v1226
      %v1456 = vpack.c.b16 %v1229, %v1228
      %v1457 = vpack.c.b16 %v1231, %v1230
      %v1458 = vpack.c.b16 %v1233, %v1232
      %v1459 = vpack.c.b16 %v1235, %v1234
      %v1460 = vpack.c.b16 %v1237, %v1236
      %v1461 = vpack.c.b16 %v1239, %v1238
      %v1462 = vpack.c.b16 %v1241, %v1240
      %v1463 = vpack.c.b16 %v1243, %v1242
      %v1464 = vpack.c.b16 %v1245, %v1244
      %v1465 = vpack.c.b16 %v1247, %v1246
      %v1466 = vpack.c.b16 %v1249, %v1248
      %v1467 = vpack.c.b16 %v1251, %v1250
      %v1468 = vpack.c.b16 %v1253, %v1252
      %v1469 = vpack.c.b16 %v1255, %v1254
      %v1470 = vpack.c.b16 %v1257, %v1256
      %v1471 = vpack.c.b16 %v1259, %v1258
      %v1472 = vpack.c.b16 %v1261, %v1260
      %v1473 = vpack.c.b16 %v1263, %v1262
      %v1474 = vpack.c.b16 %v1265, %v1264
      %v1475 = vpack.c.b16 %v1267, %v1266
      %v1476 = vpack.c.b16 %v1269, %v1268
      %v1477 = vpack.c.b16 %v1271, %v1270
      %v1478 = vpack.c.b16 %v1273, %v1272
      %v1479 = vpack.c.b16 %v1275, %v1274
      %v1480 = vpack.c.b16 %v1277, %v1276
      %v1481 = vpack.c.b16 %v1279, %v1278
      %v1482 = vpack.c.b16 %v1281, %v1280
      %v1483 = vpack.c.b16 %v1283, %v1282
      %v1484 = vpack.c.b16 %v1285, %v1284
      %v1485 = vpack.c.b16 %v1287, %v1286
      %v1486 = vpack.c.b16 %v1289, %v1288
      %v1487 = vpack.c.b16 %v1291, %v1290
      %v1488 = vpack.c.b16 %v1293, %v1292
      %v1489 = vpack.c.b16 %v1295, %v1294
      %v1490 = vpack.c.b16 %v1297, %v1296
      %v1491 = vpack.c.b16 %v1299, %v1298
      %v1492 = vpack.c.b16 %v1301, %v1300
      %v1493 = vpack.c.b16 %v1303, %v1302
      %v1494 = vpack.c.b16 %v1305, %v1304
      %v1495 = vpack.c.b16 %v1307, %v1306
      %v1496 = vpack.c.b16 %v1309, %v1308
      %v1497 = vpack.c.b16 %v1311, %v1310
      %v1498 = vpack.c.b16 %v1313, %v1312
      %v1499 = vpack.c.b16 %v1315, %v1314
      %v1500 = vpack.c.b16 %v1317, %v1316
      %v1501 = vpack.c.b16 %v1319, %v1318
      %v1502 = vpack.c.b16 %v1321, %v1320
      %v1503 = vpack.c.b16 %v1323, %v1322
      %v1504 = vpack.c.b16 %v1325, %v1324
      %v1505 = vpack.c.b16 %v1327, %v1326
      %v1506 = vpack.c.b16 %v1329, %v1328
      %v1507 = vpack.c.b16 %v1331, %v1330
      %v1508 = vpack.c.b16 %v1333, %v1332
      %v1509 = vpack.c.b16 %v1335, %v1334
      %v1510 = vpack.c.b16 %v1337, %v1336
      %v1511 = vpack.c.b16 %v1339, %v1338
      %v1512 = vpack.c.b16 %v1341, %v1340
      %v1513 = vpack.c.b16 %v1343, %v1342
      %v1514 = vpack.c.b16 %v1345, %v1344
      %v1515 = vpack.c.b16 %v1347, %v1346
      %v1516 = vpack.c.b16 %v1349, %v1348
      %v1517 = vpack.c.b16 %v1351, %v1350
      %v1518 = vpack.c.b16 %v1353, %v1352
      %v1519 = vpack.c.b16 %v1355, %v1354
      %v1520 = vpack.c.b16 %v1357, %v1356
      %v1521 = vpack.c.b16 %v1359, %v1358
      %v1522 = vpack.c.b16 %v1361, %v1360
      %v1523 = vpack.c.b16 %v1363, %v1362
      %v1524 = vpack.c.b16 %v1365, %v1364
      %v1525 = vpack.c.b16 %v1367, %v1366
      %v1526 = vpack.c.b16 %v1369, %v1368
      %v1527 = vpack.c.b16 %v1371, %v1370
      %v1528 = vpack.c.b16 %v1373, %v1372
      %v1529 = vpack.c.b16 %v1375, %v1374
      %v1530 = vpack.c.b16 %v1377, %v1376
      %v1531 = vpack.c.b16 %v1379, %v1378
      %v1532 = vpack.c.b16 %v1381, %v1380
      %v1533 = vpack.c.b16 %v1383, %v1382
      %v1534 = vpack.c.b16 %v1385, %v1384
      %v1535 = vpack.c.b16 %v1387, %v1386
      %v1536 = vpack.c.b16 %v1389, %v1388
      %v1537 = vpack.c.b16 %v1391, %v1390
      %v1538 = vpack.c.b16 %v1393, %v1392
      %v1539 = vpack.c.b16 %v1395, %v1394
      %v1540 = vpack.c.b16 %v1397, %v1396
      %v1541 = vpack.c.b16 %v1399, %v1398
      %v1542 = vpack.c.b16 %v1401, %v1400
      %v1543 = vpack.c.b16 %v1403, %v1402
      %v1544 = vpack.c.b16 %v1405, %v1404
      %v1545 = vpack.c.b16 %v1407, %v1406
      %v1546 = vpack.c.b16 %v1409, %v1408
      %v1547 = vpack.c.b16 %v1411, %v1410
      %v1548 = vpack.c.b16 %v1413, %v1412
      %v1549 = vpack.c.b16 %v1415, %v1414
      %v1550 = vpack.c.b16 %v1417, %v1416
      %v1551 = vpack.c.b16 %v1419, %v1418
      %v1552 = vpack.c.b16 %v1421, %v1420
      %v1553 = vpack.c.b16 %v1423, %v1422
      %v1554 = vpack.c.b16 %v1425, %v1424
      %v1555 = vpack.c.b16 %v1427, %v1426
      %1684 = vmatprep.subr.bf16.mxu0 0
      %1685 = vmatpush1.bf16.msra.mxu0 %v1428
      %1686 = vmatprep.subr.bf16.mxu0 0
      %1687 = vmatpush1.bf16.msra.mxu0 %v1429
      %1688 = vmatprep.subr.bf16.mxu0 0
      %1689 = vmatpush1.bf16.msra.mxu0 %v1430
      %1690 = vmatprep.subr.bf16.mxu0 0
      %1691 = vmatpush1.bf16.msra.mxu0 %v1431
      %1692 = vmatprep.subr.bf16.mxu0 0
      %1693 = vmatpush1.bf16.msra.mxu0 %v1432
      %1694 = vmatprep.subr.bf16.mxu0 0
      %1695 = vmatpush1.bf16.msra.mxu0 %v1433
      %1696 = vmatprep.subr.bf16.mxu0 0
      %1697 = vmatpush1.bf16.msra.mxu0 %v1434
      %1698 = vmatprep.subr.bf16.mxu0 0
      %1699 = vmatpush1.bf16.msra.mxu0 %v1435
      %1700 = vmatprep.subr.bf16.mxu0 0
      %1701 = vmatpush1.bf16.msra.mxu0 %v1436
      %1702 = vmatprep.subr.bf16.mxu0 0
      %1703 = vmatpush1.bf16.msra.mxu0 %v1437
      %1704 = vmatprep.subr.bf16.mxu0 0
      %1705 = vmatpush1.bf16.msra.mxu0 %v1438
      %1706 = vmatprep.subr.bf16.mxu0 0
      %1707 = vmatpush1.bf16.msra.mxu0 %v1439
      %1708 = vmatprep.subr.bf16.mxu0 0
      %1709 = vmatpush1.bf16.msra.mxu0 %v1440
      %1710 = vmatprep.subr.bf16.mxu0 0
      %1711 = vmatpush1.bf16.msra.mxu0 %v1441
      %1712 = vmatprep.subr.bf16.mxu0 0
      %1713 = vmatpush1.bf16.msra.mxu0 %v1442
      %1714 = vmatprep.subr.bf16.mxu0 0
      %1715 = vmatpush1.bf16.msra.mxu0 %v1443
      %1716 = vmatprep.mubr.bf16.mxu0 %v789
      %1717 = vmatmul.mubr.bf16.gmra.mrb[0].mxu0 %v788
      %v1718 = vpop.f32.mrb[0].mxu0
      %v1719 = vadd.f32 0.0, %v1718
      %v1720 = vpop.f32.mrb[0].mxu0
      %v1721 = vpop.f32.mrb[0].mxu0
      %v1722 = vadd.f32 0.0, %v1721
      %v1723 = vpop.f32.mrb[0].mxu0
      %1724 = vmatprep.mubr.bf16.mxu0 %v805
      %1725 = vmatmul.mubr.bf16.gmra.mrb[0].mxu0 %v804
      %v1726 = vpop.f32.mrb[0].mxu0
      %v1727 = vadd.f32 0.0, %v1726
      %v1728 = vpop.f32.mrb[0].mxu0
      %v1729 = vpop.f32.mrb[0].mxu0
      %v1730 = vadd.f32 0.0, %v1729
      %v1731 = vpop.f32.mrb[0].mxu0
      %1732 = vmatprep.mubr.bf16.mxu0 %v821
      %1733 = vmatmul.mubr.bf16.gmra.mrb[0].mxu0 %v820
      %v1734 = vpop.f32.mrb[0].mxu0
      %v1735 = vadd.f32 0.0, %v1734
      %v1736 = vpop.f32.mrb[0].mxu0
      %v1737 = vpop.f32.mrb[0].mxu0
      %v1738 = vadd.f32 0.0, %v1737
      %v1739 = vpop.f32.mrb[0].mxu0
      %1740 = vmatprep.mubr.bf16.mxu0 %v837
      %1741 = vmatmul.mubr.bf16.gmra.mrb[0].mxu0 %v836
      %v1742 = vpop.f32.mrb[0].mxu0
      %v1743 = vadd.f32 0.0, %v1742
      %v1744 = vpop.f32.mrb[0].mxu0
      %v1745 = vpop.f32.mrb[0].mxu0
      %v1746 = vadd.f32 0.0, %v1745
      %v1747 = vpop.f32.mrb[0].mxu0
      %1748 = vdwg.mxu0
      %1749 = vmatprep.subr.bf16.mxu0 0
      %1750 = vmatpush1.bf16.msra.mxu0 %v1444
      %1751 = vmatprep.subr.bf16.mxu0 0
      %1752 = vmatpush1.bf16.msra.mxu0 %v1445
      %1753 = vmatprep.subr.bf16.mxu0 0
      %1754 = vmatpush1.bf16.msra.mxu0 %v1446
      %1755 = vmatprep.subr.bf16.mxu0 0
      %1756 = vmatpush1.bf16.msra.mxu0 %v1447
      %1757 = vmatprep.subr.bf16.mxu0 0
      %1758 = vmatpush1.bf16.msra.mxu0 %v1448
      %1759 = vmatprep.subr.bf16.mxu0 0
      %1760 = vmatpush1.bf16.msra.mxu0 %v1449
      %1761 = vmatprep.subr.bf16.mxu0 0
      %1762 = vmatpush1.bf16.msra.mxu0 %v1450
      %1763 = vmatprep.subr.bf16.mxu0 0
      %1764 = vmatpush1.bf16.msra.mxu0 %v1451
      %1765 = vmatprep.subr.bf16.mxu0 0
      %1766 = vmatpush1.bf16.msra.mxu0 %v1452
      %1767 = vmatprep.subr.bf16.mxu0 0
      %1768 = vmatpush1.bf16.msra.mxu0 %v1453
      %1769 = vmatprep.subr.bf16.mxu0 0
      %1770 = vmatpush1.bf16.msra.mxu0 %v1454
      %1771 = vmatprep.subr.bf16.mxu0 0
      %1772 = vmatpush1.bf16.msra.mxu0 %v1455
      %1773 = vmatprep.subr.bf16.mxu0 0
      %1774 = vmatpush1.bf16.msra.mxu0 %v1456
      %1775 = vmatprep.subr.bf16.mxu0 0
      %1776 = vmatpush1.bf16.msra.mxu0 %v1457
      %1777 = vmatprep.subr.bf16.mxu0 0
      %1778 = vmatpush1.bf16.msra.mxu0 %v1458
      %1779 = vmatprep.subr.bf16.mxu0 0
      %1780 = vmatpush1.bf16.msra.mxu0 %v1459
      %1781 = vmatprep.mubr.bf16.mxu0 %v791
      %1782 = vmatmul.mubr.bf16.gmra.mrb[0].mxu0 %v790
      %v1783 = vpop.f32.mrb[0].mxu0
      %v1784 = vadd.f32 %v1719, %v1783
      %v1785 = vpop.f32.mrb[0].mxu0
      %v1786 = vpop.f32.mrb[0].mxu0
      %v1787 = vadd.f32 %v1722, %v1786
      %v1788 = vpop.f32.mrb[0].mxu0
      %1789 = vmatprep.mubr.bf16.mxu0 %v807
      %1790 = vmatmul.mubr.bf16.gmra.mrb[0].mxu0 %v806
      %v1791 = vpop.f32.mrb[0].mxu0
      %v1792 = vadd.f32 %v1727, %v1791
      %v1793 = vpop.f32.mrb[0].mxu0
      %v1794 = vpop.f32.mrb[0].mxu0
      %v1795 = vadd.f32 %v1730, %v1794
      %v1796 = vpop.f32.mrb[0].mxu0
      %1797 = vmatprep.mubr.bf16.mxu0 %v823
      %1798 = vmatmul.mubr.bf16.gmra.mrb[0].mxu0 %v822
      %v1799 = vpop.f32.mrb[0].mxu0
      %v1800 = vadd.f32 %v1735, %v1799
      %v1801 = vpop.f32.mrb[0].mxu0
      %v1802 = vpop.f32.mrb[0].mxu0
      %v1803 = vadd.f32 %v1738, %v1802
      %v1804 = vpop.f32.mrb[0].mxu0
      %1805 = vmatprep.mubr.bf16.mxu0 %v839
      %1806 = vmatmul.mubr.bf16.gmra.mrb[0].mxu0 %v838
      %v1807 = vpop.f32.mrb[0].mxu0
      %v1808 = vadd.f32 %v1743, %v1807
      %v1809 = vpop.f32.mrb[0].mxu0
      %v1810 = vpop.f32.mrb[0].mxu0
      %v1811 = vadd.f32 %v1746, %v1810
      %v1812 = vpop.f32.mrb[0].mxu0
      %1813 = vdwg.mxu0
      %1814 = vmatprep.subr.bf16.mxu0 0
      %1815 = vmatpush1.bf16.msra.mxu0 %v1460
      %1816 = vmatprep.subr.bf16.mxu0 0
      %1817 = vmatpush1.bf16.msra.mxu0 %v1461
      %1818 = vmatprep.subr.bf16.mxu0 0
      %1819 = vmatpush1.bf16.msra.mxu0 %v1462
      %1820 = vmatprep.subr.bf16.mxu0 0
      %1821 = vmatpush1.bf16.msra.mxu0 %v1463
      %1822 = vmatprep.subr.bf16.mxu0 0
      %1823 = vmatpush1.bf16.msra.mxu0 %v1464
      %1824 = vmatprep.subr.bf16.mxu0 0
      %1825 = vmatpush1.bf16.msra.mxu0 %v1465
      %1826 = vmatprep.subr.bf16.mxu0 0
      %1827 = vmatpush1.bf16.msra.mxu0 %v1466
      %1828 = vmatprep.subr.bf16.mxu0 0
      %1829 = vmatpush1.bf16.msra.mxu0 %v1467
      %1830 = vmatprep.subr.bf16.mxu0 0
      %1831 = vmatpush1.bf16.msra.mxu0 %v1468
      %1832 = vmatprep.subr.bf16.mxu0 0
      %1833 = vmatpush1.bf16.msra.mxu0 %v1469
      %1834 = vmatprep.subr.bf16.mxu0 0
      %1835 = vmatpush1.bf16.msra.mxu0 %v1470
      %1836 = vmatprep.subr.bf16.mxu0 0
      %1837 = vmatpush1.bf16.msra.mxu0 %v1471
      %1838 = vmatprep.subr.bf16.mxu0 0
      %1839 = vmatpush1.bf16.msra.mxu0 %v1472
      %1840 = vmatprep.subr.bf16.mxu0 0
      %1841 = vmatpush1.bf16.msra.mxu0 %v1473
      %1842 = vmatprep.subr.bf16.mxu0 0
      %1843 = vmatpush1.bf16.msra.mxu0 %v1474
      %1844 = vmatprep.subr.bf16.mxu0 0
      %1845 = vmatpush1.bf16.msra.mxu0 %v1475
      %1846 = vmatprep.mubr.bf16.mxu0 %v793
      %1847 = vmatmul.mubr.bf16.gmra.mrb[0].mxu0 %v792
      %v1848 = vpop.f32.mrb[0].mxu0
      %v1849 = vadd.f32 %v1784, %v1848
      %v1850 = vpop.f32.mrb[0].mxu0
      %v1851 = vpop.f32.mrb[0].mxu0
      %v1852 = vadd.f32 %v1787, %v1851
      %v1853 = vpop.f32.mrb[0].mxu0
      %1854 = vmatprep.mubr.bf16.mxu0 %v809
      %1855 = vmatmul.mubr.bf16.gmra.mrb[0].mxu0 %v808
      %v1856 = vpop.f32.mrb[0].mxu0
      %v1857 = vadd.f32 %v1792, %v1856
      %v1858 = vpop.f32.mrb[0].mxu0
      %v1859 = vpop.f32.mrb[0].mxu0
      %v1860 = vadd.f32 %v1795, %v1859
      %v1861 = vpop.f32.mrb[0].mxu0
      %1862 = vmatprep.mubr.bf16.mxu0 %v825
      %1863 = vmatmul.mubr.bf16.gmra.mrb[0].mxu0 %v824
      %v1864 = vpop.f32.mrb[0].mxu0
      %v1865 = vadd.f32 %v1800, %v1864
      %v1866 = vpop.f32.mrb[0].mxu0
      %v1867 = vpop.f32.mrb[0].mxu0
      %v1868 = vadd.f32 %v1803, %v1867
      %v1869 = vpop.f32.mrb[0].mxu0
      %1870 = vmatprep.mubr.bf16.mxu0 %v841
      %1871 = vmatmul.mubr.bf16.gmra.mrb[0].mxu0 %v840
      %v1872 = vpop.f32.mrb[0].mxu0
      %v1873 = vadd.f32 %v1808, %v1872
      %v1874 = vpop.f32.mrb[0].mxu0
      %v1875 = vpop.f32.mrb[0].mxu0
      %v1876 = vadd.f32 %v1811, %v1875
      %v1877 = vpop.f32.mrb[0].mxu0
      %1878 = vdwg.mxu0
      %1879 = vmatprep.subr.bf16.mxu0 0
      %1880 = vmatpush1.bf16.msra.mxu0 %v1476
      %1881 = vmatprep.subr.bf16.mxu0 0
      %1882 = vmatpush1.bf16.msra.mxu0 %v1477
      %1883 = vmatprep.subr.bf16.mxu0 0
      %1884 = vmatpush1.bf16.msra.mxu0 %v1478
      %1885 = vmatprep.subr.bf16.mxu0 0
      %1886 = vmatpush1.bf16.msra.mxu0 %v1479
      %1887 = vmatprep.subr.bf16.mxu0 0
      %1888 = vmatpush1.bf16.msra.mxu0 %v1480
      %1889 = vmatprep.subr.bf16.mxu0 0
      %1890 = vmatpush1.bf16.msra.mxu0 %v1481
      %1891 = vmatprep.subr.bf16.mxu0 0
      %1892 = vmatpush1.bf16.msra.mxu0 %v1482
      %1893 = vmatprep.subr.bf16.mxu0 0
      %1894 = vmatpush1.bf16.msra.mxu0 %v1483
      %1895 = vmatprep.subr.bf16.mxu0 0
      %1896 = vmatpush1.bf16.msra.mxu0 %v1484
      %1897 = vmatprep.subr.bf16.mxu0 0
      %1898 = vmatpush1.bf16.msra.mxu0 %v1485
      %1899 = vmatprep.subr.bf16.mxu0 0
      %1900 = vmatpush1.bf16.msra.mxu0 %v1486
      %1901 = vmatprep.subr.bf16.mxu0 0
      %1902 = vmatpush1.bf16.msra.mxu0 %v1487
      %1903 = vmatprep.subr.bf16.mxu0 0
      %1904 = vmatpush1.bf16.msra.mxu0 %v1488
      %1905 = vmatprep.subr.bf16.mxu0 0
      %1906 = vmatpush1.bf16.msra.mxu0 %v1489
      %1907 = vmatprep.subr.bf16.mxu0 0
      %1908 = vmatpush1.bf16.msra.mxu0 %v1490
      %1909 = vmatprep.subr.bf16.mxu0 0
      %1910 = vmatpush1.bf16.msra.mxu0 %v1491
      %1911 = vmatprep.mubr.bf16.mxu0 %v795
      %1912 = vmatmul.mubr.bf16.gmra.mrb[0].mxu0 %v794
      %v1913 = vpop.f32.mrb[0].mxu0
      %v1914 = vadd.f32 %v1849, %v1913
      %v1915 = vpop.f32.mrb[0].mxu0
      %v1916 = vpop.f32.mrb[0].mxu0
      %v1917 = vadd.f32 %v1852, %v1916
      %v1918 = vpop.f32.mrb[0].mxu0
      %1919 = vmatprep.mubr.bf16.mxu0 %v811
      %1920 = vmatmul.mubr.bf16.gmra.mrb[0].mxu0 %v810
      %v1921 = vpop.f32.mrb[0].mxu0
      %v1922 = vadd.f32 %v1857, %v1921
      %v1923 = vpop.f32.mrb[0].mxu0
      %v1924 = vpop.f32.mrb[0].mxu0
      %v1925 = vadd.f32 %v1860, %v1924
      %v1926 = vpop.f32.mrb[0].mxu0
      %1927 = vmatprep.mubr.bf16.mxu0 %v827
      %1928 = vmatmul.mubr.bf16.gmra.mrb[0].mxu0 %v826
      %v1929 = vpop.f32.mrb[0].mxu0
      %v1930 = vadd.f32 %v1865, %v1929
      %v1931 = vpop.f32.mrb[0].mxu0
      %v1932 = vpop.f32.mrb[0].mxu0
      %v1933 = vadd.f32 %v1868, %v1932
      %v1934 = vpop.f32.mrb[0].mxu0
      %1935 = vmatprep.mubr.bf16.mxu0 %v843
      %1936 = vmatmul.mubr.bf16.gmra.mrb[0].mxu0 %v842
      %v1937 = vpop.f32.mrb[0].mxu0
      %v1938 = vadd.f32 %v1873, %v1937
      %v1939 = vpop.f32.mrb[0].mxu0
      %v1940 = vpop.f32.mrb[0].mxu0
      %v1941 = vadd.f32 %v1876, %v1940
      %v1942 = vpop.f32.mrb[0].mxu0
      %1943 = vdwg.mxu0
      %1944 = vmatprep.subr.bf16.mxu0 0
      %1945 = vmatpush1.bf16.msra.mxu0 %v1492
      %1946 = vmatprep.subr.bf16.mxu0 0
      %1947 = vmatpush1.bf16.msra.mxu0 %v1493
      %1948 = vmatprep.subr.bf16.mxu0 0
      %1949 = vmatpush1.bf16.msra.mxu0 %v1494
      %1950 = vmatprep.subr.bf16.mxu0 0
      %1951 = vmatpush1.bf16.msra.mxu0 %v1495
      %1952 = vmatprep.subr.bf16.mxu0 0
      %1953 = vmatpush1.bf16.msra.mxu0 %v1496
      %1954 = vmatprep.subr.bf16.mxu0 0
      %1955 = vmatpush1.bf16.msra.mxu0 %v1497
      %1956 = vmatprep.subr.bf16.mxu0 0
      %1957 = vmatpush1.bf16.msra.mxu0 %v1498
      %1958 = vmatprep.subr.bf16.mxu0 0
      %1959 = vmatpush1.bf16.msra.mxu0 %v1499
      %1960 = vmatprep.subr.bf16.mxu0 0
      %1961 = vmatpush1.bf16.msra.mxu0 %v1500
      %1962 = vmatprep.subr.bf16.mxu0 0
      %1963 = vmatpush1.bf16.msra.mxu0 %v1501
      %1964 = vmatprep.subr.bf16.mxu0 0
      %1965 = vmatpush1.bf16.msra.mxu0 %v1502
      %1966 = vmatprep.subr.bf16.mxu0 0
      %1967 = vmatpush1.bf16.msra.mxu0 %v1503
      %1968 = vmatprep.subr.bf16.mxu0 0
      %1969 = vmatpush1.bf16.msra.mxu0 %v1504
      %1970 = vmatprep.subr.bf16.mxu0 0
      %1971 = vmatpush1.bf16.msra.mxu0 %v1505
      %1972 = vmatprep.subr.bf16.mxu0 0
      %1973 = vmatpush1.bf16.msra.mxu0 %v1506
      %1974 = vmatprep.subr.bf16.mxu0 0
      %1975 = vmatpush1.bf16.msra.mxu0 %v1507
      %1976 = vmatprep.mubr.bf16.mxu0 %v797
      %1977 = vmatmul.mubr.bf16.gmra.mrb[0].mxu0 %v796
      %v1978 = vpop.f32.mrb[0].mxu0
      %v1979 = vadd.f32 %v1914, %v1978
      %v1980 = vpop.f32.mrb[0].mxu0
      %v1981 = vpop.f32.mrb[0].mxu0
      %v1982 = vadd.f32 %v1917, %v1981
      %v1983 = vpop.f32.mrb[0].mxu0
      %1984 = vmatprep.mubr.bf16.mxu0 %v813
      %1985 = vmatmul.mubr.bf16.gmra.mrb[0].mxu0 %v812
      %v1986 = vpop.f32.mrb[0].mxu0
      %v1987 = vadd.f32 %v1922, %v1986
      %v1988 = vpop.f32.mrb[0].mxu0
      %v1989 = vpop.f32.mrb[0].mxu0
      %v1990 = vadd.f32 %v1925, %v1989
      %v1991 = vpop.f32.mrb[0].mxu0
      %1992 = vmatprep.mubr.bf16.mxu0 %v829
      %1993 = vmatmul.mubr.bf16.gmra.mrb[0].mxu0 %v828
      %v1994 = vpop.f32.mrb[0].mxu0
      %v1995 = vadd.f32 %v1930, %v1994
      %v1996 = vpop.f32.mrb[0].mxu0
      %v1997 = vpop.f32.mrb[0].mxu0
      %v1998 = vadd.f32 %v1933, %v1997
      %v1999 = vpop.f32.mrb[0].mxu0
      %2000 = vmatprep.mubr.bf16.mxu0 %v845
      %2001 = vmatmul.mubr.bf16.gmra.mrb[0].mxu0 %v844
      %v2002 = vpop.f32.mrb[0].mxu0
      %v2003 = vadd.f32 %v1938, %v2002
      %v2004 = vpop.f32.mrb[0].mxu0
      %v2005 = vpop.f32.mrb[0].mxu0
      %v2006 = vadd.f32 %v1941, %v2005
      %v2007 = vpop.f32.mrb[0].mxu0
      %2008 = vdwg.mxu0
      %2009 = vmatprep.subr.bf16.mxu0 0
      %2010 = vmatpush1.bf16.msra.mxu0 %v1508
      %2011 = vmatprep.subr.bf16.mxu0 0
      %2012 = vmatpush1.bf16.msra.mxu0 %v1509
      %2013 = vmatprep.subr.bf16.mxu0 0
      %2014 = vmatpush1.bf16.msra.mxu0 %v1510
      %2015 = vmatprep.subr.bf16.mxu0 0
      %2016 = vmatpush1.bf16.msra.mxu0 %v1511
      %2017 = vmatprep.subr.bf16.mxu0 0
      %2018 = vmatpush1.bf16.msra.mxu0 %v1512
      %2019 = vmatprep.subr.bf16.mxu0 0
      %2020 = vmatpush1.bf16.msra.mxu0 %v1513
      %2021 = vmatprep.subr.bf16.mxu0 0
      %2022 = vmatpush1.bf16.msra.mxu0 %v1514
      %2023 = vmatprep.subr.bf16.mxu0 0
      %2024 = vmatpush1.bf16.msra.mxu0 %v1515
      %2025 = vmatprep.subr.bf16.mxu0 0
      %2026 = vmatpush1.bf16.msra.mxu0 %v1516
      %2027 = vmatprep.subr.bf16.mxu0 0
      %2028 = vmatpush1.bf16.msra.mxu0 %v1517
      %2029 = vmatprep.subr.bf16.mxu0 0
      %2030 = vmatpush1.bf16.msra.mxu0 %v1518
      %2031 = vmatprep.subr.bf16.mxu0 0
      %2032 = vmatpush1.bf16.msra.mxu0 %v1519
      %2033 = vmatprep.subr.bf16.mxu0 0
      %2034 = vmatpush1.bf16.msra.mxu0 %v1520
      %2035 = vmatprep.subr.bf16.mxu0 0
      %2036 = vmatpush1.bf16.msra.mxu0 %v1521
      %2037 = vmatprep.subr.bf16.mxu0 0
      %2038 = vmatpush1.bf16.msra.mxu0 %v1522
      %2039 = vmatprep.subr.bf16.mxu0 0
      %2040 = vmatpush1.bf16.msra.mxu0 %v1523
      %2041 = vmatprep.mubr.bf16.mxu0 %v799
      %2042 = vmatmul.mubr.bf16.gmra.mrb[0].mxu0 %v798
      %v2043 = vpop.f32.mrb[0].mxu0
      %v2044 = vadd.f32 %v1979, %v2043
      %v2045 = vpop.f32.mrb[0].mxu0
      %v2046 = vpop.f32.mrb[0].mxu0
      %v2047 = vadd.f32 %v1982, %v2046
      %v2048 = vpop.f32.mrb[0].mxu0
      %2049 = vmatprep.mubr.bf16.mxu0 %v815
      %2050 = vmatmul.mubr.bf16.gmra.mrb[0].mxu0 %v814
      %v2051 = vpop.f32.mrb[0].mxu0
      %v2052 = vadd.f32 %v1987, %v2051
      %v2053 = vpop.f32.mrb[0].mxu0
      %v2054 = vpop.f32.mrb[0].mxu0
      %v2055 = vadd.f32 %v1990, %v2054
      %v2056 = vpop.f32.mrb[0].mxu0
      %2057 = vmatprep.mubr.bf16.mxu0 %v831
      %2058 = vmatmul.mubr.bf16.gmra.mrb[0].mxu0 %v830
      %v2059 = vpop.f32.mrb[0].mxu0
      %v2060 = vadd.f32 %v1995, %v2059
      %v2061 = vpop.f32.mrb[0].mxu0
      %v2062 = vpop.f32.mrb[0].mxu0
      %v2063 = vadd.f32 %v1998, %v2062
      %v2064 = vpop.f32.mrb[0].mxu0
      %2065 = vmatprep.mubr.bf16.mxu0 %v847
      %2066 = vmatmul.mubr.bf16.gmra.mrb[0].mxu0 %v846
      %v2067 = vpop.f32.mrb[0].mxu0
      %v2068 = vadd.f32 %v2003, %v2067
      %v2069 = vpop.f32.mrb[0].mxu0
      %v2070 = vpop.f32.mrb[0].mxu0
      %v2071 = vadd.f32 %v2006, %v2070
      %v2072 = vpop.f32.mrb[0].mxu0
      %2073 = vdwg.mxu0
      %2074 = vmatprep.subr.bf16.mxu0 0
      %2075 = vmatpush1.bf16.msra.mxu0 %v1524
      %2076 = vmatprep.subr.bf16.mxu0 0
      %2077 = vmatpush1.bf16.msra.mxu0 %v1525
      %2078 = vmatprep.subr.bf16.mxu0 0
      %2079 = vmatpush1.bf16.msra.mxu0 %v1526
      %2080 = vmatprep.subr.bf16.mxu0 0
      %2081 = vmatpush1.bf16.msra.mxu0 %v1527
      %2082 = vmatprep.subr.bf16.mxu0 0
      %2083 = vmatpush1.bf16.msra.mxu0 %v1528
      %2084 = vmatprep.subr.bf16.mxu0 0
      %2085 = vmatpush1.bf16.msra.mxu0 %v1529
      %2086 = vmatprep.subr.bf16.mxu0 0
      %2087 = vmatpush1.bf16.msra.mxu0 %v1530
      %2088 = vmatprep.subr.bf16.mxu0 0
      %2089 = vmatpush1.bf16.msra.mxu0 %v1531
      %2090 = vmatprep.subr.bf16.mxu0 0
      %2091 = vmatpush1.bf16.msra.mxu0 %v1532
      %2092 = vmatprep.subr.bf16.mxu0 0
      %2093 = vmatpush1.bf16.msra.mxu0 %v1533
      %2094 = vmatprep.subr.bf16.mxu0 0
      %2095 = vmatpush1.bf16.msra.mxu0 %v1534
      %2096 = vmatprep.subr.bf16.mxu0 0
      %2097 = vmatpush1.bf16.msra.mxu0 %v1535
      %2098 = vmatprep.subr.bf16.mxu0 0
      %2099 = vmatpush1.bf16.msra.mxu0 %v1536
      %2100 = vmatprep.subr.bf16.mxu0 0
      %2101 = vmatpush1.bf16.msra.mxu0 %v1537
      %2102 = vmatprep.subr.bf16.mxu0 0
      %2103 = vmatpush1.bf16.msra.mxu0 %v1538
      %2104 = vmatprep.subr.bf16.mxu0 0
      %2105 = vmatpush1.bf16.msra.mxu0 %v1539
      %2106 = vmatprep.mubr.bf16.mxu0 %v801
      %2107 = vmatmul.mubr.bf16.gmra.mrb[0].mxu0 %v800
      %v2108 = vpop.f32.mrb[0].mxu0
      %v2109 = vadd.f32 %v2044, %v2108
      %v2110 = vpop.f32.mrb[0].mxu0
      %v2111 = vpop.f32.mrb[0].mxu0
      %v2112 = vadd.f32 %v2047, %v2111
      %v2113 = vpop.f32.mrb[0].mxu0
      %2114 = vmatprep.mubr.bf16.mxu0 %v817
      %2115 = vmatmul.mubr.bf16.gmra.mrb[0].mxu0 %v816
      %v2116 = vpop.f32.mrb[0].mxu0
      %v2117 = vadd.f32 %v2052, %v2116
      %v2118 = vpop.f32.mrb[0].mxu0
      %v2119 = vpop.f32.mrb[0].mxu0
      %v2120 = vadd.f32 %v2055, %v2119
      %v2121 = vpop.f32.mrb[0].mxu0
      %2122 = vmatprep.mubr.bf16.mxu0 %v833
      %2123 = vmatmul.mubr.bf16.gmra.mrb[0].mxu0 %v832
      %v2124 = vpop.f32.mrb[0].mxu0
      %v2125 = vadd.f32 %v2060, %v2124
      %v2126 = vpop.f32.mrb[0].mxu0
      %v2127 = vpop.f32.mrb[0].mxu0
      %v2128 = vadd.f32 %v2063, %v2127
      %v2129 = vpop.f32.mrb[0].mxu0
      %2130 = vmatprep.mubr.bf16.mxu0 %v849
      %2131 = vmatmul.mubr.bf16.gmra.mrb[0].mxu0 %v848
      %v2132 = vpop.f32.mrb[0].mxu0
      %v2133 = vadd.f32 %v2068, %v2132
      %v2134 = vpop.f32.mrb[0].mxu0
      %v2135 = vpop.f32.mrb[0].mxu0
      %v2136 = vadd.f32 %v2071, %v2135
      %v2137 = vpop.f32.mrb[0].mxu0
      %2138 = vdwg.mxu0
      %2139 = vmatprep.subr.bf16.mxu0 0
      %2140 = vmatpush1.bf16.msra.mxu0 %v1540
      %2141 = vmatprep.subr.bf16.mxu0 0
      %2142 = vmatpush1.bf16.msra.mxu0 %v1541
      %2143 = vmatprep.subr.bf16.mxu0 0
      %2144 = vmatpush1.bf16.msra.mxu0 %v1542
      %2145 = vmatprep.subr.bf16.mxu0 0
      %2146 = vmatpush1.bf16.msra.mxu0 %v1543
      %2147 = vmatprep.subr.bf16.mxu0 0
      %2148 = vmatpush1.bf16.msra.mxu0 %v1544
      %2149 = vmatprep.subr.bf16.mxu0 0
      %2150 = vmatpush1.bf16.msra.mxu0 %v1545
      %2151 = vmatprep.subr.bf16.mxu0 0
      %2152 = vmatpush1.bf16.msra.mxu0 %v1546
      %2153 = vmatprep.subr.bf16.mxu0 0
      %2154 = vmatpush1.bf16.msra.mxu0 %v1547
      %2155 = vmatprep.subr.bf16.mxu0 0
      %2156 = vmatpush1.bf16.msra.mxu0 %v1548
      %2157 = vmatprep.subr.bf16.mxu0 0
      %2158 = vmatpush1.bf16.msra.mxu0 %v1549
      %2159 = vmatprep.subr.bf16.mxu0 0
      %2160 = vmatpush1.bf16.msra.mxu0 %v1550
      %2161 = vmatprep.subr.bf16.mxu0 0
      %2162 = vmatpush1.bf16.msra.mxu0 %v1551
      %2163 = vmatprep.subr.bf16.mxu0 0
      %2164 = vmatpush1.bf16.msra.mxu0 %v1552
      %2165 = vmatprep.subr.bf16.mxu0 0
      %2166 = vmatpush1.bf16.msra.mxu0 %v1553
      %2167 = vmatprep.subr.bf16.mxu0 0
      %2168 = vmatpush1.bf16.msra.mxu0 %v1554
      %2169 = vmatprep.subr.bf16.mxu0 0
      %2170 = vmatpush1.bf16.msra.mxu0 %v1555
      %2171 = vmatprep.mubr.bf16.mxu0 %v803
      %2172 = vmatmul.mubr.bf16.gmra.mrb[0].mxu0 %v802
      %v2173 = vpop.f32.mrb[0].mxu0
      %v2174 = vadd.f32 %v2109, %v2173
      %v2175 = vpop.f32.mrb[0].mxu0
      %v2176 = vpop.f32.mrb[0].mxu0
      %v2177 = vadd.f32 %v2112, %v2176
      %v2178 = vpop.f32.mrb[0].mxu0
      %2179 = vmatprep.mubr.bf16.mxu0 %v819
      %2180 = vmatmul.mubr.bf16.gmra.mrb[0].mxu0 %v818
      %v2181 = vpop.f32.mrb[0].mxu0
      %v2182 = vadd.f32 %v2117, %v2181
      %v2183 = vpop.f32.mrb[0].mxu0
      %v2184 = vpop.f32.mrb[0].mxu0
      %v2185 = vadd.f32 %v2120, %v2184
      %v2186 = vpop.f32.mrb[0].mxu0
      %2187 = vmatprep.mubr.bf16.mxu0 %v835
      %2188 = vmatmul.mubr.bf16.gmra.mrb[0].mxu0 %v834
      %v2189 = vpop.f32.mrb[0].mxu0
      %v2190 = vadd.f32 %v2125, %v2189
      %v2191 = vpop.f32.mrb[0].mxu0
      %v2192 = vpop.f32.mrb[0].mxu0
      %v2193 = vadd.f32 %v2128, %v2192
      %v2194 = vpop.f32.mrb[0].mxu0
      %2195 = vmatprep.mubr.bf16.mxu0 %v851
      %2196 = vmatmul.mubr.bf16.gmra.mrb[0].mxu0 %v850
      %v2197 = vpop.f32.mrb[0].mxu0
      %v2198 = vadd.f32 %v2133, %v2197
      %v2199 = vpop.f32.mrb[0].mxu0
      %v2200 = vpop.f32.mrb[0].mxu0
      %v2201 = vadd.f32 %v2136, %v2200
      %v2202 = vpop.f32.mrb[0].mxu0
      %2203 = vdwg.mxu0
      %v2204 = vadd.f32 %v2174, %v2177
      %v2205 = vadd.f32 %v2204, %v2182
      %v2206 = vadd.f32 %v2205, %v2185
      %v2207 = vadd.f32 %v2206, %v2190
      %v2208 = vadd.f32 %v2207, %v2193
      %v2209 = vadd.f32 %v2208, %v2198
      %v2210 = vadd.f32 %v2209, %v2201
      %v2211 = vrot.slane %v2210, 4
      %v2212 = vadd.f32 %v2210, %v2211
      %v2213 = vrot.slane %v2212, 2
      %v2214 = vadd.f32 %v2212, %v2213
      %v2215 = vrot.slane %v2214, 1
      %v2216 = vadd.f32 %v2214, %v2215
      %2217 = vst [vmem:[%s271] sm:$0x1] %v2216
      %v2218 = vmul.f32 %v2174, %v2174
      %v2219 = vmul.f32 %v2177, %v2177
      %v2220 = vmul.f32 %v2182, %v2182
      %v2221 = vmul.f32 %v2185, %v2185
      %v2222 = vmul.f32 %v2190, %v2190
      %v2223 = vmul.f32 %v2193, %v2193
      %v2224 = vmul.f32 %v2198, %v2198
      %v2225 = vmul.f32 %v2201, %v2201
      %v2226 = vadd.f32 %v2218, %v2219
      %v2227 = vadd.f32 %v2226, %v2220
      %v2228 = vadd.f32 %v2227, %v2221
      %v2229 = vadd.f32 %v2228, %v2222
      %v2230 = vadd.f32 %v2229, %v2223
      %v2231 = vadd.f32 %v2230, %v2224
      %v2232 = vadd.f32 %v2231, %v2225
      %v2233 = vrot.slane %v2232, 4
      %v2234 = vadd.f32 %v2232, %v2233
      %v2235 = vrot.slane %v2234, 2
      %v2236 = vadd.f32 %v2234, %v2235
      %v2237 = vrot.slane %v2236, 1
      %v2238 = vadd.f32 %v2236, %v2237
      %2239 = vst [vmem:[%s274] sm:$0x1] %v2238
      %v2240 = vld [vmem:[%s2] sm:$0x1]
      %v2242 = vlaneseq
      %v2243 = vshrl.u32 %v2242, 7
      %v2244 = vsub.s32 0, %v2243
      %v2245 = vrot.slane %v2240, %v2244
      %v2247 = vmul.f32 %v2174, %v2245
      %v2248 = vmul.f32 %v2177, %v2245
      %v2249 = vmul.f32 %v2182, %v2245
      %v2250 = vmul.f32 %v2185, %v2245
      %v2251 = vmul.f32 %v2190, %v2245
      %v2252 = vmul.f32 %v2193, %v2245
      %v2253 = vmul.f32 %v2198, %v2245
      %v2254 = vmul.f32 %v2201, %v2245
      %v2255 = vld [vmem:[%s3] sm:$0x1]
      %v2257 = vlaneseq
      %v2258 = vshrl.u32 %v2257, 7
      %v2259 = vsub.s32 0, %v2258
      %v2260 = vrot.slane %v2255, %v2259
      %v2262 = vadd.f32 %v2247, %v2260
      %v2263 = vadd.f32 %v2248, %v2260
      %v2264 = vadd.f32 %v2249, %v2260
      %v2265 = vadd.f32 %v2250, %v2260
      %v2266 = vadd.f32 %v2251, %v2260
      %v2267 = vadd.f32 %v2252, %v2260
      %v2268 = vadd.f32 %v2253, %v2260
      %v2269 = vadd.f32 %v2254, %v2260
      %2270 = vst [vmem:[%s267] sm:$0xff] %v2262
      %2271 = vst [vmem:[%s267 + $0x8] sm:$0xff] %v2263
      %2272 = vst [vmem:[%s267 + $0x10] sm:$0xff] %v2264
      %2273 = vst [vmem:[%s267 + $0x18] sm:$0xff] %v2265
      %2274 = vst [vmem:[%s267 + $0x20] sm:$0xff] %v2266
      %2275 = vst [vmem:[%s267 + $0x28] sm:$0xff] %v2267
      %2276 = vst [vmem:[%s267 + $0x30] sm:$0xff] %v2268
      %2277 = vst [vmem:[%s267 + $0x38] sm:$0xff] %v2269
      %s2278 = smul.u32 8, %s18
      %p2279 = scmp.lt.s32.totalorder %s2278, 15
      %s2280 = scalar_select %p2279, %s2278, 15
      %s2281 = smul.addr %s2280, 8
      %s2282 = scalar_lea.vmem %s4, %s2281
      %p2283 = scmp.lt.s32.totalorder %s18, 1
      %s2284 = scalar_select %p2283, %s18, 1
      %s2285 = scalar_lea.vmem %s5, %s2284
      %p2286 = scmp.lt.s32.totalorder %s18, 1
      %s2287 = scalar_select %p2286, %s18, 1
      %s2288 = scalar_lea.vmem %s6, %s2287
      // Predicated region
      $region37: #{vqvae_forward.29} parent=35 // pred_check
        %p2289 = pneg %p125
      $region38: #{vqvae_forward.29} parent=35 // pred_check_branch
        %2291 = sbr.rel (%p2289) target = $region40
      $region39: #{vqvae_forward.29} parent=35 // pred_region
        %s2292 = smul.u32 8, %s18
      $region40: #{vqvae_forward.29} parent=35 // pred_fallthru
        _
      // Predicated region
      $region41: #{vqvae_forward.29} parent=35 // pred_check
        %p2293 = pneg %p151
      $region42: #{vqvae_forward.29} parent=35 // pred_check_branch
        %2295 = sbr.rel (%p2293) target = $region44
      $region43: #{vqvae_forward.29} parent=35 // pred_region
        _
      $region44: #{vqvae_forward.29} parent=35 // pred_fallthru
        _
      // Predicated region
      $region45: #{vqvae_forward.29} parent=35 // pred_check
        %p2296 = pneg %p177
      $region46: #{vqvae_forward.29} parent=35 // pred_check_branch
        %2298 = sbr.rel (%p2296) target = $region48
      $region47: #{vqvae_forward.29} parent=35 // pred_region
        _
      $region48: #{vqvae_forward.29} parent=35 // pred_fallthru
        _
    $region36: #{vqvae_forward.29} parent=5 // pred_fallthru
      _
    %p2299 = scmp.le.s32.totalorder 2, %s13
    // Predicated region
    $region49: #{vqvae_forward.29} parent=5 // pred_check
      %p2300 = pneg %p2299
    $region50: #{vqvae_forward.29} parent=5 // pred_check_branch
      %2302 = sbr.rel (%p2300) target = $region52
    $region51: #{vqvae_forward.29} parent=5 // pred_region
      %s2303 = ssub.s32 %s13, 2
      // Predicated region
      $region53: #{vqvae_forward.29} parent=51 // pred_check
        %p2304 = pneg %p131
      $region54: #{vqvae_forward.29} parent=51 // pred_check_branch
        %2306 = sbr.rel (%p2304) target = $region56
      $region55: #{vqvae_forward.29} parent=51 // pred_region
        %s2307 = smul.u32 8, %s19
        %p2308 = scmp.lt.s32.totalorder %s2307, 15
        %s2309 = scalar_select %p2308, %s2307, 15
        %s2310 = smul.addr %s2309, 8
        %s2311 = scalar_lea.vmem %s4, %s2310
      $region56: #{vqvae_forward.29} parent=51 // pred_fallthru
        _
      // Predicated region
      $region57: #{vqvae_forward.29} parent=51 // pred_check
        %p2312 = pneg %p157
      $region58: #{vqvae_forward.29} parent=51 // pred_check_branch
        %2314 = sbr.rel (%p2312) target = $region60
      $region59: #{vqvae_forward.29} parent=51 // pred_region
        %p2315 = scmp.lt.s32.totalorder %s19, 1
        %s2316 = scalar_select %p2315, %s19, 1
        %s2317 = scalar_lea.vmem %s5, %s2316
      $region60: #{vqvae_forward.29} parent=51 // pred_fallthru
        _
      // Predicated region
      $region61: #{vqvae_forward.29} parent=51 // pred_check
        %p2318 = pneg %p183
      $region62: #{vqvae_forward.29} parent=51 // pred_check_branch
        %2320 = sbr.rel (%p2318) target = $region64
      $region63: #{vqvae_forward.29} parent=51 // pred_region
        %p2321 = scmp.lt.s32.totalorder %s19, 1
        %s2322 = scalar_select %p2321, %s19, 1
        %s2323 = scalar_lea.vmem %s6, %s2322
      $region64: #{vqvae_forward.29} parent=51 // pred_fallthru
        _
    $region52: #{vqvae_forward.29} parent=5 // pred_fallthru
      _
  $region6: #{vqvae_forward.29} parent=0 // loop_footer
    %s17 = sadd.s32 1, %s13
  $region7: #{vqvae_forward.29} parent=0 // loop_footer_branch
    %12 = sbr.rel target = $region3
  $region8: #{vqvae_forward.29} parent=0 // loop_exit
    _

// kernel: vqvae_forward.31
$region0: #{vqvae_forward.31}
  #allocation0 [shape = 'u32[]', space=smem, size = 0x4, offset = 0x4, fixed_abs, tag = 'smem constant byte address 0x4 - core index']
  #allocation1 [shape = 'u32[144,128]{1,0:T(1,128)}', space=vmem, size = 0x12000, scoped, tag = 'internal scratch']
  %s0 = inlined_call_operand.vmem [shape: bf16[512,2048], index: 0, kind: input, shape index: {}]
  %s1 = inlined_call_operand.vmem [shape: bf16[2048,3], index: 1, kind: input, shape index: {}]
  %s2 = inlined_call_operand.vmem [shape: f32[1,3], index: 2, kind: input, shape index: {}]
  %s3 = inlined_call_operand.vmem [shape: f32[1,3], index: 3, kind: input, shape index: {}]
  %s4 = inlined_call_operand.vmem [shape: f32[512,3], index: 4, kind: output, shape index: {}]
  %s5 = sld [smem:[#allocation0]]
  $region49: #{vqvae_forward.31} parent=0
    _
  %s7 = ssub.s32 1, %s5
  %s8 = scalar_select 0, %s7, %s5
  loop: start=0, step=1, limit=4
  $region2: #{vqvae_forward.31} parent=0 // loop_pre_header
    _
  $region3: #{vqvae_forward.31} parent=0 // loop_header
    %s10 = sphi 0, %s14
    %p11 = scmp.ge.s32.totalorder %s10, 4
    %s20 = sphi 0, %s22
    %s23 = sphi 0, %s20
    %s24 = sphi 0, %s23
    %s40 = sphi 0, %s24
    %s44 = sphi 0, %s44
    %s46 = sphi 0, %s44
    %s47 = sphi 0, %s46
    %s61 = sphi 0, %s47
    %s65 = sphi 0, %s65
    %s67 = sphi 0, %s65
    %s68 = sphi 0, %s67
    %s82 = sphi 0, %s68
    %s86 = sphi 0, %s86
    %s88 = sphi 0, %s86
    %s89 = sphi 0, %s88
    %s103 = sphi 0, %s89
    %s109 = sphi 0, %s111
    %s112 = sphi 0, %s109
    %s113 = sphi 0, %s112
    %s129 = sphi 0, %s113
  $region4: #{vqvae_forward.31} parent=0 // loop_header_branch
    %13 = sbr.rel (%p11) target = $region8
  $region5: #{vqvae_forward.31} parent=0 // loop_body
    %s15 = ssub.s32 %s10, 1
    %s16 = ssub.s32 %s10, 2
    %s17 = sadd.s32 %s10, 1
    %s18 = ssub.s32 %s10, %s17
    %p19 = scmp.eq.s32.totalorder %s18, 0
    %s21 = sadd.s32 %s20, 1
    %s22 = scalar_select %p19, %s20, %s21
    %p25 = pneg %p19
    %p26 = scmp.eq.s32.totalorder %s10, 1
    %p27 = por %p25, %p26
    %p28 = scmp.ne.s32.totalorder %s20, %s23
    %p29 = scmp.eq.s32.totalorder %s10, 0
    %p30 = por %p28, %p29
    %p31 = scmp.ne.s32.totalorder %s20, %s23
    %p32 = scmp.eq.s32.totalorder %s15, 1
    %p33 = por %p31, %p32
    %p34 = scmp.ne.s32.totalorder %s23, %s24
    %p35 = scmp.eq.s32.totalorder %s15, 0
    %p36 = por %p34, %p35
    %p37 = scmp.ne.s32.totalorder %s23, %s24
    %p38 = scmp.eq.s32.totalorder %s16, 1
    %p39 = por %p37, %p38
    %p41 = scmp.ne.s32.totalorder %s24, %s40
    %p42 = scmp.eq.s32.totalorder %s16, 0
    %p43 = por %p41, %p42
    %s45 = sadd.s32 %s44, 1
    %p48 = scmp.eq.s32.totalorder %s10, 1
    %p49 = scmp.ne.s32.totalorder %s44, %s46
    %p50 = scmp.eq.s32.totalorder %s10, 0
    %p51 = por %p49, %p50
    %p52 = scmp.ne.s32.totalorder %s44, %s46
    %p53 = scmp.eq.s32.totalorder %s15, 1
    %p54 = por %p52, %p53
    %p55 = scmp.ne.s32.totalorder %s46, %s47
    %p56 = scmp.eq.s32.totalorder %s15, 0
    %p57 = por %p55, %p56
    %p58 = scmp.ne.s32.totalorder %s46, %s47
    %p59 = scmp.eq.s32.totalorder %s16, 1
    %p60 = por %p58, %p59
    %p62 = scmp.ne.s32.totalorder %s47, %s61
    %p63 = scmp.eq.s32.totalorder %s16, 0
    %p64 = por %p62, %p63
    %s66 = sadd.s32 %s65, 1
    %p69 = scmp.eq.s32.totalorder %s10, 1
    %p70 = scmp.ne.s32.totalorder %s65, %s67
    %p71 = scmp.eq.s32.totalorder %s10, 0
    %p72 = por %p70, %p71
    %p73 = scmp.ne.s32.totalorder %s65, %s67
    %p74 = scmp.eq.s32.totalorder %s15, 1
    %p75 = por %p73, %p74
    %p76 = scmp.ne.s32.totalorder %s67, %s68
    %p77 = scmp.eq.s32.totalorder %s15, 0
    %p78 = por %p76, %p77
    %p79 = scmp.ne.s32.totalorder %s67, %s68
    %p80 = scmp.eq.s32.totalorder %s16, 1
    %p81 = por %p79, %p80
    %p83 = scmp.ne.s32.totalorder %s68, %s82
    %p84 = scmp.eq.s32.totalorder %s16, 0
    %p85 = por %p83, %p84
    %s87 = sadd.s32 %s86, 1
    %p90 = scmp.eq.s32.totalorder %s10, 1
    %p91 = scmp.ne.s32.totalorder %s86, %s88
    %p92 = scmp.eq.s32.totalorder %s10, 0
    %p93 = por %p91, %p92
    %p94 = scmp.ne.s32.totalorder %s86, %s88
    %p95 = scmp.eq.s32.totalorder %s15, 1
    %p96 = por %p94, %p95
    %p97 = scmp.ne.s32.totalorder %s88, %s89
    %p98 = scmp.eq.s32.totalorder %s15, 0
    %p99 = por %p97, %p98
    %p100 = scmp.ne.s32.totalorder %s88, %s89
    %p101 = scmp.eq.s32.totalorder %s16, 1
    %p102 = por %p100, %p101
    %p104 = scmp.ne.s32.totalorder %s89, %s103
    %p105 = scmp.eq.s32.totalorder %s16, 0
    %p106 = por %p104, %p105
    %s107 = ssub.s32 %s10, %s17
    %p108 = scmp.eq.s32.totalorder %s107, 0
    %s110 = sadd.s32 %s109, 1
    %s111 = scalar_select %p108, %s109, %s110
    %p114 = pneg %p108
    %p115 = scmp.eq.s32.totalorder %s10, 1
    %p116 = por %p114, %p115
    %p117 = scmp.ne.s32.totalorder %s109, %s112
    %p118 = scmp.eq.s32.totalorder %s10, 0
    %p119 = por %p117, %p118
    %p120 = scmp.ne.s32.totalorder %s109, %s112
    %p121 = scmp.eq.s32.totalorder %s15, 1
    %p122 = por %p120, %p121
    %p123 = scmp.ne.s32.totalorder %s112, %s113
    %p124 = scmp.eq.s32.totalorder %s15, 0
    %p125 = por %p123, %p124
    %p126 = scmp.ne.s32.totalorder %s112, %s113
    %p127 = scmp.eq.s32.totalorder %s16, 1
    %p128 = por %p126, %p127
    %p130 = scmp.ne.s32.totalorder %s113, %s129
    %p131 = scmp.eq.s32.totalorder %s16, 0
    %p132 = por %p130, %p131
    %p133 = scmp.le.s32.totalorder 1, %s10
    %p134 = scmp.lt.s32.totalorder %s10, 3
    %p135 = pnand %p133, %p134
    %p136 = pneg %p135
    // Predicated region
    $region9: #{vqvae_forward.31} parent=5 // pred_check
      _
    $region10: #{vqvae_forward.31} parent=5 // pred_check_branch
      %138 = sbr.rel (%p135) target = $region12
    $region11: #{vqvae_forward.31} parent=5 // pred_region
      %s139 = ssub.s32 %s10, 1
      // Predicated region
      $region13: #{vqvae_forward.31} parent=11 // pred_check
        %p140 = pneg %p57
      $region14: #{vqvae_forward.31} parent=11 // pred_check_branch
        %142 = sbr.rel (%p140) target = $region16
      $region15: #{vqvae_forward.31} parent=11 // pred_region
        _
      $region16: #{vqvae_forward.31} parent=11 // pred_fallthru
        _
      // Predicated region
      $region17: #{vqvae_forward.31} parent=11 // pred_check
        %p143 = pneg %p78
      $region18: #{vqvae_forward.31} parent=11 // pred_check_branch
        %145 = sbr.rel (%p143) target = $region20
      $region19: #{vqvae_forward.31} parent=11 // pred_region
        _
      $region20: #{vqvae_forward.31} parent=11 // pred_fallthru
        _
      // Predicated region
      $region21: #{vqvae_forward.31} parent=11 // pred_check
        %p146 = pneg %p99
      $region22: #{vqvae_forward.31} parent=11 // pred_check_branch
        %148 = sbr.rel (%p146) target = $region24
      $region23: #{vqvae_forward.31} parent=11 // pred_region
        _
      $region24: #{vqvae_forward.31} parent=11 // pred_fallthru
        _
    $region12: #{vqvae_forward.31} parent=5 // pred_fallthru
      _
    %p149 = scmp.lt.s32.totalorder %s10, 2
    // Predicated region
    $region25: #{vqvae_forward.31} parent=5 // pred_check
      %p150 = pneg %p149
    $region26: #{vqvae_forward.31} parent=5 // pred_check_branch
      %152 = sbr.rel (%p150) target = $region28
    $region27: #{vqvae_forward.31} parent=5 // pred_region
      // Predicated region
      $region29: #{vqvae_forward.31} parent=27 // pred_check
        %p153 = pneg %p30
      $region30: #{vqvae_forward.31} parent=27 // pred_check_branch
        %155 = sbr.rel (%p153) target = $region32
      $region31: #{vqvae_forward.31} parent=27 // pred_region
        %s156 = smul.u32 32, %s10
        %p157 = scmp.lt.s32.totalorder %s156, 63
        %s158 = scalar_select %p157, %s156, 63
        %s159 = smul.addr %s158, 16
        %s160 = smul.addr %s159, 4
        %s161 = scalar_lea.vmem %s0, %s160
        %s162 = smul.u32 32, %s10
      $region32: #{vqvae_forward.31} parent=27 // pred_fallthru
        _
    $region28: #{vqvae_forward.31} parent=5 // pred_fallthru
      _
    %p163 = scmp.le.s32.totalorder 1, %s10
    %p164 = scmp.lt.s32.totalorder %s10, 3
    %p165 = pnand %p163, %p164
    %p166 = pneg %p165
    // Predicated region
    $region33: #{vqvae_forward.31} parent=5 // pred_check
      _
    $region34: #{vqvae_forward.31} parent=5 // pred_check_branch
      %168 = sbr.rel (%p165) target = $region36
    $region35: #{vqvae_forward.31} parent=5 // pred_region
      %s169 = ssub.s32 %s10, 1
      %s170 = smul.u32 32, %s15
      %p171 = scmp.lt.s32.totalorder %s170, 63
      %s172 = scalar_select %p171, %s170, 63
      %s173 = smul.addr %s172, 16
      %s174 = smul.addr %s173, 4
      %s175 = scalar_lea.vmem %s0, %s174
      %p176 = pneg %p36
      %p177 = pneg %p33
      %p178 = pneg %p57
      %p179 = pneg %p54
      %p180 = pneg %p78
      %p181 = pneg %p75
      %p182 = pneg %p99
      %p183 = pneg %p96
      %p184 = pneg %p125
      %p185 = pneg %p122
      %s186 = smul.u32 32, %s15
      %p187 = scmp.lt.s32.totalorder %s186, 63
      %s188 = scalar_select %p187, %s186, 63
      %s189 = smul.addr %s188, 8
      %s190 = scalar_lea.vmem %s4, %s189
      %s191 = smul.u32 32, %s15
      %p192 = scmp.lt.s32.totalorder %s191, 63
      %s193 = scalar_select %p192, %s191, 63
      %s194 = smul.addr %s193, 16
      %s195 = smul.addr %s194, 4
      %s196 = scalar_lea.vmem %s0, %s195
      %s197 = smul.u32 32, %s15
      %s198 = smul.u32 32, %s15
      %p199 = scmp.lt.s32.totalorder %s198, 63
      %s200 = scalar_select %p199, %s198, 63
      %s201 = smul.addr %s200, 8
      %s202 = scalar_lea.vmem %s4, %s201
      %s203 = smul.u32 32, %s15
      %v205 = vld [vmem:[%s196] sm:$0xff]
      %v206 = vld [vmem:[%s196 + $0x8] sm:$0xff]
      %v207 = vld [vmem:[%s196 + $0x10] sm:$0xff]
      %v208 = vld [vmem:[%s196 + $0x18] sm:$0xff]
      %v209 = vld [vmem:[%s196 + $0x20] sm:$0xff]
      %v210 = vld [vmem:[%s196 + $0x28] sm:$0xff]
      %v211 = vld [vmem:[%s196 + $0x30] sm:$0xff]
      %v212 = vld [vmem:[%s196 + $0x38] sm:$0xff]
      %v213 = vld [vmem:[%s196 + $0x40] sm:$0xff]
      %v214 = vld [vmem:[%s196 + $0x48] sm:$0xff]
      %v215 = vld [vmem:[%s196 + $0x50] sm:$0xff]
      %v216 = vld [vmem:[%s196 + $0x58] sm:$0xff]
      %v217 = vld [vmem:[%s196 + $0x60] sm:$0xff]
      %v218 = vld [vmem:[%s196 + $0x68] sm:$0xff]
      %v219 = vld [vmem:[%s196 + $0x70] sm:$0xff]
      %v220 = vld [vmem:[%s196 + $0x78] sm:$0xff]
      %v221 = vld [vmem:[%s196 + $0x80] sm:$0xff]
      %v222 = vld [vmem:[%s196 + $0x88] sm:$0xff]
      %v223 = vld [vmem:[%s196 + $0x90] sm:$0xff]
      %v224 = vld [vmem:[%s196 + $0x98] sm:$0xff]
      %v225 = vld [vmem:[%s196 + $0xa0] sm:$0xff]
      %v226 = vld [vmem:[%s196 + $0xa8] sm:$0xff]
      %v227 = vld [vmem:[%s196 + $0xb0] sm:$0xff]
      %v228 = vld [vmem:[%s196 + $0xb8] sm:$0xff]
      %v229 = vld [vmem:[%s196 + $0xc0] sm:$0xff]
      %v230 = vld [vmem:[%s196 + $0xc8] sm:$0xff]
      %v231 = vld [vmem:[%s196 + $0xd0] sm:$0xff]
      %v232 = vld [vmem:[%s196 + $0xd8] sm:$0xff]
      %v233 = vld [vmem:[%s196 + $0xe0] sm:$0xff]
      %v234 = vld [vmem:[%s196 + $0xe8] sm:$0xff]
      %v235 = vld [vmem:[%s196 + $0xf0] sm:$0xff]
      %v236 = vld [vmem:[%s196 + $0xf8] sm:$0xff]
      %v237 = vld [vmem:[%s196 + $0x100] sm:$0xff]
      %v238 = vld [vmem:[%s196 + $0x108] sm:$0xff]
      %v239 = vld [vmem:[%s196 + $0x110] sm:$0xff]
      %v240 = vld [vmem:[%s196 + $0x118] sm:$0xff]
      %v241 = vld [vmem:[%s196 + $0x120] sm:$0xff]
      %v242 = vld [vmem:[%s196 + $0x128] sm:$0xff]
      %v243 = vld [vmem:[%s196 + $0x130] sm:$0xff]
      %v244 = vld [vmem:[%s196 + $0x138] sm:$0xff]
      %v245 = vld [vmem:[%s196 + $0x140] sm:$0xff]
      %v246 = vld [vmem:[%s196 + $0x148] sm:$0xff]
      %v247 = vld [vmem:[%s196 + $0x150] sm:$0xff]
      %v248 = vld [vmem:[%s196 + $0x158] sm:$0xff]
      %v249 = vld [vmem:[%s196 + $0x160] sm:$0xff]
      %v250 = vld [vmem:[%s196 + $0x168] sm:$0xff]
      %v251 = vld [vmem:[%s196 + $0x170] sm:$0xff]
      %v252 = vld [vmem:[%s196 + $0x178] sm:$0xff]
      %v253 = vld [vmem:[%s196 + $0x180] sm:$0xff]
      %v254 = vld [vmem:[%s196 + $0x188] sm:$0xff]
      %v255 = vld [vmem:[%s196 + $0x190] sm:$0xff]
      %v256 = vld [vmem:[%s196 + $0x198] sm:$0xff]
      %v257 = vld [vmem:[%s196 + $0x1a0] sm:$0xff]
      %v258 = vld [vmem:[%s196 + $0x1a8] sm:$0xff]
      %v259 = vld [vmem:[%s196 + $0x1b0] sm:$0xff]
      %v260 = vld [vmem:[%s196 + $0x1b8] sm:$0xff]
      %v261 = vld [vmem:[%s196 + $0x1c0] sm:$0xff]
      %v262 = vld [vmem:[%s196 + $0x1c8] sm:$0xff]
      %v263 = vld [vmem:[%s196 + $0x1d0] sm:$0xff]
      %v264 = vld [vmem:[%s196 + $0x1d8] sm:$0xff]
      %v265 = vld [vmem:[%s196 + $0x1e0] sm:$0xff]
      %v266 = vld [vmem:[%s196 + $0x1e8] sm:$0xff]
      %v267 = vld [vmem:[%s196 + $0x1f0] sm:$0xff]
      %v268 = vld [vmem:[%s196 + $0x1f8] sm:$0xff]
      %v269 = vld [vmem:[%s196 + $0x200] sm:$0xff]
      %v270 = vld [vmem:[%s196 + $0x208] sm:$0xff]
      %v271 = vld [vmem:[%s196 + $0x210] sm:$0xff]
      %v272 = vld [vmem:[%s196 + $0x218] sm:$0xff]
      %v273 = vld [vmem:[%s196 + $0x220] sm:$0xff]
      %v274 = vld [vmem:[%s196 + $0x228] sm:$0xff]
      %v275 = vld [vmem:[%s196 + $0x230] sm:$0xff]
      %v276 = vld [vmem:[%s196 + $0x238] sm:$0xff]
      %v277 = vld [vmem:[%s196 + $0x240] sm:$0xff]
      %v278 = vld [vmem:[%s196 + $0x248] sm:$0xff]
      %v279 = vld [vmem:[%s196 + $0x250] sm:$0xff]
      %v280 = vld [vmem:[%s196 + $0x258] sm:$0xff]
      %v281 = vld [vmem:[%s196 + $0x260] sm:$0xff]
      %v282 = vld [vmem:[%s196 + $0x268] sm:$0xff]
      %v283 = vld [vmem:[%s196 + $0x270] sm:$0xff]
      %v284 = vld [vmem:[%s196 + $0x278] sm:$0xff]
      %v285 = vld [vmem:[%s196 + $0x280] sm:$0xff]
      %v286 = vld [vmem:[%s196 + $0x288] sm:$0xff]
      %v287 = vld [vmem:[%s196 + $0x290] sm:$0xff]
      %v288 = vld [vmem:[%s196 + $0x298] sm:$0xff]
      %v289 = vld [vmem:[%s196 + $0x2a0] sm:$0xff]
      %v290 = vld [vmem:[%s196 + $0x2a8] sm:$0xff]
      %v291 = vld [vmem:[%s196 + $0x2b0] sm:$0xff]
      %v292 = vld [vmem:[%s196 + $0x2b8] sm:$0xff]
      %v293 = vld [vmem:[%s196 + $0x2c0] sm:$0xff]
      %v294 = vld [vmem:[%s196 + $0x2c8] sm:$0xff]
      %v295 = vld [vmem:[%s196 + $0x2d0] sm:$0xff]
      %v296 = vld [vmem:[%s196 + $0x2d8] sm:$0xff]
      %v297 = vld [vmem:[%s196 + $0x2e0] sm:$0xff]
      %v298 = vld [vmem:[%s196 + $0x2e8] sm:$0xff]
      %v299 = vld [vmem:[%s196 + $0x2f0] sm:$0xff]
      %v300 = vld [vmem:[%s196 + $0x2f8] sm:$0xff]
      %v301 = vld [vmem:[%s196 + $0x300] sm:$0xff]
      %v302 = vld [vmem:[%s196 + $0x308] sm:$0xff]
      %v303 = vld [vmem:[%s196 + $0x310] sm:$0xff]
      %v304 = vld [vmem:[%s196 + $0x318] sm:$0xff]
      %v305 = vld [vmem:[%s196 + $0x320] sm:$0xff]
      %v306 = vld [vmem:[%s196 + $0x328] sm:$0xff]
      %v307 = vld [vmem:[%s196 + $0x330] sm:$0xff]
      %v308 = vld [vmem:[%s196 + $0x338] sm:$0xff]
      %v309 = vld [vmem:[%s196 + $0x340] sm:$0xff]
      %v310 = vld [vmem:[%s196 + $0x348] sm:$0xff]
      %v311 = vld [vmem:[%s196 + $0x350] sm:$0xff]
      %v312 = vld [vmem:[%s196 + $0x358] sm:$0xff]
      %v313 = vld [vmem:[%s196 + $0x360] sm:$0xff]
      %v314 = vld [vmem:[%s196 + $0x368] sm:$0xff]
      %v315 = vld [vmem:[%s196 + $0x370] sm:$0xff]
      %v316 = vld [vmem:[%s196 + $0x378] sm:$0xff]
      %v317 = vld [vmem:[%s196 + $0x380] sm:$0xff]
      %v318 = vld [vmem:[%s196 + $0x388] sm:$0xff]
      %v319 = vld [vmem:[%s196 + $0x390] sm:$0xff]
      %v320 = vld [vmem:[%s196 + $0x398] sm:$0xff]
      %v321 = vld [vmem:[%s196 + $0x3a0] sm:$0xff]
      %v322 = vld [vmem:[%s196 + $0x3a8] sm:$0xff]
      %v323 = vld [vmem:[%s196 + $0x3b0] sm:$0xff]
      %v324 = vld [vmem:[%s196 + $0x3b8] sm:$0xff]
      %v325 = vld [vmem:[%s196 + $0x3c0] sm:$0xff]
      %v326 = vld [vmem:[%s196 + $0x3c8] sm:$0xff]
      %v327 = vld [vmem:[%s196 + $0x3d0] sm:$0xff]
      %v328 = vld [vmem:[%s196 + $0x3d8] sm:$0xff]
      %v329 = vld [vmem:[%s196 + $0x3e0] sm:$0xff]
      %v330 = vld [vmem:[%s196 + $0x3e8] sm:$0xff]
      %v331 = vld [vmem:[%s196 + $0x3f0] sm:$0xff]
      %v332 = vld [vmem:[%s196 + $0x3f8] sm:$0xff]
      %v333 = vld [vmem:[%s196 + $0x400] sm:$0xff]
      %v334 = vld [vmem:[%s196 + $0x408] sm:$0xff]
      %v335 = vld [vmem:[%s196 + $0x410] sm:$0xff]
      %v336 = vld [vmem:[%s196 + $0x418] sm:$0xff]
      %v337 = vld [vmem:[%s196 + $0x420] sm:$0xff]
      %v338 = vld [vmem:[%s196 + $0x428] sm:$0xff]
      %v339 = vld [vmem:[%s196 + $0x430] sm:$0xff]
      %v340 = vld [vmem:[%s196 + $0x438] sm:$0xff]
      %v341 = vld [vmem:[%s196 + $0x440] sm:$0xff]
      %v342 = vld [vmem:[%s196 + $0x448] sm:$0xff]
      %v343 = vld [vmem:[%s196 + $0x450] sm:$0xff]
      %v344 = vld [vmem:[%s196 + $0x458] sm:$0xff]
      %v345 = vld [vmem:[%s196 + $0x460] sm:$0xff]
      %v346 = vld [vmem:[%s196 + $0x468] sm:$0xff]
      %v347 = vld [vmem:[%s196 + $0x470] sm:$0xff]
      %v348 = vld [vmem:[%s196 + $0x478] sm:$0xff]
      %v349 = vld [vmem:[%s196 + $0x480] sm:$0xff]
      %v350 = vld [vmem:[%s196 + $0x488] sm:$0xff]
      %v351 = vld [vmem:[%s196 + $0x490] sm:$0xff]
      %v352 = vld [vmem:[%s196 + $0x498] sm:$0xff]
      %v353 = vld [vmem:[%s196 + $0x4a0] sm:$0xff]
      %v354 = vld [vmem:[%s196 + $0x4a8] sm:$0xff]
      %v355 = vld [vmem:[%s196 + $0x4b0] sm:$0xff]
      %v356 = vld [vmem:[%s196 + $0x4b8] sm:$0xff]
      %v357 = vld [vmem:[%s196 + $0x4c0] sm:$0xff]
      %v358 = vld [vmem:[%s196 + $0x4c8] sm:$0xff]
      %v359 = vld [vmem:[%s196 + $0x4d0] sm:$0xff]
      %v360 = vld [vmem:[%s196 + $0x4d8] sm:$0xff]
      %v361 = vld [vmem:[%s196 + $0x4e0] sm:$0xff]
      %v362 = vld [vmem:[%s196 + $0x4e8] sm:$0xff]
      %v363 = vld [vmem:[%s196 + $0x4f0] sm:$0xff]
      %v364 = vld [vmem:[%s196 + $0x4f8] sm:$0xff]
      %v365 = vld [vmem:[%s196 + $0x500] sm:$0xff]
      %v366 = vld [vmem:[%s196 + $0x508] sm:$0xff]
      %v367 = vld [vmem:[%s196 + $0x510] sm:$0xff]
      %v368 = vld [vmem:[%s196 + $0x518] sm:$0xff]
      %v369 = vld [vmem:[%s196 + $0x520] sm:$0xff]
      %v370 = vld [vmem:[%s196 + $0x528] sm:$0xff]
      %v371 = vld [vmem:[%s196 + $0x530] sm:$0xff]
      %v372 = vld [vmem:[%s196 + $0x538] sm:$0xff]
      %v373 = vld [vmem:[%s196 + $0x540] sm:$0xff]
      %v374 = vld [vmem:[%s196 + $0x548] sm:$0xff]
      %v375 = vld [vmem:[%s196 + $0x550] sm:$0xff]
      %v376 = vld [vmem:[%s196 + $0x558] sm:$0xff]
      %v377 = vld [vmem:[%s196 + $0x560] sm:$0xff]
      %v378 = vld [vmem:[%s196 + $0x568] sm:$0xff]
      %v379 = vld [vmem:[%s196 + $0x570] sm:$0xff]
      %v380 = vld [vmem:[%s196 + $0x578] sm:$0xff]
      %v381 = vld [vmem:[%s196 + $0x580] sm:$0xff]
      %v382 = vld [vmem:[%s196 + $0x588] sm:$0xff]
      %v383 = vld [vmem:[%s196 + $0x590] sm:$0xff]
      %v384 = vld [vmem:[%s196 + $0x598] sm:$0xff]
      %v385 = vld [vmem:[%s196 + $0x5a0] sm:$0xff]
      %v386 = vld [vmem:[%s196 + $0x5a8] sm:$0xff]
      %v387 = vld [vmem:[%s196 + $0x5b0] sm:$0xff]
      %v388 = vld [vmem:[%s196 + $0x5b8] sm:$0xff]
      %v389 = vld [vmem:[%s196 + $0x5c0] sm:$0xff]
      %v390 = vld [vmem:[%s196 + $0x5c8] sm:$0xff]
      %v391 = vld [vmem:[%s196 + $0x5d0] sm:$0xff]
      %v392 = vld [vmem:[%s196 + $0x5d8] sm:$0xff]
      %v393 = vld [vmem:[%s196 + $0x5e0] sm:$0xff]
      %v394 = vld [vmem:[%s196 + $0x5e8] sm:$0xff]
      %v395 = vld [vmem:[%s196 + $0x5f0] sm:$0xff]
      %v396 = vld [vmem:[%s196 + $0x5f8] sm:$0xff]
      %v397 = vld [vmem:[%s196 + $0x600] sm:$0xff]
      %v398 = vld [vmem:[%s196 + $0x608] sm:$0xff]
      %v399 = vld [vmem:[%s196 + $0x610] sm:$0xff]
      %v400 = vld [vmem:[%s196 + $0x618] sm:$0xff]
      %v401 = vld [vmem:[%s196 + $0x620] sm:$0xff]
      %v402 = vld [vmem:[%s196 + $0x628] sm:$0xff]
      %v403 = vld [vmem:[%s196 + $0x630] sm:$0xff]
      %v404 = vld [vmem:[%s196 + $0x638] sm:$0xff]
      %v405 = vld [vmem:[%s196 + $0x640] sm:$0xff]
      %v406 = vld [vmem:[%s196 + $0x648] sm:$0xff]
      %v407 = vld [vmem:[%s196 + $0x650] sm:$0xff]
      %v408 = vld [vmem:[%s196 + $0x658] sm:$0xff]
      %v409 = vld [vmem:[%s196 + $0x660] sm:$0xff]
      %v410 = vld [vmem:[%s196 + $0x668] sm:$0xff]
      %v411 = vld [vmem:[%s196 + $0x670] sm:$0xff]
      %v412 = vld [vmem:[%s196 + $0x678] sm:$0xff]
      %v413 = vld [vmem:[%s196 + $0x680] sm:$0xff]
      %v414 = vld [vmem:[%s196 + $0x688] sm:$0xff]
      %v415 = vld [vmem:[%s196 + $0x690] sm:$0xff]
      %v416 = vld [vmem:[%s196 + $0x698] sm:$0xff]
      %v417 = vld [vmem:[%s196 + $0x6a0] sm:$0xff]
      %v418 = vld [vmem:[%s196 + $0x6a8] sm:$0xff]
      %v419 = vld [vmem:[%s196 + $0x6b0] sm:$0xff]
      %v420 = vld [vmem:[%s196 + $0x6b8] sm:$0xff]
      %v421 = vld [vmem:[%s196 + $0x6c0] sm:$0xff]
      %v422 = vld [vmem:[%s196 + $0x6c8] sm:$0xff]
      %v423 = vld [vmem:[%s196 + $0x6d0] sm:$0xff]
      %v424 = vld [vmem:[%s196 + $0x6d8] sm:$0xff]
      %v425 = vld [vmem:[%s196 + $0x6e0] sm:$0xff]
      %v426 = vld [vmem:[%s196 + $0x6e8] sm:$0xff]
      %v427 = vld [vmem:[%s196 + $0x6f0] sm:$0xff]
      %v428 = vld [vmem:[%s196 + $0x6f8] sm:$0xff]
      %v429 = vld [vmem:[%s196 + $0x700] sm:$0xff]
      %v430 = vld [vmem:[%s196 + $0x708] sm:$0xff]
      %v431 = vld [vmem:[%s196 + $0x710] sm:$0xff]
      %v432 = vld [vmem:[%s196 + $0x718] sm:$0xff]
      %v433 = vld [vmem:[%s196 + $0x720] sm:$0xff]
      %v434 = vld [vmem:[%s196 + $0x728] sm:$0xff]
      %v435 = vld [vmem:[%s196 + $0x730] sm:$0xff]
      %v436 = vld [vmem:[%s196 + $0x738] sm:$0xff]
      %v437 = vld [vmem:[%s196 + $0x740] sm:$0xff]
      %v438 = vld [vmem:[%s196 + $0x748] sm:$0xff]
      %v439 = vld [vmem:[%s196 + $0x750] sm:$0xff]
      %v440 = vld [vmem:[%s196 + $0x758] sm:$0xff]
      %v441 = vld [vmem:[%s196 + $0x760] sm:$0xff]
      %v442 = vld [vmem:[%s196 + $0x768] sm:$0xff]
      %v443 = vld [vmem:[%s196 + $0x770] sm:$0xff]
      %v444 = vld [vmem:[%s196 + $0x778] sm:$0xff]
      %v445 = vld [vmem:[%s196 + $0x780] sm:$0xff]
      %v446 = vld [vmem:[%s196 + $0x788] sm:$0xff]
      %v447 = vld [vmem:[%s196 + $0x790] sm:$0xff]
      %v448 = vld [vmem:[%s196 + $0x798] sm:$0xff]
      %v449 = vld [vmem:[%s196 + $0x7a0] sm:$0xff]
      %v450 = vld [vmem:[%s196 + $0x7a8] sm:$0xff]
      %v451 = vld [vmem:[%s196 + $0x7b0] sm:$0xff]
      %v452 = vld [vmem:[%s196 + $0x7b8] sm:$0xff]
      %v453 = vld [vmem:[%s196 + $0x7c0] sm:$0xff]
      %v454 = vld [vmem:[%s196 + $0x7c8] sm:$0xff]
      %v455 = vld [vmem:[%s196 + $0x7d0] sm:$0xff]
      %v456 = vld [vmem:[%s196 + $0x7d8] sm:$0xff]
      %v457 = vld [vmem:[%s196 + $0x7e0] sm:$0xff]
      %v458 = vld [vmem:[%s196 + $0x7e8] sm:$0xff]
      %v459 = vld [vmem:[%s196 + $0x7f0] sm:$0xff]
      %v460 = vld [vmem:[%s196 + $0x7f8] sm:$0xff]
      %v461 = vld [vmem:[%s1] sm:$0xf]
      %v462 = vld [vmem:[%s1 + $0x4] sm:$0xf]
      %v463 = vld [vmem:[%s1 + $0x8] sm:$0xf]
      %v464 = vld [vmem:[%s1 + $0xc] sm:$0xf]
      %v465 = vld [vmem:[%s1 + $0x10] sm:$0xf]
      %v466 = vld [vmem:[%s1 + $0x14] sm:$0xf]
      %v467 = vld [vmem:[%s1 + $0x18] sm:$0xf]
      %v468 = vld [vmem:[%s1 + $0x1c] sm:$0xf]
      %v469 = vld [vmem:[%s1 + $0x20] sm:$0xf]
      %v470 = vld [vmem:[%s1 + $0x24] sm:$0xf]
      %v471 = vld [vmem:[%s1 + $0x28] sm:$0xf]
      %v472 = vld [vmem:[%s1 + $0x2c] sm:$0xf]
      %v473 = vld [vmem:[%s1 + $0x30] sm:$0xf]
      %v474 = vld [vmem:[%s1 + $0x34] sm:$0xf]
      %v475 = vld [vmem:[%s1 + $0x38] sm:$0xf]
      %v476 = vld [vmem:[%s1 + $0x3c] sm:$0xf]
      %v477 = vld [vmem:[%s1 + $0x40] sm:$0xf]
      %v478 = vld [vmem:[%s1 + $0x44] sm:$0xf]
      %v479 = vld [vmem:[%s1 + $0x48] sm:$0xf]
      %v480 = vld [vmem:[%s1 + $0x4c] sm:$0xf]
      %v481 = vld [vmem:[%s1 + $0x50] sm:$0xf]
      %v482 = vld [vmem:[%s1 + $0x54] sm:$0xf]
      %v483 = vld [vmem:[%s1 + $0x58] sm:$0xf]
      %v484 = vld [vmem:[%s1 + $0x5c] sm:$0xf]
      %v485 = vld [vmem:[%s1 + $0x60] sm:$0xf]
      %v486 = vld [vmem:[%s1 + $0x64] sm:$0xf]
      %v487 = vld [vmem:[%s1 + $0x68] sm:$0xf]
      %v488 = vld [vmem:[%s1 + $0x6c] sm:$0xf]
      %v489 = vld [vmem:[%s1 + $0x70] sm:$0xf]
      %v490 = vld [vmem:[%s1 + $0x74] sm:$0xf]
      %v491 = vld [vmem:[%s1 + $0x78] sm:$0xf]
      %v492 = vld [vmem:[%s1 + $0x7c] sm:$0xf]
      %v493 = vld [vmem:[%s1 + $0x80] sm:$0xf]
      %v494 = vld [vmem:[%s1 + $0x84] sm:$0xf]
      %v495 = vld [vmem:[%s1 + $0x88] sm:$0xf]
      %v496 = vld [vmem:[%s1 + $0x8c] sm:$0xf]
      %v497 = vld [vmem:[%s1 + $0x90] sm:$0xf]
      %v498 = vld [vmem:[%s1 + $0x94] sm:$0xf]
      %v499 = vld [vmem:[%s1 + $0x98] sm:$0xf]
      %v500 = vld [vmem:[%s1 + $0x9c] sm:$0xf]
      %v501 = vld [vmem:[%s1 + $0xa0] sm:$0xf]
      %v502 = vld [vmem:[%s1 + $0xa4] sm:$0xf]
      %v503 = vld [vmem:[%s1 + $0xa8] sm:$0xf]
      %v504 = vld [vmem:[%s1 + $0xac] sm:$0xf]
      %v505 = vld [vmem:[%s1 + $0xb0] sm:$0xf]
      %v506 = vld [vmem:[%s1 + $0xb4] sm:$0xf]
      %v507 = vld [vmem:[%s1 + $0xb8] sm:$0xf]
      %v508 = vld [vmem:[%s1 + $0xbc] sm:$0xf]
      %v509 = vld [vmem:[%s1 + $0xc0] sm:$0xf]
      %v510 = vld [vmem:[%s1 + $0xc4] sm:$0xf]
      %v511 = vld [vmem:[%s1 + $0xc8] sm:$0xf]
      %v512 = vld [vmem:[%s1 + $0xcc] sm:$0xf]
      %v513 = vld [vmem:[%s1 + $0xd0] sm:$0xf]
      %v514 = vld [vmem:[%s1 + $0xd4] sm:$0xf]
      %v515 = vld [vmem:[%s1 + $0xd8] sm:$0xf]
      %v516 = vld [vmem:[%s1 + $0xdc] sm:$0xf]
      %v517 = vld [vmem:[%s1 + $0xe0] sm:$0xf]
      %v518 = vld [vmem:[%s1 + $0xe4] sm:$0xf]
      %v519 = vld [vmem:[%s1 + $0xe8] sm:$0xf]
      %v520 = vld [vmem:[%s1 + $0xec] sm:$0xf]
      %v521 = vld [vmem:[%s1 + $0xf0] sm:$0xf]
      %v522 = vld [vmem:[%s1 + $0xf4] sm:$0xf]
      %v523 = vld [vmem:[%s1 + $0xf8] sm:$0xf]
      %v524 = vld [vmem:[%s1 + $0xfc] sm:$0xf]
      %v525 = vld [vmem:[%s1 + $0x100] sm:$0xf]
      %v526 = vld [vmem:[%s1 + $0x104] sm:$0xf]
      %v527 = vld [vmem:[%s1 + $0x108] sm:$0xf]
      %v528 = vld [vmem:[%s1 + $0x10c] sm:$0xf]
      %v529 = vld [vmem:[%s1 + $0x110] sm:$0xf]
      %v530 = vld [vmem:[%s1 + $0x114] sm:$0xf]
      %v531 = vld [vmem:[%s1 + $0x118] sm:$0xf]
      %v532 = vld [vmem:[%s1 + $0x11c] sm:$0xf]
      %v533 = vld [vmem:[%s1 + $0x120] sm:$0xf]
      %v534 = vld [vmem:[%s1 + $0x124] sm:$0xf]
      %v535 = vld [vmem:[%s1 + $0x128] sm:$0xf]
      %v536 = vld [vmem:[%s1 + $0x12c] sm:$0xf]
      %v537 = vld [vmem:[%s1 + $0x130] sm:$0xf]
      %v538 = vld [vmem:[%s1 + $0x134] sm:$0xf]
      %v539 = vld [vmem:[%s1 + $0x138] sm:$0xf]
      %v540 = vld [vmem:[%s1 + $0x13c] sm:$0xf]
      %v541 = vld [vmem:[%s1 + $0x140] sm:$0xf]
      %v542 = vld [vmem:[%s1 + $0x144] sm:$0xf]
      %v543 = vld [vmem:[%s1 + $0x148] sm:$0xf]
      %v544 = vld [vmem:[%s1 + $0x14c] sm:$0xf]
      %v545 = vld [vmem:[%s1 + $0x150] sm:$0xf]
      %v546 = vld [vmem:[%s1 + $0x154] sm:$0xf]
      %v547 = vld [vmem:[%s1 + $0x158] sm:$0xf]
      %v548 = vld [vmem:[%s1 + $0x15c] sm:$0xf]
      %v549 = vld [vmem:[%s1 + $0x160] sm:$0xf]
      %v550 = vld [vmem:[%s1 + $0x164] sm:$0xf]
      %v551 = vld [vmem:[%s1 + $0x168] sm:$0xf]
      %v552 = vld [vmem:[%s1 + $0x16c] sm:$0xf]
      %v553 = vld [vmem:[%s1 + $0x170] sm:$0xf]
      %v554 = vld [vmem:[%s1 + $0x174] sm:$0xf]
      %v555 = vld [vmem:[%s1 + $0x178] sm:$0xf]
      %v556 = vld [vmem:[%s1 + $0x17c] sm:$0xf]
      %v557 = vld [vmem:[%s1 + $0x180] sm:$0xf]
      %v558 = vld [vmem:[%s1 + $0x184] sm:$0xf]
      %v559 = vld [vmem:[%s1 + $0x188] sm:$0xf]
      %v560 = vld [vmem:[%s1 + $0x18c] sm:$0xf]
      %v561 = vld [vmem:[%s1 + $0x190] sm:$0xf]
      %v562 = vld [vmem:[%s1 + $0x194] sm:$0xf]
      %v563 = vld [vmem:[%s1 + $0x198] sm:$0xf]
      %v564 = vld [vmem:[%s1 + $0x19c] sm:$0xf]
      %v565 = vld [vmem:[%s1 + $0x1a0] sm:$0xf]
      %v566 = vld [vmem:[%s1 + $0x1a4] sm:$0xf]
      %v567 = vld [vmem:[%s1 + $0x1a8] sm:$0xf]
      %v568 = vld [vmem:[%s1 + $0x1ac] sm:$0xf]
      %v569 = vld [vmem:[%s1 + $0x1b0] sm:$0xf]
      %v570 = vld [vmem:[%s1 + $0x1b4] sm:$0xf]
      %v571 = vld [vmem:[%s1 + $0x1b8] sm:$0xf]
      %v572 = vld [vmem:[%s1 + $0x1bc] sm:$0xf]
      %v573 = vld [vmem:[%s1 + $0x1c0] sm:$0xf]
      %v574 = vld [vmem:[%s1 + $0x1c4] sm:$0xf]
      %v575 = vld [vmem:[%s1 + $0x1c8] sm:$0xf]
      %v576 = vld [vmem:[%s1 + $0x1cc] sm:$0xf]
      %v577 = vld [vmem:[%s1 + $0x1d0] sm:$0xf]
      %v578 = vld [vmem:[%s1 + $0x1d4] sm:$0xf]
      %v579 = vld [vmem:[%s1 + $0x1d8] sm:$0xf]
      %v580 = vld [vmem:[%s1 + $0x1dc] sm:$0xf]
      %v581 = vld [vmem:[%s1 + $0x1e0] sm:$0xf]
      %v582 = vld [vmem:[%s1 + $0x1e4] sm:$0xf]
      %v583 = vld [vmem:[%s1 + $0x1e8] sm:$0xf]
      %v584 = vld [vmem:[%s1 + $0x1ec] sm:$0xf]
      %v585 = vld [vmem:[%s1 + $0x1f0] sm:$0xf]
      %v586 = vld [vmem:[%s1 + $0x1f4] sm:$0xf]
      %v587 = vld [vmem:[%s1 + $0x1f8] sm:$0xf]
      %v588 = vld [vmem:[%s1 + $0x1fc] sm:$0xf]
      %v589 = vld [vmem:[%s1 + $0x200] sm:$0xf]
      %v590 = vld [vmem:[%s1 + $0x204] sm:$0xf]
      %v591 = vld [vmem:[%s1 + $0x208] sm:$0xf]
      %v592 = vld [vmem:[%s1 + $0x20c] sm:$0xf]
      %v593 = vld [vmem:[%s1 + $0x210] sm:$0xf]
      %v594 = vld [vmem:[%s1 + $0x214] sm:$0xf]
      %v595 = vld [vmem:[%s1 + $0x218] sm:$0xf]
      %v596 = vld [vmem:[%s1 + $0x21c] sm:$0xf]
      %v597 = vld [vmem:[%s1 + $0x220] sm:$0xf]
      %v598 = vld [vmem:[%s1 + $0x224] sm:$0xf]
      %v599 = vld [vmem:[%s1 + $0x228] sm:$0xf]
      %v600 = vld [vmem:[%s1 + $0x22c] sm:$0xf]
      %v601 = vld [vmem:[%s1 + $0x230] sm:$0xf]
      %v602 = vld [vmem:[%s1 + $0x234] sm:$0xf]
      %v603 = vld [vmem:[%s1 + $0x238] sm:$0xf]
      %v604 = vld [vmem:[%s1 + $0x23c] sm:$0xf]
      %v605 = vld [vmem:[%s1 + $0x240] sm:$0xf]
      %v606 = vld [vmem:[%s1 + $0x244] sm:$0xf]
      %v607 = vld [vmem:[%s1 + $0x248] sm:$0xf]
      %v608 = vld [vmem:[%s1 + $0x24c] sm:$0xf]
      %v609 = vld [vmem:[%s1 + $0x250] sm:$0xf]
      %v610 = vld [vmem:[%s1 + $0x254] sm:$0xf]
      %v611 = vld [vmem:[%s1 + $0x258] sm:$0xf]
      %v612 = vld [vmem:[%s1 + $0x25c] sm:$0xf]
      %v613 = vld [vmem:[%s1 + $0x260] sm:$0xf]
      %v614 = vld [vmem:[%s1 + $0x264] sm:$0xf]
      %v615 = vld [vmem:[%s1 + $0x268] sm:$0xf]
      %v616 = vld [vmem:[%s1 + $0x26c] sm:$0xf]
      %v617 = vld [vmem:[%s1 + $0x270] sm:$0xf]
      %v618 = vld [vmem:[%s1 + $0x274] sm:$0xf]
      %v619 = vld [vmem:[%s1 + $0x278] sm:$0xf]
      %v620 = vld [vmem:[%s1 + $0x27c] sm:$0xf]
      %v621 = vld [vmem:[%s1 + $0x280] sm:$0xf]
      %v622 = vld [vmem:[%s1 + $0x284] sm:$0xf]
      %v623 = vld [vmem:[%s1 + $0x288] sm:$0xf]
      %v624 = vld [vmem:[%s1 + $0x28c] sm:$0xf]
      %v625 = vld [vmem:[%s1 + $0x290] sm:$0xf]
      %v626 = vld [vmem:[%s1 + $0x294] sm:$0xf]
      %v627 = vld [vmem:[%s1 + $0x298] sm:$0xf]
      %v628 = vld [vmem:[%s1 + $0x29c] sm:$0xf]
      %v629 = vld [vmem:[%s1 + $0x2a0] sm:$0xf]
      %v630 = vld [vmem:[%s1 + $0x2a4] sm:$0xf]
      %v631 = vld [vmem:[%s1 + $0x2a8] sm:$0xf]
      %v632 = vld [vmem:[%s1 + $0x2ac] sm:$0xf]
      %v633 = vld [vmem:[%s1 + $0x2b0] sm:$0xf]
      %v634 = vld [vmem:[%s1 + $0x2b4] sm:$0xf]
      %v635 = vld [vmem:[%s1 + $0x2b8] sm:$0xf]
      %v636 = vld [vmem:[%s1 + $0x2bc] sm:$0xf]
      %v637 = vld [vmem:[%s1 + $0x2c0] sm:$0xf]
      %v638 = vld [vmem:[%s1 + $0x2c4] sm:$0xf]
      %v639 = vld [vmem:[%s1 + $0x2c8] sm:$0xf]
      %v640 = vld [vmem:[%s1 + $0x2cc] sm:$0xf]
      %v641 = vld [vmem:[%s1 + $0x2d0] sm:$0xf]
      %v642 = vld [vmem:[%s1 + $0x2d4] sm:$0xf]
      %v643 = vld [vmem:[%s1 + $0x2d8] sm:$0xf]
      %v644 = vld [vmem:[%s1 + $0x2dc] sm:$0xf]
      %v645 = vld [vmem:[%s1 + $0x2e0] sm:$0xf]
      %v646 = vld [vmem:[%s1 + $0x2e4] sm:$0xf]
      %v647 = vld [vmem:[%s1 + $0x2e8] sm:$0xf]
      %v648 = vld [vmem:[%s1 + $0x2ec] sm:$0xf]
      %v649 = vld [vmem:[%s1 + $0x2f0] sm:$0xf]
      %v650 = vld [vmem:[%s1 + $0x2f4] sm:$0xf]
      %v651 = vld [vmem:[%s1 + $0x2f8] sm:$0xf]
      %v652 = vld [vmem:[%s1 + $0x2fc] sm:$0xf]
      %v653 = vld [vmem:[%s1 + $0x300] sm:$0xf]
      %v654 = vld [vmem:[%s1 + $0x304] sm:$0xf]
      %v655 = vld [vmem:[%s1 + $0x308] sm:$0xf]
      %v656 = vld [vmem:[%s1 + $0x30c] sm:$0xf]
      %v657 = vld [vmem:[%s1 + $0x310] sm:$0xf]
      %v658 = vld [vmem:[%s1 + $0x314] sm:$0xf]
      %v659 = vld [vmem:[%s1 + $0x318] sm:$0xf]
      %v660 = vld [vmem:[%s1 + $0x31c] sm:$0xf]
      %v661 = vld [vmem:[%s1 + $0x320] sm:$0xf]
      %v662 = vld [vmem:[%s1 + $0x324] sm:$0xf]
      %v663 = vld [vmem:[%s1 + $0x328] sm:$0xf]
      %v664 = vld [vmem:[%s1 + $0x32c] sm:$0xf]
      %v665 = vld [vmem:[%s1 + $0x330] sm:$0xf]
      %v666 = vld [vmem:[%s1 + $0x334] sm:$0xf]
      %v667 = vld [vmem:[%s1 + $0x338] sm:$0xf]
      %v668 = vld [vmem:[%s1 + $0x33c] sm:$0xf]
      %v669 = vld [vmem:[%s1 + $0x340] sm:$0xf]
      %v670 = vld [vmem:[%s1 + $0x344] sm:$0xf]
      %v671 = vld [vmem:[%s1 + $0x348] sm:$0xf]
      %v672 = vld [vmem:[%s1 + $0x34c] sm:$0xf]
      %v673 = vld [vmem:[%s1 + $0x350] sm:$0xf]
      %v674 = vld [vmem:[%s1 + $0x354] sm:$0xf]
      %v675 = vld [vmem:[%s1 + $0x358] sm:$0xf]
      %v676 = vld [vmem:[%s1 + $0x35c] sm:$0xf]
      %v677 = vld [vmem:[%s1 + $0x360] sm:$0xf]
      %v678 = vld [vmem:[%s1 + $0x364] sm:$0xf]
      %v679 = vld [vmem:[%s1 + $0x368] sm:$0xf]
      %v680 = vld [vmem:[%s1 + $0x36c] sm:$0xf]
      %v681 = vld [vmem:[%s1 + $0x370] sm:$0xf]
      %v682 = vld [vmem:[%s1 + $0x374] sm:$0xf]
      %v683 = vld [vmem:[%s1 + $0x378] sm:$0xf]
      %v684 = vld [vmem:[%s1 + $0x37c] sm:$0xf]
      %v685 = vld [vmem:[%s1 + $0x380] sm:$0xf]
      %v686 = vld [vmem:[%s1 + $0x384] sm:$0xf]
      %v687 = vld [vmem:[%s1 + $0x388] sm:$0xf]
      %v688 = vld [vmem:[%s1 + $0x38c] sm:$0xf]
      %v689 = vld [vmem:[%s1 + $0x390] sm:$0xf]
      %v690 = vld [vmem:[%s1 + $0x394] sm:$0xf]
      %v691 = vld [vmem:[%s1 + $0x398] sm:$0xf]
      %v692 = vld [vmem:[%s1 + $0x39c] sm:$0xf]
      %v693 = vld [vmem:[%s1 + $0x3a0] sm:$0xf]
      %v694 = vld [vmem:[%s1 + $0x3a4] sm:$0xf]
      %v695 = vld [vmem:[%s1 + $0x3a8] sm:$0xf]
      %v696 = vld [vmem:[%s1 + $0x3ac] sm:$0xf]
      %v697 = vld [vmem:[%s1 + $0x3b0] sm:$0xf]
      %v698 = vld [vmem:[%s1 + $0x3b4] sm:$0xf]
      %v699 = vld [vmem:[%s1 + $0x3b8] sm:$0xf]
      %v700 = vld [vmem:[%s1 + $0x3bc] sm:$0xf]
      %v701 = vld [vmem:[%s1 + $0x3c0] sm:$0xf]
      %v702 = vld [vmem:[%s1 + $0x3c4] sm:$0xf]
      %v703 = vld [vmem:[%s1 + $0x3c8] sm:$0xf]
      %v704 = vld [vmem:[%s1 + $0x3cc] sm:$0xf]
      %v705 = vld [vmem:[%s1 + $0x3d0] sm:$0xf]
      %v706 = vld [vmem:[%s1 + $0x3d4] sm:$0xf]
      %v707 = vld [vmem:[%s1 + $0x3d8] sm:$0xf]
      %v708 = vld [vmem:[%s1 + $0x3dc] sm:$0xf]
      %v709 = vld [vmem:[%s1 + $0x3e0] sm:$0xf]
      %v710 = vld [vmem:[%s1 + $0x3e4] sm:$0xf]
      %v711 = vld [vmem:[%s1 + $0x3e8] sm:$0xf]
      %v712 = vld [vmem:[%s1 + $0x3ec] sm:$0xf]
      %v713 = vld [vmem:[%s1 + $0x3f0] sm:$0xf]
      %v714 = vld [vmem:[%s1 + $0x3f4] sm:$0xf]
      %v715 = vld [vmem:[%s1 + $0x3f8] sm:$0xf]
      %v716 = vld [vmem:[%s1 + $0x3fc] sm:$0xf]
      %v973 = vunpack.c.l.b16 %v205
      %v974 = vunpack.c.h.b16 %v205
      %v975 = vunpack.c.l.b16 %v206
      %v976 = vunpack.c.h.b16 %v206
      %v977 = vunpack.c.l.b16 %v207
      %v978 = vunpack.c.h.b16 %v207
      %v979 = vunpack.c.l.b16 %v208
      %v980 = vunpack.c.h.b16 %v208
      %v981 = vunpack.c.l.b16 %v209
      %v982 = vunpack.c.h.b16 %v209
      %v983 = vunpack.c.l.b16 %v210
      %v984 = vunpack.c.h.b16 %v210
      %v985 = vunpack.c.l.b16 %v211
      %v986 = vunpack.c.h.b16 %v211
      %v987 = vunpack.c.l.b16 %v212
      %v988 = vunpack.c.h.b16 %v212
      %v989 = vunpack.c.l.b16 %v213
      %v990 = vunpack.c.h.b16 %v213
      %v991 = vunpack.c.l.b16 %v214
      %v992 = vunpack.c.h.b16 %v214
      %v993 = vunpack.c.l.b16 %v215
      %v994 = vunpack.c.h.b16 %v215
      %v995 = vunpack.c.l.b16 %v216
      %v996 = vunpack.c.h.b16 %v216
      %v997 = vunpack.c.l.b16 %v217
      %v998 = vunpack.c.h.b16 %v217
      %v999 = vunpack.c.l.b16 %v218
      %v1000 = vunpack.c.h.b16 %v218
      %v1001 = vunpack.c.l.b16 %v219
      %v1002 = vunpack.c.h.b16 %v219
      %v1003 = vunpack.c.l.b16 %v220
      %v1004 = vunpack.c.h.b16 %v220
      %v1005 = vunpack.c.l.b16 %v221
      %v1006 = vunpack.c.h.b16 %v221
      %v1007 = vunpack.c.l.b16 %v222
      %v1008 = vunpack.c.h.b16 %v222
      %v1009 = vunpack.c.l.b16 %v223
      %v1010 = vunpack.c.h.b16 %v223
      %v1011 = vunpack.c.l.b16 %v224
      %v1012 = vunpack.c.h.b16 %v224
      %v1013 = vunpack.c.l.b16 %v225
      %v1014 = vunpack.c.h.b16 %v225
      %v1015 = vunpack.c.l.b16 %v226
      %v1016 = vunpack.c.h.b16 %v226
      %v1017 = vunpack.c.l.b16 %v227
      %v1018 = vunpack.c.h.b16 %v227
      %v1019 = vunpack.c.l.b16 %v228
      %v1020 = vunpack.c.h.b16 %v228
      %v1021 = vunpack.c.l.b16 %v229
      %v1022 = vunpack.c.h.b16 %v229
      %v1023 = vunpack.c.l.b16 %v230
      %v1024 = vunpack.c.h.b16 %v230
      %v1025 = vunpack.c.l.b16 %v231
      %v1026 = vunpack.c.h.b16 %v231
      %v1027 = vunpack.c.l.b16 %v232
      %v1028 = vunpack.c.h.b16 %v232
      %v1029 = vunpack.c.l.b16 %v233
      %v1030 = vunpack.c.h.b16 %v233
      %v1031 = vunpack.c.l.b16 %v234
      %v1032 = vunpack.c.h.b16 %v234
      %v1033 = vunpack.c.l.b16 %v235
      %v1034 = vunpack.c.h.b16 %v235
      %v1035 = vunpack.c.l.b16 %v236
      %v1036 = vunpack.c.h.b16 %v236
      %v1037 = vunpack.c.l.b16 %v237
      %v1038 = vunpack.c.h.b16 %v237
      %v1039 = vunpack.c.l.b16 %v238
      %v1040 = vunpack.c.h.b16 %v238
      %v1041 = vunpack.c.l.b16 %v239
      %v1042 = vunpack.c.h.b16 %v239
      %v1043 = vunpack.c.l.b16 %v240
      %v1044 = vunpack.c.h.b16 %v240
      %v1045 = vunpack.c.l.b16 %v241
      %v1046 = vunpack.c.h.b16 %v241
      %v1047 = vunpack.c.l.b16 %v242
      %v1048 = vunpack.c.h.b16 %v242
      %v1049 = vunpack.c.l.b16 %v243
      %v1050 = vunpack.c.h.b16 %v243
      %v1051 = vunpack.c.l.b16 %v244
      %v1052 = vunpack.c.h.b16 %v244
      %v1053 = vunpack.c.l.b16 %v245
      %v1054 = vunpack.c.h.b16 %v245
      %v1055 = vunpack.c.l.b16 %v246
      %v1056 = vunpack.c.h.b16 %v246
      %v1057 = vunpack.c.l.b16 %v247
      %v1058 = vunpack.c.h.b16 %v247
      %v1059 = vunpack.c.l.b16 %v248
      %v1060 = vunpack.c.h.b16 %v248
      %v1061 = vunpack.c.l.b16 %v249
      %v1062 = vunpack.c.h.b16 %v249
      %v1063 = vunpack.c.l.b16 %v250
      %v1064 = vunpack.c.h.b16 %v250
      %v1065 = vunpack.c.l.b16 %v251
      %v1066 = vunpack.c.h.b16 %v251
      %v1067 = vunpack.c.l.b16 %v252
      %v1068 = vunpack.c.h.b16 %v252
      %v1069 = vunpack.c.l.b16 %v253
      %v1070 = vunpack.c.h.b16 %v253
      %v1071 = vunpack.c.l.b16 %v254
      %v1072 = vunpack.c.h.b16 %v254
      %v1073 = vunpack.c.l.b16 %v255
      %v1074 = vunpack.c.h.b16 %v255
      %v1075 = vunpack.c.l.b16 %v256
      %v1076 = vunpack.c.h.b16 %v256
      %v1077 = vunpack.c.l.b16 %v257
      %v1078 = vunpack.c.h.b16 %v257
      %v1079 = vunpack.c.l.b16 %v258
      %v1080 = vunpack.c.h.b16 %v258
      %v1081 = vunpack.c.l.b16 %v259
      %v1082 = vunpack.c.h.b16 %v259
      %v1083 = vunpack.c.l.b16 %v260
      %v1084 = vunpack.c.h.b16 %v260
      %v1085 = vunpack.c.l.b16 %v261
      %v1086 = vunpack.c.h.b16 %v261
      %v1087 = vunpack.c.l.b16 %v262
      %v1088 = vunpack.c.h.b16 %v262
      %v1089 = vunpack.c.l.b16 %v263
      %v1090 = vunpack.c.h.b16 %v263
      %v1091 = vunpack.c.l.b16 %v264
      %v1092 = vunpack.c.h.b16 %v264
      %v1093 = vunpack.c.l.b16 %v265
      %v1094 = vunpack.c.h.b16 %v265
      %v1095 = vunpack.c.l.b16 %v266
      %v1096 = vunpack.c.h.b16 %v266
      %v1097 = vunpack.c.l.b16 %v267
      %v1098 = vunpack.c.h.b16 %v267
      %v1099 = vunpack.c.l.b16 %v268
      %v1100 = vunpack.c.h.b16 %v268
      %v1101 = vunpack.c.l.b16 %v269
      %v1102 = vunpack.c.h.b16 %v269
      %v1103 = vunpack.c.l.b16 %v270
      %v1104 = vunpack.c.h.b16 %v270
      %v1105 = vunpack.c.l.b16 %v271
      %v1106 = vunpack.c.h.b16 %v271
      %v1107 = vunpack.c.l.b16 %v272
      %v1108 = vunpack.c.h.b16 %v272
      %v1109 = vunpack.c.l.b16 %v273
      %v1110 = vunpack.c.h.b16 %v273
      %v1111 = vunpack.c.l.b16 %v274
      %v1112 = vunpack.c.h.b16 %v274
      %v1113 = vunpack.c.l.b16 %v275
      %v1114 = vunpack.c.h.b16 %v275
      %v1115 = vunpack.c.l.b16 %v276
      %v1116 = vunpack.c.h.b16 %v276
      %v1117 = vunpack.c.l.b16 %v277
      %v1118 = vunpack.c.h.b16 %v277
      %v1119 = vunpack.c.l.b16 %v278
      %v1120 = vunpack.c.h.b16 %v278
      %v1121 = vunpack.c.l.b16 %v279
      %v1122 = vunpack.c.h.b16 %v279
      %v1123 = vunpack.c.l.b16 %v280
      %v1124 = vunpack.c.h.b16 %v280
      %v1125 = vunpack.c.l.b16 %v281
      %v1126 = vunpack.c.h.b16 %v281
      %v1127 = vunpack.c.l.b16 %v282
      %v1128 = vunpack.c.h.b16 %v282
      %v1129 = vunpack.c.l.b16 %v283
      %v1130 = vunpack.c.h.b16 %v283
      %v1131 = vunpack.c.l.b16 %v284
      %v1132 = vunpack.c.h.b16 %v284
      %v1133 = vunpack.c.l.b16 %v285
      %v1134 = vunpack.c.h.b16 %v285
      %v1135 = vunpack.c.l.b16 %v286
      %v1136 = vunpack.c.h.b16 %v286
      %v1137 = vunpack.c.l.b16 %v287
      %v1138 = vunpack.c.h.b16 %v287
      %v1139 = vunpack.c.l.b16 %v288
      %v1140 = vunpack.c.h.b16 %v288
      %v1141 = vunpack.c.l.b16 %v289
      %v1142 = vunpack.c.h.b16 %v289
      %v1143 = vunpack.c.l.b16 %v290
      %v1144 = vunpack.c.h.b16 %v290
      %v1145 = vunpack.c.l.b16 %v291
      %v1146 = vunpack.c.h.b16 %v291
      %v1147 = vunpack.c.l.b16 %v292
      %v1148 = vunpack.c.h.b16 %v292
      %v1149 = vunpack.c.l.b16 %v293
      %v1150 = vunpack.c.h.b16 %v293
      %v1151 = vunpack.c.l.b16 %v294
      %v1152 = vunpack.c.h.b16 %v294
      %v1153 = vunpack.c.l.b16 %v295
      %v1154 = vunpack.c.h.b16 %v295
      %v1155 = vunpack.c.l.b16 %v296
      %v1156 = vunpack.c.h.b16 %v296
      %v1157 = vunpack.c.l.b16 %v297
      %v1158 = vunpack.c.h.b16 %v297
      %v1159 = vunpack.c.l.b16 %v298
      %v1160 = vunpack.c.h.b16 %v298
      %v1161 = vunpack.c.l.b16 %v299
      %v1162 = vunpack.c.h.b16 %v299
      %v1163 = vunpack.c.l.b16 %v300
      %v1164 = vunpack.c.h.b16 %v300
      %v1165 = vunpack.c.l.b16 %v301
      %v1166 = vunpack.c.h.b16 %v301
      %v1167 = vunpack.c.l.b16 %v302
      %v1168 = vunpack.c.h.b16 %v302
      %v1169 = vunpack.c.l.b16 %v303
      %v1170 = vunpack.c.h.b16 %v303
      %v1171 = vunpack.c.l.b16 %v304
      %v1172 = vunpack.c.h.b16 %v304
      %v1173 = vunpack.c.l.b16 %v305
      %v1174 = vunpack.c.h.b16 %v305
      %v1175 = vunpack.c.l.b16 %v306
      %v1176 = vunpack.c.h.b16 %v306
      %v1177 = vunpack.c.l.b16 %v307
      %v1178 = vunpack.c.h.b16 %v307
      %v1179 = vunpack.c.l.b16 %v308
      %v1180 = vunpack.c.h.b16 %v308
      %v1181 = vunpack.c.l.b16 %v309
      %v1182 = vunpack.c.h.b16 %v309
      %v1183 = vunpack.c.l.b16 %v310
      %v1184 = vunpack.c.h.b16 %v310
      %v1185 = vunpack.c.l.b16 %v311
      %v1186 = vunpack.c.h.b16 %v311
      %v1187 = vunpack.c.l.b16 %v312
      %v1188 = vunpack.c.h.b16 %v312
      %v1189 = vunpack.c.l.b16 %v313
      %v1190 = vunpack.c.h.b16 %v313
      %v1191 = vunpack.c.l.b16 %v314
      %v1192 = vunpack.c.h.b16 %v314
      %v1193 = vunpack.c.l.b16 %v315
      %v1194 = vunpack.c.h.b16 %v315
      %v1195 = vunpack.c.l.b16 %v316
      %v1196 = vunpack.c.h.b16 %v316
      %v1197 = vunpack.c.l.b16 %v317
      %v1198 = vunpack.c.h.b16 %v317
      %v1199 = vunpack.c.l.b16 %v318
      %v1200 = vunpack.c.h.b16 %v318
      %v1201 = vunpack.c.l.b16 %v319
      %v1202 = vunpack.c.h.b16 %v319
      %v1203 = vunpack.c.l.b16 %v320
      %v1204 = vunpack.c.h.b16 %v320
      %v1205 = vunpack.c.l.b16 %v321
      %v1206 = vunpack.c.h.b16 %v321
      %v1207 = vunpack.c.l.b16 %v322
      %v1208 = vunpack.c.h.b16 %v322
      %v1209 = vunpack.c.l.b16 %v323
      %v1210 = vunpack.c.h.b16 %v323
      %v1211 = vunpack.c.l.b16 %v324
      %v1212 = vunpack.c.h.b16 %v324
      %v1213 = vunpack.c.l.b16 %v325
      %v1214 = vunpack.c.h.b16 %v325
      %v1215 = vunpack.c.l.b16 %v326
      %v1216 = vunpack.c.h.b16 %v326
      %v1217 = vunpack.c.l.b16 %v327
      %v1218 = vunpack.c.h.b16 %v327
      %v1219 = vunpack.c.l.b16 %v328
      %v1220 = vunpack.c.h.b16 %v328
      %v1221 = vunpack.c.l.b16 %v329
      %v1222 = vunpack.c.h.b16 %v329
      %v1223 = vunpack.c.l.b16 %v330
      %v1224 = vunpack.c.h.b16 %v330
      %v1225 = vunpack.c.l.b16 %v331
      %v1226 = vunpack.c.h.b16 %v331
      %v1227 = vunpack.c.l.b16 %v332
      %v1228 = vunpack.c.h.b16 %v332
      %v1229 = vunpack.c.l.b16 %v333
      %v1230 = vunpack.c.h.b16 %v333
      %v1231 = vunpack.c.l.b16 %v334
      %v1232 = vunpack.c.h.b16 %v334
      %v1233 = vunpack.c.l.b16 %v335
      %v1234 = vunpack.c.h.b16 %v335
      %v1235 = vunpack.c.l.b16 %v336
      %v1236 = vunpack.c.h.b16 %v336
      %v1237 = vunpack.c.l.b16 %v337
      %v1238 = vunpack.c.h.b16 %v337
      %v1239 = vunpack.c.l.b16 %v338
      %v1240 = vunpack.c.h.b16 %v338
      %v1241 = vunpack.c.l.b16 %v339
      %v1242 = vunpack.c.h.b16 %v339
      %v1243 = vunpack.c.l.b16 %v340
      %v1244 = vunpack.c.h.b16 %v340
      %v1245 = vunpack.c.l.b16 %v341
      %v1246 = vunpack.c.h.b16 %v341
      %v1247 = vunpack.c.l.b16 %v342
      %v1248 = vunpack.c.h.b16 %v342
      %v1249 = vunpack.c.l.b16 %v343
      %v1250 = vunpack.c.h.b16 %v343
      %v1251 = vunpack.c.l.b16 %v344
      %v1252 = vunpack.c.h.b16 %v344
      %v1253 = vunpack.c.l.b16 %v345
      %v1254 = vunpack.c.h.b16 %v345
      %v1255 = vunpack.c.l.b16 %v346
      %v1256 = vunpack.c.h.b16 %v346
      %v1257 = vunpack.c.l.b16 %v347
      %v1258 = vunpack.c.h.b16 %v347
      %v1259 = vunpack.c.l.b16 %v348
      %v1260 = vunpack.c.h.b16 %v348
      %v1261 = vunpack.c.l.b16 %v349
      %v1262 = vunpack.c.h.b16 %v349
      %v1263 = vunpack.c.l.b16 %v350
      %v1264 = vunpack.c.h.b16 %v350
      %v1265 = vunpack.c.l.b16 %v351
      %v1266 = vunpack.c.h.b16 %v351
      %v1267 = vunpack.c.l.b16 %v352
      %v1268 = vunpack.c.h.b16 %v352
      %v1269 = vunpack.c.l.b16 %v353
      %v1270 = vunpack.c.h.b16 %v353
      %v1271 = vunpack.c.l.b16 %v354
      %v1272 = vunpack.c.h.b16 %v354
      %v1273 = vunpack.c.l.b16 %v355
      %v1274 = vunpack.c.h.b16 %v355
      %v1275 = vunpack.c.l.b16 %v356
      %v1276 = vunpack.c.h.b16 %v356
      %v1277 = vunpack.c.l.b16 %v357
      %v1278 = vunpack.c.h.b16 %v357
      %v1279 = vunpack.c.l.b16 %v358
      %v1280 = vunpack.c.h.b16 %v358
      %v1281 = vunpack.c.l.b16 %v359
      %v1282 = vunpack.c.h.b16 %v359
      %v1283 = vunpack.c.l.b16 %v360
      %v1284 = vunpack.c.h.b16 %v360
      %v1285 = vunpack.c.l.b16 %v361
      %v1286 = vunpack.c.h.b16 %v361
      %v1287 = vunpack.c.l.b16 %v362
      %v1288 = vunpack.c.h.b16 %v362
      %v1289 = vunpack.c.l.b16 %v363
      %v1290 = vunpack.c.h.b16 %v363
      %v1291 = vunpack.c.l.b16 %v364
      %v1292 = vunpack.c.h.b16 %v364
      %v1293 = vunpack.c.l.b16 %v365
      %v1294 = vunpack.c.h.b16 %v365
      %v1295 = vunpack.c.l.b16 %v366
      %v1296 = vunpack.c.h.b16 %v366
      %v1297 = vunpack.c.l.b16 %v367
      %v1298 = vunpack.c.h.b16 %v367
      %v1299 = vunpack.c.l.b16 %v368
      %v1300 = vunpack.c.h.b16 %v368
      %v1301 = vunpack.c.l.b16 %v369
      %v1302 = vunpack.c.h.b16 %v369
      %v1303 = vunpack.c.l.b16 %v370
      %v1304 = vunpack.c.h.b16 %v370
      %v1305 = vunpack.c.l.b16 %v371
      %v1306 = vunpack.c.h.b16 %v371
      %v1307 = vunpack.c.l.b16 %v372
      %v1308 = vunpack.c.h.b16 %v372
      %v1309 = vunpack.c.l.b16 %v373
      %v1310 = vunpack.c.h.b16 %v373
      %v1311 = vunpack.c.l.b16 %v374
      %v1312 = vunpack.c.h.b16 %v374
      %v1313 = vunpack.c.l.b16 %v375
      %v1314 = vunpack.c.h.b16 %v375
      %v1315 = vunpack.c.l.b16 %v376
      %v1316 = vunpack.c.h.b16 %v376
      %v1317 = vunpack.c.l.b16 %v377
      %v1318 = vunpack.c.h.b16 %v377
      %v1319 = vunpack.c.l.b16 %v378
      %v1320 = vunpack.c.h.b16 %v378
      %v1321 = vunpack.c.l.b16 %v379
      %v1322 = vunpack.c.h.b16 %v379
      %v1323 = vunpack.c.l.b16 %v380
      %v1324 = vunpack.c.h.b16 %v380
      %v1325 = vunpack.c.l.b16 %v381
      %v1326 = vunpack.c.h.b16 %v381
      %v1327 = vunpack.c.l.b16 %v382
      %v1328 = vunpack.c.h.b16 %v382
      %v1329 = vunpack.c.l.b16 %v383
      %v1330 = vunpack.c.h.b16 %v383
      %v1331 = vunpack.c.l.b16 %v384
      %v1332 = vunpack.c.h.b16 %v384
      %v1333 = vunpack.c.l.b16 %v385
      %v1334 = vunpack.c.h.b16 %v385
      %v1335 = vunpack.c.l.b16 %v386
      %v1336 = vunpack.c.h.b16 %v386
      %v1337 = vunpack.c.l.b16 %v387
      %v1338 = vunpack.c.h.b16 %v387
      %v1339 = vunpack.c.l.b16 %v388
      %v1340 = vunpack.c.h.b16 %v388
      %v1341 = vunpack.c.l.b16 %v389
      %v1342 = vunpack.c.h.b16 %v389
      %v1343 = vunpack.c.l.b16 %v390
      %v1344 = vunpack.c.h.b16 %v390
      %v1345 = vunpack.c.l.b16 %v391
      %v1346 = vunpack.c.h.b16 %v391
      %v1347 = vunpack.c.l.b16 %v392
      %v1348 = vunpack.c.h.b16 %v392
      %v1349 = vunpack.c.l.b16 %v393
      %v1350 = vunpack.c.h.b16 %v393
      %v1351 = vunpack.c.l.b16 %v394
      %v1352 = vunpack.c.h.b16 %v394
      %v1353 = vunpack.c.l.b16 %v395
      %v1354 = vunpack.c.h.b16 %v395
      %v1355 = vunpack.c.l.b16 %v396
      %v1356 = vunpack.c.h.b16 %v396
      %v1357 = vunpack.c.l.b16 %v397
      %v1358 = vunpack.c.h.b16 %v397
      %v1359 = vunpack.c.l.b16 %v398
      %v1360 = vunpack.c.h.b16 %v398
      %v1361 = vunpack.c.l.b16 %v399
      %v1362 = vunpack.c.h.b16 %v399
      %v1363 = vunpack.c.l.b16 %v400
      %v1364 = vunpack.c.h.b16 %v400
      %v1365 = vunpack.c.l.b16 %v401
      %v1366 = vunpack.c.h.b16 %v401
      %v1367 = vunpack.c.l.b16 %v402
      %v1368 = vunpack.c.h.b16 %v402
      %v1369 = vunpack.c.l.b16 %v403
      %v1370 = vunpack.c.h.b16 %v403
      %v1371 = vunpack.c.l.b16 %v404
      %v1372 = vunpack.c.h.b16 %v404
      %v1373 = vunpack.c.l.b16 %v405
      %v1374 = vunpack.c.h.b16 %v405
      %v1375 = vunpack.c.l.b16 %v406
      %v1376 = vunpack.c.h.b16 %v406
      %v1377 = vunpack.c.l.b16 %v407
      %v1378 = vunpack.c.h.b16 %v407
      %v1379 = vunpack.c.l.b16 %v408
      %v1380 = vunpack.c.h.b16 %v408
      %v1381 = vunpack.c.l.b16 %v409
      %v1382 = vunpack.c.h.b16 %v409
      %v1383 = vunpack.c.l.b16 %v410
      %v1384 = vunpack.c.h.b16 %v410
      %v1385 = vunpack.c.l.b16 %v411
      %v1386 = vunpack.c.h.b16 %v411
      %v1387 = vunpack.c.l.b16 %v412
      %v1388 = vunpack.c.h.b16 %v412
      %v1389 = vunpack.c.l.b16 %v413
      %v1390 = vunpack.c.h.b16 %v413
      %v1391 = vunpack.c.l.b16 %v414
      %v1392 = vunpack.c.h.b16 %v414
      %v1393 = vunpack.c.l.b16 %v415
      %v1394 = vunpack.c.h.b16 %v415
      %v1395 = vunpack.c.l.b16 %v416
      %v1396 = vunpack.c.h.b16 %v416
      %v1397 = vunpack.c.l.b16 %v417
      %v1398 = vunpack.c.h.b16 %v417
      %v1399 = vunpack.c.l.b16 %v418
      %v1400 = vunpack.c.h.b16 %v418
      %v1401 = vunpack.c.l.b16 %v419
      %v1402 = vunpack.c.h.b16 %v419
      %v1403 = vunpack.c.l.b16 %v420
      %v1404 = vunpack.c.h.b16 %v420
      %v1405 = vunpack.c.l.b16 %v421
      %v1406 = vunpack.c.h.b16 %v421
      %v1407 = vunpack.c.l.b16 %v422
      %v1408 = vunpack.c.h.b16 %v422
      %v1409 = vunpack.c.l.b16 %v423
      %v1410 = vunpack.c.h.b16 %v423
      %v1411 = vunpack.c.l.b16 %v424
      %v1412 = vunpack.c.h.b16 %v424
      %v1413 = vunpack.c.l.b16 %v425
      %v1414 = vunpack.c.h.b16 %v425
      %v1415 = vunpack.c.l.b16 %v426
      %v1416 = vunpack.c.h.b16 %v426
      %v1417 = vunpack.c.l.b16 %v427
      %v1418 = vunpack.c.h.b16 %v427
      %v1419 = vunpack.c.l.b16 %v428
      %v1420 = vunpack.c.h.b16 %v428
      %v1421 = vunpack.c.l.b16 %v429
      %v1422 = vunpack.c.h.b16 %v429
      %v1423 = vunpack.c.l.b16 %v430
      %v1424 = vunpack.c.h.b16 %v430
      %v1425 = vunpack.c.l.b16 %v431
      %v1426 = vunpack.c.h.b16 %v431
      %v1427 = vunpack.c.l.b16 %v432
      %v1428 = vunpack.c.h.b16 %v432
      %v1429 = vunpack.c.l.b16 %v433
      %v1430 = vunpack.c.h.b16 %v433
      %v1431 = vunpack.c.l.b16 %v434
      %v1432 = vunpack.c.h.b16 %v434
      %v1433 = vunpack.c.l.b16 %v435
      %v1434 = vunpack.c.h.b16 %v435
      %v1435 = vunpack.c.l.b16 %v436
      %v1436 = vunpack.c.h.b16 %v436
      %v1437 = vunpack.c.l.b16 %v437
      %v1438 = vunpack.c.h.b16 %v437
      %v1439 = vunpack.c.l.b16 %v438
      %v1440 = vunpack.c.h.b16 %v438
      %v1441 = vunpack.c.l.b16 %v439
      %v1442 = vunpack.c.h.b16 %v439
      %v1443 = vunpack.c.l.b16 %v440
      %v1444 = vunpack.c.h.b16 %v440
      %v1445 = vunpack.c.l.b16 %v441
      %v1446 = vunpack.c.h.b16 %v441
      %v1447 = vunpack.c.l.b16 %v442
      %v1448 = vunpack.c.h.b16 %v442
      %v1449 = vunpack.c.l.b16 %v443
      %v1450 = vunpack.c.h.b16 %v443
      %v1451 = vunpack.c.l.b16 %v444
      %v1452 = vunpack.c.h.b16 %v444
      %v1453 = vunpack.c.l.b16 %v445
      %v1454 = vunpack.c.h.b16 %v445
      %v1455 = vunpack.c.l.b16 %v446
      %v1456 = vunpack.c.h.b16 %v446
      %v1457 = vunpack.c.l.b16 %v447
      %v1458 = vunpack.c.h.b16 %v447
      %v1459 = vunpack.c.l.b16 %v448
      %v1460 = vunpack.c.h.b16 %v448
      %v1461 = vunpack.c.l.b16 %v449
      %v1462 = vunpack.c.h.b16 %v449
      %v1463 = vunpack.c.l.b16 %v450
      %v1464 = vunpack.c.h.b16 %v450
      %v1465 = vunpack.c.l.b16 %v451
      %v1466 = vunpack.c.h.b16 %v451
      %v1467 = vunpack.c.l.b16 %v452
      %v1468 = vunpack.c.h.b16 %v452
      %v1469 = vunpack.c.l.b16 %v453
      %v1470 = vunpack.c.h.b16 %v453
      %v1471 = vunpack.c.l.b16 %v454
      %v1472 = vunpack.c.h.b16 %v454
      %v1473 = vunpack.c.l.b16 %v455
      %v1474 = vunpack.c.h.b16 %v455
      %v1475 = vunpack.c.l.b16 %v456
      %v1476 = vunpack.c.h.b16 %v456
      %v1477 = vunpack.c.l.b16 %v457
      %v1478 = vunpack.c.h.b16 %v457
      %v1479 = vunpack.c.l.b16 %v458
      %v1480 = vunpack.c.h.b16 %v458
      %v1481 = vunpack.c.l.b16 %v459
      %v1482 = vunpack.c.h.b16 %v459
      %v1483 = vunpack.c.l.b16 %v460
      %v1484 = vunpack.c.h.b16 %v460
      %v1485 = vpack.c.b16 %v989, %v973
      %v1486 = vpack.c.b16 %v990, %v974
      %v1487 = vpack.c.b16 %v991, %v975
      %v1488 = vpack.c.b16 %v992, %v976
      %v1489 = vpack.c.b16 %v993, %v977
      %v1490 = vpack.c.b16 %v994, %v978
      %v1491 = vpack.c.b16 %v995, %v979
      %v1492 = vpack.c.b16 %v996, %v980
      %v1493 = vpack.c.b16 %v997, %v981
      %v1494 = vpack.c.b16 %v998, %v982
      %v1495 = vpack.c.b16 %v999, %v983
      %v1496 = vpack.c.b16 %v1000, %v984
      %v1497 = vpack.c.b16 %v1001, %v985
      %v1498 = vpack.c.b16 %v1002, %v986
      %v1499 = vpack.c.b16 %v1003, %v987
      %v1500 = vpack.c.b16 %v1004, %v988
      %v1501 = vpack.c.b16 %v1021, %v1005
      %v1502 = vpack.c.b16 %v1022, %v1006
      %v1503 = vpack.c.b16 %v1023, %v1007
      %v1504 = vpack.c.b16 %v1024, %v1008
      %v1505 = vpack.c.b16 %v1025, %v1009
      %v1506 = vpack.c.b16 %v1026, %v1010
      %v1507 = vpack.c.b16 %v1027, %v1011
      %v1508 = vpack.c.b16 %v1028, %v1012
      %v1509 = vpack.c.b16 %v1029, %v1013
      %v1510 = vpack.c.b16 %v1030, %v1014
      %v1511 = vpack.c.b16 %v1031, %v1015
      %v1512 = vpack.c.b16 %v1032, %v1016
      %v1513 = vpack.c.b16 %v1033, %v1017
      %v1514 = vpack.c.b16 %v1034, %v1018
      %v1515 = vpack.c.b16 %v1035, %v1019
      %v1516 = vpack.c.b16 %v1036, %v1020
      %v1517 = vpack.c.b16 %v1053, %v1037
      %v1518 = vpack.c.b16 %v1054, %v1038
      %v1519 = vpack.c.b16 %v1055, %v1039
      %v1520 = vpack.c.b16 %v1056, %v1040
      %v1521 = vpack.c.b16 %v1057, %v1041
      %v1522 = vpack.c.b16 %v1058, %v1042
      %v1523 = vpack.c.b16 %v1059, %v1043
      %v1524 = vpack.c.b16 %v1060, %v1044
      %v1525 = vpack.c.b16 %v1061, %v1045
      %v1526 = vpack.c.b16 %v1062, %v1046
      %v1527 = vpack.c.b16 %v1063, %v1047
      %v1528 = vpack.c.b16 %v1064, %v1048
      %v1529 = vpack.c.b16 %v1065, %v1049
      %v1530 = vpack.c.b16 %v1066, %v1050
      %v1531 = vpack.c.b16 %v1067, %v1051
      %v1532 = vpack.c.b16 %v1068, %v1052
      %v1533 = vpack.c.b16 %v1085, %v1069
      %v1534 = vpack.c.b16 %v1086, %v1070
      %v1535 = vpack.c.b16 %v1087, %v1071
      %v1536 = vpack.c.b16 %v1088, %v1072
      %v1537 = vpack.c.b16 %v1089, %v1073
      %v1538 = vpack.c.b16 %v1090, %v1074
      %v1539 = vpack.c.b16 %v1091, %v1075
      %v1540 = vpack.c.b16 %v1092, %v1076
      %v1541 = vpack.c.b16 %v1093, %v1077
      %v1542 = vpack.c.b16 %v1094, %v1078
      %v1543 = vpack.c.b16 %v1095, %v1079
      %v1544 = vpack.c.b16 %v1096, %v1080
      %v1545 = vpack.c.b16 %v1097, %v1081
      %v1546 = vpack.c.b16 %v1098, %v1082
      %v1547 = vpack.c.b16 %v1099, %v1083
      %v1548 = vpack.c.b16 %v1100, %v1084
      %v1549 = vpack.c.b16 %v1117, %v1101
      %v1550 = vpack.c.b16 %v1118, %v1102
      %v1551 = vpack.c.b16 %v1119, %v1103
      %v1552 = vpack.c.b16 %v1120, %v1104
      %v1553 = vpack.c.b16 %v1121, %v1105
      %v1554 = vpack.c.b16 %v1122, %v1106
      %v1555 = vpack.c.b16 %v1123, %v1107
      %v1556 = vpack.c.b16 %v1124, %v1108
      %v1557 = vpack.c.b16 %v1125, %v1109
      %v1558 = vpack.c.b16 %v1126, %v1110
      %v1559 = vpack.c.b16 %v1127, %v1111
      %v1560 = vpack.c.b16 %v1128, %v1112
      %v1561 = vpack.c.b16 %v1129, %v1113
      %v1562 = vpack.c.b16 %v1130, %v1114
      %v1563 = vpack.c.b16 %v1131, %v1115
      %v1564 = vpack.c.b16 %v1132, %v1116
      %v1565 = vpack.c.b16 %v1149, %v1133
      %v1566 = vpack.c.b16 %v1150, %v1134
      %v1567 = vpack.c.b16 %v1151, %v1135
      %v1568 = vpack.c.b16 %v1152, %v1136
      %v1569 = vpack.c.b16 %v1153, %v1137
      %v1570 = vpack.c.b16 %v1154, %v1138
      %v1571 = vpack.c.b16 %v1155, %v1139
      %v1572 = vpack.c.b16 %v1156, %v1140
      %v1573 = vpack.c.b16 %v1157, %v1141
      %v1574 = vpack.c.b16 %v1158, %v1142
      %v1575 = vpack.c.b16 %v1159, %v1143
      %v1576 = vpack.c.b16 %v1160, %v1144
      %v1577 = vpack.c.b16 %v1161, %v1145
      %v1578 = vpack.c.b16 %v1162, %v1146
      %v1579 = vpack.c.b16 %v1163, %v1147
      %v1580 = vpack.c.b16 %v1164, %v1148
      %v1581 = vpack.c.b16 %v1181, %v1165
      %v1582 = vpack.c.b16 %v1182, %v1166
      %v1583 = vpack.c.b16 %v1183, %v1167
      %v1584 = vpack.c.b16 %v1184, %v1168
      %v1585 = vpack.c.b16 %v1185, %v1169
      %v1586 = vpack.c.b16 %v1186, %v1170
      %v1587 = vpack.c.b16 %v1187, %v1171
      %v1588 = vpack.c.b16 %v1188, %v1172
      %v1589 = vpack.c.b16 %v1189, %v1173
      %v1590 = vpack.c.b16 %v1190, %v1174
      %v1591 = vpack.c.b16 %v1191, %v1175
      %v1592 = vpack.c.b16 %v1192, %v1176
      %v1593 = vpack.c.b16 %v1193, %v1177
      %v1594 = vpack.c.b16 %v1194, %v1178
      %v1595 = vpack.c.b16 %v1195, %v1179
      %v1596 = vpack.c.b16 %v1196, %v1180
      %v1597 = vpack.c.b16 %v1213, %v1197
      %v1598 = vpack.c.b16 %v1214, %v1198
      %v1599 = vpack.c.b16 %v1215, %v1199
      %v1600 = vpack.c.b16 %v1216, %v1200
      %v1601 = vpack.c.b16 %v1217, %v1201
      %v1602 = vpack.c.b16 %v1218, %v1202
      %v1603 = vpack.c.b16 %v1219, %v1203
      %v1604 = vpack.c.b16 %v1220, %v1204
      %v1605 = vpack.c.b16 %v1221, %v1205
      %v1606 = vpack.c.b16 %v1222, %v1206
      %v1607 = vpack.c.b16 %v1223, %v1207
      %v1608 = vpack.c.b16 %v1224, %v1208
      %v1609 = vpack.c.b16 %v1225, %v1209
      %v1610 = vpack.c.b16 %v1226, %v1210
      %v1611 = vpack.c.b16 %v1227, %v1211
      %v1612 = vpack.c.b16 %v1228, %v1212
      %v1613 = vpack.c.b16 %v1245, %v1229
      %v1614 = vpack.c.b16 %v1246, %v1230
      %v1615 = vpack.c.b16 %v1247, %v1231
      %v1616 = vpack.c.b16 %v1248, %v1232
      %v1617 = vpack.c.b16 %v1249, %v1233
      %v1618 = vpack.c.b16 %v1250, %v1234
      %v1619 = vpack.c.b16 %v1251, %v1235
      %v1620 = vpack.c.b16 %v1252, %v1236
      %v1621 = vpack.c.b16 %v1253, %v1237
      %v1622 = vpack.c.b16 %v1254, %v1238
      %v1623 = vpack.c.b16 %v1255, %v1239
      %v1624 = vpack.c.b16 %v1256, %v1240
      %v1625 = vpack.c.b16 %v1257, %v1241
      %v1626 = vpack.c.b16 %v1258, %v1242
      %v1627 = vpack.c.b16 %v1259, %v1243
      %v1628 = vpack.c.b16 %v1260, %v1244
      %v1629 = vpack.c.b16 %v1277, %v1261
      %v1630 = vpack.c.b16 %v1278, %v1262
      %v1631 = vpack.c.b16 %v1279, %v1263
      %v1632 = vpack.c.b16 %v1280, %v1264
      %v1633 = vpack.c.b16 %v1281, %v1265
      %v1634 = vpack.c.b16 %v1282, %v1266
      %v1635 = vpack.c.b16 %v1283, %v1267
      %v1636 = vpack.c.b16 %v1284, %v1268
      %v1637 = vpack.c.b16 %v1285, %v1269
      %v1638 = vpack.c.b16 %v1286, %v1270
      %v1639 = vpack.c.b16 %v1287, %v1271
      %v1640 = vpack.c.b16 %v1288, %v1272
      %v1641 = vpack.c.b16 %v1289, %v1273
      %v1642 = vpack.c.b16 %v1290, %v1274
      %v1643 = vpack.c.b16 %v1291, %v1275
      %v1644 = vpack.c.b16 %v1292, %v1276
      %v1645 = vpack.c.b16 %v1309, %v1293
      %v1646 = vpack.c.b16 %v1310, %v1294
      %v1647 = vpack.c.b16 %v1311, %v1295
      %v1648 = vpack.c.b16 %v1312, %v1296
      %v1649 = vpack.c.b16 %v1313, %v1297
      %v1650 = vpack.c.b16 %v1314, %v1298
      %v1651 = vpack.c.b16 %v1315, %v1299
      %v1652 = vpack.c.b16 %v1316, %v1300
      %v1653 = vpack.c.b16 %v1317, %v1301
      %v1654 = vpack.c.b16 %v1318, %v1302
      %v1655 = vpack.c.b16 %v1319, %v1303
      %v1656 = vpack.c.b16 %v1320, %v1304
      %v1657 = vpack.c.b16 %v1321, %v1305
      %v1658 = vpack.c.b16 %v1322, %v1306
      %v1659 = vpack.c.b16 %v1323, %v1307
      %v1660 = vpack.c.b16 %v1324, %v1308
      %v1661 = vpack.c.b16 %v1341, %v1325
      %v1662 = vpack.c.b16 %v1342, %v1326
      %v1663 = vpack.c.b16 %v1343, %v1327
      %v1664 = vpack.c.b16 %v1344, %v1328
      %v1665 = vpack.c.b16 %v1345, %v1329
      %v1666 = vpack.c.b16 %v1346, %v1330
      %v1667 = vpack.c.b16 %v1347, %v1331
      %v1668 = vpack.c.b16 %v1348, %v1332
      %v1669 = vpack.c.b16 %v1349, %v1333
      %v1670 = vpack.c.b16 %v1350, %v1334
      %v1671 = vpack.c.b16 %v1351, %v1335
      %v1672 = vpack.c.b16 %v1352, %v1336
      %v1673 = vpack.c.b16 %v1353, %v1337
      %v1674 = vpack.c.b16 %v1354, %v1338
      %v1675 = vpack.c.b16 %v1355, %v1339
      %v1676 = vpack.c.b16 %v1356, %v1340
      %v1677 = vpack.c.b16 %v1373, %v1357
      %v1678 = vpack.c.b16 %v1374, %v1358
      %v1679 = vpack.c.b16 %v1375, %v1359
      %v1680 = vpack.c.b16 %v1376, %v1360
      %v1681 = vpack.c.b16 %v1377, %v1361
      %v1682 = vpack.c.b16 %v1378, %v1362
      %v1683 = vpack.c.b16 %v1379, %v1363
      %v1684 = vpack.c.b16 %v1380, %v1364
      %v1685 = vpack.c.b16 %v1381, %v1365
      %v1686 = vpack.c.b16 %v1382, %v1366
      %v1687 = vpack.c.b16 %v1383, %v1367
      %v1688 = vpack.c.b16 %v1384, %v1368
      %v1689 = vpack.c.b16 %v1385, %v1369
      %v1690 = vpack.c.b16 %v1386, %v1370
      %v1691 = vpack.c.b16 %v1387, %v1371
      %v1692 = vpack.c.b16 %v1388, %v1372
      %v1693 = vpack.c.b16 %v1405, %v1389
      %v1694 = vpack.c.b16 %v1406, %v1390
      %v1695 = vpack.c.b16 %v1407, %v1391
      %v1696 = vpack.c.b16 %v1408, %v1392
      %v1697 = vpack.c.b16 %v1409, %v1393
      %v1698 = vpack.c.b16 %v1410, %v1394
      %v1699 = vpack.c.b16 %v1411, %v1395
      %v1700 = vpack.c.b16 %v1412, %v1396
      %v1701 = vpack.c.b16 %v1413, %v1397
      %v1702 = vpack.c.b16 %v1414, %v1398
      %v1703 = vpack.c.b16 %v1415, %v1399
      %v1704 = vpack.c.b16 %v1416, %v1400
      %v1705 = vpack.c.b16 %v1417, %v1401
      %v1706 = vpack.c.b16 %v1418, %v1402
      %v1707 = vpack.c.b16 %v1419, %v1403
      %v1708 = vpack.c.b16 %v1420, %v1404
      %v1709 = vpack.c.b16 %v1437, %v1421
      %v1710 = vpack.c.b16 %v1438, %v1422
      %v1711 = vpack.c.b16 %v1439, %v1423
      %v1712 = vpack.c.b16 %v1440, %v1424
      %v1713 = vpack.c.b16 %v1441, %v1425
      %v1714 = vpack.c.b16 %v1442, %v1426
      %v1715 = vpack.c.b16 %v1443, %v1427
      %v1716 = vpack.c.b16 %v1444, %v1428
      %v1717 = vpack.c.b16 %v1445, %v1429
      %v1718 = vpack.c.b16 %v1446, %v1430
      %v1719 = vpack.c.b16 %v1447, %v1431
      %v1720 = vpack.c.b16 %v1448, %v1432
      %v1721 = vpack.c.b16 %v1449, %v1433
      %v1722 = vpack.c.b16 %v1450, %v1434
      %v1723 = vpack.c.b16 %v1451, %v1435
      %v1724 = vpack.c.b16 %v1452, %v1436
      %v1725 = vpack.c.b16 %v1469, %v1453
      %v1726 = vpack.c.b16 %v1470, %v1454
      %v1727 = vpack.c.b16 %v1471, %v1455
      %v1728 = vpack.c.b16 %v1472, %v1456
      %v1729 = vpack.c.b16 %v1473, %v1457
      %v1730 = vpack.c.b16 %v1474, %v1458
      %v1731 = vpack.c.b16 %v1475, %v1459
      %v1732 = vpack.c.b16 %v1476, %v1460
      %v1733 = vpack.c.b16 %v1477, %v1461
      %v1734 = vpack.c.b16 %v1478, %v1462
      %v1735 = vpack.c.b16 %v1479, %v1463
      %v1736 = vpack.c.b16 %v1480, %v1464
      %v1737 = vpack.c.b16 %v1481, %v1465
      %v1738 = vpack.c.b16 %v1482, %v1466
      %v1739 = vpack.c.b16 %v1483, %v1467
      %v1740 = vpack.c.b16 %v1484, %v1468
      %v2253 = vunpack.c.l.b16 %v461
      %v2254 = vunpack.c.l.b16 %v462
      %v2255 = vunpack.c.l.b16 %v463
      %v2256 = vunpack.c.l.b16 %v464
      %v2257 = vunpack.c.l.b16 %v465
      %v2258 = vunpack.c.l.b16 %v466
      %v2259 = vunpack.c.l.b16 %v467
      %v2260 = vunpack.c.l.b16 %v468
      %v2261 = vunpack.c.l.b16 %v469
      %v2262 = vunpack.c.l.b16 %v470
      %v2263 = vunpack.c.l.b16 %v471
      %v2264 = vunpack.c.l.b16 %v472
      %v2265 = vunpack.c.l.b16 %v473
      %v2266 = vunpack.c.l.b16 %v474
      %v2267 = vunpack.c.l.b16 %v475
      %v2268 = vunpack.c.l.b16 %v476
      %v2269 = vunpack.c.l.b16 %v477
      %v2270 = vunpack.c.l.b16 %v478
      %v2271 = vunpack.c.l.b16 %v479
      %v2272 = vunpack.c.l.b16 %v480
      %v2273 = vunpack.c.l.b16 %v481
      %v2274 = vunpack.c.l.b16 %v482
      %v2275 = vunpack.c.l.b16 %v483
      %v2276 = vunpack.c.l.b16 %v484
      %v2277 = vunpack.c.l.b16 %v485
      %v2278 = vunpack.c.l.b16 %v486
      %v2279 = vunpack.c.l.b16 %v487
      %v2280 = vunpack.c.l.b16 %v488
      %v2281 = vunpack.c.l.b16 %v489
      %v2282 = vunpack.c.l.b16 %v490
      %v2283 = vunpack.c.l.b16 %v491
      %v2284 = vunpack.c.l.b16 %v492
      %v2285 = vunpack.c.l.b16 %v493
      %v2286 = vunpack.c.l.b16 %v494
      %v2287 = vunpack.c.l.b16 %v495
      %v2288 = vunpack.c.l.b16 %v496
      %v2289 = vunpack.c.l.b16 %v497
      %v2290 = vunpack.c.l.b16 %v498
      %v2291 = vunpack.c.l.b16 %v499
      %v2292 = vunpack.c.l.b16 %v500
      %v2293 = vunpack.c.l.b16 %v501
      %v2294 = vunpack.c.l.b16 %v502
      %v2295 = vunpack.c.l.b16 %v503
      %v2296 = vunpack.c.l.b16 %v504
      %v2297 = vunpack.c.l.b16 %v505
      %v2298 = vunpack.c.l.b16 %v506
      %v2299 = vunpack.c.l.b16 %v507
      %v2300 = vunpack.c.l.b16 %v508
      %v2301 = vunpack.c.l.b16 %v509
      %v2302 = vunpack.c.l.b16 %v510
      %v2303 = vunpack.c.l.b16 %v511
      %v2304 = vunpack.c.l.b16 %v512
      %v2305 = vunpack.c.l.b16 %v513
      %v2306 = vunpack.c.l.b16 %v514
      %v2307 = vunpack.c.l.b16 %v515
      %v2308 = vunpack.c.l.b16 %v516
      %v2309 = vunpack.c.l.b16 %v517
      %v2310 = vunpack.c.l.b16 %v518
      %v2311 = vunpack.c.l.b16 %v519
      %v2312 = vunpack.c.l.b16 %v520
      %v2313 = vunpack.c.l.b16 %v521
      %v2314 = vunpack.c.l.b16 %v522
      %v2315 = vunpack.c.l.b16 %v523
      %v2316 = vunpack.c.l.b16 %v524
      %v2317 = vunpack.c.l.b16 %v525
      %v2318 = vunpack.c.l.b16 %v526
      %v2319 = vunpack.c.l.b16 %v527
      %v2320 = vunpack.c.l.b16 %v528
      %v2321 = vunpack.c.l.b16 %v529
      %v2322 = vunpack.c.l.b16 %v530
      %v2323 = vunpack.c.l.b16 %v531
      %v2324 = vunpack.c.l.b16 %v532
      %v2325 = vunpack.c.l.b16 %v533
      %v2326 = vunpack.c.l.b16 %v534
      %v2327 = vunpack.c.l.b16 %v535
      %v2328 = vunpack.c.l.b16 %v536
      %v2329 = vunpack.c.l.b16 %v537
      %v2330 = vunpack.c.l.b16 %v538
      %v2331 = vunpack.c.l.b16 %v539
      %v2332 = vunpack.c.l.b16 %v540
      %v2333 = vunpack.c.l.b16 %v541
      %v2334 = vunpack.c.l.b16 %v542
      %v2335 = vunpack.c.l.b16 %v543
      %v2336 = vunpack.c.l.b16 %v544
      %v2337 = vunpack.c.l.b16 %v545
      %v2338 = vunpack.c.l.b16 %v546
      %v2339 = vunpack.c.l.b16 %v547
      %v2340 = vunpack.c.l.b16 %v548
      %v2341 = vunpack.c.l.b16 %v549
      %v2342 = vunpack.c.l.b16 %v550
      %v2343 = vunpack.c.l.b16 %v551
      %v2344 = vunpack.c.l.b16 %v552
      %v2345 = vunpack.c.l.b16 %v553
      %v2346 = vunpack.c.l.b16 %v554
      %v2347 = vunpack.c.l.b16 %v555
      %v2348 = vunpack.c.l.b16 %v556
      %v2349 = vunpack.c.l.b16 %v557
      %v2350 = vunpack.c.l.b16 %v558
      %v2351 = vunpack.c.l.b16 %v559
      %v2352 = vunpack.c.l.b16 %v560
      %v2353 = vunpack.c.l.b16 %v561
      %v2354 = vunpack.c.l.b16 %v562
      %v2355 = vunpack.c.l.b16 %v563
      %v2356 = vunpack.c.l.b16 %v564
      %v2357 = vunpack.c.l.b16 %v565
      %v2358 = vunpack.c.l.b16 %v566
      %v2359 = vunpack.c.l.b16 %v567
      %v2360 = vunpack.c.l.b16 %v568
      %v2361 = vunpack.c.l.b16 %v569
      %v2362 = vunpack.c.l.b16 %v570
      %v2363 = vunpack.c.l.b16 %v571
      %v2364 = vunpack.c.l.b16 %v572
      %v2365 = vunpack.c.l.b16 %v573
      %v2366 = vunpack.c.l.b16 %v574
      %v2367 = vunpack.c.l.b16 %v575
      %v2368 = vunpack.c.l.b16 %v576
      %v2369 = vunpack.c.l.b16 %v577
      %v2370 = vunpack.c.l.b16 %v578
      %v2371 = vunpack.c.l.b16 %v579
      %v2372 = vunpack.c.l.b16 %v580
      %v2373 = vunpack.c.l.b16 %v581
      %v2374 = vunpack.c.l.b16 %v582
      %v2375 = vunpack.c.l.b16 %v583
      %v2376 = vunpack.c.l.b16 %v584
      %v2377 = vunpack.c.l.b16 %v585
      %v2378 = vunpack.c.l.b16 %v586
      %v2379 = vunpack.c.l.b16 %v587
      %v2380 = vunpack.c.l.b16 %v588
      %v2381 = vunpack.c.l.b16 %v589
      %v2382 = vunpack.c.l.b16 %v590
      %v2383 = vunpack.c.l.b16 %v591
      %v2384 = vunpack.c.l.b16 %v592
      %v2385 = vunpack.c.l.b16 %v593
      %v2386 = vunpack.c.l.b16 %v594
      %v2387 = vunpack.c.l.b16 %v595
      %v2388 = vunpack.c.l.b16 %v596
      %v2389 = vunpack.c.l.b16 %v597
      %v2390 = vunpack.c.l.b16 %v598
      %v2391 = vunpack.c.l.b16 %v599
      %v2392 = vunpack.c.l.b16 %v600
      %v2393 = vunpack.c.l.b16 %v601
      %v2394 = vunpack.c.l.b16 %v602
      %v2395 = vunpack.c.l.b16 %v603
      %v2396 = vunpack.c.l.b16 %v604
      %v2397 = vunpack.c.l.b16 %v605
      %v2398 = vunpack.c.l.b16 %v606
      %v2399 = vunpack.c.l.b16 %v607
      %v2400 = vunpack.c.l.b16 %v608
      %v2401 = vunpack.c.l.b16 %v609
      %v2402 = vunpack.c.l.b16 %v610
      %v2403 = vunpack.c.l.b16 %v611
      %v2404 = vunpack.c.l.b16 %v612
      %v2405 = vunpack.c.l.b16 %v613
      %v2406 = vunpack.c.l.b16 %v614
      %v2407 = vunpack.c.l.b16 %v615
      %v2408 = vunpack.c.l.b16 %v616
      %v2409 = vunpack.c.l.b16 %v617
      %v2410 = vunpack.c.l.b16 %v618
      %v2411 = vunpack.c.l.b16 %v619
      %v2412 = vunpack.c.l.b16 %v620
      %v2413 = vunpack.c.l.b16 %v621
      %v2414 = vunpack.c.l.b16 %v622
      %v2415 = vunpack.c.l.b16 %v623
      %v2416 = vunpack.c.l.b16 %v624
      %v2417 = vunpack.c.l.b16 %v625
      %v2418 = vunpack.c.l.b16 %v626
      %v2419 = vunpack.c.l.b16 %v627
      %v2420 = vunpack.c.l.b16 %v628
      %v2421 = vunpack.c.l.b16 %v629
      %v2422 = vunpack.c.l.b16 %v630
      %v2423 = vunpack.c.l.b16 %v631
      %v2424 = vunpack.c.l.b16 %v632
      %v2425 = vunpack.c.l.b16 %v633
      %v2426 = vunpack.c.l.b16 %v634
      %v2427 = vunpack.c.l.b16 %v635
      %v2428 = vunpack.c.l.b16 %v636
      %v2429 = vunpack.c.l.b16 %v637
      %v2430 = vunpack.c.l.b16 %v638
      %v2431 = vunpack.c.l.b16 %v639
      %v2432 = vunpack.c.l.b16 %v640
      %v2433 = vunpack.c.l.b16 %v641
      %v2434 = vunpack.c.l.b16 %v642
      %v2435 = vunpack.c.l.b16 %v643
      %v2436 = vunpack.c.l.b16 %v644
      %v2437 = vunpack.c.l.b16 %v645
      %v2438 = vunpack.c.l.b16 %v646
      %v2439 = vunpack.c.l.b16 %v647
      %v2440 = vunpack.c.l.b16 %v648
      %v2441 = vunpack.c.l.b16 %v649
      %v2442 = vunpack.c.l.b16 %v650
      %v2443 = vunpack.c.l.b16 %v651
      %v2444 = vunpack.c.l.b16 %v652
      %v2445 = vunpack.c.l.b16 %v653
      %v2446 = vunpack.c.l.b16 %v654
      %v2447 = vunpack.c.l.b16 %v655
      %v2448 = vunpack.c.l.b16 %v656
      %v2449 = vunpack.c.l.b16 %v657
      %v2450 = vunpack.c.l.b16 %v658
      %v2451 = vunpack.c.l.b16 %v659
      %v2452 = vunpack.c.l.b16 %v660
      %v2453 = vunpack.c.l.b16 %v661
      %v2454 = vunpack.c.l.b16 %v662
      %v2455 = vunpack.c.l.b16 %v663
      %v2456 = vunpack.c.l.b16 %v664
      %v2457 = vunpack.c.l.b16 %v665
      %v2458 = vunpack.c.l.b16 %v666
      %v2459 = vunpack.c.l.b16 %v667
      %v2460 = vunpack.c.l.b16 %v668
      %v2461 = vunpack.c.l.b16 %v669
      %v2462 = vunpack.c.l.b16 %v670
      %v2463 = vunpack.c.l.b16 %v671
      %v2464 = vunpack.c.l.b16 %v672
      %v2465 = vunpack.c.l.b16 %v673
      %v2466 = vunpack.c.l.b16 %v674
      %v2467 = vunpack.c.l.b16 %v675
      %v2468 = vunpack.c.l.b16 %v676
      %v2469 = vunpack.c.l.b16 %v677
      %v2470 = vunpack.c.l.b16 %v678
      %v2471 = vunpack.c.l.b16 %v679
      %v2472 = vunpack.c.l.b16 %v680
      %v2473 = vunpack.c.l.b16 %v681
      %v2474 = vunpack.c.l.b16 %v682
      %v2475 = vunpack.c.l.b16 %v683
      %v2476 = vunpack.c.l.b16 %v684
      %v2477 = vunpack.c.l.b16 %v685
      %v2478 = vunpack.c.l.b16 %v686
      %v2479 = vunpack.c.l.b16 %v687
      %v2480 = vunpack.c.l.b16 %v688
      %v2481 = vunpack.c.l.b16 %v689
      %v2482 = vunpack.c.l.b16 %v690
      %v2483 = vunpack.c.l.b16 %v691
      %v2484 = vunpack.c.l.b16 %v692
      %v2485 = vunpack.c.l.b16 %v693
      %v2486 = vunpack.c.l.b16 %v694
      %v2487 = vunpack.c.l.b16 %v695
      %v2488 = vunpack.c.l.b16 %v696
      %v2489 = vunpack.c.l.b16 %v697
      %v2490 = vunpack.c.l.b16 %v698
      %v2491 = vunpack.c.l.b16 %v699
      %v2492 = vunpack.c.l.b16 %v700
      %v2493 = vunpack.c.l.b16 %v701
      %v2494 = vunpack.c.l.b16 %v702
      %v2495 = vunpack.c.l.b16 %v703
      %v2496 = vunpack.c.l.b16 %v704
      %v2497 = vunpack.c.l.b16 %v705
      %v2498 = vunpack.c.l.b16 %v706
      %v2499 = vunpack.c.l.b16 %v707
      %v2500 = vunpack.c.l.b16 %v708
      %v2501 = vunpack.c.l.b16 %v709
      %v2502 = vunpack.c.l.b16 %v710
      %v2503 = vunpack.c.l.b16 %v711
      %v2504 = vunpack.c.l.b16 %v712
      %v2505 = vunpack.c.l.b16 %v713
      %v2506 = vunpack.c.l.b16 %v714
      %v2507 = vunpack.c.l.b16 %v715
      %v2508 = vunpack.c.l.b16 %v716
      %v2509 = vpack.c.b16 %v2254, %v2253
      %v2510 = vpack.c.b16 %v2256, %v2255
      %v2511 = vpack.c.b16 %v2258, %v2257
      %v2512 = vpack.c.b16 %v2260, %v2259
      %v2513 = vpack.c.b16 %v2262, %v2261
      %v2514 = vpack.c.b16 %v2264, %v2263
      %v2515 = vpack.c.b16 %v2266, %v2265
      %v2516 = vpack.c.b16 %v2268, %v2267
      %v2517 = vpack.c.b16 %v2270, %v2269
      %v2518 = vpack.c.b16 %v2272, %v2271
      %v2519 = vpack.c.b16 %v2274, %v2273
      %v2520 = vpack.c.b16 %v2276, %v2275
      %v2521 = vpack.c.b16 %v2278, %v2277
      %v2522 = vpack.c.b16 %v2280, %v2279
      %v2523 = vpack.c.b16 %v2282, %v2281
      %v2524 = vpack.c.b16 %v2284, %v2283
      %v2525 = vpack.c.b16 %v2286, %v2285
      %v2526 = vpack.c.b16 %v2288, %v2287
      %v2527 = vpack.c.b16 %v2290, %v2289
      %v2528 = vpack.c.b16 %v2292, %v2291
      %v2529 = vpack.c.b16 %v2294, %v2293
      %v2530 = vpack.c.b16 %v2296, %v2295
      %v2531 = vpack.c.b16 %v2298, %v2297
      %v2532 = vpack.c.b16 %v2300, %v2299
      %v2533 = vpack.c.b16 %v2302, %v2301
      %v2534 = vpack.c.b16 %v2304, %v2303
      %v2535 = vpack.c.b16 %v2306, %v2305
      %v2536 = vpack.c.b16 %v2308, %v2307
      %v2537 = vpack.c.b16 %v2310, %v2309
      %v2538 = vpack.c.b16 %v2312, %v2311
      %v2539 = vpack.c.b16 %v2314, %v2313
      %v2540 = vpack.c.b16 %v2316, %v2315
      %v2541 = vpack.c.b16 %v2318, %v2317
      %v2542 = vpack.c.b16 %v2320, %v2319
      %v2543 = vpack.c.b16 %v2322, %v2321
      %v2544 = vpack.c.b16 %v2324, %v2323
      %v2545 = vpack.c.b16 %v2326, %v2325
      %v2546 = vpack.c.b16 %v2328, %v2327
      %v2547 = vpack.c.b16 %v2330, %v2329
      %v2548 = vpack.c.b16 %v2332, %v2331
      %v2549 = vpack.c.b16 %v2334, %v2333
      %v2550 = vpack.c.b16 %v2336, %v2335
      %v2551 = vpack.c.b16 %v2338, %v2337
      %v2552 = vpack.c.b16 %v2340, %v2339
      %v2553 = vpack.c.b16 %v2342, %v2341
      %v2554 = vpack.c.b16 %v2344, %v2343
      %v2555 = vpack.c.b16 %v2346, %v2345
      %v2556 = vpack.c.b16 %v2348, %v2347
      %v2557 = vpack.c.b16 %v2350, %v2349
      %v2558 = vpack.c.b16 %v2352, %v2351
      %v2559 = vpack.c.b16 %v2354, %v2353
      %v2560 = vpack.c.b16 %v2356, %v2355
      %v2561 = vpack.c.b16 %v2358, %v2357
      %v2562 = vpack.c.b16 %v2360, %v2359
      %v2563 = vpack.c.b16 %v2362, %v2361
      %v2564 = vpack.c.b16 %v2364, %v2363
      %v2565 = vpack.c.b16 %v2366, %v2365
      %v2566 = vpack.c.b16 %v2368, %v2367
      %v2567 = vpack.c.b16 %v2370, %v2369
      %v2568 = vpack.c.b16 %v2372, %v2371
      %v2569 = vpack.c.b16 %v2374, %v2373
      %v2570 = vpack.c.b16 %v2376, %v2375
      %v2571 = vpack.c.b16 %v2378, %v2377
      %v2572 = vpack.c.b16 %v2380, %v2379
      %v2573 = vpack.c.b16 %v2382, %v2381
      %v2574 = vpack.c.b16 %v2384, %v2383
      %v2575 = vpack.c.b16 %v2386, %v2385
      %v2576 = vpack.c.b16 %v2388, %v2387
      %v2577 = vpack.c.b16 %v2390, %v2389
      %v2578 = vpack.c.b16 %v2392, %v2391
      %v2579 = vpack.c.b16 %v2394, %v2393
      %v2580 = vpack.c.b16 %v2396, %v2395
      %v2581 = vpack.c.b16 %v2398, %v2397
      %v2582 = vpack.c.b16 %v2400, %v2399
      %v2583 = vpack.c.b16 %v2402, %v2401
      %v2584 = vpack.c.b16 %v2404, %v2403
      %v2585 = vpack.c.b16 %v2406, %v2405
      %v2586 = vpack.c.b16 %v2408, %v2407
      %v2587 = vpack.c.b16 %v2410, %v2409
      %v2588 = vpack.c.b16 %v2412, %v2411
      %v2589 = vpack.c.b16 %v2414, %v2413
      %v2590 = vpack.c.b16 %v2416, %v2415
      %v2591 = vpack.c.b16 %v2418, %v2417
      %v2592 = vpack.c.b16 %v2420, %v2419
      %v2593 = vpack.c.b16 %v2422, %v2421
      %v2594 = vpack.c.b16 %v2424, %v2423
      %v2595 = vpack.c.b16 %v2426, %v2425
      %v2596 = vpack.c.b16 %v2428, %v2427
      %v2597 = vpack.c.b16 %v2430, %v2429
      %v2598 = vpack.c.b16 %v2432, %v2431
      %v2599 = vpack.c.b16 %v2434, %v2433
      %v2600 = vpack.c.b16 %v2436, %v2435
      %v2601 = vpack.c.b16 %v2438, %v2437
      %v2602 = vpack.c.b16 %v2440, %v2439
      %v2603 = vpack.c.b16 %v2442, %v2441
      %v2604 = vpack.c.b16 %v2444, %v2443
      %v2605 = vpack.c.b16 %v2446, %v2445
      %v2606 = vpack.c.b16 %v2448, %v2447
      %v2607 = vpack.c.b16 %v2450, %v2449
      %v2608 = vpack.c.b16 %v2452, %v2451
      %v2609 = vpack.c.b16 %v2454, %v2453
      %v2610 = vpack.c.b16 %v2456, %v2455
      %v2611 = vpack.c.b16 %v2458, %v2457
      %v2612 = vpack.c.b16 %v2460, %v2459
      %v2613 = vpack.c.b16 %v2462, %v2461
      %v2614 = vpack.c.b16 %v2464, %v2463
      %v2615 = vpack.c.b16 %v2466, %v2465
      %v2616 = vpack.c.b16 %v2468, %v2467
      %v2617 = vpack.c.b16 %v2470, %v2469
      %v2618 = vpack.c.b16 %v2472, %v2471
      %v2619 = vpack.c.b16 %v2474, %v2473
      %v2620 = vpack.c.b16 %v2476, %v2475
      %v2621 = vpack.c.b16 %v2478, %v2477
      %v2622 = vpack.c.b16 %v2480, %v2479
      %v2623 = vpack.c.b16 %v2482, %v2481
      %v2624 = vpack.c.b16 %v2484, %v2483
      %v2625 = vpack.c.b16 %v2486, %v2485
      %v2626 = vpack.c.b16 %v2488, %v2487
      %v2627 = vpack.c.b16 %v2490, %v2489
      %v2628 = vpack.c.b16 %v2492, %v2491
      %v2629 = vpack.c.b16 %v2494, %v2493
      %v2630 = vpack.c.b16 %v2496, %v2495
      %v2631 = vpack.c.b16 %v2498, %v2497
      %v2632 = vpack.c.b16 %v2500, %v2499
      %v2633 = vpack.c.b16 %v2502, %v2501
      %v2634 = vpack.c.b16 %v2504, %v2503
      %v2635 = vpack.c.b16 %v2506, %v2505
      %v2636 = vpack.c.b16 %v2508, %v2507
      %2765 = vmatprep.subr.bf16.mxu0 0
      %2766 = vmatpush1.bf16.msra.mxu0 %v2509
      %2767 = vmatprep.subr.bf16.mxu0 0
      %2768 = vmatpush1.bf16.msra.mxu0 %v2510
      %2769 = vmatprep.subr.bf16.mxu0 0
      %2770 = vmatpush1.bf16.msra.mxu0 %v2511
      %2771 = vmatprep.subr.bf16.mxu0 0
      %2772 = vmatpush1.bf16.msra.mxu0 %v2512
      %2773 = vmatprep.subr.bf16.mxu0 0
      %2774 = vmatpush1.bf16.msra.mxu0 %v2513
      %2775 = vmatprep.subr.bf16.mxu0 0
      %2776 = vmatpush1.bf16.msra.mxu0 %v2514
      %2777 = vmatprep.subr.bf16.mxu0 0
      %2778 = vmatpush1.bf16.msra.mxu0 %v2515
      %2779 = vmatprep.subr.bf16.mxu0 0
      %2780 = vmatpush1.bf16.msra.mxu0 %v2516
      %2781 = vmatprep.subr.bf16.mxu0 0
      %2782 = vmatpush1.bf16.msra.mxu0 %v2517
      %2783 = vmatprep.subr.bf16.mxu0 0
      %2784 = vmatpush1.bf16.msra.mxu0 %v2518
      %2785 = vmatprep.subr.bf16.mxu0 0
      %2786 = vmatpush1.bf16.msra.mxu0 %v2519
      %2787 = vmatprep.subr.bf16.mxu0 0
      %2788 = vmatpush1.bf16.msra.mxu0 %v2520
      %2789 = vmatprep.subr.bf16.mxu0 0
      %2790 = vmatpush1.bf16.msra.mxu0 %v2521
      %2791 = vmatprep.subr.bf16.mxu0 0
      %2792 = vmatpush1.bf16.msra.mxu0 %v2522
      %2793 = vmatprep.subr.bf16.mxu0 0
      %2794 = vmatpush1.bf16.msra.mxu0 %v2523
      %2795 = vmatprep.subr.bf16.mxu0 0
      %2796 = vmatpush1.bf16.msra.mxu0 %v2524
      %2797 = vmatprep.mubr.bf16.mxu0 %v1486
      %2798 = vmatmul.mubr.bf16.gmra.mrb[0].mxu0 %v1485
      %v2799 = vpop.f32.mrb[0].mxu0
      %v2800 = vadd.f32 0.0, %v2799
      %v2801 = vpop.f32.mrb[0].mxu0
      %v2802 = vpop.f32.mrb[0].mxu0
      %v2803 = vadd.f32 0.0, %v2802
      %v2804 = vpop.f32.mrb[0].mxu0
      %2805 = vmatprep.mubr.bf16.mxu0 %v1502
      %2806 = vmatmul.mubr.bf16.gmra.mrb[0].mxu0 %v1501
      %v2807 = vpop.f32.mrb[0].mxu0
      %v2808 = vadd.f32 0.0, %v2807
      %v2809 = vpop.f32.mrb[0].mxu0
      %v2810 = vpop.f32.mrb[0].mxu0
      %v2811 = vadd.f32 0.0, %v2810
      %v2812 = vpop.f32.mrb[0].mxu0
      %2813 = vmatprep.mubr.bf16.mxu0 %v1518
      %2814 = vmatmul.mubr.bf16.gmra.mrb[0].mxu0 %v1517
      %v2815 = vpop.f32.mrb[0].mxu0
      %v2816 = vadd.f32 0.0, %v2815
      %v2817 = vpop.f32.mrb[0].mxu0
      %v2818 = vpop.f32.mrb[0].mxu0
      %v2819 = vadd.f32 0.0, %v2818
      %v2820 = vpop.f32.mrb[0].mxu0
      %2821 = vmatprep.mubr.bf16.mxu0 %v1534
      %2822 = vmatmul.mubr.bf16.gmra.mrb[0].mxu0 %v1533
      %v2823 = vpop.f32.mrb[0].mxu0
      %v2824 = vadd.f32 0.0, %v2823
      %v2825 = vpop.f32.mrb[0].mxu0
      %v2826 = vpop.f32.mrb[0].mxu0
      %v2827 = vadd.f32 0.0, %v2826
      %v2828 = vpop.f32.mrb[0].mxu0
      %2829 = vmatprep.mubr.bf16.mxu0 %v1550
      %2830 = vmatmul.mubr.bf16.gmra.mrb[0].mxu0 %v1549
      %v2831 = vpop.f32.mrb[0].mxu0
      %v2832 = vadd.f32 0.0, %v2831
      %v2833 = vpop.f32.mrb[0].mxu0
      %v2834 = vpop.f32.mrb[0].mxu0
      %v2835 = vadd.f32 0.0, %v2834
      %v2836 = vpop.f32.mrb[0].mxu0
      %2837 = vmatprep.mubr.bf16.mxu0 %v1566
      %2838 = vmatmul.mubr.bf16.gmra.mrb[0].mxu0 %v1565
      %v2839 = vpop.f32.mrb[0].mxu0
      %v2840 = vadd.f32 0.0, %v2839
      %v2841 = vpop.f32.mrb[0].mxu0
      %v2842 = vpop.f32.mrb[0].mxu0
      %v2843 = vadd.f32 0.0, %v2842
      %v2844 = vpop.f32.mrb[0].mxu0
      %2845 = vmatprep.mubr.bf16.mxu0 %v1582
      %2846 = vmatmul.mubr.bf16.gmra.mrb[0].mxu0 %v1581
      %v2847 = vpop.f32.mrb[0].mxu0
      %v2848 = vadd.f32 0.0, %v2847
      %v2849 = vpop.f32.mrb[0].mxu0
      %v2850 = vpop.f32.mrb[0].mxu0
      %v2851 = vadd.f32 0.0, %v2850
      %v2852 = vpop.f32.mrb[0].mxu0
      %2853 = vmatprep.mubr.bf16.mxu0 %v1598
      %2854 = vmatmul.mubr.bf16.gmra.mrb[0].mxu0 %v1597
      %v2855 = vpop.f32.mrb[0].mxu0
      %v2856 = vadd.f32 0.0, %v2855
      %v2857 = vpop.f32.mrb[0].mxu0
      %v2858 = vpop.f32.mrb[0].mxu0
      %v2859 = vadd.f32 0.0, %v2858
      %v2860 = vpop.f32.mrb[0].mxu0
      %2861 = vmatprep.mubr.bf16.mxu0 %v1614
      %2862 = vmatmul.mubr.bf16.gmra.mrb[0].mxu0 %v1613
      %v2863 = vpop.f32.mrb[0].mxu0
      %v2864 = vadd.f32 0.0, %v2863
      %v2865 = vpop.f32.mrb[0].mxu0
      %v2866 = vpop.f32.mrb[0].mxu0
      %v2867 = vadd.f32 0.0, %v2866
      %v2868 = vpop.f32.mrb[0].mxu0
      %2869 = vmatprep.mubr.bf16.mxu0 %v1630
      %2870 = vmatmul.mubr.bf16.gmra.mrb[0].mxu0 %v1629
      %v2871 = vpop.f32.mrb[0].mxu0
      %v2872 = vadd.f32 0.0, %v2871
      %v2873 = vpop.f32.mrb[0].mxu0
      %v2874 = vpop.f32.mrb[0].mxu0
      %v2875 = vadd.f32 0.0, %v2874
      %v2876 = vpop.f32.mrb[0].mxu0
      %2877 = vmatprep.mubr.bf16.mxu0 %v1646
      %2878 = vmatmul.mubr.bf16.gmra.mrb[0].mxu0 %v1645
      %v2879 = vpop.f32.mrb[0].mxu0
      %v2880 = vadd.f32 0.0, %v2879
      %v2881 = vpop.f32.mrb[0].mxu0
      %v2882 = vpop.f32.mrb[0].mxu0
      %v2883 = vadd.f32 0.0, %v2882
      %v2884 = vpop.f32.mrb[0].mxu0
      %2885 = vmatprep.mubr.bf16.mxu0 %v1662
      %2886 = vmatmul.mubr.bf16.gmra.mrb[0].mxu0 %v1661
      %v2887 = vpop.f32.mrb[0].mxu0
      %v2888 = vadd.f32 0.0, %v2887
      %v2889 = vpop.f32.mrb[0].mxu0
      %v2890 = vpop.f32.mrb[0].mxu0
      %v2891 = vadd.f32 0.0, %v2890
      %v2892 = vpop.f32.mrb[0].mxu0
      %2893 = vmatprep.mubr.bf16.mxu0 %v1678
      %2894 = vmatmul.mubr.bf16.gmra.mrb[0].mxu0 %v1677
      %v2895 = vpop.f32.mrb[0].mxu0
      %v2896 = vadd.f32 0.0, %v2895
      %v2897 = vpop.f32.mrb[0].mxu0
      %v2898 = vpop.f32.mrb[0].mxu0
      %v2899 = vadd.f32 0.0, %v2898
      %v2900 = vpop.f32.mrb[0].mxu0
      %2901 = vmatprep.mubr.bf16.mxu0 %v1694
      %2902 = vmatmul.mubr.bf16.gmra.mrb[0].mxu0 %v1693
      %v2903 = vpop.f32.mrb[0].mxu0
      %v2904 = vadd.f32 0.0, %v2903
      %v2905 = vpop.f32.mrb[0].mxu0
      %v2906 = vpop.f32.mrb[0].mxu0
      %v2907 = vadd.f32 0.0, %v2906
      %v2908 = vpop.f32.mrb[0].mxu0
      %2909 = vmatprep.mubr.bf16.mxu0 %v1710
      %2910 = vmatmul.mubr.bf16.gmra.mrb[0].mxu0 %v1709
      %v2911 = vpop.f32.mrb[0].mxu0
      %v2912 = vadd.f32 0.0, %v2911
      %v2913 = vpop.f32.mrb[0].mxu0
      %v2914 = vpop.f32.mrb[0].mxu0
      %v2915 = vadd.f32 0.0, %v2914
      %v2916 = vpop.f32.mrb[0].mxu0
      %2917 = vmatprep.mubr.bf16.mxu0 %v1726
      %2918 = vmatmul.mubr.bf16.gmra.mrb[0].mxu0 %v1725
      %v2919 = vpop.f32.mrb[0].mxu0
      %v2920 = vadd.f32 0.0, %v2919
      %v2921 = vpop.f32.mrb[0].mxu0
      %v2922 = vpop.f32.mrb[0].mxu0
      %v2923 = vadd.f32 0.0, %v2922
      %v2924 = vpop.f32.mrb[0].mxu0
      %2925 = vdwg.mxu0
      %2926 = vmatprep.subr.bf16.mxu0 0
      %2927 = vmatpush1.bf16.msra.mxu0 %v2525
      %2928 = vmatprep.subr.bf16.mxu0 0
      %2929 = vmatpush1.bf16.msra.mxu0 %v2526
      %2930 = vmatprep.subr.bf16.mxu0 0
      %2931 = vmatpush1.bf16.msra.mxu0 %v2527
      %2932 = vmatprep.subr.bf16.mxu0 0
      %2933 = vmatpush1.bf16.msra.mxu0 %v2528
      %2934 = vmatprep.subr.bf16.mxu0 0
      %2935 = vmatpush1.bf16.msra.mxu0 %v2529
      %2936 = vmatprep.subr.bf16.mxu0 0
      %2937 = vmatpush1.bf16.msra.mxu0 %v2530
      %2938 = vmatprep.subr.bf16.mxu0 0
      %2939 = vmatpush1.bf16.msra.mxu0 %v2531
      %2940 = vmatprep.subr.bf16.mxu0 0
      %2941 = vmatpush1.bf16.msra.mxu0 %v2532
      %2942 = vmatprep.subr.bf16.mxu0 0
      %2943 = vmatpush1.bf16.msra.mxu0 %v2533
      %2944 = vmatprep.subr.bf16.mxu0 0
      %2945 = vmatpush1.bf16.msra.mxu0 %v2534
      %2946 = vmatprep.subr.bf16.mxu0 0
      %2947 = vmatpush1.bf16.msra.mxu0 %v2535
      %2948 = vmatprep.subr.bf16.mxu0 0
      %2949 = vmatpush1.bf16.msra.mxu0 %v2536
      %2950 = vmatprep.subr.bf16.mxu0 0
      %2951 = vmatpush1.bf16.msra.mxu0 %v2537
      %2952 = vmatprep.subr.bf16.mxu0 0
      %2953 = vmatpush1.bf16.msra.mxu0 %v2538
      %2954 = vmatprep.subr.bf16.mxu0 0
      %2955 = vmatpush1.bf16.msra.mxu0 %v2539
      %2956 = vmatprep.subr.bf16.mxu0 0
      %2957 = vmatpush1.bf16.msra.mxu0 %v2540
      %2958 = vmatprep.mubr.bf16.mxu0 %v1488
      %2959 = vmatmul.mubr.bf16.gmra.mrb[0].mxu0 %v1487
      %v2960 = vpop.f32.mrb[0].mxu0
      %v2961 = vadd.f32 %v2800, %v2960
      %v2962 = vpop.f32.mrb[0].mxu0
      %v2963 = vpop.f32.mrb[0].mxu0
      %v2964 = vadd.f32 %v2803, %v2963
      %v2965 = vpop.f32.mrb[0].mxu0
      %2966 = vmatprep.mubr.bf16.mxu0 %v1504
      %2967 = vmatmul.mubr.bf16.gmra.mrb[0].mxu0 %v1503
      %v2968 = vpop.f32.mrb[0].mxu0
      %v2969 = vadd.f32 %v2808, %v2968
      %v2970 = vpop.f32.mrb[0].mxu0
      %v2971 = vpop.f32.mrb[0].mxu0
      %v2972 = vadd.f32 %v2811, %v2971
      %v2973 = vpop.f32.mrb[0].mxu0
      %2974 = vmatprep.mubr.bf16.mxu0 %v1520
      %2975 = vmatmul.mubr.bf16.gmra.mrb[0].mxu0 %v1519
      %v2976 = vpop.f32.mrb[0].mxu0
      %v2977 = vadd.f32 %v2816, %v2976
      %v2978 = vpop.f32.mrb[0].mxu0
      %v2979 = vpop.f32.mrb[0].mxu0
      %v2980 = vadd.f32 %v2819, %v2979
      %v2981 = vpop.f32.mrb[0].mxu0
      %2982 = vmatprep.mubr.bf16.mxu0 %v1536
      %2983 = vmatmul.mubr.bf16.gmra.mrb[0].mxu0 %v1535
      %v2984 = vpop.f32.mrb[0].mxu0
      %v2985 = vadd.f32 %v2824, %v2984
      %v2986 = vpop.f32.mrb[0].mxu0
      %v2987 = vpop.f32.mrb[0].mxu0
      %v2988 = vadd.f32 %v2827, %v2987
      %v2989 = vpop.f32.mrb[0].mxu0
      %2990 = vmatprep.mubr.bf16.mxu0 %v1552
      %2991 = vmatmul.mubr.bf16.gmra.mrb[0].mxu0 %v1551
      %v2992 = vpop.f32.mrb[0].mxu0
      %v2993 = vadd.f32 %v2832, %v2992
      %v2994 = vpop.f32.mrb[0].mxu0
      %v2995 = vpop.f32.mrb[0].mxu0
      %v2996 = vadd.f32 %v2835, %v2995
      %v2997 = vpop.f32.mrb[0].mxu0
      %2998 = vmatprep.mubr.bf16.mxu0 %v1568
      %2999 = vmatmul.mubr.bf16.gmra.mrb[0].mxu0 %v1567
      %v3000 = vpop.f32.mrb[0].mxu0
      %v3001 = vadd.f32 %v2840, %v3000
      %v3002 = vpop.f32.mrb[0].mxu0
      %v3003 = vpop.f32.mrb[0].mxu0
      %v3004 = vadd.f32 %v2843, %v3003
      %v3005 = vpop.f32.mrb[0].mxu0
      %3006 = vmatprep.mubr.bf16.mxu0 %v1584
      %3007 = vmatmul.mubr.bf16.gmra.mrb[0].mxu0 %v1583
      %v3008 = vpop.f32.mrb[0].mxu0
      %v3009 = vadd.f32 %v2848, %v3008
      %v3010 = vpop.f32.mrb[0].mxu0
      %v3011 = vpop.f32.mrb[0].mxu0
      %v3012 = vadd.f32 %v2851, %v3011
      %v3013 = vpop.f32.mrb[0].mxu0
      %3014 = vmatprep.mubr.bf16.mxu0 %v1600
      %3015 = vmatmul.mubr.bf16.gmra.mrb[0].mxu0 %v1599
      %v3016 = vpop.f32.mrb[0].mxu0
      %v3017 = vadd.f32 %v2856, %v3016
      %v3018 = vpop.f32.mrb[0].mxu0
      %v3019 = vpop.f32.mrb[0].mxu0
      %v3020 = vadd.f32 %v2859, %v3019
      %v3021 = vpop.f32.mrb[0].mxu0
      %3022 = vmatprep.mubr.bf16.mxu0 %v1616
      %3023 = vmatmul.mubr.bf16.gmra.mrb[0].mxu0 %v1615
      %v3024 = vpop.f32.mrb[0].mxu0
      %v3025 = vadd.f32 %v2864, %v3024
      %v3026 = vpop.f32.mrb[0].mxu0
      %v3027 = vpop.f32.mrb[0].mxu0
      %v3028 = vadd.f32 %v2867, %v3027
      %v3029 = vpop.f32.mrb[0].mxu0
      %3030 = vmatprep.mubr.bf16.mxu0 %v1632
      %3031 = vmatmul.mubr.bf16.gmra.mrb[0].mxu0 %v1631
      %v3032 = vpop.f32.mrb[0].mxu0
      %v3033 = vadd.f32 %v2872, %v3032
      %v3034 = vpop.f32.mrb[0].mxu0
      %v3035 = vpop.f32.mrb[0].mxu0
      %v3036 = vadd.f32 %v2875, %v3035
      %v3037 = vpop.f32.mrb[0].mxu0
      %3038 = vmatprep.mubr.bf16.mxu0 %v1648
      %3039 = vmatmul.mubr.bf16.gmra.mrb[0].mxu0 %v1647
      %v3040 = vpop.f32.mrb[0].mxu0
      %v3041 = vadd.f32 %v2880, %v3040
      %v3042 = vpop.f32.mrb[0].mxu0
      %v3043 = vpop.f32.mrb[0].mxu0
      %v3044 = vadd.f32 %v2883, %v3043
      %v3045 = vpop.f32.mrb[0].mxu0
      %3046 = vmatprep.mubr.bf16.mxu0 %v1664
      %3047 = vmatmul.mubr.bf16.gmra.mrb[0].mxu0 %v1663
      %v3048 = vpop.f32.mrb[0].mxu0
      %v3049 = vadd.f32 %v2888, %v3048
      %v3050 = vpop.f32.mrb[0].mxu0
      %v3051 = vpop.f32.mrb[0].mxu0
      %v3052 = vadd.f32 %v2891, %v3051
      %v3053 = vpop.f32.mrb[0].mxu0
      %3054 = vmatprep.mubr.bf16.mxu0 %v1680
      %3055 = vmatmul.mubr.bf16.gmra.mrb[0].mxu0 %v1679
      %v3056 = vpop.f32.mrb[0].mxu0
      %v3057 = vadd.f32 %v2896, %v3056
      %v3058 = vpop.f32.mrb[0].mxu0
      %v3059 = vpop.f32.mrb[0].mxu0
      %v3060 = vadd.f32 %v2899, %v3059
      %v3061 = vpop.f32.mrb[0].mxu0
      %3062 = vmatprep.mubr.bf16.mxu0 %v1696
      %3063 = vmatmul.mubr.bf16.gmra.mrb[0].mxu0 %v1695
      %v3064 = vpop.f32.mrb[0].mxu0
      %v3065 = vadd.f32 %v2904, %v3064
      %v3066 = vpop.f32.mrb[0].mxu0
      %v3067 = vpop.f32.mrb[0].mxu0
      %v3068 = vadd.f32 %v2907, %v3067
      %v3069 = vpop.f32.mrb[0].mxu0
      %3070 = vmatprep.mubr.bf16.mxu0 %v1712
      %3071 = vmatmul.mubr.bf16.gmra.mrb[0].mxu0 %v1711
      %v3072 = vpop.f32.mrb[0].mxu0
      %v3073 = vadd.f32 %v2912, %v3072
      %v3074 = vpop.f32.mrb[0].mxu0
      %v3075 = vpop.f32.mrb[0].mxu0
      %v3076 = vadd.f32 %v2915, %v3075
      %v3077 = vpop.f32.mrb[0].mxu0
      %3078 = vmatprep.mubr.bf16.mxu0 %v1728
      %3079 = vmatmul.mubr.bf16.gmra.mrb[0].mxu0 %v1727
      %v3080 = vpop.f32.mrb[0].mxu0
      %v3081 = vadd.f32 %v2920, %v3080
      %v3082 = vpop.f32.mrb[0].mxu0
      %v3083 = vpop.f32.mrb[0].mxu0
      %v3084 = vadd.f32 %v2923, %v3083
      %v3085 = vpop.f32.mrb[0].mxu0
      %3086 = vdwg.mxu0
      %3087 = vmatprep.subr.bf16.mxu0 0
      %3088 = vmatpush1.bf16.msra.mxu0 %v2541
      %3089 = vmatprep.subr.bf16.mxu0 0
      %3090 = vmatpush1.bf16.msra.mxu0 %v2542
      %3091 = vmatprep.subr.bf16.mxu0 0
      %3092 = vmatpush1.bf16.msra.mxu0 %v2543
      %3093 = vmatprep.subr.bf16.mxu0 0
      %3094 = vmatpush1.bf16.msra.mxu0 %v2544
      %3095 = vmatprep.subr.bf16.mxu0 0
      %3096 = vmatpush1.bf16.msra.mxu0 %v2545
      %3097 = vmatprep.subr.bf16.mxu0 0
      %3098 = vmatpush1.bf16.msra.mxu0 %v2546
      %3099 = vmatprep.subr.bf16.mxu0 0
      %3100 = vmatpush1.bf16.msra.mxu0 %v2547
      %3101 = vmatprep.subr.bf16.mxu0 0
      %3102 = vmatpush1.bf16.msra.mxu0 %v2548
      %3103 = vmatprep.subr.bf16.mxu0 0
      %3104 = vmatpush1.bf16.msra.mxu0 %v2549
      %3105 = vmatprep.subr.bf16.mxu0 0
      %3106 = vmatpush1.bf16.msra.mxu0 %v2550
      %3107 = vmatprep.subr.bf16.mxu0 0
      %3108 = vmatpush1.bf16.msra.mxu0 %v2551
      %3109 = vmatprep.subr.bf16.mxu0 0
      %3110 = vmatpush1.bf16.msra.mxu0 %v2552
      %3111 = vmatprep.subr.bf16.mxu0 0
      %3112 = vmatpush1.bf16.msra.mxu0 %v2553
      %3113 = vmatprep.subr.bf16.mxu0 0
      %3114 = vmatpush1.bf16.msra.mxu0 %v2554
      %3115 = vmatprep.subr.bf16.mxu0 0
      %3116 = vmatpush1.bf16.msra.mxu0 %v2555
      %3117 = vmatprep.subr.bf16.mxu0 0
      %3118 = vmatpush1.bf16.msra.mxu0 %v2556
      %3119 = vmatprep.mubr.bf16.mxu0 %v1490
      %3120 = vmatmul.mubr.bf16.gmra.mrb[0].mxu0 %v1489
      %v3121 = vpop.f32.mrb[0].mxu0
      %v3122 = vadd.f32 %v2961, %v3121
      %v3123 = vpop.f32.mrb[0].mxu0
      %v3124 = vpop.f32.mrb[0].mxu0
      %v3125 = vadd.f32 %v2964, %v3124
      %v3126 = vpop.f32.mrb[0].mxu0
      %3127 = vmatprep.mubr.bf16.mxu0 %v1506
      %3128 = vmatmul.mubr.bf16.gmra.mrb[0].mxu0 %v1505
      %v3129 = vpop.f32.mrb[0].mxu0
      %v3130 = vadd.f32 %v2969, %v3129
      %v3131 = vpop.f32.mrb[0].mxu0
      %v3132 = vpop.f32.mrb[0].mxu0
      %v3133 = vadd.f32 %v2972, %v3132
      %v3134 = vpop.f32.mrb[0].mxu0
      %3135 = vmatprep.mubr.bf16.mxu0 %v1522
      %3136 = vmatmul.mubr.bf16.gmra.mrb[0].mxu0 %v1521
      %v3137 = vpop.f32.mrb[0].mxu0
      %v3138 = vadd.f32 %v2977, %v3137
      %v3139 = vpop.f32.mrb[0].mxu0
      %v3140 = vpop.f32.mrb[0].mxu0
      %v3141 = vadd.f32 %v2980, %v3140
      %v3142 = vpop.f32.mrb[0].mxu0
      %3143 = vmatprep.mubr.bf16.mxu0 %v1538
      %3144 = vmatmul.mubr.bf16.gmra.mrb[0].mxu0 %v1537
      %v3145 = vpop.f32.mrb[0].mxu0
      %v3146 = vadd.f32 %v2985, %v3145
      %v3147 = vpop.f32.mrb[0].mxu0
      %v3148 = vpop.f32.mrb[0].mxu0
      %v3149 = vadd.f32 %v2988, %v3148
      %v3150 = vpop.f32.mrb[0].mxu0
      %3151 = vmatprep.mubr.bf16.mxu0 %v1554
      %3152 = vmatmul.mubr.bf16.gmra.mrb[0].mxu0 %v1553
      %v3153 = vpop.f32.mrb[0].mxu0
      %v3154 = vadd.f32 %v2993, %v3153
      %v3155 = vpop.f32.mrb[0].mxu0
      %v3156 = vpop.f32.mrb[0].mxu0
      %v3157 = vadd.f32 %v2996, %v3156
      %v3158 = vpop.f32.mrb[0].mxu0
      %3159 = vmatprep.mubr.bf16.mxu0 %v1570
      %3160 = vmatmul.mubr.bf16.gmra.mrb[0].mxu0 %v1569
      %v3161 = vpop.f32.mrb[0].mxu0
      %v3162 = vadd.f32 %v3001, %v3161
      %v3163 = vpop.f32.mrb[0].mxu0
      %v3164 = vpop.f32.mrb[0].mxu0
      %v3165 = vadd.f32 %v3004, %v3164
      %v3166 = vpop.f32.mrb[0].mxu0
      %3167 = vmatprep.mubr.bf16.mxu0 %v1586
      %3168 = vmatmul.mubr.bf16.gmra.mrb[0].mxu0 %v1585
      %v3169 = vpop.f32.mrb[0].mxu0
      %v3170 = vadd.f32 %v3009, %v3169
      %v3171 = vpop.f32.mrb[0].mxu0
      %v3172 = vpop.f32.mrb[0].mxu0
      %v3173 = vadd.f32 %v3012, %v3172
      %v3174 = vpop.f32.mrb[0].mxu0
      %3175 = vmatprep.mubr.bf16.mxu0 %v1602
      %3176 = vmatmul.mubr.bf16.gmra.mrb[0].mxu0 %v1601
      %v3177 = vpop.f32.mrb[0].mxu0
      %v3178 = vadd.f32 %v3017, %v3177
      %v3179 = vpop.f32.mrb[0].mxu0
      %v3180 = vpop.f32.mrb[0].mxu0
      %v3181 = vadd.f32 %v3020, %v3180
      %v3182 = vpop.f32.mrb[0].mxu0
      %3183 = vmatprep.mubr.bf16.mxu0 %v1618
      %3184 = vmatmul.mubr.bf16.gmra.mrb[0].mxu0 %v1617
      %v3185 = vpop.f32.mrb[0].mxu0
      %v3186 = vadd.f32 %v3025, %v3185
      %v3187 = vpop.f32.mrb[0].mxu0
      %v3188 = vpop.f32.mrb[0].mxu0
      %v3189 = vadd.f32 %v3028, %v3188
      %v3190 = vpop.f32.mrb[0].mxu0
      %3191 = vmatprep.mubr.bf16.mxu0 %v1634
      %3192 = vmatmul.mubr.bf16.gmra.mrb[0].mxu0 %v1633
      %v3193 = vpop.f32.mrb[0].mxu0
      %v3194 = vadd.f32 %v3033, %v3193
      %v3195 = vpop.f32.mrb[0].mxu0
      %v3196 = vpop.f32.mrb[0].mxu0
      %v3197 = vadd.f32 %v3036, %v3196
      %v3198 = vpop.f32.mrb[0].mxu0
      %3199 = vmatprep.mubr.bf16.mxu0 %v1650
      %3200 = vmatmul.mubr.bf16.gmra.mrb[0].mxu0 %v1649
      %v3201 = vpop.f32.mrb[0].mxu0
      %v3202 = vadd.f32 %v3041, %v3201
      %v3203 = vpop.f32.mrb[0].mxu0
      %v3204 = vpop.f32.mrb[0].mxu0
      %v3205 = vadd.f32 %v3044, %v3204
      %v3206 = vpop.f32.mrb[0].mxu0
      %3207 = vmatprep.mubr.bf16.mxu0 %v1666
      %3208 = vmatmul.mubr.bf16.gmra.mrb[0].mxu0 %v1665
      %v3209 = vpop.f32.mrb[0].mxu0
      %v3210 = vadd.f32 %v3049, %v3209
      %v3211 = vpop.f32.mrb[0].mxu0
      %v3212 = vpop.f32.mrb[0].mxu0
      %v3213 = vadd.f32 %v3052, %v3212
      %v3214 = vpop.f32.mrb[0].mxu0
      %3215 = vmatprep.mubr.bf16.mxu0 %v1682
      %3216 = vmatmul.mubr.bf16.gmra.mrb[0].mxu0 %v1681
      %v3217 = vpop.f32.mrb[0].mxu0
      %v3218 = vadd.f32 %v3057, %v3217
      %v3219 = vpop.f32.mrb[0].mxu0
      %v3220 = vpop.f32.mrb[0].mxu0
      %v3221 = vadd.f32 %v3060, %v3220
      %v3222 = vpop.f32.mrb[0].mxu0
      %3223 = vmatprep.mubr.bf16.mxu0 %v1698
      %3224 = vmatmul.mubr.bf16.gmra.mrb[0].mxu0 %v1697
      %v3225 = vpop.f32.mrb[0].mxu0
      %v3226 = vadd.f32 %v3065, %v3225
      %v3227 = vpop.f32.mrb[0].mxu0
      %v3228 = vpop.f32.mrb[0].mxu0
      %v3229 = vadd.f32 %v3068, %v3228
      %v3230 = vpop.f32.mrb[0].mxu0
      %3231 = vmatprep.mubr.bf16.mxu0 %v1714
      %3232 = vmatmul.mubr.bf16.gmra.mrb[0].mxu0 %v1713
      %v3233 = vpop.f32.mrb[0].mxu0
      %v3234 = vadd.f32 %v3073, %v3233
      %v3235 = vpop.f32.mrb[0].mxu0
      %v3236 = vpop.f32.mrb[0].mxu0
      %v3237 = vadd.f32 %v3076, %v3236
      %v3238 = vpop.f32.mrb[0].mxu0
      %3239 = vmatprep.mubr.bf16.mxu0 %v1730
      %3240 = vmatmul.mubr.bf16.gmra.mrb[0].mxu0 %v1729
      %v3241 = vpop.f32.mrb[0].mxu0
      %v3242 = vadd.f32 %v3081, %v3241
      %v3243 = vpop.f32.mrb[0].mxu0
      %v3244 = vpop.f32.mrb[0].mxu0
      %v3245 = vadd.f32 %v3084, %v3244
      %v3246 = vpop.f32.mrb[0].mxu0
      %3247 = vdwg.mxu0
      %3248 = vmatprep.subr.bf16.mxu0 0
      %3249 = vmatpush1.bf16.msra.mxu0 %v2557
      %3250 = vmatprep.subr.bf16.mxu0 0
      %3251 = vmatpush1.bf16.msra.mxu0 %v2558
      %3252 = vmatprep.subr.bf16.mxu0 0
      %3253 = vmatpush1.bf16.msra.mxu0 %v2559
      %3254 = vmatprep.subr.bf16.mxu0 0
      %3255 = vmatpush1.bf16.msra.mxu0 %v2560
      %3256 = vmatprep.subr.bf16.mxu0 0
      %3257 = vmatpush1.bf16.msra.mxu0 %v2561
      %3258 = vmatprep.subr.bf16.mxu0 0
      %3259 = vmatpush1.bf16.msra.mxu0 %v2562
      %3260 = vmatprep.subr.bf16.mxu0 0
      %3261 = vmatpush1.bf16.msra.mxu0 %v2563
      %3262 = vmatprep.subr.bf16.mxu0 0
      %3263 = vmatpush1.bf16.msra.mxu0 %v2564
      %3264 = vmatprep.subr.bf16.mxu0 0
      %3265 = vmatpush1.bf16.msra.mxu0 %v2565
      %3266 = vmatprep.subr.bf16.mxu0 0
      %3267 = vmatpush1.bf16.msra.mxu0 %v2566
      %3268 = vmatprep.subr.bf16.mxu0 0
      %3269 = vmatpush1.bf16.msra.mxu0 %v2567
      %3270 = vmatprep.subr.bf16.mxu0 0
      %3271 = vmatpush1.bf16.msra.mxu0 %v2568
      %3272 = vmatprep.subr.bf16.mxu0 0
      %3273 = vmatpush1.bf16.msra.mxu0 %v2569
      %3274 = vmatprep.subr.bf16.mxu0 0
      %3275 = vmatpush1.bf16.msra.mxu0 %v2570
      %3276 = vmatprep.subr.bf16.mxu0 0
      %3277 = vmatpush1.bf16.msra.mxu0 %v2571
      %3278 = vmatprep.subr.bf16.mxu0 0
      %3279 = vmatpush1.bf16.msra.mxu0 %v2572
      %3280 = vmatprep.mubr.bf16.mxu0 %v1492
      %3281 = vmatmul.mubr.bf16.gmra.mrb[0].mxu0 %v1491
      %v3282 = vpop.f32.mrb[0].mxu0
      %v3283 = vadd.f32 %v3122, %v3282
      %v3284 = vpop.f32.mrb[0].mxu0
      %v3285 = vpop.f32.mrb[0].mxu0
      %v3286 = vadd.f32 %v3125, %v3285
      %v3287 = vpop.f32.mrb[0].mxu0
      %3288 = vmatprep.mubr.bf16.mxu0 %v1508
      %3289 = vmatmul.mubr.bf16.gmra.mrb[0].mxu0 %v1507
      %v3290 = vpop.f32.mrb[0].mxu0
      %v3291 = vadd.f32 %v3130, %v3290
      %v3292 = vpop.f32.mrb[0].mxu0
      %v3293 = vpop.f32.mrb[0].mxu0
      %v3294 = vadd.f32 %v3133, %v3293
      %v3295 = vpop.f32.mrb[0].mxu0
      %3296 = vmatprep.mubr.bf16.mxu0 %v1524
      %3297 = vmatmul.mubr.bf16.gmra.mrb[0].mxu0 %v1523
      %v3298 = vpop.f32.mrb[0].mxu0
      %v3299 = vadd.f32 %v3138, %v3298
      %v3300 = vpop.f32.mrb[0].mxu0
      %v3301 = vpop.f32.mrb[0].mxu0
      %v3302 = vadd.f32 %v3141, %v3301
      %v3303 = vpop.f32.mrb[0].mxu0
      %3304 = vmatprep.mubr.bf16.mxu0 %v1540
      %3305 = vmatmul.mubr.bf16.gmra.mrb[0].mxu0 %v1539
      %v3306 = vpop.f32.mrb[0].mxu0
      %v3307 = vadd.f32 %v3146, %v3306
      %v3308 = vpop.f32.mrb[0].mxu0
      %v3309 = vpop.f32.mrb[0].mxu0
      %v3310 = vadd.f32 %v3149, %v3309
      %v3311 = vpop.f32.mrb[0].mxu0
      %3312 = vmatprep.mubr.bf16.mxu0 %v1556
      %3313 = vmatmul.mubr.bf16.gmra.mrb[0].mxu0 %v1555
      %v3314 = vpop.f32.mrb[0].mxu0
      %v3315 = vadd.f32 %v3154, %v3314
      %v3316 = vpop.f32.mrb[0].mxu0
      %v3317 = vpop.f32.mrb[0].mxu0
      %v3318 = vadd.f32 %v3157, %v3317
      %v3319 = vpop.f32.mrb[0].mxu0
      %3320 = vmatprep.mubr.bf16.mxu0 %v1572
      %3321 = vmatmul.mubr.bf16.gmra.mrb[0].mxu0 %v1571
      %v3322 = vpop.f32.mrb[0].mxu0
      %v3323 = vadd.f32 %v3162, %v3322
      %v3324 = vpop.f32.mrb[0].mxu0
      %v3325 = vpop.f32.mrb[0].mxu0
      %v3326 = vadd.f32 %v3165, %v3325
      %v3327 = vpop.f32.mrb[0].mxu0
      %3328 = vmatprep.mubr.bf16.mxu0 %v1588
      %3329 = vmatmul.mubr.bf16.gmra.mrb[0].mxu0 %v1587
      %v3330 = vpop.f32.mrb[0].mxu0
      %v3331 = vadd.f32 %v3170, %v3330
      %v3332 = vpop.f32.mrb[0].mxu0
      %v3333 = vpop.f32.mrb[0].mxu0
      %v3334 = vadd.f32 %v3173, %v3333
      %v3335 = vpop.f32.mrb[0].mxu0
      %3336 = vmatprep.mubr.bf16.mxu0 %v1604
      %3337 = vmatmul.mubr.bf16.gmra.mrb[0].mxu0 %v1603
      %v3338 = vpop.f32.mrb[0].mxu0
      %v3339 = vadd.f32 %v3178, %v3338
      %v3340 = vpop.f32.mrb[0].mxu0
      %v3341 = vpop.f32.mrb[0].mxu0
      %v3342 = vadd.f32 %v3181, %v3341
      %v3343 = vpop.f32.mrb[0].mxu0
      %3344 = vmatprep.mubr.bf16.mxu0 %v1620
      %3345 = vmatmul.mubr.bf16.gmra.mrb[0].mxu0 %v1619
      %v3346 = vpop.f32.mrb[0].mxu0
      %v3347 = vadd.f32 %v3186, %v3346
      %v3348 = vpop.f32.mrb[0].mxu0
      %v3349 = vpop.f32.mrb[0].mxu0
      %v3350 = vadd.f32 %v3189, %v3349
      %v3351 = vpop.f32.mrb[0].mxu0
      %3352 = vmatprep.mubr.bf16.mxu0 %v1636
      %3353 = vmatmul.mubr.bf16.gmra.mrb[0].mxu0 %v1635
      %v3354 = vpop.f32.mrb[0].mxu0
      %v3355 = vadd.f32 %v3194, %v3354
      %v3356 = vpop.f32.mrb[0].mxu0
      %v3357 = vpop.f32.mrb[0].mxu0
      %v3358 = vadd.f32 %v3197, %v3357
      %v3359 = vpop.f32.mrb[0].mxu0
      %3360 = vmatprep.mubr.bf16.mxu0 %v1652
      %3361 = vmatmul.mubr.bf16.gmra.mrb[0].mxu0 %v1651
      %v3362 = vpop.f32.mrb[0].mxu0
      %v3363 = vadd.f32 %v3202, %v3362
      %v3364 = vpop.f32.mrb[0].mxu0
      %v3365 = vpop.f32.mrb[0].mxu0
      %v3366 = vadd.f32 %v3205, %v3365
      %v3367 = vpop.f32.mrb[0].mxu0
      %3368 = vmatprep.mubr.bf16.mxu0 %v1668
      %3369 = vmatmul.mubr.bf16.gmra.mrb[0].mxu0 %v1667
      %v3370 = vpop.f32.mrb[0].mxu0
      %v3371 = vadd.f32 %v3210, %v3370
      %v3372 = vpop.f32.mrb[0].mxu0
      %v3373 = vpop.f32.mrb[0].mxu0
      %v3374 = vadd.f32 %v3213, %v3373
      %v3375 = vpop.f32.mrb[0].mxu0
      %3376 = vmatprep.mubr.bf16.mxu0 %v1684
      %3377 = vmatmul.mubr.bf16.gmra.mrb[0].mxu0 %v1683
      %v3378 = vpop.f32.mrb[0].mxu0
      %v3379 = vadd.f32 %v3218, %v3378
      %v3380 = vpop.f32.mrb[0].mxu0
      %v3381 = vpop.f32.mrb[0].mxu0
      %v3382 = vadd.f32 %v3221, %v3381
      %v3383 = vpop.f32.mrb[0].mxu0
      %3384 = vmatprep.mubr.bf16.mxu0 %v1700
      %3385 = vmatmul.mubr.bf16.gmra.mrb[0].mxu0 %v1699
      %v3386 = vpop.f32.mrb[0].mxu0
      %v3387 = vadd.f32 %v3226, %v3386
      %v3388 = vpop.f32.mrb[0].mxu0
      %v3389 = vpop.f32.mrb[0].mxu0
      %v3390 = vadd.f32 %v3229, %v3389
      %v3391 = vpop.f32.mrb[0].mxu0
      %3392 = vmatprep.mubr.bf16.mxu0 %v1716
      %3393 = vmatmul.mubr.bf16.gmra.mrb[0].mxu0 %v1715
      %v3394 = vpop.f32.mrb[0].mxu0
      %v3395 = vadd.f32 %v3234, %v3394
      %v3396 = vpop.f32.mrb[0].mxu0
      %v3397 = vpop.f32.mrb[0].mxu0
      %v3398 = vadd.f32 %v3237, %v3397
      %v3399 = vpop.f32.mrb[0].mxu0
      %3400 = vmatprep.mubr.bf16.mxu0 %v1732
      %3401 = vmatmul.mubr.bf16.gmra.mrb[0].mxu0 %v1731
      %v3402 = vpop.f32.mrb[0].mxu0
      %v3403 = vadd.f32 %v3242, %v3402
      %v3404 = vpop.f32.mrb[0].mxu0
      %v3405 = vpop.f32.mrb[0].mxu0
      %v3406 = vadd.f32 %v3245, %v3405
      %v3407 = vpop.f32.mrb[0].mxu0
      %3408 = vdwg.mxu0
      %3409 = vmatprep.subr.bf16.mxu0 0
      %3410 = vmatpush1.bf16.msra.mxu0 %v2573
      %3411 = vmatprep.subr.bf16.mxu0 0
      %3412 = vmatpush1.bf16.msra.mxu0 %v2574
      %3413 = vmatprep.subr.bf16.mxu0 0
      %3414 = vmatpush1.bf16.msra.mxu0 %v2575
      %3415 = vmatprep.subr.bf16.mxu0 0
      %3416 = vmatpush1.bf16.msra.mxu0 %v2576
      %3417 = vmatprep.subr.bf16.mxu0 0
      %3418 = vmatpush1.bf16.msra.mxu0 %v2577
      %3419 = vmatprep.subr.bf16.mxu0 0
      %3420 = vmatpush1.bf16.msra.mxu0 %v2578
      %3421 = vmatprep.subr.bf16.mxu0 0
      %3422 = vmatpush1.bf16.msra.mxu0 %v2579
      %3423 = vmatprep.subr.bf16.mxu0 0
      %3424 = vmatpush1.bf16.msra.mxu0 %v2580
      %3425 = vmatprep.subr.bf16.mxu0 0
      %3426 = vmatpush1.bf16.msra.mxu0 %v2581
      %3427 = vmatprep.subr.bf16.mxu0 0
      %3428 = vmatpush1.bf16.msra.mxu0 %v2582
      %3429 = vmatprep.subr.bf16.mxu0 0
      %3430 = vmatpush1.bf16.msra.mxu0 %v2583
      %3431 = vmatprep.subr.bf16.mxu0 0
      %3432 = vmatpush1.bf16.msra.mxu0 %v2584
      %3433 = vmatprep.subr.bf16.mxu0 0
      %3434 = vmatpush1.bf16.msra.mxu0 %v2585
      %3435 = vmatprep.subr.bf16.mxu0 0
      %3436 = vmatpush1.bf16.msra.mxu0 %v2586
      %3437 = vmatprep.subr.bf16.mxu0 0
      %3438 = vmatpush1.bf16.msra.mxu0 %v2587
      %3439 = vmatprep.subr.bf16.mxu0 0
      %3440 = vmatpush1.bf16.msra.mxu0 %v2588
      %3441 = vmatprep.mubr.bf16.mxu0 %v1494
      %3442 = vmatmul.mubr.bf16.gmra.mrb[0].mxu0 %v1493
      %v3443 = vpop.f32.mrb[0].mxu0
      %v3444 = vadd.f32 %v3283, %v3443
      %v3445 = vpop.f32.mrb[0].mxu0
      %v3446 = vpop.f32.mrb[0].mxu0
      %v3447 = vadd.f32 %v3286, %v3446
      %v3448 = vpop.f32.mrb[0].mxu0
      %3449 = vmatprep.mubr.bf16.mxu0 %v1510
      %3450 = vmatmul.mubr.bf16.gmra.mrb[0].mxu0 %v1509
      %v3451 = vpop.f32.mrb[0].mxu0
      %v3452 = vadd.f32 %v3291, %v3451
      %v3453 = vpop.f32.mrb[0].mxu0
      %v3454 = vpop.f32.mrb[0].mxu0
      %v3455 = vadd.f32 %v3294, %v3454
      %v3456 = vpop.f32.mrb[0].mxu0
      %3457 = vmatprep.mubr.bf16.mxu0 %v1526
      %3458 = vmatmul.mubr.bf16.gmra.mrb[0].mxu0 %v1525
      %v3459 = vpop.f32.mrb[0].mxu0
      %v3460 = vadd.f32 %v3299, %v3459
      %v3461 = vpop.f32.mrb[0].mxu0
      %v3462 = vpop.f32.mrb[0].mxu0
      %v3463 = vadd.f32 %v3302, %v3462
      %v3464 = vpop.f32.mrb[0].mxu0
      %3465 = vmatprep.mubr.bf16.mxu0 %v1542
      %3466 = vmatmul.mubr.bf16.gmra.mrb[0].mxu0 %v1541
      %v3467 = vpop.f32.mrb[0].mxu0
      %v3468 = vadd.f32 %v3307, %v3467
      %v3469 = vpop.f32.mrb[0].mxu0
      %v3470 = vpop.f32.mrb[0].mxu0
      %v3471 = vadd.f32 %v3310, %v3470
      %v3472 = vpop.f32.mrb[0].mxu0
      %3473 = vmatprep.mubr.bf16.mxu0 %v1558
      %3474 = vmatmul.mubr.bf16.gmra.mrb[0].mxu0 %v1557
      %v3475 = vpop.f32.mrb[0].mxu0
      %v3476 = vadd.f32 %v3315, %v3475
      %v3477 = vpop.f32.mrb[0].mxu0
      %v3478 = vpop.f32.mrb[0].mxu0
      %v3479 = vadd.f32 %v3318, %v3478
      %v3480 = vpop.f32.mrb[0].mxu0
      %3481 = vmatprep.mubr.bf16.mxu0 %v1574
      %3482 = vmatmul.mubr.bf16.gmra.mrb[0].mxu0 %v1573
      %v3483 = vpop.f32.mrb[0].mxu0
      %v3484 = vadd.f32 %v3323, %v3483
      %v3485 = vpop.f32.mrb[0].mxu0
      %v3486 = vpop.f32.mrb[0].mxu0
      %v3487 = vadd.f32 %v3326, %v3486
      %v3488 = vpop.f32.mrb[0].mxu0
      %3489 = vmatprep.mubr.bf16.mxu0 %v1590
      %3490 = vmatmul.mubr.bf16.gmra.mrb[0].mxu0 %v1589
      %v3491 = vpop.f32.mrb[0].mxu0
      %v3492 = vadd.f32 %v3331, %v3491
      %v3493 = vpop.f32.mrb[0].mxu0
      %v3494 = vpop.f32.mrb[0].mxu0
      %v3495 = vadd.f32 %v3334, %v3494
      %v3496 = vpop.f32.mrb[0].mxu0
      %3497 = vmatprep.mubr.bf16.mxu0 %v1606
      %3498 = vmatmul.mubr.bf16.gmra.mrb[0].mxu0 %v1605
      %v3499 = vpop.f32.mrb[0].mxu0
      %v3500 = vadd.f32 %v3339, %v3499
      %v3501 = vpop.f32.mrb[0].mxu0
      %v3502 = vpop.f32.mrb[0].mxu0
      %v3503 = vadd.f32 %v3342, %v3502
      %v3504 = vpop.f32.mrb[0].mxu0
      %3505 = vmatprep.mubr.bf16.mxu0 %v1622
      %3506 = vmatmul.mubr.bf16.gmra.mrb[0].mxu0 %v1621
      %v3507 = vpop.f32.mrb[0].mxu0
      %v3508 = vadd.f32 %v3347, %v3507
      %v3509 = vpop.f32.mrb[0].mxu0
      %v3510 = vpop.f32.mrb[0].mxu0
      %v3511 = vadd.f32 %v3350, %v3510
      %v3512 = vpop.f32.mrb[0].mxu0
      %3513 = vmatprep.mubr.bf16.mxu0 %v1638
      %3514 = vmatmul.mubr.bf16.gmra.mrb[0].mxu0 %v1637
      %v3515 = vpop.f32.mrb[0].mxu0
      %v3516 = vadd.f32 %v3355, %v3515
      %v3517 = vpop.f32.mrb[0].mxu0
      %v3518 = vpop.f32.mrb[0].mxu0
      %v3519 = vadd.f32 %v3358, %v3518
      %v3520 = vpop.f32.mrb[0].mxu0
      %3521 = vmatprep.mubr.bf16.mxu0 %v1654
      %3522 = vmatmul.mubr.bf16.gmra.mrb[0].mxu0 %v1653
      %v3523 = vpop.f32.mrb[0].mxu0
      %v3524 = vadd.f32 %v3363, %v3523
      %v3525 = vpop.f32.mrb[0].mxu0
      %v3526 = vpop.f32.mrb[0].mxu0
      %v3527 = vadd.f32 %v3366, %v3526
      %v3528 = vpop.f32.mrb[0].mxu0
      %3529 = vmatprep.mubr.bf16.mxu0 %v1670
      %3530 = vmatmul.mubr.bf16.gmra.mrb[0].mxu0 %v1669
      %v3531 = vpop.f32.mrb[0].mxu0
      %v3532 = vadd.f32 %v3371, %v3531
      %v3533 = vpop.f32.mrb[0].mxu0
      %v3534 = vpop.f32.mrb[0].mxu0
      %v3535 = vadd.f32 %v3374, %v3534
      %v3536 = vpop.f32.mrb[0].mxu0
      %3537 = vmatprep.mubr.bf16.mxu0 %v1686
      %3538 = vmatmul.mubr.bf16.gmra.mrb[0].mxu0 %v1685
      %v3539 = vpop.f32.mrb[0].mxu0
      %v3540 = vadd.f32 %v3379, %v3539
      %v3541 = vpop.f32.mrb[0].mxu0
      %v3542 = vpop.f32.mrb[0].mxu0
      %v3543 = vadd.f32 %v3382, %v3542
      %v3544 = vpop.f32.mrb[0].mxu0
      %3545 = vmatprep.mubr.bf16.mxu0 %v1702
      %3546 = vmatmul.mubr.bf16.gmra.mrb[0].mxu0 %v1701
      %v3547 = vpop.f32.mrb[0].mxu0
      %v3548 = vadd.f32 %v3387, %v3547
      %v3549 = vpop.f32.mrb[0].mxu0
      %v3550 = vpop.f32.mrb[0].mxu0
      %v3551 = vadd.f32 %v3390, %v3550
      %v3552 = vpop.f32.mrb[0].mxu0
      %3553 = vmatprep.mubr.bf16.mxu0 %v1718
      %3554 = vmatmul.mubr.bf16.gmra.mrb[0].mxu0 %v1717
      %v3555 = vpop.f32.mrb[0].mxu0
      %v3556 = vadd.f32 %v3395, %v3555
      %v3557 = vpop.f32.mrb[0].mxu0
      %v3558 = vpop.f32.mrb[0].mxu0
      %v3559 = vadd.f32 %v3398, %v3558
      %v3560 = vpop.f32.mrb[0].mxu0
      %3561 = vmatprep.mubr.bf16.mxu0 %v1734
      %3562 = vmatmul.mubr.bf16.gmra.mrb[0].mxu0 %v1733
      %v3563 = vpop.f32.mrb[0].mxu0
      %v3564 = vadd.f32 %v3403, %v3563
      %v3565 = vpop.f32.mrb[0].mxu0
      %v3566 = vpop.f32.mrb[0].mxu0
      %v3567 = vadd.f32 %v3406, %v3566
      %v3568 = vpop.f32.mrb[0].mxu0
      %3569 = vdwg.mxu0
      %3570 = vmatprep.subr.bf16.mxu0 0
      %3571 = vmatpush1.bf16.msra.mxu0 %v2589
      %3572 = vmatprep.subr.bf16.mxu0 0
      %3573 = vmatpush1.bf16.msra.mxu0 %v2590
      %3574 = vmatprep.subr.bf16.mxu0 0
      %3575 = vmatpush1.bf16.msra.mxu0 %v2591
      %3576 = vmatprep.subr.bf16.mxu0 0
      %3577 = vmatpush1.bf16.msra.mxu0 %v2592
      %3578 = vmatprep.subr.bf16.mxu0 0
      %3579 = vmatpush1.bf16.msra.mxu0 %v2593
      %3580 = vmatprep.subr.bf16.mxu0 0
      %3581 = vmatpush1.bf16.msra.mxu0 %v2594
      %3582 = vmatprep.subr.bf16.mxu0 0
      %3583 = vmatpush1.bf16.msra.mxu0 %v2595
      %3584 = vmatprep.subr.bf16.mxu0 0
      %3585 = vmatpush1.bf16.msra.mxu0 %v2596
      %3586 = vmatprep.subr.bf16.mxu0 0
      %3587 = vmatpush1.bf16.msra.mxu0 %v2597
      %3588 = vmatprep.subr.bf16.mxu0 0
      %3589 = vmatpush1.bf16.msra.mxu0 %v2598
      %3590 = vmatprep.subr.bf16.mxu0 0
      %3591 = vmatpush1.bf16.msra.mxu0 %v2599
      %3592 = vmatprep.subr.bf16.mxu0 0
      %3593 = vmatpush1.bf16.msra.mxu0 %v2600
      %3594 = vmatprep.subr.bf16.mxu0 0
      %3595 = vmatpush1.bf16.msra.mxu0 %v2601
      %3596 = vmatprep.subr.bf16.mxu0 0
      %3597 = vmatpush1.bf16.msra.mxu0 %v2602
      %3598 = vmatprep.subr.bf16.mxu0 0
      %3599 = vmatpush1.bf16.msra.mxu0 %v2603
      %3600 = vmatprep.subr.bf16.mxu0 0
      %3601 = vmatpush1.bf16.msra.mxu0 %v2604
      %3602 = vmatprep.mubr.bf16.mxu0 %v1496
      %3603 = vmatmul.mubr.bf16.gmra.mrb[0].mxu0 %v1495
      %v3604 = vpop.f32.mrb[0].mxu0
      %v3605 = vadd.f32 %v3444, %v3604
      %v3606 = vpop.f32.mrb[0].mxu0
      %v3607 = vpop.f32.mrb[0].mxu0
      %v3608 = vadd.f32 %v3447, %v3607
      %v3609 = vpop.f32.mrb[0].mxu0
      %3610 = vmatprep.mubr.bf16.mxu0 %v1512
      %3611 = vmatmul.mubr.bf16.gmra.mrb[0].mxu0 %v1511
      %v3612 = vpop.f32.mrb[0].mxu0
      %v3613 = vadd.f32 %v3452, %v3612
      %v3614 = vpop.f32.mrb[0].mxu0
      %v3615 = vpop.f32.mrb[0].mxu0
      %v3616 = vadd.f32 %v3455, %v3615
      %v3617 = vpop.f32.mrb[0].mxu0
      %3618 = vmatprep.mubr.bf16.mxu0 %v1528
      %3619 = vmatmul.mubr.bf16.gmra.mrb[0].mxu0 %v1527
      %v3620 = vpop.f32.mrb[0].mxu0
      %v3621 = vadd.f32 %v3460, %v3620
      %v3622 = vpop.f32.mrb[0].mxu0
      %v3623 = vpop.f32.mrb[0].mxu0
      %v3624 = vadd.f32 %v3463, %v3623
      %v3625 = vpop.f32.mrb[0].mxu0
      %3626 = vmatprep.mubr.bf16.mxu0 %v1544
      %3627 = vmatmul.mubr.bf16.gmra.mrb[0].mxu0 %v1543
      %v3628 = vpop.f32.mrb[0].mxu0
      %v3629 = vadd.f32 %v3468, %v3628
      %v3630 = vpop.f32.mrb[0].mxu0
      %v3631 = vpop.f32.mrb[0].mxu0
      %v3632 = vadd.f32 %v3471, %v3631
      %v3633 = vpop.f32.mrb[0].mxu0
      %3634 = vmatprep.mubr.bf16.mxu0 %v1560
      %3635 = vmatmul.mubr.bf16.gmra.mrb[0].mxu0 %v1559
      %v3636 = vpop.f32.mrb[0].mxu0
      %v3637 = vadd.f32 %v3476, %v3636
      %v3638 = vpop.f32.mrb[0].mxu0
      %v3639 = vpop.f32.mrb[0].mxu0
      %v3640 = vadd.f32 %v3479, %v3639
      %v3641 = vpop.f32.mrb[0].mxu0
      %3642 = vmatprep.mubr.bf16.mxu0 %v1576
      %3643 = vmatmul.mubr.bf16.gmra.mrb[0].mxu0 %v1575
      %v3644 = vpop.f32.mrb[0].mxu0
      %v3645 = vadd.f32 %v3484, %v3644
      %v3646 = vpop.f32.mrb[0].mxu0
      %v3647 = vpop.f32.mrb[0].mxu0
      %v3648 = vadd.f32 %v3487, %v3647
      %v3649 = vpop.f32.mrb[0].mxu0
      %3650 = vmatprep.mubr.bf16.mxu0 %v1592
      %3651 = vmatmul.mubr.bf16.gmra.mrb[0].mxu0 %v1591
      %v3652 = vpop.f32.mrb[0].mxu0
      %v3653 = vadd.f32 %v3492, %v3652
      %v3654 = vpop.f32.mrb[0].mxu0
      %v3655 = vpop.f32.mrb[0].mxu0
      %v3656 = vadd.f32 %v3495, %v3655
      %v3657 = vpop.f32.mrb[0].mxu0
      %3658 = vmatprep.mubr.bf16.mxu0 %v1608
      %3659 = vmatmul.mubr.bf16.gmra.mrb[0].mxu0 %v1607
      %v3660 = vpop.f32.mrb[0].mxu0
      %v3661 = vadd.f32 %v3500, %v3660
      %v3662 = vpop.f32.mrb[0].mxu0
      %v3663 = vpop.f32.mrb[0].mxu0
      %v3664 = vadd.f32 %v3503, %v3663
      %v3665 = vpop.f32.mrb[0].mxu0
      %3666 = vmatprep.mubr.bf16.mxu0 %v1624
      %3667 = vmatmul.mubr.bf16.gmra.mrb[0].mxu0 %v1623
      %v3668 = vpop.f32.mrb[0].mxu0
      %v3669 = vadd.f32 %v3508, %v3668
      %v3670 = vpop.f32.mrb[0].mxu0
      %v3671 = vpop.f32.mrb[0].mxu0
      %v3672 = vadd.f32 %v3511, %v3671
      %v3673 = vpop.f32.mrb[0].mxu0
      %3674 = vmatprep.mubr.bf16.mxu0 %v1640
      %3675 = vmatmul.mubr.bf16.gmra.mrb[0].mxu0 %v1639
      %v3676 = vpop.f32.mrb[0].mxu0
      %v3677 = vadd.f32 %v3516, %v3676
      %v3678 = vpop.f32.mrb[0].mxu0
      %v3679 = vpop.f32.mrb[0].mxu0
      %v3680 = vadd.f32 %v3519, %v3679
      %v3681 = vpop.f32.mrb[0].mxu0
      %3682 = vmatprep.mubr.bf16.mxu0 %v1656
      %3683 = vmatmul.mubr.bf16.gmra.mrb[0].mxu0 %v1655
      %v3684 = vpop.f32.mrb[0].mxu0
      %v3685 = vadd.f32 %v3524, %v3684
      %v3686 = vpop.f32.mrb[0].mxu0
      %v3687 = vpop.f32.mrb[0].mxu0
      %v3688 = vadd.f32 %v3527, %v3687
      %v3689 = vpop.f32.mrb[0].mxu0
      %3690 = vmatprep.mubr.bf16.mxu0 %v1672
      %3691 = vmatmul.mubr.bf16.gmra.mrb[0].mxu0 %v1671
      %v3692 = vpop.f32.mrb[0].mxu0
      %v3693 = vadd.f32 %v3532, %v3692
      %v3694 = vpop.f32.mrb[0].mxu0
      %v3695 = vpop.f32.mrb[0].mxu0
      %v3696 = vadd.f32 %v3535, %v3695
      %v3697 = vpop.f32.mrb[0].mxu0
      %3698 = vmatprep.mubr.bf16.mxu0 %v1688
      %3699 = vmatmul.mubr.bf16.gmra.mrb[0].mxu0 %v1687
      %v3700 = vpop.f32.mrb[0].mxu0
      %v3701 = vadd.f32 %v3540, %v3700
      %v3702 = vpop.f32.mrb[0].mxu0
      %v3703 = vpop.f32.mrb[0].mxu0
      %v3704 = vadd.f32 %v3543, %v3703
      %v3705 = vpop.f32.mrb[0].mxu0
      %3706 = vmatprep.mubr.bf16.mxu0 %v1704
      %3707 = vmatmul.mubr.bf16.gmra.mrb[0].mxu0 %v1703
      %v3708 = vpop.f32.mrb[0].mxu0
      %v3709 = vadd.f32 %v3548, %v3708
      %v3710 = vpop.f32.mrb[0].mxu0
      %v3711 = vpop.f32.mrb[0].mxu0
      %v3712 = vadd.f32 %v3551, %v3711
      %v3713 = vpop.f32.mrb[0].mxu0
      %3714 = vmatprep.mubr.bf16.mxu0 %v1720
      %3715 = vmatmul.mubr.bf16.gmra.mrb[0].mxu0 %v1719
      %v3716 = vpop.f32.mrb[0].mxu0
      %v3717 = vadd.f32 %v3556, %v3716
      %v3718 = vpop.f32.mrb[0].mxu0
      %v3719 = vpop.f32.mrb[0].mxu0
      %v3720 = vadd.f32 %v3559, %v3719
      %v3721 = vpop.f32.mrb[0].mxu0
      %3722 = vmatprep.mubr.bf16.mxu0 %v1736
      %3723 = vmatmul.mubr.bf16.gmra.mrb[0].mxu0 %v1735
      %v3724 = vpop.f32.mrb[0].mxu0
      %v3725 = vadd.f32 %v3564, %v3724
      %v3726 = vpop.f32.mrb[0].mxu0
      %v3727 = vpop.f32.mrb[0].mxu0
      %v3728 = vadd.f32 %v3567, %v3727
      %v3729 = vpop.f32.mrb[0].mxu0
      %3730 = vdwg.mxu0
      %3731 = vmatprep.subr.bf16.mxu0 0
      %3732 = vmatpush1.bf16.msra.mxu0 %v2605
      %3733 = vmatprep.subr.bf16.mxu0 0
      %3734 = vmatpush1.bf16.msra.mxu0 %v2606
      %3735 = vmatprep.subr.bf16.mxu0 0
      %3736 = vmatpush1.bf16.msra.mxu0 %v2607
      %3737 = vmatprep.subr.bf16.mxu0 0
      %3738 = vmatpush1.bf16.msra.mxu0 %v2608
      %3739 = vmatprep.subr.bf16.mxu0 0
      %3740 = vmatpush1.bf16.msra.mxu0 %v2609
      %3741 = vmatprep.subr.bf16.mxu0 0
      %3742 = vmatpush1.bf16.msra.mxu0 %v2610
      %3743 = vmatprep.subr.bf16.mxu0 0
      %3744 = vmatpush1.bf16.msra.mxu0 %v2611
      %3745 = vmatprep.subr.bf16.mxu0 0
      %3746 = vmatpush1.bf16.msra.mxu0 %v2612
      %3747 = vmatprep.subr.bf16.mxu0 0
      %3748 = vmatpush1.bf16.msra.mxu0 %v2613
      %3749 = vmatprep.subr.bf16.mxu0 0
      %3750 = vmatpush1.bf16.msra.mxu0 %v2614
      %3751 = vmatprep.subr.bf16.mxu0 0
      %3752 = vmatpush1.bf16.msra.mxu0 %v2615
      %3753 = vmatprep.subr.bf16.mxu0 0
      %3754 = vmatpush1.bf16.msra.mxu0 %v2616
      %3755 = vmatprep.subr.bf16.mxu0 0
      %3756 = vmatpush1.bf16.msra.mxu0 %v2617
      %3757 = vmatprep.subr.bf16.mxu0 0
      %3758 = vmatpush1.bf16.msra.mxu0 %v2618
      %3759 = vmatprep.subr.bf16.mxu0 0
      %3760 = vmatpush1.bf16.msra.mxu0 %v2619
      %3761 = vmatprep.subr.bf16.mxu0 0
      %3762 = vmatpush1.bf16.msra.mxu0 %v2620
      %3763 = vmatprep.mubr.bf16.mxu0 %v1498
      %3764 = vmatmul.mubr.bf16.gmra.mrb[0].mxu0 %v1497
      %v3765 = vpop.f32.mrb[0].mxu0
      %v3766 = vadd.f32 %v3605, %v3765
      %v3767 = vpop.f32.mrb[0].mxu0
      %v3768 = vpop.f32.mrb[0].mxu0
      %v3769 = vadd.f32 %v3608, %v3768
      %v3770 = vpop.f32.mrb[0].mxu0
      %3771 = vmatprep.mubr.bf16.mxu0 %v1514
      %3772 = vmatmul.mubr.bf16.gmra.mrb[0].mxu0 %v1513
      %v3773 = vpop.f32.mrb[0].mxu0
      %v3774 = vadd.f32 %v3613, %v3773
      %v3775 = vpop.f32.mrb[0].mxu0
      %v3776 = vpop.f32.mrb[0].mxu0
      %v3777 = vadd.f32 %v3616, %v3776
      %v3778 = vpop.f32.mrb[0].mxu0
      %3779 = vmatprep.mubr.bf16.mxu0 %v1530
      %3780 = vmatmul.mubr.bf16.gmra.mrb[0].mxu0 %v1529
      %v3781 = vpop.f32.mrb[0].mxu0
      %v3782 = vadd.f32 %v3621, %v3781
      %v3783 = vpop.f32.mrb[0].mxu0
      %v3784 = vpop.f32.mrb[0].mxu0
      %v3785 = vadd.f32 %v3624, %v3784
      %v3786 = vpop.f32.mrb[0].mxu0
      %3787 = vmatprep.mubr.bf16.mxu0 %v1546
      %3788 = vmatmul.mubr.bf16.gmra.mrb[0].mxu0 %v1545
      %v3789 = vpop.f32.mrb[0].mxu0
      %v3790 = vadd.f32 %v3629, %v3789
      %v3791 = vpop.f32.mrb[0].mxu0
      %v3792 = vpop.f32.mrb[0].mxu0
      %v3793 = vadd.f32 %v3632, %v3792
      %v3794 = vpop.f32.mrb[0].mxu0
      %3795 = vmatprep.mubr.bf16.mxu0 %v1562
      %3796 = vmatmul.mubr.bf16.gmra.mrb[0].mxu0 %v1561
      %v3797 = vpop.f32.mrb[0].mxu0
      %v3798 = vadd.f32 %v3637, %v3797
      %v3799 = vpop.f32.mrb[0].mxu0
      %v3800 = vpop.f32.mrb[0].mxu0
      %v3801 = vadd.f32 %v3640, %v3800
      %v3802 = vpop.f32.mrb[0].mxu0
      %3803 = vmatprep.mubr.bf16.mxu0 %v1578
      %3804 = vmatmul.mubr.bf16.gmra.mrb[0].mxu0 %v1577
      %v3805 = vpop.f32.mrb[0].mxu0
      %v3806 = vadd.f32 %v3645, %v3805
      %v3807 = vpop.f32.mrb[0].mxu0
      %v3808 = vpop.f32.mrb[0].mxu0
      %v3809 = vadd.f32 %v3648, %v3808
      %v3810 = vpop.f32.mrb[0].mxu0
      %3811 = vmatprep.mubr.bf16.mxu0 %v1594
      %3812 = vmatmul.mubr.bf16.gmra.mrb[0].mxu0 %v1593
      %v3813 = vpop.f32.mrb[0].mxu0
      %v3814 = vadd.f32 %v3653, %v3813
      %v3815 = vpop.f32.mrb[0].mxu0
      %v3816 = vpop.f32.mrb[0].mxu0
      %v3817 = vadd.f32 %v3656, %v3816
      %v3818 = vpop.f32.mrb[0].mxu0
      %3819 = vmatprep.mubr.bf16.mxu0 %v1610
      %3820 = vmatmul.mubr.bf16.gmra.mrb[0].mxu0 %v1609
      %v3821 = vpop.f32.mrb[0].mxu0
      %v3822 = vadd.f32 %v3661, %v3821
      %v3823 = vpop.f32.mrb[0].mxu0
      %v3824 = vpop.f32.mrb[0].mxu0
      %v3825 = vadd.f32 %v3664, %v3824
      %v3826 = vpop.f32.mrb[0].mxu0
      %3827 = vmatprep.mubr.bf16.mxu0 %v1626
      %3828 = vmatmul.mubr.bf16.gmra.mrb[0].mxu0 %v1625
      %v3829 = vpop.f32.mrb[0].mxu0
      %v3830 = vadd.f32 %v3669, %v3829
      %v3831 = vpop.f32.mrb[0].mxu0
      %v3832 = vpop.f32.mrb[0].mxu0
      %v3833 = vadd.f32 %v3672, %v3832
      %v3834 = vpop.f32.mrb[0].mxu0
      %3835 = vmatprep.mubr.bf16.mxu0 %v1642
      %3836 = vmatmul.mubr.bf16.gmra.mrb[0].mxu0 %v1641
      %v3837 = vpop.f32.mrb[0].mxu0
      %v3838 = vadd.f32 %v3677, %v3837
      %v3839 = vpop.f32.mrb[0].mxu0
      %v3840 = vpop.f32.mrb[0].mxu0
      %v3841 = vadd.f32 %v3680, %v3840
      %v3842 = vpop.f32.mrb[0].mxu0
      %3843 = vmatprep.mubr.bf16.mxu0 %v1658
      %3844 = vmatmul.mubr.bf16.gmra.mrb[0].mxu0 %v1657
      %v3845 = vpop.f32.mrb[0].mxu0
      %v3846 = vadd.f32 %v3685, %v3845
      %v3847 = vpop.f32.mrb[0].mxu0
      %v3848 = vpop.f32.mrb[0].mxu0
      %v3849 = vadd.f32 %v3688, %v3848
      %v3850 = vpop.f32.mrb[0].mxu0
      %3851 = vmatprep.mubr.bf16.mxu0 %v1674
      %3852 = vmatmul.mubr.bf16.gmra.mrb[0].mxu0 %v1673
      %v3853 = vpop.f32.mrb[0].mxu0
      %v3854 = vadd.f32 %v3693, %v3853
      %v3855 = vpop.f32.mrb[0].mxu0
      %v3856 = vpop.f32.mrb[0].mxu0
      %v3857 = vadd.f32 %v3696, %v3856
      %v3858 = vpop.f32.mrb[0].mxu0
      %3859 = vmatprep.mubr.bf16.mxu0 %v1690
      %3860 = vmatmul.mubr.bf16.gmra.mrb[0].mxu0 %v1689
      %v3861 = vpop.f32.mrb[0].mxu0
      %v3862 = vadd.f32 %v3701, %v3861
      %v3863 = vpop.f32.mrb[0].mxu0
      %v3864 = vpop.f32.mrb[0].mxu0
      %v3865 = vadd.f32 %v3704, %v3864
      %v3866 = vpop.f32.mrb[0].mxu0
      %3867 = vmatprep.mubr.bf16.mxu0 %v1706
      %3868 = vmatmul.mubr.bf16.gmra.mrb[0].mxu0 %v1705
      %v3869 = vpop.f32.mrb[0].mxu0
      %v3870 = vadd.f32 %v3709, %v3869
      %v3871 = vpop.f32.mrb[0].mxu0
      %v3872 = vpop.f32.mrb[0].mxu0
      %v3873 = vadd.f32 %v3712, %v3872
      %v3874 = vpop.f32.mrb[0].mxu0
      %3875 = vmatprep.mubr.bf16.mxu0 %v1722
      %3876 = vmatmul.mubr.bf16.gmra.mrb[0].mxu0 %v1721
      %v3877 = vpop.f32.mrb[0].mxu0
      %v3878 = vadd.f32 %v3717, %v3877
      %v3879 = vpop.f32.mrb[0].mxu0
      %v3880 = vpop.f32.mrb[0].mxu0
      %v3881 = vadd.f32 %v3720, %v3880
      %v3882 = vpop.f32.mrb[0].mxu0
      %3883 = vmatprep.mubr.bf16.mxu0 %v1738
      %3884 = vmatmul.mubr.bf16.gmra.mrb[0].mxu0 %v1737
      %v3885 = vpop.f32.mrb[0].mxu0
      %v3886 = vadd.f32 %v3725, %v3885
      %v3887 = vpop.f32.mrb[0].mxu0
      %v3888 = vpop.f32.mrb[0].mxu0
      %v3889 = vadd.f32 %v3728, %v3888
      %v3890 = vpop.f32.mrb[0].mxu0
      %3891 = vdwg.mxu0
      %3892 = vmatprep.subr.bf16.mxu0 0
      %3893 = vmatpush1.bf16.msra.mxu0 %v2621
      %3894 = vmatprep.subr.bf16.mxu0 0
      %3895 = vmatpush1.bf16.msra.mxu0 %v2622
      %3896 = vmatprep.subr.bf16.mxu0 0
      %3897 = vmatpush1.bf16.msra.mxu0 %v2623
      %3898 = vmatprep.subr.bf16.mxu0 0
      %3899 = vmatpush1.bf16.msra.mxu0 %v2624
      %3900 = vmatprep.subr.bf16.mxu0 0
      %3901 = vmatpush1.bf16.msra.mxu0 %v2625
      %3902 = vmatprep.subr.bf16.mxu0 0
      %3903 = vmatpush1.bf16.msra.mxu0 %v2626
      %3904 = vmatprep.subr.bf16.mxu0 0
      %3905 = vmatpush1.bf16.msra.mxu0 %v2627
      %3906 = vmatprep.subr.bf16.mxu0 0
      %3907 = vmatpush1.bf16.msra.mxu0 %v2628
      %3908 = vmatprep.subr.bf16.mxu0 0
      %3909 = vmatpush1.bf16.msra.mxu0 %v2629
      %3910 = vmatprep.subr.bf16.mxu0 0
      %3911 = vmatpush1.bf16.msra.mxu0 %v2630
      %3912 = vmatprep.subr.bf16.mxu0 0
      %3913 = vmatpush1.bf16.msra.mxu0 %v2631
      %3914 = vmatprep.subr.bf16.mxu0 0
      %3915 = vmatpush1.bf16.msra.mxu0 %v2632
      %3916 = vmatprep.subr.bf16.mxu0 0
      %3917 = vmatpush1.bf16.msra.mxu0 %v2633
      %3918 = vmatprep.subr.bf16.mxu0 0
      %3919 = vmatpush1.bf16.msra.mxu0 %v2634
      %3920 = vmatprep.subr.bf16.mxu0 0
      %3921 = vmatpush1.bf16.msra.mxu0 %v2635
      %3922 = vmatprep.subr.bf16.mxu0 0
      %3923 = vmatpush1.bf16.msra.mxu0 %v2636
      %3924 = vmatprep.mubr.bf16.mxu0 %v1500
      %3925 = vmatmul.mubr.bf16.gmra.mrb[0].mxu0 %v1499
      %v3926 = vpop.f32.mrb[0].mxu0
      %v3927 = vadd.f32 %v3766, %v3926
      %v3928 = vpop.f32.mrb[0].mxu0
      %v3929 = vpop.f32.mrb[0].mxu0
      %v3930 = vadd.f32 %v3769, %v3929
      %v3931 = vpop.f32.mrb[0].mxu0
      %3932 = vmatprep.mubr.bf16.mxu0 %v1516
      %3933 = vmatmul.mubr.bf16.gmra.mrb[0].mxu0 %v1515
      %v3934 = vpop.f32.mrb[0].mxu0
      %v3935 = vadd.f32 %v3774, %v3934
      %v3936 = vpop.f32.mrb[0].mxu0
      %v3937 = vpop.f32.mrb[0].mxu0
      %v3938 = vadd.f32 %v3777, %v3937
      %v3939 = vpop.f32.mrb[0].mxu0
      %3940 = vmatprep.mubr.bf16.mxu0 %v1532
      %3941 = vmatmul.mubr.bf16.gmra.mrb[0].mxu0 %v1531
      %v3942 = vpop.f32.mrb[0].mxu0
      %v3943 = vadd.f32 %v3782, %v3942
      %v3944 = vpop.f32.mrb[0].mxu0
      %v3945 = vpop.f32.mrb[0].mxu0
      %v3946 = vadd.f32 %v3785, %v3945
      %v3947 = vpop.f32.mrb[0].mxu0
      %3948 = vmatprep.mubr.bf16.mxu0 %v1548
      %3949 = vmatmul.mubr.bf16.gmra.mrb[0].mxu0 %v1547
      %v3950 = vpop.f32.mrb[0].mxu0
      %v3951 = vadd.f32 %v3790, %v3950
      %v3952 = vpop.f32.mrb[0].mxu0
      %v3953 = vpop.f32.mrb[0].mxu0
      %v3954 = vadd.f32 %v3793, %v3953
      %v3955 = vpop.f32.mrb[0].mxu0
      %3956 = vmatprep.mubr.bf16.mxu0 %v1564
      %3957 = vmatmul.mubr.bf16.gmra.mrb[0].mxu0 %v1563
      %v3958 = vpop.f32.mrb[0].mxu0
      %v3959 = vadd.f32 %v3798, %v3958
      %v3960 = vpop.f32.mrb[0].mxu0
      %v3961 = vpop.f32.mrb[0].mxu0
      %v3962 = vadd.f32 %v3801, %v3961
      %v3963 = vpop.f32.mrb[0].mxu0
      %3964 = vmatprep.mubr.bf16.mxu0 %v1580
      %3965 = vmatmul.mubr.bf16.gmra.mrb[0].mxu0 %v1579
      %v3966 = vpop.f32.mrb[0].mxu0
      %v3967 = vadd.f32 %v3806, %v3966
      %v3968 = vpop.f32.mrb[0].mxu0
      %v3969 = vpop.f32.mrb[0].mxu0
      %v3970 = vadd.f32 %v3809, %v3969
      %v3971 = vpop.f32.mrb[0].mxu0
      %3972 = vmatprep.mubr.bf16.mxu0 %v1596
      %3973 = vmatmul.mubr.bf16.gmra.mrb[0].mxu0 %v1595
      %v3974 = vpop.f32.mrb[0].mxu0
      %v3975 = vadd.f32 %v3814, %v3974
      %v3976 = vpop.f32.mrb[0].mxu0
      %v3977 = vpop.f32.mrb[0].mxu0
      %v3978 = vadd.f32 %v3817, %v3977
      %v3979 = vpop.f32.mrb[0].mxu0
      %3980 = vmatprep.mubr.bf16.mxu0 %v1612
      %3981 = vmatmul.mubr.bf16.gmra.mrb[0].mxu0 %v1611
      %v3982 = vpop.f32.mrb[0].mxu0
      %v3983 = vadd.f32 %v3822, %v3982
      %v3984 = vpop.f32.mrb[0].mxu0
      %v3985 = vpop.f32.mrb[0].mxu0
      %v3986 = vadd.f32 %v3825, %v3985
      %v3987 = vpop.f32.mrb[0].mxu0
      %3988 = vmatprep.mubr.bf16.mxu0 %v1628
      %3989 = vmatmul.mubr.bf16.gmra.mrb[0].mxu0 %v1627
      %v3990 = vpop.f32.mrb[0].mxu0
      %v3991 = vadd.f32 %v3830, %v3990
      %v3992 = vpop.f32.mrb[0].mxu0
      %v3993 = vpop.f32.mrb[0].mxu0
      %v3994 = vadd.f32 %v3833, %v3993
      %v3995 = vpop.f32.mrb[0].mxu0
      %3996 = vmatprep.mubr.bf16.mxu0 %v1644
      %3997 = vmatmul.mubr.bf16.gmra.mrb[0].mxu0 %v1643
      %v3998 = vpop.f32.mrb[0].mxu0
      %v3999 = vadd.f32 %v3838, %v3998
      %v4000 = vpop.f32.mrb[0].mxu0
      %v4001 = vpop.f32.mrb[0].mxu0
      %v4002 = vadd.f32 %v3841, %v4001
      %v4003 = vpop.f32.mrb[0].mxu0
      %4004 = vmatprep.mubr.bf16.mxu0 %v1660
      %4005 = vmatmul.mubr.bf16.gmra.mrb[0].mxu0 %v1659
      %v4006 = vpop.f32.mrb[0].mxu0
      %v4007 = vadd.f32 %v3846, %v4006
      %v4008 = vpop.f32.mrb[0].mxu0
      %v4009 = vpop.f32.mrb[0].mxu0
      %v4010 = vadd.f32 %v3849, %v4009
      %v4011 = vpop.f32.mrb[0].mxu0
      %4012 = vmatprep.mubr.bf16.mxu0 %v1676
      %4013 = vmatmul.mubr.bf16.gmra.mrb[0].mxu0 %v1675
      %v4014 = vpop.f32.mrb[0].mxu0
      %v4015 = vadd.f32 %v3854, %v4014
      %v4016 = vpop.f32.mrb[0].mxu0
      %v4017 = vpop.f32.mrb[0].mxu0
      %v4018 = vadd.f32 %v3857, %v4017
      %v4019 = vpop.f32.mrb[0].mxu0
      %4020 = vmatprep.mubr.bf16.mxu0 %v1692
      %4021 = vmatmul.mubr.bf16.gmra.mrb[0].mxu0 %v1691
      %v4022 = vpop.f32.mrb[0].mxu0
      %v4023 = vadd.f32 %v3862, %v4022
      %v4024 = vpop.f32.mrb[0].mxu0
      %v4025 = vpop.f32.mrb[0].mxu0
      %v4026 = vadd.f32 %v3865, %v4025
      %v4027 = vpop.f32.mrb[0].mxu0
      %4028 = vmatprep.mubr.bf16.mxu0 %v1708
      %4029 = vmatmul.mubr.bf16.gmra.mrb[0].mxu0 %v1707
      %v4030 = vpop.f32.mrb[0].mxu0
      %v4031 = vadd.f32 %v3870, %v4030
      %v4032 = vpop.f32.mrb[0].mxu0
      %v4033 = vpop.f32.mrb[0].mxu0
      %v4034 = vadd.f32 %v3873, %v4033
      %v4035 = vpop.f32.mrb[0].mxu0
      %4036 = vmatprep.mubr.bf16.mxu0 %v1724
      %4037 = vmatmul.mubr.bf16.gmra.mrb[0].mxu0 %v1723
      %v4038 = vpop.f32.mrb[0].mxu0
      %v4039 = vadd.f32 %v3878, %v4038
      %v4040 = vpop.f32.mrb[0].mxu0
      %v4041 = vpop.f32.mrb[0].mxu0
      %v4042 = vadd.f32 %v3881, %v4041
      %v4043 = vpop.f32.mrb[0].mxu0
      %4044 = vmatprep.mubr.bf16.mxu0 %v1740
      %4045 = vmatmul.mubr.bf16.gmra.mrb[0].mxu0 %v1739
      %v4046 = vpop.f32.mrb[0].mxu0
      %v4047 = vadd.f32 %v3886, %v4046
      %v4048 = vpop.f32.mrb[0].mxu0
      %v4049 = vpop.f32.mrb[0].mxu0
      %v4050 = vadd.f32 %v3889, %v4049
      %v4051 = vpop.f32.mrb[0].mxu0
      %4052 = vdwg.mxu0
      %v4053 = vld [vmem:[%s2] sm:$0x1]
      %v4055 = vlaneseq
      %v4056 = vshrl.u32 %v4055, 7
      %v4057 = vsub.s32 0, %v4056
      %v4058 = vrot.slane %v4053, %v4057
      %v4060 = vmul.f32 %v3927, %v4058
      %v4061 = vmul.f32 %v3930, %v4058
      %v4062 = vmul.f32 %v3935, %v4058
      %v4063 = vmul.f32 %v3938, %v4058
      %v4064 = vmul.f32 %v3943, %v4058
      %v4065 = vmul.f32 %v3946, %v4058
      %v4066 = vmul.f32 %v3951, %v4058
      %v4067 = vmul.f32 %v3954, %v4058
      %v4068 = vmul.f32 %v3959, %v4058
      %v4069 = vmul.f32 %v3962, %v4058
      %v4070 = vmul.f32 %v3967, %v4058
      %v4071 = vmul.f32 %v3970, %v4058
      %v4072 = vmul.f32 %v3975, %v4058
      %v4073 = vmul.f32 %v3978, %v4058
      %v4074 = vmul.f32 %v3983, %v4058
      %v4075 = vmul.f32 %v3986, %v4058
      %v4076 = vmul.f32 %v3991, %v4058
      %v4077 = vmul.f32 %v3994, %v4058
      %v4078 = vmul.f32 %v3999, %v4058
      %v4079 = vmul.f32 %v4002, %v4058
      %v4080 = vmul.f32 %v4007, %v4058
      %v4081 = vmul.f32 %v4010, %v4058
      %v4082 = vmul.f32 %v4015, %v4058
      %v4083 = vmul.f32 %v4018, %v4058
      %v4084 = vmul.f32 %v4023, %v4058
      %v4085 = vmul.f32 %v4026, %v4058
      %v4086 = vmul.f32 %v4031, %v4058
      %v4087 = vmul.f32 %v4034, %v4058
      %v4088 = vmul.f32 %v4039, %v4058
      %v4089 = vmul.f32 %v4042, %v4058
      %v4090 = vmul.f32 %v4047, %v4058
      %v4091 = vmul.f32 %v4050, %v4058
      %v4092 = vld [vmem:[%s3] sm:$0x1]
      %v4094 = vlaneseq
      %v4095 = vshrl.u32 %v4094, 7
      %v4096 = vsub.s32 0, %v4095
      %v4097 = vrot.slane %v4092, %v4096
      %v4099 = vadd.f32 %v4060, %v4097
      %v4100 = vadd.f32 %v4061, %v4097
      %v4101 = vadd.f32 %v4062, %v4097
      %v4102 = vadd.f32 %v4063, %v4097
      %v4103 = vadd.f32 %v4064, %v4097
      %v4104 = vadd.f32 %v4065, %v4097
      %v4105 = vadd.f32 %v4066, %v4097
      %v4106 = vadd.f32 %v4067, %v4097
      %v4107 = vadd.f32 %v4068, %v4097
      %v4108 = vadd.f32 %v4069, %v4097
      %v4109 = vadd.f32 %v4070, %v4097
      %v4110 = vadd.f32 %v4071, %v4097
      %v4111 = vadd.f32 %v4072, %v4097
      %v4112 = vadd.f32 %v4073, %v4097
      %v4113 = vadd.f32 %v4074, %v4097
      %v4114 = vadd.f32 %v4075, %v4097
      %v4115 = vadd.f32 %v4076, %v4097
      %v4116 = vadd.f32 %v4077, %v4097
      %v4117 = vadd.f32 %v4078, %v4097
      %v4118 = vadd.f32 %v4079, %v4097
      %v4119 = vadd.f32 %v4080, %v4097
      %v4120 = vadd.f32 %v4081, %v4097
      %v4121 = vadd.f32 %v4082, %v4097
      %v4122 = vadd.f32 %v4083, %v4097
      %v4123 = vadd.f32 %v4084, %v4097
      %v4124 = vadd.f32 %v4085, %v4097
      %v4125 = vadd.f32 %v4086, %v4097
      %v4126 = vadd.f32 %v4087, %v4097
      %v4127 = vadd.f32 %v4088, %v4097
      %v4128 = vadd.f32 %v4089, %v4097
      %v4129 = vadd.f32 %v4090, %v4097
      %v4130 = vadd.f32 %v4091, %v4097
      %v4131 = vtanh.pop %v4099
      %v4132 = vtanh.pop %v4100
      %v4133 = vtanh.pop %v4101
      %v4134 = vtanh.pop %v4102
      %v4135 = vtanh.pop %v4103
      %v4136 = vtanh.pop %v4104
      %v4137 = vtanh.pop %v4105
      %v4138 = vtanh.pop %v4106
      %v4139 = vtanh.pop %v4107
      %v4140 = vtanh.pop %v4108
      %v4141 = vtanh.pop %v4109
      %v4142 = vtanh.pop %v4110
      %v4143 = vtanh.pop %v4111
      %v4144 = vtanh.pop %v4112
      %v4145 = vtanh.pop %v4113
      %v4146 = vtanh.pop %v4114
      %v4147 = vtanh.pop %v4115
      %v4148 = vtanh.pop %v4116
      %v4149 = vtanh.pop %v4117
      %v4150 = vtanh.pop %v4118
      %v4151 = vtanh.pop %v4119
      %v4152 = vtanh.pop %v4120
      %v4153 = vtanh.pop %v4121
      %v4154 = vtanh.pop %v4122
      %v4155 = vtanh.pop %v4123
      %v4156 = vtanh.pop %v4124
      %v4157 = vtanh.pop %v4125
      %v4158 = vtanh.pop %v4126
      %v4159 = vtanh.pop %v4127
      %v4160 = vtanh.pop %v4128
      %v4161 = vtanh.pop %v4129
      %v4162 = vtanh.pop %v4130
      %vm4163 = vcmask 23552
      %4164 = vst.msk [vmem:[%s202] sm:$0xff] %vm4163, %v4131
      %4165 = vst.msk [vmem:[%s202 + $0x8] sm:$0xff] %vm4163, %v4132
      %4166 = vst.msk [vmem:[%s202 + $0x10] sm:$0xff] %vm4163, %v4133
      %4167 = vst.msk [vmem:[%s202 + $0x18] sm:$0xff] %vm4163, %v4134
      %4168 = vst.msk [vmem:[%s202 + $0x20] sm:$0xff] %vm4163, %v4135
      %4169 = vst.msk [vmem:[%s202 + $0x28] sm:$0xff] %vm4163, %v4136
      %4170 = vst.msk [vmem:[%s202 + $0x30] sm:$0xff] %vm4163, %v4137
      %4171 = vst.msk [vmem:[%s202 + $0x38] sm:$0xff] %vm4163, %v4138
      %4172 = vst.msk [vmem:[%s202 + $0x40] sm:$0xff] %vm4163, %v4139
      %4173 = vst.msk [vmem:[%s202 + $0x48] sm:$0xff] %vm4163, %v4140
      %4174 = vst.msk [vmem:[%s202 + $0x50] sm:$0xff] %vm4163, %v4141
      %4175 = vst.msk [vmem:[%s202 + $0x58] sm:$0xff] %vm4163, %v4142
      %4176 = vst.msk [vmem:[%s202 + $0x60] sm:$0xff] %vm4163, %v4143
      %4177 = vst.msk [vmem:[%s202 + $0x68] sm:$0xff] %vm4163, %v4144
      %4178 = vst.msk [vmem:[%s202 + $0x70] sm:$0xff] %vm4163, %v4145
      %4179 = vst.msk [vmem:[%s202 + $0x78] sm:$0xff] %vm4163, %v4146
      %4180 = vst.msk [vmem:[%s202 + $0x80] sm:$0xff] %vm4163, %v4147
      %4181 = vst.msk [vmem:[%s202 + $0x88] sm:$0xff] %vm4163, %v4148
      %4182 = vst.msk [vmem:[%s202 + $0x90] sm:$0xff] %vm4163, %v4149
      %4183 = vst.msk [vmem:[%s202 + $0x98] sm:$0xff] %vm4163, %v4150
      %4184 = vst.msk [vmem:[%s202 + $0xa0] sm:$0xff] %vm4163, %v4151
      %4185 = vst.msk [vmem:[%s202 + $0xa8] sm:$0xff] %vm4163, %v4152
      %4186 = vst.msk [vmem:[%s202 + $0xb0] sm:$0xff] %vm4163, %v4153
      %4187 = vst.msk [vmem:[%s202 + $0xb8] sm:$0xff] %vm4163, %v4154
      %4188 = vst.msk [vmem:[%s202 + $0xc0] sm:$0xff] %vm4163, %v4155
      %4189 = vst.msk [vmem:[%s202 + $0xc8] sm:$0xff] %vm4163, %v4156
      %4190 = vst.msk [vmem:[%s202 + $0xd0] sm:$0xff] %vm4163, %v4157
      %4191 = vst.msk [vmem:[%s202 + $0xd8] sm:$0xff] %vm4163, %v4158
      %4192 = vst.msk [vmem:[%s202 + $0xe0] sm:$0xff] %vm4163, %v4159
      %4193 = vst.msk [vmem:[%s202 + $0xe8] sm:$0xff] %vm4163, %v4160
      %4194 = vst.msk [vmem:[%s202 + $0xf0] sm:$0xff] %vm4163, %v4161
      %4195 = vst.msk [vmem:[%s202 + $0xf8] sm:$0xff] %vm4163, %v4162
      %s4196 = smul.u32 32, %s15
      %p4197 = scmp.lt.s32.totalorder %s4196, 63
      %s4198 = scalar_select %p4197, %s4196, 63
      %s4199 = smul.addr %s4198, 8
      %s4200 = scalar_lea.vmem %s4, %s4199
      // Predicated region
      $region37: #{vqvae_forward.31} parent=35 // pred_check
        %p4201 = pneg %p122
      $region38: #{vqvae_forward.31} parent=35 // pred_check_branch
        %4203 = sbr.rel (%p4201) target = $region40
      $region39: #{vqvae_forward.31} parent=35 // pred_region
        %s4204 = smul.u32 32, %s15
      $region40: #{vqvae_forward.31} parent=35 // pred_fallthru
        _
    $region36: #{vqvae_forward.31} parent=5 // pred_fallthru
      _
    %p4205 = scmp.le.s32.totalorder 2, %s10
    // Predicated region
    $region41: #{vqvae_forward.31} parent=5 // pred_check
      %p4206 = pneg %p4205
    $region42: #{vqvae_forward.31} parent=5 // pred_check_branch
      %4208 = sbr.rel (%p4206) target = $region44
    $region43: #{vqvae_forward.31} parent=5 // pred_region
      %s4209 = ssub.s32 %s10, 2
      // Predicated region
      $region45: #{vqvae_forward.31} parent=43 // pred_check
        %p4210 = pneg %p128
      $region46: #{vqvae_forward.31} parent=43 // pred_check_branch
        %4212 = sbr.rel (%p4210) target = $region48
      $region47: #{vqvae_forward.31} parent=43 // pred_region
        %s4213 = smul.u32 32, %s16
        %p4214 = scmp.lt.s32.totalorder %s4213, 63
        %s4215 = scalar_select %p4214, %s4213, 63
        %s4216 = smul.addr %s4215, 8
        %s4217 = scalar_lea.vmem %s4, %s4216
      $region48: #{vqvae_forward.31} parent=43 // pred_fallthru
        _
    $region44: #{vqvae_forward.31} parent=5 // pred_fallthru
      _
  $region6: #{vqvae_forward.31} parent=0 // loop_footer
    %s14 = sadd.s32 1, %s10
  $region7: #{vqvae_forward.31} parent=0 // loop_footer_branch
    %9 = sbr.rel target = $region3
  $region8: #{vqvae_forward.31} parent=0 // loop_exit
    _

</llo_original>
